<compile_context>
chip_gen: v5e
topology: v5e:2x2
jax: 0.10.0
libtpu: 0.0.40
codegen_flags: <defaults>
</compile_context>

<pallas_src>
import jax
import jax.numpy as jnp
from jax.experimental import pallas as pl
from jax.experimental.pallas import tpu as pltpu


def _linear_kernel(x_ref, w_ref, b_ref, o_ref):
    # x_ref: (M, K); w_ref: (K, tn); b_ref: (1, tn); o_ref: (M, tn)
    acc = jnp.dot(x_ref[...], w_ref[...], preferred_element_type=jnp.float32)
    o_ref[...] = (acc + b_ref[...]).astype(o_ref.dtype)


def _default_n_splits():
    """2-way N-split on v7x (2 TensorCores/chip); single step elsewhere."""
    try:
        kind = jax.devices()[0].device_kind.lower()
    except Exception:
        return 1
    return 2 if ("v7" in kind or "7x" in kind) else 1


def linear_pallas(x, weight, bias, *, n_splits=None):
    """x: (B, S, K); weight: (N, K) PyTorch layout; bias: (N,) -> (B, S, N)."""
    B, S, K = x.shape
    N = weight.shape[0]
    M = B * S

    if n_splits is None:
        n_splits = _default_n_splits()
    assert N % n_splits == 0, (N, n_splits)
    tn = N // n_splits
    # Keep the MXU/VPU tiling happy: lane dim multiple of 128, sublane of 8.
    assert tn % 128 == 0 and M % 8 == 0 and K % 128 == 0, (M, K, tn)

    x2d = x.reshape(M, K)
    w_t = jnp.transpose(weight)      # (K, N): MXU-native orientation, done once
    b2d = bias.reshape(1, N)

    grid = (n_splits,)

    flops = 2 * M * K * N
    bytes_accessed = (
        x2d.size * x2d.dtype.itemsize
        + w_t.size * w_t.dtype.itemsize
        + b2d.size * b2d.dtype.itemsize
        + M * N * x.dtype.itemsize
    )

    out = pl.pallas_call(
        _linear_kernel,
        out_shape=jax.ShapeDtypeStruct((M, N), x.dtype),
        grid_spec=pltpu.PrefetchScalarGridSpec(
            num_scalar_prefetch=0,
            grid=grid,
            in_specs=[
                pl.BlockSpec((M, K), lambda j: (0, 0)),   # full x, resident
                pl.BlockSpec((K, tn), lambda j: (0, j)),  # weight column slab
                pl.BlockSpec((1, tn), lambda j: (0, j)),  # bias slab
            ],
            out_specs=pl.BlockSpec((M, tn), lambda j: (0, j)),
        ),
        compiler_params=pltpu.CompilerParams(
            dimension_semantics=("parallel",),
        ),
        cost_estimate=pl.CostEstimate(
            flops=flops, transcendentals=0, bytes_accessed=bytes_accessed
        ),
    )(x2d, w_t, b2d)

    return out.reshape(B, S, N)


if __name__ == "__main__":
    key = jax.random.PRNGKey(0)
    kx, kw, kb = jax.random.split(key, 3)

    B, S, H = 1, 384, 768  # shapes implied by the module (Linear 768 -> 768)
    x = jax.random.normal(kx, (B, S, H), dtype=jnp.float32)

    # Deterministic parameters (nn.Linear shapes: weight (out, in), bias (out,))
    bound = 1.0 / (H ** 0.5)
    weight = jax.random.uniform(kw, (H, H), jnp.float32, -bound, bound)
    bias = jax.random.uniform(kb, (H,), jnp.float32, -bound, bound)

    y = linear_pallas(x, weight, bias)
    y = jax.block_until_ready(y)

    # correctness check against plain JAX reference (x @ W^T + b, PyTorch semantics)
    y_ref = x @ weight.T + bias
    assert y.shape == (B, S, H)
    assert jnp.allclose(y, y_ref, atol=1e-4, rtol=1e-4)

    print("KERNEL_OK")
</pallas_src>

<mosaic_0001>
module attributes {stable_mosaic.version = 11 : i64} {
  func.func @_linear_kernel(%arg0: i32, %arg1: memref<384x768xf32, #tpu.memory_space<vmem>>, %arg2: memref<768x768xf32, #tpu.memory_space<vmem>>, %arg3: memref<1x768xf32, #tpu.memory_space<vmem>>, %arg4: memref<384x768xf32, #tpu.memory_space<vmem>>) attributes {dimension_semantics = [#tpu.dimension_semantics<parallel>], iteration_bounds = array<i64: 1>, scalar_prefetch = 0 : i64, scratch_operands = 0 : i64, tpu.core_type = #tpu.core_type<tc>, window_params = [{pipeline_mode = #tpu.pipeline_mode<synchronous>, transform_indices = @transform_0, window_bounds = array<i64: 384, 768>}, {transform_indices = @transform_1, window_bounds = array<i64: 768, 768>}, {transform_indices = @transform_2, window_bounds = array<i64: 1, 768>}, {transform_indices = @transform_3, window_bounds = array<i64: 384, 768>}]} {
    %c0 = arith.constant 0 : index
    %c0_0 = arith.constant 0 : index
    %0 = vector.load %arg1[%c0, %c0_0] : memref<384x768xf32, #tpu.memory_space<vmem>>, vector<384x768xf32>
    %c0_1 = arith.constant 0 : index
    %c0_2 = arith.constant 0 : index
    %1 = vector.load %arg2[%c0_1, %c0_2] : memref<768x768xf32, #tpu.memory_space<vmem>>, vector<768x768xf32>
    %cst = arith.constant dense<0.000000e+00> : vector<384x768xf32>
    %2 = tpu.matmul %0, %1, %cst {dimension_numbers = #tpu.dot_dimension_numbers<[1], [0], [0], [1], [0, 0, 1, 1], [], []>} : vector<384x768xf32>, vector<768x768xf32>, vector<384x768xf32> -> vector<384x768xf32>
    %c0_3 = arith.constant 0 : index
    %c0_4 = arith.constant 0 : index
    %3 = vector.load %arg3[%c0_3, %c0_4] : memref<1x768xf32, #tpu.memory_space<vmem>>, vector<1x768xf32>
    %4 = vector.broadcast %3 : vector<1x768xf32> to vector<384x768xf32>
    %5 = arith.addf %2, %4 : vector<384x768xf32>
    %c0_5 = arith.constant 0 : index
    %c0_6 = arith.constant 0 : index
    %6 = vector.load %arg4[%c0_5, %c0_6] : memref<384x768xf32, #tpu.memory_space<vmem>>, vector<384x768xf32>
    tpu.vector_store %arg4[%c0_5, %c0_6], %5 {strides = array<i32>} : memref<384x768xf32, #tpu.memory_space<vmem>>, vector<384x768xf32>,
    return
  }
  func.func @transform_0(%arg0: i32) -> (i32, i32) {
    %c0_i32 = arith.constant 0 : i32
    %c0_i32_0 = arith.constant 0 : i32
    %c0_i32_1 = arith.constant 0 : i32
    return %c0_i32, %c0_i32_0 : i32, i32
  }
  func.func @transform_1(%arg0: i32) -> (i32, i32) {
    %c0_i32 = arith.constant 0 : i32
    %c0_i32_0 = arith.constant 0 : i32
    return %c0_i32, %arg0 : i32, i32
  }
  func.func @transform_2(%arg0: i32) -> (i32, i32) {
    %c0_i32 = arith.constant 0 : i32
    %c0_i32_0 = arith.constant 0 : i32
    return %c0_i32, %arg0 : i32, i32
  }
  func.func @transform_3(%arg0: i32) -> (i32, i32) {
    %c0_i32 = arith.constant 0 : i32
    %c0_i32_0 = arith.constant 0 : i32
    return %c0_i32, %arg0 : i32, i32
  }
}

</mosaic_0001>

<llo_original>
// kernel: tpu_custom_call.1
$region0: #{tpu_custom_call.1}
  #allocation0 [shape = 'u32[]', space=smem, size = 0x4, offset = 0x4, fixed_abs, tag = 'smem constant byte address 0x4 - core index']
  #allocation1 [shape = 'u32[72,128]{1,0:T(1,128)}', space=vmem, size = 0x9000, scoped, tag = 'internal scratch']
  %s0 = inlined_call_operand.hbm [shape: f32[384,768], index: 0, kind: input, shape index: {}]
  %s1 = inlined_call_operand.hbm [shape: f32[768,768], index: 1, kind: input, shape index: {}]
  %s2 = inlined_call_operand.hbm [shape: f32[1,768], index: 2, kind: input, shape index: {}]
  %s3 = inlined_call_operand.hbm [shape: f32[384,768], index: 3, kind: output, shape index: {}]
  %s4 = sld [smem:[#allocation0]]
  $region34: #{tpu_custom_call.1} parent=0
    _
  %s6 = ssub.s32 1, %s4
  %s7 = scalar_select 0, %s6, %s4
  $region1: #{tpu_custom_call.1} parent=0
    #allocation2 [shape = 'u8[1179648]{0}', space=vmem, size = 0x120000, scoped, tag = 'input window, operand 0, single buffered']
    #allocation3 [shape = 's32[1]{0}', space=sflag, size = 0x4, scoped, tag = 'scoped memory for tpu_custom_call.1']
    #allocation4 [shape = 's32[1]{0}', space=sflag, size = 0x4, scoped, tag = 'scoped memory for tpu_custom_call.1']
    #allocation5 [shape = 'u8[2359296]{0}', space=vmem, size = 0x240000, scoped, tag = 'input window, operand 1, single buffered']
    #allocation6 [shape = 's32[1]{0}', space=sflag, size = 0x4, scoped, tag = 'scoped memory for tpu_custom_call.1']
    #allocation7 [shape = 'u8[3072]{0}', space=vmem, size = 0xc00, scoped, tag = 'input window, operand 2, single buffered']
    #allocation8 [shape = 'u8[1179648]{0}', space=vmem, size = 0x120000, scoped, tag = 'output window, operand 0, single buffered']
    %8 = vsyncpa [#allocation3], 0
    %9 = vsyncpa [#allocation6], 0
    %10 = vsyncpa [#allocation4], 0
    // Predicated region
    $region2: #{tpu_custom_call.1} parent=1 // pred_check
      _
    $region3: #{tpu_custom_call.1} parent=1 // pred_check_branch
      %12 = sbr.rel (0) target = $region5
    $region4: #{tpu_custom_call.1} parent=1 // pred_region
      %14 = vsyncadd [#allocation3], 0
      %s15 = sshll.u32 %s0, 4
      %s16 = int_to_ptr.hbm [resolvable:$true] %s15
      %s17 = sshll.u32 [#allocation2], 4
      %s18 = int_to_ptr.vmem [resolvable:$true] %s17
      %23 = dma.hbm_to_vmem [thread:$0]  %s16, 36864, %s18, [#allocation3], 768, 768, 48
    $region5: #{tpu_custom_call.1} parent=1 // pred_fallthru
      _
    // Predicated region
    $region6: #{tpu_custom_call.1} parent=1 // pred_check
      _
    $region7: #{tpu_custom_call.1} parent=1 // pred_check_branch
      %25 = sbr.rel (0) target = $region9
    $region8: #{tpu_custom_call.1} parent=1 // pred_region
      %27 = vsyncadd [#allocation6], 0
      %s28 = sshll.u32 %s1, 4
      %s29 = int_to_ptr.hbm [resolvable:$true] %s28
      %s30 = sshll.u32 [#allocation5], 4
      %s31 = int_to_ptr.vmem [resolvable:$true] %s30
      %36 = dma.hbm_to_vmem [thread:$0]  %s29, 73728, %s31, [#allocation6], 768, 768, 48
    $region9: #{tpu_custom_call.1} parent=1 // pred_fallthru
      _
    // Predicated region
    $region10: #{tpu_custom_call.1} parent=1 // pred_check
      _
    $region11: #{tpu_custom_call.1} parent=1 // pred_check_branch
      %38 = sbr.rel (0) target = $region13
    $region12: #{tpu_custom_call.1} parent=1 // pred_region
      %40 = vsyncadd [#allocation6], 0
      %s42 = sshll.u32 %s2, 4
      %s43 = int_to_ptr.hbm [resolvable:$true] %s42
      %s44 = sshll.u32 [#allocation7], 4
      %s45 = int_to_ptr.vmem [resolvable:$true] %s44
      %47 = dma.hbm_to_vmem [thread:$0]  %s43, 96, %s45, [#allocation6]
    $region13: #{tpu_custom_call.1} parent=1 // pred_fallthru
      _
    // Predicated region
    $region14: #{tpu_custom_call.1} parent=1 // pred_check
      _
    $region15: #{tpu_custom_call.1} parent=1 // pred_check_branch
      %49 = sbr.rel (0) target = $region17
    $region16: #{tpu_custom_call.1} parent=1 // pred_region
      %51 = dma.done [#allocation3], 36864
    $region17: #{tpu_custom_call.1} parent=1 // pred_fallthru
      _
    // Predicated region
    $region18: #{tpu_custom_call.1} parent=1 // pred_check
      _
    $region19: #{tpu_custom_call.1} parent=1 // pred_check_branch
      %53 = sbr.rel (0) target = $region21
    $region20: #{tpu_custom_call.1} parent=1 // pred_region
      %55 = dma.done [#allocation6], 73728
    $region21: #{tpu_custom_call.1} parent=1 // pred_fallthru
      _
    // Predicated region
    $region22: #{tpu_custom_call.1} parent=1 // pred_check
      _
    $region23: #{tpu_custom_call.1} parent=1 // pred_check_branch
      %57 = sbr.rel (0) target = $region25
    $region24: #{tpu_custom_call.1} parent=1 // pred_region
      %59 = dma.done [#allocation6], 96
    $region25: #{tpu_custom_call.1} parent=1 // pred_fallthru
      _
    %v60 = vld [vmem:[#allocation2] sm:$0xff]
    %v61 = vld [vmem:[#allocation2 + $0x8] sm:$0xff]
    %v62 = vld [vmem:[#allocation2 + $0x10] sm:$0xff]
    %v63 = vld [vmem:[#allocation2 + $0x18] sm:$0xff]
    %v64 = vld [vmem:[#allocation2 + $0x20] sm:$0xff]
    %v65 = vld [vmem:[#allocation2 + $0x28] sm:$0xff]
    %v66 = vld [vmem:[#allocation2 + $0x30] sm:$0xff]
    %v67 = vld [vmem:[#allocation2 + $0x38] sm:$0xff]
    %v68 = vld [vmem:[#allocation2 + $0x40] sm:$0xff]
    %v69 = vld [vmem:[#allocation2 + $0x48] sm:$0xff]
    %v70 = vld [vmem:[#allocation2 + $0x50] sm:$0xff]
    %v71 = vld [vmem:[#allocation2 + $0x58] sm:$0xff]
    %v72 = vld [vmem:[#allocation2 + $0x60] sm:$0xff]
    %v73 = vld [vmem:[#allocation2 + $0x68] sm:$0xff]
    %v74 = vld [vmem:[#allocation2 + $0x70] sm:$0xff]
    %v75 = vld [vmem:[#allocation2 + $0x78] sm:$0xff]
    %v76 = vld [vmem:[#allocation2 + $0x80] sm:$0xff]
    %v77 = vld [vmem:[#allocation2 + $0x88] sm:$0xff]
    %v78 = vld [vmem:[#allocation2 + $0x90] sm:$0xff]
    %v79 = vld [vmem:[#allocation2 + $0x98] sm:$0xff]
    %v80 = vld [vmem:[#allocation2 + $0xa0] sm:$0xff]
    %v81 = vld [vmem:[#allocation2 + $0xa8] sm:$0xff]
    %v82 = vld [vmem:[#allocation2 + $0xb0] sm:$0xff]
    %v83 = vld [vmem:[#allocation2 + $0xb8] sm:$0xff]
    %v84 = vld [vmem:[#allocation2 + $0xc0] sm:$0xff]
    %v85 = vld [vmem:[#allocation2 + $0xc8] sm:$0xff]
    %v86 = vld [vmem:[#allocation2 + $0xd0] sm:$0xff]
    %v87 = vld [vmem:[#allocation2 + $0xd8] sm:$0xff]
    %v88 = vld [vmem:[#allocation2 + $0xe0] sm:$0xff]
    %v89 = vld [vmem:[#allocation2 + $0xe8] sm:$0xff]
    %v90 = vld [vmem:[#allocation2 + $0xf0] sm:$0xff]
    %v91 = vld [vmem:[#allocation2 + $0xf8] sm:$0xff]
    %v92 = vld [vmem:[#allocation2 + $0x100] sm:$0xff]
    %v93 = vld [vmem:[#allocation2 + $0x108] sm:$0xff]
    %v94 = vld [vmem:[#allocation2 + $0x110] sm:$0xff]
    %v95 = vld [vmem:[#allocation2 + $0x118] sm:$0xff]
    %v96 = vld [vmem:[#allocation2 + $0x120] sm:$0xff]
    %v97 = vld [vmem:[#allocation2 + $0x128] sm:$0xff]
    %v98 = vld [vmem:[#allocation2 + $0x130] sm:$0xff]
    %v99 = vld [vmem:[#allocation2 + $0x138] sm:$0xff]
    %v100 = vld [vmem:[#allocation2 + $0x140] sm:$0xff]
    %v101 = vld [vmem:[#allocation2 + $0x148] sm:$0xff]
    %v102 = vld [vmem:[#allocation2 + $0x150] sm:$0xff]
    %v103 = vld [vmem:[#allocation2 + $0x158] sm:$0xff]
    %v104 = vld [vmem:[#allocation2 + $0x160] sm:$0xff]
    %v105 = vld [vmem:[#allocation2 + $0x168] sm:$0xff]
    %v106 = vld [vmem:[#allocation2 + $0x170] sm:$0xff]
    %v107 = vld [vmem:[#allocation2 + $0x178] sm:$0xff]
    %v108 = vld [vmem:[#allocation2 + $0x180] sm:$0xff]
    %v109 = vld [vmem:[#allocation2 + $0x188] sm:$0xff]
    %v110 = vld [vmem:[#allocation2 + $0x190] sm:$0xff]
    %v111 = vld [vmem:[#allocation2 + $0x198] sm:$0xff]
    %v112 = vld [vmem:[#allocation2 + $0x1a0] sm:$0xff]
    %v113 = vld [vmem:[#allocation2 + $0x1a8] sm:$0xff]
    %v114 = vld [vmem:[#allocation2 + $0x1b0] sm:$0xff]
    %v115 = vld [vmem:[#allocation2 + $0x1b8] sm:$0xff]
    %v116 = vld [vmem:[#allocation2 + $0x1c0] sm:$0xff]
    %v117 = vld [vmem:[#allocation2 + $0x1c8] sm:$0xff]
    %v118 = vld [vmem:[#allocation2 + $0x1d0] sm:$0xff]
    %v119 = vld [vmem:[#allocation2 + $0x1d8] sm:$0xff]
    %v120 = vld [vmem:[#allocation2 + $0x1e0] sm:$0xff]
    %v121 = vld [vmem:[#allocation2 + $0x1e8] sm:$0xff]
    %v122 = vld [vmem:[#allocation2 + $0x1f0] sm:$0xff]
    %v123 = vld [vmem:[#allocation2 + $0x1f8] sm:$0xff]
    %v124 = vld [vmem:[#allocation2 + $0x200] sm:$0xff]
    %v125 = vld [vmem:[#allocation2 + $0x208] sm:$0xff]
    %v126 = vld [vmem:[#allocation2 + $0x210] sm:$0xff]
    %v127 = vld [vmem:[#allocation2 + $0x218] sm:$0xff]
    %v128 = vld [vmem:[#allocation2 + $0x220] sm:$0xff]
    %v129 = vld [vmem:[#allocation2 + $0x228] sm:$0xff]
    %v130 = vld [vmem:[#allocation2 + $0x230] sm:$0xff]
    %v131 = vld [vmem:[#allocation2 + $0x238] sm:$0xff]
    %v132 = vld [vmem:[#allocation2 + $0x240] sm:$0xff]
    %v133 = vld [vmem:[#allocation2 + $0x248] sm:$0xff]
    %v134 = vld [vmem:[#allocation2 + $0x250] sm:$0xff]
    %v135 = vld [vmem:[#allocation2 + $0x258] sm:$0xff]
    %v136 = vld [vmem:[#allocation2 + $0x260] sm:$0xff]
    %v137 = vld [vmem:[#allocation2 + $0x268] sm:$0xff]
    %v138 = vld [vmem:[#allocation2 + $0x270] sm:$0xff]
    %v139 = vld [vmem:[#allocation2 + $0x278] sm:$0xff]
    %v140 = vld [vmem:[#allocation2 + $0x280] sm:$0xff]
    %v141 = vld [vmem:[#allocation2 + $0x288] sm:$0xff]
    %v142 = vld [vmem:[#allocation2 + $0x290] sm:$0xff]
    %v143 = vld [vmem:[#allocation2 + $0x298] sm:$0xff]
    %v144 = vld [vmem:[#allocation2 + $0x2a0] sm:$0xff]
    %v145 = vld [vmem:[#allocation2 + $0x2a8] sm:$0xff]
    %v146 = vld [vmem:[#allocation2 + $0x2b0] sm:$0xff]
    %v147 = vld [vmem:[#allocation2 + $0x2b8] sm:$0xff]
    %v148 = vld [vmem:[#allocation2 + $0x2c0] sm:$0xff]
    %v149 = vld [vmem:[#allocation2 + $0x2c8] sm:$0xff]
    %v150 = vld [vmem:[#allocation2 + $0x2d0] sm:$0xff]
    %v151 = vld [vmem:[#allocation2 + $0x2d8] sm:$0xff]
    %v152 = vld [vmem:[#allocation2 + $0x2e0] sm:$0xff]
    %v153 = vld [vmem:[#allocation2 + $0x2e8] sm:$0xff]
    %v154 = vld [vmem:[#allocation2 + $0x2f0] sm:$0xff]
    %v155 = vld [vmem:[#allocation2 + $0x2f8] sm:$0xff]
    %v156 = vld [vmem:[#allocation2 + $0x300] sm:$0xff]
    %v157 = vld [vmem:[#allocation2 + $0x308] sm:$0xff]
    %v158 = vld [vmem:[#allocation2 + $0x310] sm:$0xff]
    %v159 = vld [vmem:[#allocation2 + $0x318] sm:$0xff]
    %v160 = vld [vmem:[#allocation2 + $0x320] sm:$0xff]
    %v161 = vld [vmem:[#allocation2 + $0x328] sm:$0xff]
    %v162 = vld [vmem:[#allocation2 + $0x330] sm:$0xff]
    %v163 = vld [vmem:[#allocation2 + $0x338] sm:$0xff]
    %v164 = vld [vmem:[#allocation2 + $0x340] sm:$0xff]
    %v165 = vld [vmem:[#allocation2 + $0x348] sm:$0xff]
    %v166 = vld [vmem:[#allocation2 + $0x350] sm:$0xff]
    %v167 = vld [vmem:[#allocation2 + $0x358] sm:$0xff]
    %v168 = vld [vmem:[#allocation2 + $0x360] sm:$0xff]
    %v169 = vld [vmem:[#allocation2 + $0x368] sm:$0xff]
    %v170 = vld [vmem:[#allocation2 + $0x370] sm:$0xff]
    %v171 = vld [vmem:[#allocation2 + $0x378] sm:$0xff]
    %v172 = vld [vmem:[#allocation2 + $0x380] sm:$0xff]
    %v173 = vld [vmem:[#allocation2 + $0x388] sm:$0xff]
    %v174 = vld [vmem:[#allocation2 + $0x390] sm:$0xff]
    %v175 = vld [vmem:[#allocation2 + $0x398] sm:$0xff]
    %v176 = vld [vmem:[#allocation2 + $0x3a0] sm:$0xff]
    %v177 = vld [vmem:[#allocation2 + $0x3a8] sm:$0xff]
    %v178 = vld [vmem:[#allocation2 + $0x3b0] sm:$0xff]
    %v179 = vld [vmem:[#allocation2 + $0x3b8] sm:$0xff]
    %v180 = vld [vmem:[#allocation2 + $0x3c0] sm:$0xff]
    %v181 = vld [vmem:[#allocation2 + $0x3c8] sm:$0xff]
    %v182 = vld [vmem:[#allocation2 + $0x3d0] sm:$0xff]
    %v183 = vld [vmem:[#allocation2 + $0x3d8] sm:$0xff]
    %v184 = vld [vmem:[#allocation2 + $0x3e0] sm:$0xff]
    %v185 = vld [vmem:[#allocation2 + $0x3e8] sm:$0xff]
    %v186 = vld [vmem:[#allocation2 + $0x3f0] sm:$0xff]
    %v187 = vld [vmem:[#allocation2 + $0x3f8] sm:$0xff]
    %v188 = vld [vmem:[#allocation2 + $0x400] sm:$0xff]
    %v189 = vld [vmem:[#allocation2 + $0x408] sm:$0xff]
    %v190 = vld [vmem:[#allocation2 + $0x410] sm:$0xff]
    %v191 = vld [vmem:[#allocation2 + $0x418] sm:$0xff]
    %v192 = vld [vmem:[#allocation2 + $0x420] sm:$0xff]
    %v193 = vld [vmem:[#allocation2 + $0x428] sm:$0xff]
    %v194 = vld [vmem:[#allocation2 + $0x430] sm:$0xff]
    %v195 = vld [vmem:[#allocation2 + $0x438] sm:$0xff]
    %v196 = vld [vmem:[#allocation2 + $0x440] sm:$0xff]
    %v197 = vld [vmem:[#allocation2 + $0x448] sm:$0xff]
    %v198 = vld [vmem:[#allocation2 + $0x450] sm:$0xff]
    %v199 = vld [vmem:[#allocation2 + $0x458] sm:$0xff]
    %v200 = vld [vmem:[#allocation2 + $0x460] sm:$0xff]
    %v201 = vld [vmem:[#allocation2 + $0x468] sm:$0xff]
    %v202 = vld [vmem:[#allocation2 + $0x470] sm:$0xff]
    %v203 = vld [vmem:[#allocation2 + $0x478] sm:$0xff]
    %v204 = vld [vmem:[#allocation2 + $0x480] sm:$0xff]
    %v205 = vld [vmem:[#allocation2 + $0x488] sm:$0xff]
    %v206 = vld [vmem:[#allocation2 + $0x490] sm:$0xff]
    %v207 = vld [vmem:[#allocation2 + $0x498] sm:$0xff]
    %v208 = vld [vmem:[#allocation2 + $0x4a0] sm:$0xff]
    %v209 = vld [vmem:[#allocation2 + $0x4a8] sm:$0xff]
    %v210 = vld [vmem:[#allocation2 + $0x4b0] sm:$0xff]
    %v211 = vld [vmem:[#allocation2 + $0x4b8] sm:$0xff]
    %v212 = vld [vmem:[#allocation2 + $0x4c0] sm:$0xff]
    %v213 = vld [vmem:[#allocation2 + $0x4c8] sm:$0xff]
    %v214 = vld [vmem:[#allocation2 + $0x4d0] sm:$0xff]
    %v215 = vld [vmem:[#allocation2 + $0x4d8] sm:$0xff]
    %v216 = vld [vmem:[#allocation2 + $0x4e0] sm:$0xff]
    %v217 = vld [vmem:[#allocation2 + $0x4e8] sm:$0xff]
    %v218 = vld [vmem:[#allocation2 + $0x4f0] sm:$0xff]
    %v219 = vld [vmem:[#allocation2 + $0x4f8] sm:$0xff]
    %v220 = vld [vmem:[#allocation2 + $0x500] sm:$0xff]
    %v221 = vld [vmem:[#allocation2 + $0x508] sm:$0xff]
    %v222 = vld [vmem:[#allocation2 + $0x510] sm:$0xff]
    %v223 = vld [vmem:[#allocation2 + $0x518] sm:$0xff]
    %v224 = vld [vmem:[#allocation2 + $0x520] sm:$0xff]
    %v225 = vld [vmem:[#allocation2 + $0x528] sm:$0xff]
    %v226 = vld [vmem:[#allocation2 + $0x530] sm:$0xff]
    %v227 = vld [vmem:[#allocation2 + $0x538] sm:$0xff]
    %v228 = vld [vmem:[#allocation2 + $0x540] sm:$0xff]
    %v229 = vld [vmem:[#allocation2 + $0x548] sm:$0xff]
    %v230 = vld [vmem:[#allocation2 + $0x550] sm:$0xff]
    %v231 = vld [vmem:[#allocation2 + $0x558] sm:$0xff]
    %v232 = vld [vmem:[#allocation2 + $0x560] sm:$0xff]
    %v233 = vld [vmem:[#allocation2 + $0x568] sm:$0xff]
    %v234 = vld [vmem:[#allocation2 + $0x570] sm:$0xff]
    %v235 = vld [vmem:[#allocation2 + $0x578] sm:$0xff]
    %v236 = vld [vmem:[#allocation2 + $0x580] sm:$0xff]
    %v237 = vld [vmem:[#allocation2 + $0x588] sm:$0xff]
    %v238 = vld [vmem:[#allocation2 + $0x590] sm:$0xff]
    %v239 = vld [vmem:[#allocation2 + $0x598] sm:$0xff]
    %v240 = vld [vmem:[#allocation2 + $0x5a0] sm:$0xff]
    %v241 = vld [vmem:[#allocation2 + $0x5a8] sm:$0xff]
    %v242 = vld [vmem:[#allocation2 + $0x5b0] sm:$0xff]
    %v243 = vld [vmem:[#allocation2 + $0x5b8] sm:$0xff]
    %v244 = vld [vmem:[#allocation2 + $0x5c0] sm:$0xff]
    %v245 = vld [vmem:[#allocation2 + $0x5c8] sm:$0xff]
    %v246 = vld [vmem:[#allocation2 + $0x5d0] sm:$0xff]
    %v247 = vld [vmem:[#allocation2 + $0x5d8] sm:$0xff]
    %v248 = vld [vmem:[#allocation2 + $0x5e0] sm:$0xff]
    %v249 = vld [vmem:[#allocation2 + $0x5e8] sm:$0xff]
    %v250 = vld [vmem:[#allocation2 + $0x5f0] sm:$0xff]
    %v251 = vld [vmem:[#allocation2 + $0x5f8] sm:$0xff]
    %v252 = vld [vmem:[#allocation2 + $0x600] sm:$0xff]
    %v253 = vld [vmem:[#allocation2 + $0x608] sm:$0xff]
    %v254 = vld [vmem:[#allocation2 + $0x610] sm:$0xff]
    %v255 = vld [vmem:[#allocation2 + $0x618] sm:$0xff]
    %v256 = vld [vmem:[#allocation2 + $0x620] sm:$0xff]
    %v257 = vld [vmem:[#allocation2 + $0x628] sm:$0xff]
    %v258 = vld [vmem:[#allocation2 + $0x630] sm:$0xff]
    %v259 = vld [vmem:[#allocation2 + $0x638] sm:$0xff]
    %v260 = vld [vmem:[#allocation2 + $0x640] sm:$0xff]
    %v261 = vld [vmem:[#allocation2 + $0x648] sm:$0xff]
    %v262 = vld [vmem:[#allocation2 + $0x650] sm:$0xff]
    %v263 = vld [vmem:[#allocation2 + $0x658] sm:$0xff]
    %v264 = vld [vmem:[#allocation2 + $0x660] sm:$0xff]
    %v265 = vld [vmem:[#allocation2 + $0x668] sm:$0xff]
    %v266 = vld [vmem:[#allocation2 + $0x670] sm:$0xff]
    %v267 = vld [vmem:[#allocation2 + $0x678] sm:$0xff]
    %v268 = vld [vmem:[#allocation2 + $0x680] sm:$0xff]
    %v269 = vld [vmem:[#allocation2 + $0x688] sm:$0xff]
    %v270 = vld [vmem:[#allocation2 + $0x690] sm:$0xff]
    %v271 = vld [vmem:[#allocation2 + $0x698] sm:$0xff]
    %v272 = vld [vmem:[#allocation2 + $0x6a0] sm:$0xff]
    %v273 = vld [vmem:[#allocation2 + $0x6a8] sm:$0xff]
    %v274 = vld [vmem:[#allocation2 + $0x6b0] sm:$0xff]
    %v275 = vld [vmem:[#allocation2 + $0x6b8] sm:$0xff]
    %v276 = vld [vmem:[#allocation2 + $0x6c0] sm:$0xff]
    %v277 = vld [vmem:[#allocation2 + $0x6c8] sm:$0xff]
    %v278 = vld [vmem:[#allocation2 + $0x6d0] sm:$0xff]
    %v279 = vld [vmem:[#allocation2 + $0x6d8] sm:$0xff]
    %v280 = vld [vmem:[#allocation2 + $0x6e0] sm:$0xff]
    %v281 = vld [vmem:[#allocation2 + $0x6e8] sm:$0xff]
    %v282 = vld [vmem:[#allocation2 + $0x6f0] sm:$0xff]
    %v283 = vld [vmem:[#allocation2 + $0x6f8] sm:$0xff]
    %v284 = vld [vmem:[#allocation2 + $0x700] sm:$0xff]
    %v285 = vld [vmem:[#allocation2 + $0x708] sm:$0xff]
    %v286 = vld [vmem:[#allocation2 + $0x710] sm:$0xff]
    %v287 = vld [vmem:[#allocation2 + $0x718] sm:$0xff]
    %v288 = vld [vmem:[#allocation2 + $0x720] sm:$0xff]
    %v289 = vld [vmem:[#allocation2 + $0x728] sm:$0xff]
    %v290 = vld [vmem:[#allocation2 + $0x730] sm:$0xff]
    %v291 = vld [vmem:[#allocation2 + $0x738] sm:$0xff]
    %v292 = vld [vmem:[#allocation2 + $0x740] sm:$0xff]
    %v293 = vld [vmem:[#allocation2 + $0x748] sm:$0xff]
    %v294 = vld [vmem:[#allocation2 + $0x750] sm:$0xff]
    %v295 = vld [vmem:[#allocation2 + $0x758] sm:$0xff]
    %v296 = vld [vmem:[#allocation2 + $0x760] sm:$0xff]
    %v297 = vld [vmem:[#allocation2 + $0x768] sm:$0xff]
    %v298 = vld [vmem:[#allocation2 + $0x770] sm:$0xff]
    %v299 = vld [vmem:[#allocation2 + $0x778] sm:$0xff]
    %v300 = vld [vmem:[#allocation2 + $0x780] sm:$0xff]
    %v301 = vld [vmem:[#allocation2 + $0x788] sm:$0xff]
    %v302 = vld [vmem:[#allocation2 + $0x790] sm:$0xff]
    %v303 = vld [vmem:[#allocation2 + $0x798] sm:$0xff]
    %v304 = vld [vmem:[#allocation2 + $0x7a0] sm:$0xff]
    %v305 = vld [vmem:[#allocation2 + $0x7a8] sm:$0xff]
    %v306 = vld [vmem:[#allocation2 + $0x7b0] sm:$0xff]
    %v307 = vld [vmem:[#allocation2 + $0x7b8] sm:$0xff]
    %v308 = vld [vmem:[#allocation2 + $0x7c0] sm:$0xff]
    %v309 = vld [vmem:[#allocation2 + $0x7c8] sm:$0xff]
    %v310 = vld [vmem:[#allocation2 + $0x7d0] sm:$0xff]
    %v311 = vld [vmem:[#allocation2 + $0x7d8] sm:$0xff]
    %v312 = vld [vmem:[#allocation2 + $0x7e0] sm:$0xff]
    %v313 = vld [vmem:[#allocation2 + $0x7e8] sm:$0xff]
    %v314 = vld [vmem:[#allocation2 + $0x7f0] sm:$0xff]
    %v315 = vld [vmem:[#allocation2 + $0x7f8] sm:$0xff]
    %v316 = vld [vmem:[#allocation2 + $0x800] sm:$0xff]
    %v317 = vld [vmem:[#allocation2 + $0x808] sm:$0xff]
    %v318 = vld [vmem:[#allocation2 + $0x810] sm:$0xff]
    %v319 = vld [vmem:[#allocation2 + $0x818] sm:$0xff]
    %v320 = vld [vmem:[#allocation2 + $0x820] sm:$0xff]
    %v321 = vld [vmem:[#allocation2 + $0x828] sm:$0xff]
    %v322 = vld [vmem:[#allocation2 + $0x830] sm:$0xff]
    %v323 = vld [vmem:[#allocation2 + $0x838] sm:$0xff]
    %v324 = vld [vmem:[#allocation2 + $0x840] sm:$0xff]
    %v325 = vld [vmem:[#allocation2 + $0x848] sm:$0xff]
    %v326 = vld [vmem:[#allocation2 + $0x850] sm:$0xff]
    %v327 = vld [vmem:[#allocation2 + $0x858] sm:$0xff]
    %v328 = vld [vmem:[#allocation2 + $0x860] sm:$0xff]
    %v329 = vld [vmem:[#allocation2 + $0x868] sm:$0xff]
    %v330 = vld [vmem:[#allocation2 + $0x870] sm:$0xff]
    %v331 = vld [vmem:[#allocation2 + $0x878] sm:$0xff]
    %v332 = vld [vmem:[#allocation2 + $0x880] sm:$0xff]
    %v333 = vld [vmem:[#allocation2 + $0x888] sm:$0xff]
    %v334 = vld [vmem:[#allocation2 + $0x890] sm:$0xff]
    %v335 = vld [vmem:[#allocation2 + $0x898] sm:$0xff]
    %v336 = vld [vmem:[#allocation2 + $0x8a0] sm:$0xff]
    %v337 = vld [vmem:[#allocation2 + $0x8a8] sm:$0xff]
    %v338 = vld [vmem:[#allocation2 + $0x8b0] sm:$0xff]
    %v339 = vld [vmem:[#allocation2 + $0x8b8] sm:$0xff]
    %v340 = vld [vmem:[#allocation2 + $0x8c0] sm:$0xff]
    %v341 = vld [vmem:[#allocation2 + $0x8c8] sm:$0xff]
    %v342 = vld [vmem:[#allocation2 + $0x8d0] sm:$0xff]
    %v343 = vld [vmem:[#allocation2 + $0x8d8] sm:$0xff]
    %v344 = vld [vmem:[#allocation2 + $0x8e0] sm:$0xff]
    %v345 = vld [vmem:[#allocation2 + $0x8e8] sm:$0xff]
    %v346 = vld [vmem:[#allocation2 + $0x8f0] sm:$0xff]
    %v347 = vld [vmem:[#allocation2 + $0x8f8] sm:$0xff]
    %v348 = vld [vmem:[#allocation5] sm:$0xff]
    %v349 = vld [vmem:[#allocation5 + $0x8] sm:$0xff]
    %v350 = vld [vmem:[#allocation5 + $0x10] sm:$0xff]
    %v351 = vld [vmem:[#allocation5 + $0x18] sm:$0xff]
    %v352 = vld [vmem:[#allocation5 + $0x20] sm:$0xff]
    %v353 = vld [vmem:[#allocation5 + $0x28] sm:$0xff]
    %v354 = vld [vmem:[#allocation5 + $0x30] sm:$0xff]
    %v355 = vld [vmem:[#allocation5 + $0x38] sm:$0xff]
    %v356 = vld [vmem:[#allocation5 + $0x40] sm:$0xff]
    %v357 = vld [vmem:[#allocation5 + $0x48] sm:$0xff]
    %v358 = vld [vmem:[#allocation5 + $0x50] sm:$0xff]
    %v359 = vld [vmem:[#allocation5 + $0x58] sm:$0xff]
    %v360 = vld [vmem:[#allocation5 + $0x60] sm:$0xff]
    %v361 = vld [vmem:[#allocation5 + $0x68] sm:$0xff]
    %v362 = vld [vmem:[#allocation5 + $0x70] sm:$0xff]
    %v363 = vld [vmem:[#allocation5 + $0x78] sm:$0xff]
    %v364 = vld [vmem:[#allocation5 + $0x80] sm:$0xff]
    %v365 = vld [vmem:[#allocation5 + $0x88] sm:$0xff]
    %v366 = vld [vmem:[#allocation5 + $0x90] sm:$0xff]
    %v367 = vld [vmem:[#allocation5 + $0x98] sm:$0xff]
    %v368 = vld [vmem:[#allocation5 + $0xa0] sm:$0xff]
    %v369 = vld [vmem:[#allocation5 + $0xa8] sm:$0xff]
    %v370 = vld [vmem:[#allocation5 + $0xb0] sm:$0xff]
    %v371 = vld [vmem:[#allocation5 + $0xb8] sm:$0xff]
    %v372 = vld [vmem:[#allocation5 + $0xc0] sm:$0xff]
    %v373 = vld [vmem:[#allocation5 + $0xc8] sm:$0xff]
    %v374 = vld [vmem:[#allocation5 + $0xd0] sm:$0xff]
    %v375 = vld [vmem:[#allocation5 + $0xd8] sm:$0xff]
    %v376 = vld [vmem:[#allocation5 + $0xe0] sm:$0xff]
    %v377 = vld [vmem:[#allocation5 + $0xe8] sm:$0xff]
    %v378 = vld [vmem:[#allocation5 + $0xf0] sm:$0xff]
    %v379 = vld [vmem:[#allocation5 + $0xf8] sm:$0xff]
    %v380 = vld [vmem:[#allocation5 + $0x100] sm:$0xff]
    %v381 = vld [vmem:[#allocation5 + $0x108] sm:$0xff]
    %v382 = vld [vmem:[#allocation5 + $0x110] sm:$0xff]
    %v383 = vld [vmem:[#allocation5 + $0x118] sm:$0xff]
    %v384 = vld [vmem:[#allocation5 + $0x120] sm:$0xff]
    %v385 = vld [vmem:[#allocation5 + $0x128] sm:$0xff]
    %v386 = vld [vmem:[#allocation5 + $0x130] sm:$0xff]
    %v387 = vld [vmem:[#allocation5 + $0x138] sm:$0xff]
    %v388 = vld [vmem:[#allocation5 + $0x140] sm:$0xff]
    %v389 = vld [vmem:[#allocation5 + $0x148] sm:$0xff]
    %v390 = vld [vmem:[#allocation5 + $0x150] sm:$0xff]
    %v391 = vld [vmem:[#allocation5 + $0x158] sm:$0xff]
    %v392 = vld [vmem:[#allocation5 + $0x160] sm:$0xff]
    %v393 = vld [vmem:[#allocation5 + $0x168] sm:$0xff]
    %v394 = vld [vmem:[#allocation5 + $0x170] sm:$0xff]
    %v395 = vld [vmem:[#allocation5 + $0x178] sm:$0xff]
    %v396 = vld [vmem:[#allocation5 + $0x180] sm:$0xff]
    %v397 = vld [vmem:[#allocation5 + $0x188] sm:$0xff]
    %v398 = vld [vmem:[#allocation5 + $0x190] sm:$0xff]
    %v399 = vld [vmem:[#allocation5 + $0x198] sm:$0xff]
    %v400 = vld [vmem:[#allocation5 + $0x1a0] sm:$0xff]
    %v401 = vld [vmem:[#allocation5 + $0x1a8] sm:$0xff]
    %v402 = vld [vmem:[#allocation5 + $0x1b0] sm:$0xff]
    %v403 = vld [vmem:[#allocation5 + $0x1b8] sm:$0xff]
    %v404 = vld [vmem:[#allocation5 + $0x1c0] sm:$0xff]
    %v405 = vld [vmem:[#allocation5 + $0x1c8] sm:$0xff]
    %v406 = vld [vmem:[#allocation5 + $0x1d0] sm:$0xff]
    %v407 = vld [vmem:[#allocation5 + $0x1d8] sm:$0xff]
    %v408 = vld [vmem:[#allocation5 + $0x1e0] sm:$0xff]
    %v409 = vld [vmem:[#allocation5 + $0x1e8] sm:$0xff]
    %v410 = vld [vmem:[#allocation5 + $0x1f0] sm:$0xff]
    %v411 = vld [vmem:[#allocation5 + $0x1f8] sm:$0xff]
    %v412 = vld [vmem:[#allocation5 + $0x200] sm:$0xff]
    %v413 = vld [vmem:[#allocation5 + $0x208] sm:$0xff]
    %v414 = vld [vmem:[#allocation5 + $0x210] sm:$0xff]
    %v415 = vld [vmem:[#allocation5 + $0x218] sm:$0xff]
    %v416 = vld [vmem:[#allocation5 + $0x220] sm:$0xff]
    %v417 = vld [vmem:[#allocation5 + $0x228] sm:$0xff]
    %v418 = vld [vmem:[#allocation5 + $0x230] sm:$0xff]
    %v419 = vld [vmem:[#allocation5 + $0x238] sm:$0xff]
    %v420 = vld [vmem:[#allocation5 + $0x240] sm:$0xff]
    %v421 = vld [vmem:[#allocation5 + $0x248] sm:$0xff]
    %v422 = vld [vmem:[#allocation5 + $0x250] sm:$0xff]
    %v423 = vld [vmem:[#allocation5 + $0x258] sm:$0xff]
    %v424 = vld [vmem:[#allocation5 + $0x260] sm:$0xff]
    %v425 = vld [vmem:[#allocation5 + $0x268] sm:$0xff]
    %v426 = vld [vmem:[#allocation5 + $0x270] sm:$0xff]
    %v427 = vld [vmem:[#allocation5 + $0x278] sm:$0xff]
    %v428 = vld [vmem:[#allocation5 + $0x280] sm:$0xff]
    %v429 = vld [vmem:[#allocation5 + $0x288] sm:$0xff]
    %v430 = vld [vmem:[#allocation5 + $0x290] sm:$0xff]
    %v431 = vld [vmem:[#allocation5 + $0x298] sm:$0xff]
    %v432 = vld [vmem:[#allocation5 + $0x2a0] sm:$0xff]
    %v433 = vld [vmem:[#allocation5 + $0x2a8] sm:$0xff]
    %v434 = vld [vmem:[#allocation5 + $0x2b0] sm:$0xff]
    %v435 = vld [vmem:[#allocation5 + $0x2b8] sm:$0xff]
    %v436 = vld [vmem:[#allocation5 + $0x2c0] sm:$0xff]
    %v437 = vld [vmem:[#allocation5 + $0x2c8] sm:$0xff]
    %v438 = vld [vmem:[#allocation5 + $0x2d0] sm:$0xff]
    %v439 = vld [vmem:[#allocation5 + $0x2d8] sm:$0xff]
    %v440 = vld [vmem:[#allocation5 + $0x2e0] sm:$0xff]
    %v441 = vld [vmem:[#allocation5 + $0x2e8] sm:$0xff]
    %v442 = vld [vmem:[#allocation5 + $0x2f0] sm:$0xff]
    %v443 = vld [vmem:[#allocation5 + $0x2f8] sm:$0xff]
    %v444 = vld [vmem:[#allocation5 + $0x300] sm:$0xff]
    %v445 = vld [vmem:[#allocation5 + $0x308] sm:$0xff]
    %v446 = vld [vmem:[#allocation5 + $0x310] sm:$0xff]
    %v447 = vld [vmem:[#allocation5 + $0x318] sm:$0xff]
    %v448 = vld [vmem:[#allocation5 + $0x320] sm:$0xff]
    %v449 = vld [vmem:[#allocation5 + $0x328] sm:$0xff]
    %v450 = vld [vmem:[#allocation5 + $0x330] sm:$0xff]
    %v451 = vld [vmem:[#allocation5 + $0x338] sm:$0xff]
    %v452 = vld [vmem:[#allocation5 + $0x340] sm:$0xff]
    %v453 = vld [vmem:[#allocation5 + $0x348] sm:$0xff]
    %v454 = vld [vmem:[#allocation5 + $0x350] sm:$0xff]
    %v455 = vld [vmem:[#allocation5 + $0x358] sm:$0xff]
    %v456 = vld [vmem:[#allocation5 + $0x360] sm:$0xff]
    %v457 = vld [vmem:[#allocation5 + $0x368] sm:$0xff]
    %v458 = vld [vmem:[#allocation5 + $0x370] sm:$0xff]
    %v459 = vld [vmem:[#allocation5 + $0x378] sm:$0xff]
    %v460 = vld [vmem:[#allocation5 + $0x380] sm:$0xff]
    %v461 = vld [vmem:[#allocation5 + $0x388] sm:$0xff]
    %v462 = vld [vmem:[#allocation5 + $0x390] sm:$0xff]
    %v463 = vld [vmem:[#allocation5 + $0x398] sm:$0xff]
    %v464 = vld [vmem:[#allocation5 + $0x3a0] sm:$0xff]
    %v465 = vld [vmem:[#allocation5 + $0x3a8] sm:$0xff]
    %v466 = vld [vmem:[#allocation5 + $0x3b0] sm:$0xff]
    %v467 = vld [vmem:[#allocation5 + $0x3b8] sm:$0xff]
    %v468 = vld [vmem:[#allocation5 + $0x3c0] sm:$0xff]
    %v469 = vld [vmem:[#allocation5 + $0x3c8] sm:$0xff]
    %v470 = vld [vmem:[#allocation5 + $0x3d0] sm:$0xff]
    %v471 = vld [vmem:[#allocation5 + $0x3d8] sm:$0xff]
    %v472 = vld [vmem:[#allocation5 + $0x3e0] sm:$0xff]
    %v473 = vld [vmem:[#allocation5 + $0x3e8] sm:$0xff]
    %v474 = vld [vmem:[#allocation5 + $0x3f0] sm:$0xff]
    %v475 = vld [vmem:[#allocation5 + $0x3f8] sm:$0xff]
    %v476 = vld [vmem:[#allocation5 + $0x400] sm:$0xff]
    %v477 = vld [vmem:[#allocation5 + $0x408] sm:$0xff]
    %v478 = vld [vmem:[#allocation5 + $0x410] sm:$0xff]
    %v479 = vld [vmem:[#allocation5 + $0x418] sm:$0xff]
    %v480 = vld [vmem:[#allocation5 + $0x420] sm:$0xff]
    %v481 = vld [vmem:[#allocation5 + $0x428] sm:$0xff]
    %v482 = vld [vmem:[#allocation5 + $0x430] sm:$0xff]
    %v483 = vld [vmem:[#allocation5 + $0x438] sm:$0xff]
    %v484 = vld [vmem:[#allocation5 + $0x440] sm:$0xff]
    %v485 = vld [vmem:[#allocation5 + $0x448] sm:$0xff]
    %v486 = vld [vmem:[#allocation5 + $0x450] sm:$0xff]
    %v487 = vld [vmem:[#allocation5 + $0x458] sm:$0xff]
    %v488 = vld [vmem:[#allocation5 + $0x460] sm:$0xff]
    %v489 = vld [vmem:[#allocation5 + $0x468] sm:$0xff]
    %v490 = vld [vmem:[#allocation5 + $0x470] sm:$0xff]
    %v491 = vld [vmem:[#allocation5 + $0x478] sm:$0xff]
    %v492 = vld [vmem:[#allocation5 + $0x480] sm:$0xff]
    %v493 = vld [vmem:[#allocation5 + $0x488] sm:$0xff]
    %v494 = vld [vmem:[#allocation5 + $0x490] sm:$0xff]
    %v495 = vld [vmem:[#allocation5 + $0x498] sm:$0xff]
    %v496 = vld [vmem:[#allocation5 + $0x4a0] sm:$0xff]
    %v497 = vld [vmem:[#allocation5 + $0x4a8] sm:$0xff]
    %v498 = vld [vmem:[#allocation5 + $0x4b0] sm:$0xff]
    %v499 = vld [vmem:[#allocation5 + $0x4b8] sm:$0xff]
    %v500 = vld [vmem:[#allocation5 + $0x4c0] sm:$0xff]
    %v501 = vld [vmem:[#allocation5 + $0x4c8] sm:$0xff]
    %v502 = vld [vmem:[#allocation5 + $0x4d0] sm:$0xff]
    %v503 = vld [vmem:[#allocation5 + $0x4d8] sm:$0xff]
    %v504 = vld [vmem:[#allocation5 + $0x4e0] sm:$0xff]
    %v505 = vld [vmem:[#allocation5 + $0x4e8] sm:$0xff]
    %v506 = vld [vmem:[#allocation5 + $0x4f0] sm:$0xff]
    %v507 = vld [vmem:[#allocation5 + $0x4f8] sm:$0xff]
    %v508 = vld [vmem:[#allocation5 + $0x500] sm:$0xff]
    %v509 = vld [vmem:[#allocation5 + $0x508] sm:$0xff]
    %v510 = vld [vmem:[#allocation5 + $0x510] sm:$0xff]
    %v511 = vld [vmem:[#allocation5 + $0x518] sm:$0xff]
    %v512 = vld [vmem:[#allocation5 + $0x520] sm:$0xff]
    %v513 = vld [vmem:[#allocation5 + $0x528] sm:$0xff]
    %v514 = vld [vmem:[#allocation5 + $0x530] sm:$0xff]
    %v515 = vld [vmem:[#allocation5 + $0x538] sm:$0xff]
    %v516 = vld [vmem:[#allocation5 + $0x540] sm:$0xff]
    %v517 = vld [vmem:[#allocation5 + $0x548] sm:$0xff]
    %v518 = vld [vmem:[#allocation5 + $0x550] sm:$0xff]
    %v519 = vld [vmem:[#allocation5 + $0x558] sm:$0xff]
    %v520 = vld [vmem:[#allocation5 + $0x560] sm:$0xff]
    %v521 = vld [vmem:[#allocation5 + $0x568] sm:$0xff]
    %v522 = vld [vmem:[#allocation5 + $0x570] sm:$0xff]
    %v523 = vld [vmem:[#allocation5 + $0x578] sm:$0xff]
    %v524 = vld [vmem:[#allocation5 + $0x580] sm:$0xff]
    %v525 = vld [vmem:[#allocation5 + $0x588] sm:$0xff]
    %v526 = vld [vmem:[#allocation5 + $0x590] sm:$0xff]
    %v527 = vld [vmem:[#allocation5 + $0x598] sm:$0xff]
    %v528 = vld [vmem:[#allocation5 + $0x5a0] sm:$0xff]
    %v529 = vld [vmem:[#allocation5 + $0x5a8] sm:$0xff]
    %v530 = vld [vmem:[#allocation5 + $0x5b0] sm:$0xff]
    %v531 = vld [vmem:[#allocation5 + $0x5b8] sm:$0xff]
    %v532 = vld [vmem:[#allocation5 + $0x5c0] sm:$0xff]
    %v533 = vld [vmem:[#allocation5 + $0x5c8] sm:$0xff]
    %v534 = vld [vmem:[#allocation5 + $0x5d0] sm:$0xff]
    %v535 = vld [vmem:[#allocation5 + $0x5d8] sm:$0xff]
    %v536 = vld [vmem:[#allocation5 + $0x5e0] sm:$0xff]
    %v537 = vld [vmem:[#allocation5 + $0x5e8] sm:$0xff]
    %v538 = vld [vmem:[#allocation5 + $0x5f0] sm:$0xff]
    %v539 = vld [vmem:[#allocation5 + $0x5f8] sm:$0xff]
    %v540 = vld [vmem:[#allocation5 + $0x600] sm:$0xff]
    %v541 = vld [vmem:[#allocation5 + $0x608] sm:$0xff]
    %v542 = vld [vmem:[#allocation5 + $0x610] sm:$0xff]
    %v543 = vld [vmem:[#allocation5 + $0x618] sm:$0xff]
    %v544 = vld [vmem:[#allocation5 + $0x620] sm:$0xff]
    %v545 = vld [vmem:[#allocation5 + $0x628] sm:$0xff]
    %v546 = vld [vmem:[#allocation5 + $0x630] sm:$0xff]
    %v547 = vld [vmem:[#allocation5 + $0x638] sm:$0xff]
    %v548 = vld [vmem:[#allocation5 + $0x640] sm:$0xff]
    %v549 = vld [vmem:[#allocation5 + $0x648] sm:$0xff]
    %v550 = vld [vmem:[#allocation5 + $0x650] sm:$0xff]
    %v551 = vld [vmem:[#allocation5 + $0x658] sm:$0xff]
    %v552 = vld [vmem:[#allocation5 + $0x660] sm:$0xff]
    %v553 = vld [vmem:[#allocation5 + $0x668] sm:$0xff]
    %v554 = vld [vmem:[#allocation5 + $0x670] sm:$0xff]
    %v555 = vld [vmem:[#allocation5 + $0x678] sm:$0xff]
    %v556 = vld [vmem:[#allocation5 + $0x680] sm:$0xff]
    %v557 = vld [vmem:[#allocation5 + $0x688] sm:$0xff]
    %v558 = vld [vmem:[#allocation5 + $0x690] sm:$0xff]
    %v559 = vld [vmem:[#allocation5 + $0x698] sm:$0xff]
    %v560 = vld [vmem:[#allocation5 + $0x6a0] sm:$0xff]
    %v561 = vld [vmem:[#allocation5 + $0x6a8] sm:$0xff]
    %v562 = vld [vmem:[#allocation5 + $0x6b0] sm:$0xff]
    %v563 = vld [vmem:[#allocation5 + $0x6b8] sm:$0xff]
    %v564 = vld [vmem:[#allocation5 + $0x6c0] sm:$0xff]
    %v565 = vld [vmem:[#allocation5 + $0x6c8] sm:$0xff]
    %v566 = vld [vmem:[#allocation5 + $0x6d0] sm:$0xff]
    %v567 = vld [vmem:[#allocation5 + $0x6d8] sm:$0xff]
    %v568 = vld [vmem:[#allocation5 + $0x6e0] sm:$0xff]
    %v569 = vld [vmem:[#allocation5 + $0x6e8] sm:$0xff]
    %v570 = vld [vmem:[#allocation5 + $0x6f0] sm:$0xff]
    %v571 = vld [vmem:[#allocation5 + $0x6f8] sm:$0xff]
    %v572 = vld [vmem:[#allocation5 + $0x700] sm:$0xff]
    %v573 = vld [vmem:[#allocation5 + $0x708] sm:$0xff]
    %v574 = vld [vmem:[#allocation5 + $0x710] sm:$0xff]
    %v575 = vld [vmem:[#allocation5 + $0x718] sm:$0xff]
    %v576 = vld [vmem:[#allocation5 + $0x720] sm:$0xff]
    %v577 = vld [vmem:[#allocation5 + $0x728] sm:$0xff]
    %v578 = vld [vmem:[#allocation5 + $0x730] sm:$0xff]
    %v579 = vld [vmem:[#allocation5 + $0x738] sm:$0xff]
    %v580 = vld [vmem:[#allocation5 + $0x740] sm:$0xff]
    %v581 = vld [vmem:[#allocation5 + $0x748] sm:$0xff]
    %v582 = vld [vmem:[#allocation5 + $0x750] sm:$0xff]
    %v583 = vld [vmem:[#allocation5 + $0x758] sm:$0xff]
    %v584 = vld [vmem:[#allocation5 + $0x760] sm:$0xff]
    %v585 = vld [vmem:[#allocation5 + $0x768] sm:$0xff]
    %v586 = vld [vmem:[#allocation5 + $0x770] sm:$0xff]
    %v587 = vld [vmem:[#allocation5 + $0x778] sm:$0xff]
    %v588 = vld [vmem:[#allocation5 + $0x780] sm:$0xff]
    %v589 = vld [vmem:[#allocation5 + $0x788] sm:$0xff]
    %v590 = vld [vmem:[#allocation5 + $0x790] sm:$0xff]
    %v591 = vld [vmem:[#allocation5 + $0x798] sm:$0xff]
    %v592 = vld [vmem:[#allocation5 + $0x7a0] sm:$0xff]
    %v593 = vld [vmem:[#allocation5 + $0x7a8] sm:$0xff]
    %v594 = vld [vmem:[#allocation5 + $0x7b0] sm:$0xff]
    %v595 = vld [vmem:[#allocation5 + $0x7b8] sm:$0xff]
    %v596 = vld [vmem:[#allocation5 + $0x7c0] sm:$0xff]
    %v597 = vld [vmem:[#allocation5 + $0x7c8] sm:$0xff]
    %v598 = vld [vmem:[#allocation5 + $0x7d0] sm:$0xff]
    %v599 = vld [vmem:[#allocation5 + $0x7d8] sm:$0xff]
    %v600 = vld [vmem:[#allocation5 + $0x7e0] sm:$0xff]
    %v601 = vld [vmem:[#allocation5 + $0x7e8] sm:$0xff]
    %v602 = vld [vmem:[#allocation5 + $0x7f0] sm:$0xff]
    %v603 = vld [vmem:[#allocation5 + $0x7f8] sm:$0xff]
    %v604 = vld [vmem:[#allocation5 + $0x800] sm:$0xff]
    %v605 = vld [vmem:[#allocation5 + $0x808] sm:$0xff]
    %v606 = vld [vmem:[#allocation5 + $0x810] sm:$0xff]
    %v607 = vld [vmem:[#allocation5 + $0x818] sm:$0xff]
    %v608 = vld [vmem:[#allocation5 + $0x820] sm:$0xff]
    %v609 = vld [vmem:[#allocation5 + $0x828] sm:$0xff]
    %v610 = vld [vmem:[#allocation5 + $0x830] sm:$0xff]
    %v611 = vld [vmem:[#allocation5 + $0x838] sm:$0xff]
    %v612 = vld [vmem:[#allocation5 + $0x840] sm:$0xff]
    %v613 = vld [vmem:[#allocation5 + $0x848] sm:$0xff]
    %v614 = vld [vmem:[#allocation5 + $0x850] sm:$0xff]
    %v615 = vld [vmem:[#allocation5 + $0x858] sm:$0xff]
    %v616 = vld [vmem:[#allocation5 + $0x860] sm:$0xff]
    %v617 = vld [vmem:[#allocation5 + $0x868] sm:$0xff]
    %v618 = vld [vmem:[#allocation5 + $0x870] sm:$0xff]
    %v619 = vld [vmem:[#allocation5 + $0x878] sm:$0xff]
    %v620 = vld [vmem:[#allocation5 + $0x880] sm:$0xff]
    %v621 = vld [vmem:[#allocation5 + $0x888] sm:$0xff]
    %v622 = vld [vmem:[#allocation5 + $0x890] sm:$0xff]
    %v623 = vld [vmem:[#allocation5 + $0x898] sm:$0xff]
    %v624 = vld [vmem:[#allocation5 + $0x8a0] sm:$0xff]
    %v625 = vld [vmem:[#allocation5 + $0x8a8] sm:$0xff]
    %v626 = vld [vmem:[#allocation5 + $0x8b0] sm:$0xff]
    %v627 = vld [vmem:[#allocation5 + $0x8b8] sm:$0xff]
    %v628 = vld [vmem:[#allocation5 + $0x8c0] sm:$0xff]
    %v629 = vld [vmem:[#allocation5 + $0x8c8] sm:$0xff]
    %v630 = vld [vmem:[#allocation5 + $0x8d0] sm:$0xff]
    %v631 = vld [vmem:[#allocation5 + $0x8d8] sm:$0xff]
    %v632 = vld [vmem:[#allocation5 + $0x8e0] sm:$0xff]
    %v633 = vld [vmem:[#allocation5 + $0x8e8] sm:$0xff]
    %v634 = vld [vmem:[#allocation5 + $0x8f0] sm:$0xff]
    %v635 = vld [vmem:[#allocation5 + $0x8f8] sm:$0xff]
    %v636 = vld [vmem:[#allocation5 + $0x900] sm:$0xff]
    %v637 = vld [vmem:[#allocation5 + $0x908] sm:$0xff]
    %v638 = vld [vmem:[#allocation5 + $0x910] sm:$0xff]
    %v639 = vld [vmem:[#allocation5 + $0x918] sm:$0xff]
    %v640 = vld [vmem:[#allocation5 + $0x920] sm:$0xff]
    %v641 = vld [vmem:[#allocation5 + $0x928] sm:$0xff]
    %v642 = vld [vmem:[#allocation5 + $0x930] sm:$0xff]
    %v643 = vld [vmem:[#allocation5 + $0x938] sm:$0xff]
    %v644 = vld [vmem:[#allocation5 + $0x940] sm:$0xff]
    %v645 = vld [vmem:[#allocation5 + $0x948] sm:$0xff]
    %v646 = vld [vmem:[#allocation5 + $0x950] sm:$0xff]
    %v647 = vld [vmem:[#allocation5 + $0x958] sm:$0xff]
    %v648 = vld [vmem:[#allocation5 + $0x960] sm:$0xff]
    %v649 = vld [vmem:[#allocation5 + $0x968] sm:$0xff]
    %v650 = vld [vmem:[#allocation5 + $0x970] sm:$0xff]
    %v651 = vld [vmem:[#allocation5 + $0x978] sm:$0xff]
    %v652 = vld [vmem:[#allocation5 + $0x980] sm:$0xff]
    %v653 = vld [vmem:[#allocation5 + $0x988] sm:$0xff]
    %v654 = vld [vmem:[#allocation5 + $0x990] sm:$0xff]
    %v655 = vld [vmem:[#allocation5 + $0x998] sm:$0xff]
    %v656 = vld [vmem:[#allocation5 + $0x9a0] sm:$0xff]
    %v657 = vld [vmem:[#allocation5 + $0x9a8] sm:$0xff]
    %v658 = vld [vmem:[#allocation5 + $0x9b0] sm:$0xff]
    %v659 = vld [vmem:[#allocation5 + $0x9b8] sm:$0xff]
    %v660 = vld [vmem:[#allocation5 + $0x9c0] sm:$0xff]
    %v661 = vld [vmem:[#allocation5 + $0x9c8] sm:$0xff]
    %v662 = vld [vmem:[#allocation5 + $0x9d0] sm:$0xff]
    %v663 = vld [vmem:[#allocation5 + $0x9d8] sm:$0xff]
    %v664 = vld [vmem:[#allocation5 + $0x9e0] sm:$0xff]
    %v665 = vld [vmem:[#allocation5 + $0x9e8] sm:$0xff]
    %v666 = vld [vmem:[#allocation5 + $0x9f0] sm:$0xff]
    %v667 = vld [vmem:[#allocation5 + $0x9f8] sm:$0xff]
    %v668 = vld [vmem:[#allocation5 + $0xa00] sm:$0xff]
    %v669 = vld [vmem:[#allocation5 + $0xa08] sm:$0xff]
    %v670 = vld [vmem:[#allocation5 + $0xa10] sm:$0xff]
    %v671 = vld [vmem:[#allocation5 + $0xa18] sm:$0xff]
    %v672 = vld [vmem:[#allocation5 + $0xa20] sm:$0xff]
    %v673 = vld [vmem:[#allocation5 + $0xa28] sm:$0xff]
    %v674 = vld [vmem:[#allocation5 + $0xa30] sm:$0xff]
    %v675 = vld [vmem:[#allocation5 + $0xa38] sm:$0xff]
    %v676 = vld [vmem:[#allocation5 + $0xa40] sm:$0xff]
    %v677 = vld [vmem:[#allocation5 + $0xa48] sm:$0xff]
    %v678 = vld [vmem:[#allocation5 + $0xa50] sm:$0xff]
    %v679 = vld [vmem:[#allocation5 + $0xa58] sm:$0xff]
    %v680 = vld [vmem:[#allocation5 + $0xa60] sm:$0xff]
    %v681 = vld [vmem:[#allocation5 + $0xa68] sm:$0xff]
    %v682 = vld [vmem:[#allocation5 + $0xa70] sm:$0xff]
    %v683 = vld [vmem:[#allocation5 + $0xa78] sm:$0xff]
    %v684 = vld [vmem:[#allocation5 + $0xa80] sm:$0xff]
    %v685 = vld [vmem:[#allocation5 + $0xa88] sm:$0xff]
    %v686 = vld [vmem:[#allocation5 + $0xa90] sm:$0xff]
    %v687 = vld [vmem:[#allocation5 + $0xa98] sm:$0xff]
    %v688 = vld [vmem:[#allocation5 + $0xaa0] sm:$0xff]
    %v689 = vld [vmem:[#allocation5 + $0xaa8] sm:$0xff]
    %v690 = vld [vmem:[#allocation5 + $0xab0] sm:$0xff]
    %v691 = vld [vmem:[#allocation5 + $0xab8] sm:$0xff]
    %v692 = vld [vmem:[#allocation5 + $0xac0] sm:$0xff]
    %v693 = vld [vmem:[#allocation5 + $0xac8] sm:$0xff]
    %v694 = vld [vmem:[#allocation5 + $0xad0] sm:$0xff]
    %v695 = vld [vmem:[#allocation5 + $0xad8] sm:$0xff]
    %v696 = vld [vmem:[#allocation5 + $0xae0] sm:$0xff]
    %v697 = vld [vmem:[#allocation5 + $0xae8] sm:$0xff]
    %v698 = vld [vmem:[#allocation5 + $0xaf0] sm:$0xff]
    %v699 = vld [vmem:[#allocation5 + $0xaf8] sm:$0xff]
    %v700 = vld [vmem:[#allocation5 + $0xb00] sm:$0xff]
    %v701 = vld [vmem:[#allocation5 + $0xb08] sm:$0xff]
    %v702 = vld [vmem:[#allocation5 + $0xb10] sm:$0xff]
    %v703 = vld [vmem:[#allocation5 + $0xb18] sm:$0xff]
    %v704 = vld [vmem:[#allocation5 + $0xb20] sm:$0xff]
    %v705 = vld [vmem:[#allocation5 + $0xb28] sm:$0xff]
    %v706 = vld [vmem:[#allocation5 + $0xb30] sm:$0xff]
    %v707 = vld [vmem:[#allocation5 + $0xb38] sm:$0xff]
    %v708 = vld [vmem:[#allocation5 + $0xb40] sm:$0xff]
    %v709 = vld [vmem:[#allocation5 + $0xb48] sm:$0xff]
    %v710 = vld [vmem:[#allocation5 + $0xb50] sm:$0xff]
    %v711 = vld [vmem:[#allocation5 + $0xb58] sm:$0xff]
    %v712 = vld [vmem:[#allocation5 + $0xb60] sm:$0xff]
    %v713 = vld [vmem:[#allocation5 + $0xb68] sm:$0xff]
    %v714 = vld [vmem:[#allocation5 + $0xb70] sm:$0xff]
    %v715 = vld [vmem:[#allocation5 + $0xb78] sm:$0xff]
    %v716 = vld [vmem:[#allocation5 + $0xb80] sm:$0xff]
    %v717 = vld [vmem:[#allocation5 + $0xb88] sm:$0xff]
    %v718 = vld [vmem:[#allocation5 + $0xb90] sm:$0xff]
    %v719 = vld [vmem:[#allocation5 + $0xb98] sm:$0xff]
    %v720 = vld [vmem:[#allocation5 + $0xba0] sm:$0xff]
    %v721 = vld [vmem:[#allocation5 + $0xba8] sm:$0xff]
    %v722 = vld [vmem:[#allocation5 + $0xbb0] sm:$0xff]
    %v723 = vld [vmem:[#allocation5 + $0xbb8] sm:$0xff]
    %v724 = vld [vmem:[#allocation5 + $0xbc0] sm:$0xff]
    %v725 = vld [vmem:[#allocation5 + $0xbc8] sm:$0xff]
    %v726 = vld [vmem:[#allocation5 + $0xbd0] sm:$0xff]
    %v727 = vld [vmem:[#allocation5 + $0xbd8] sm:$0xff]
    %v728 = vld [vmem:[#allocation5 + $0xbe0] sm:$0xff]
    %v729 = vld [vmem:[#allocation5 + $0xbe8] sm:$0xff]
    %v730 = vld [vmem:[#allocation5 + $0xbf0] sm:$0xff]
    %v731 = vld [vmem:[#allocation5 + $0xbf8] sm:$0xff]
    %v732 = vld [vmem:[#allocation5 + $0xc00] sm:$0xff]
    %v733 = vld [vmem:[#allocation5 + $0xc08] sm:$0xff]
    %v734 = vld [vmem:[#allocation5 + $0xc10] sm:$0xff]
    %v735 = vld [vmem:[#allocation5 + $0xc18] sm:$0xff]
    %v736 = vld [vmem:[#allocation5 + $0xc20] sm:$0xff]
    %v737 = vld [vmem:[#allocation5 + $0xc28] sm:$0xff]
    %v738 = vld [vmem:[#allocation5 + $0xc30] sm:$0xff]
    %v739 = vld [vmem:[#allocation5 + $0xc38] sm:$0xff]
    %v740 = vld [vmem:[#allocation5 + $0xc40] sm:$0xff]
    %v741 = vld [vmem:[#allocation5 + $0xc48] sm:$0xff]
    %v742 = vld [vmem:[#allocation5 + $0xc50] sm:$0xff]
    %v743 = vld [vmem:[#allocation5 + $0xc58] sm:$0xff]
    %v744 = vld [vmem:[#allocation5 + $0xc60] sm:$0xff]
    %v745 = vld [vmem:[#allocation5 + $0xc68] sm:$0xff]
    %v746 = vld [vmem:[#allocation5 + $0xc70] sm:$0xff]
    %v747 = vld [vmem:[#allocation5 + $0xc78] sm:$0xff]
    %v748 = vld [vmem:[#allocation5 + $0xc80] sm:$0xff]
    %v749 = vld [vmem:[#allocation5 + $0xc88] sm:$0xff]
    %v750 = vld [vmem:[#allocation5 + $0xc90] sm:$0xff]
    %v751 = vld [vmem:[#allocation5 + $0xc98] sm:$0xff]
    %v752 = vld [vmem:[#allocation5 + $0xca0] sm:$0xff]
    %v753 = vld [vmem:[#allocation5 + $0xca8] sm:$0xff]
    %v754 = vld [vmem:[#allocation5 + $0xcb0] sm:$0xff]
    %v755 = vld [vmem:[#allocation5 + $0xcb8] sm:$0xff]
    %v756 = vld [vmem:[#allocation5 + $0xcc0] sm:$0xff]
    %v757 = vld [vmem:[#allocation5 + $0xcc8] sm:$0xff]
    %v758 = vld [vmem:[#allocation5 + $0xcd0] sm:$0xff]
    %v759 = vld [vmem:[#allocation5 + $0xcd8] sm:$0xff]
    %v760 = vld [vmem:[#allocation5 + $0xce0] sm:$0xff]
    %v761 = vld [vmem:[#allocation5 + $0xce8] sm:$0xff]
    %v762 = vld [vmem:[#allocation5 + $0xcf0] sm:$0xff]
    %v763 = vld [vmem:[#allocation5 + $0xcf8] sm:$0xff]
    %v764 = vld [vmem:[#allocation5 + $0xd00] sm:$0xff]
    %v765 = vld [vmem:[#allocation5 + $0xd08] sm:$0xff]
    %v766 = vld [vmem:[#allocation5 + $0xd10] sm:$0xff]
    %v767 = vld [vmem:[#allocation5 + $0xd18] sm:$0xff]
    %v768 = vld [vmem:[#allocation5 + $0xd20] sm:$0xff]
    %v769 = vld [vmem:[#allocation5 + $0xd28] sm:$0xff]
    %v770 = vld [vmem:[#allocation5 + $0xd30] sm:$0xff]
    %v771 = vld [vmem:[#allocation5 + $0xd38] sm:$0xff]
    %v772 = vld [vmem:[#allocation5 + $0xd40] sm:$0xff]
    %v773 = vld [vmem:[#allocation5 + $0xd48] sm:$0xff]
    %v774 = vld [vmem:[#allocation5 + $0xd50] sm:$0xff]
    %v775 = vld [vmem:[#allocation5 + $0xd58] sm:$0xff]
    %v776 = vld [vmem:[#allocation5 + $0xd60] sm:$0xff]
    %v777 = vld [vmem:[#allocation5 + $0xd68] sm:$0xff]
    %v778 = vld [vmem:[#allocation5 + $0xd70] sm:$0xff]
    %v779 = vld [vmem:[#allocation5 + $0xd78] sm:$0xff]
    %v780 = vld [vmem:[#allocation5 + $0xd80] sm:$0xff]
    %v781 = vld [vmem:[#allocation5 + $0xd88] sm:$0xff]
    %v782 = vld [vmem:[#allocation5 + $0xd90] sm:$0xff]
    %v783 = vld [vmem:[#allocation5 + $0xd98] sm:$0xff]
    %v784 = vld [vmem:[#allocation5 + $0xda0] sm:$0xff]
    %v785 = vld [vmem:[#allocation5 + $0xda8] sm:$0xff]
    %v786 = vld [vmem:[#allocation5 + $0xdb0] sm:$0xff]
    %v787 = vld [vmem:[#allocation5 + $0xdb8] sm:$0xff]
    %v788 = vld [vmem:[#allocation5 + $0xdc0] sm:$0xff]
    %v789 = vld [vmem:[#allocation5 + $0xdc8] sm:$0xff]
    %v790 = vld [vmem:[#allocation5 + $0xdd0] sm:$0xff]
    %v791 = vld [vmem:[#allocation5 + $0xdd8] sm:$0xff]
    %v792 = vld [vmem:[#allocation5 + $0xde0] sm:$0xff]
    %v793 = vld [vmem:[#allocation5 + $0xde8] sm:$0xff]
    %v794 = vld [vmem:[#allocation5 + $0xdf0] sm:$0xff]
    %v795 = vld [vmem:[#allocation5 + $0xdf8] sm:$0xff]
    %v796 = vld [vmem:[#allocation5 + $0xe00] sm:$0xff]
    %v797 = vld [vmem:[#allocation5 + $0xe08] sm:$0xff]
    %v798 = vld [vmem:[#allocation5 + $0xe10] sm:$0xff]
    %v799 = vld [vmem:[#allocation5 + $0xe18] sm:$0xff]
    %v800 = vld [vmem:[#allocation5 + $0xe20] sm:$0xff]
    %v801 = vld [vmem:[#allocation5 + $0xe28] sm:$0xff]
    %v802 = vld [vmem:[#allocation5 + $0xe30] sm:$0xff]
    %v803 = vld [vmem:[#allocation5 + $0xe38] sm:$0xff]
    %v804 = vld [vmem:[#allocation5 + $0xe40] sm:$0xff]
    %v805 = vld [vmem:[#allocation5 + $0xe48] sm:$0xff]
    %v806 = vld [vmem:[#allocation5 + $0xe50] sm:$0xff]
    %v807 = vld [vmem:[#allocation5 + $0xe58] sm:$0xff]
    %v808 = vld [vmem:[#allocation5 + $0xe60] sm:$0xff]
    %v809 = vld [vmem:[#allocation5 + $0xe68] sm:$0xff]
    %v810 = vld [vmem:[#allocation5 + $0xe70] sm:$0xff]
    %v811 = vld [vmem:[#allocation5 + $0xe78] sm:$0xff]
    %v812 = vld [vmem:[#allocation5 + $0xe80] sm:$0xff]
    %v813 = vld [vmem:[#allocation5 + $0xe88] sm:$0xff]
    %v814 = vld [vmem:[#allocation5 + $0xe90] sm:$0xff]
    %v815 = vld [vmem:[#allocation5 + $0xe98] sm:$0xff]
    %v816 = vld [vmem:[#allocation5 + $0xea0] sm:$0xff]
    %v817 = vld [vmem:[#allocation5 + $0xea8] sm:$0xff]
    %v818 = vld [vmem:[#allocation5 + $0xeb0] sm:$0xff]
    %v819 = vld [vmem:[#allocation5 + $0xeb8] sm:$0xff]
    %v820 = vld [vmem:[#allocation5 + $0xec0] sm:$0xff]
    %v821 = vld [vmem:[#allocation5 + $0xec8] sm:$0xff]
    %v822 = vld [vmem:[#allocation5 + $0xed0] sm:$0xff]
    %v823 = vld [vmem:[#allocation5 + $0xed8] sm:$0xff]
    %v824 = vld [vmem:[#allocation5 + $0xee0] sm:$0xff]
    %v825 = vld [vmem:[#allocation5 + $0xee8] sm:$0xff]
    %v826 = vld [vmem:[#allocation5 + $0xef0] sm:$0xff]
    %v827 = vld [vmem:[#allocation5 + $0xef8] sm:$0xff]
    %v828 = vld [vmem:[#allocation5 + $0xf00] sm:$0xff]
    %v829 = vld [vmem:[#allocation5 + $0xf08] sm:$0xff]
    %v830 = vld [vmem:[#allocation5 + $0xf10] sm:$0xff]
    %v831 = vld [vmem:[#allocation5 + $0xf18] sm:$0xff]
    %v832 = vld [vmem:[#allocation5 + $0xf20] sm:$0xff]
    %v833 = vld [vmem:[#allocation5 + $0xf28] sm:$0xff]
    %v834 = vld [vmem:[#allocation5 + $0xf30] sm:$0xff]
    %v835 = vld [vmem:[#allocation5 + $0xf38] sm:$0xff]
    %v836 = vld [vmem:[#allocation5 + $0xf40] sm:$0xff]
    %v837 = vld [vmem:[#allocation5 + $0xf48] sm:$0xff]
    %v838 = vld [vmem:[#allocation5 + $0xf50] sm:$0xff]
    %v839 = vld [vmem:[#allocation5 + $0xf58] sm:$0xff]
    %v840 = vld [vmem:[#allocation5 + $0xf60] sm:$0xff]
    %v841 = vld [vmem:[#allocation5 + $0xf68] sm:$0xff]
    %v842 = vld [vmem:[#allocation5 + $0xf70] sm:$0xff]
    %v843 = vld [vmem:[#allocation5 + $0xf78] sm:$0xff]
    %v844 = vld [vmem:[#allocation5 + $0xf80] sm:$0xff]
    %v845 = vld [vmem:[#allocation5 + $0xf88] sm:$0xff]
    %v846 = vld [vmem:[#allocation5 + $0xf90] sm:$0xff]
    %v847 = vld [vmem:[#allocation5 + $0xf98] sm:$0xff]
    %v848 = vld [vmem:[#allocation5 + $0xfa0] sm:$0xff]
    %v849 = vld [vmem:[#allocation5 + $0xfa8] sm:$0xff]
    %v850 = vld [vmem:[#allocation5 + $0xfb0] sm:$0xff]
    %v851 = vld [vmem:[#allocation5 + $0xfb8] sm:$0xff]
    %v852 = vld [vmem:[#allocation5 + $0xfc0] sm:$0xff]
    %v853 = vld [vmem:[#allocation5 + $0xfc8] sm:$0xff]
    %v854 = vld [vmem:[#allocation5 + $0xfd0] sm:$0xff]
    %v855 = vld [vmem:[#allocation5 + $0xfd8] sm:$0xff]
    %v856 = vld [vmem:[#allocation5 + $0xfe0] sm:$0xff]
    %v857 = vld [vmem:[#allocation5 + $0xfe8] sm:$0xff]
    %v858 = vld [vmem:[#allocation5 + $0xff0] sm:$0xff]
    %v859 = vld [vmem:[#allocation5 + $0xff8] sm:$0xff]
    %v860 = vld [vmem:[#allocation5 + $0x1000] sm:$0xff]
    %v861 = vld [vmem:[#allocation5 + $0x1008] sm:$0xff]
    %v862 = vld [vmem:[#allocation5 + $0x1010] sm:$0xff]
    %v863 = vld [vmem:[#allocation5 + $0x1018] sm:$0xff]
    %v864 = vld [vmem:[#allocation5 + $0x1020] sm:$0xff]
    %v865 = vld [vmem:[#allocation5 + $0x1028] sm:$0xff]
    %v866 = vld [vmem:[#allocation5 + $0x1030] sm:$0xff]
    %v867 = vld [vmem:[#allocation5 + $0x1038] sm:$0xff]
    %v868 = vld [vmem:[#allocation5 + $0x1040] sm:$0xff]
    %v869 = vld [vmem:[#allocation5 + $0x1048] sm:$0xff]
    %v870 = vld [vmem:[#allocation5 + $0x1050] sm:$0xff]
    %v871 = vld [vmem:[#allocation5 + $0x1058] sm:$0xff]
    %v872 = vld [vmem:[#allocation5 + $0x1060] sm:$0xff]
    %v873 = vld [vmem:[#allocation5 + $0x1068] sm:$0xff]
    %v874 = vld [vmem:[#allocation5 + $0x1070] sm:$0xff]
    %v875 = vld [vmem:[#allocation5 + $0x1078] sm:$0xff]
    %v876 = vld [vmem:[#allocation5 + $0x1080] sm:$0xff]
    %v877 = vld [vmem:[#allocation5 + $0x1088] sm:$0xff]
    %v878 = vld [vmem:[#allocation5 + $0x1090] sm:$0xff]
    %v879 = vld [vmem:[#allocation5 + $0x1098] sm:$0xff]
    %v880 = vld [vmem:[#allocation5 + $0x10a0] sm:$0xff]
    %v881 = vld [vmem:[#allocation5 + $0x10a8] sm:$0xff]
    %v882 = vld [vmem:[#allocation5 + $0x10b0] sm:$0xff]
    %v883 = vld [vmem:[#allocation5 + $0x10b8] sm:$0xff]
    %v884 = vld [vmem:[#allocation5 + $0x10c0] sm:$0xff]
    %v885 = vld [vmem:[#allocation5 + $0x10c8] sm:$0xff]
    %v886 = vld [vmem:[#allocation5 + $0x10d0] sm:$0xff]
    %v887 = vld [vmem:[#allocation5 + $0x10d8] sm:$0xff]
    %v888 = vld [vmem:[#allocation5 + $0x10e0] sm:$0xff]
    %v889 = vld [vmem:[#allocation5 + $0x10e8] sm:$0xff]
    %v890 = vld [vmem:[#allocation5 + $0x10f0] sm:$0xff]
    %v891 = vld [vmem:[#allocation5 + $0x10f8] sm:$0xff]
    %v892 = vld [vmem:[#allocation5 + $0x1100] sm:$0xff]
    %v893 = vld [vmem:[#allocation5 + $0x1108] sm:$0xff]
    %v894 = vld [vmem:[#allocation5 + $0x1110] sm:$0xff]
    %v895 = vld [vmem:[#allocation5 + $0x1118] sm:$0xff]
    %v896 = vld [vmem:[#allocation5 + $0x1120] sm:$0xff]
    %v897 = vld [vmem:[#allocation5 + $0x1128] sm:$0xff]
    %v898 = vld [vmem:[#allocation5 + $0x1130] sm:$0xff]
    %v899 = vld [vmem:[#allocation5 + $0x1138] sm:$0xff]
    %v900 = vld [vmem:[#allocation5 + $0x1140] sm:$0xff]
    %v901 = vld [vmem:[#allocation5 + $0x1148] sm:$0xff]
    %v902 = vld [vmem:[#allocation5 + $0x1150] sm:$0xff]
    %v903 = vld [vmem:[#allocation5 + $0x1158] sm:$0xff]
    %v904 = vld [vmem:[#allocation5 + $0x1160] sm:$0xff]
    %v905 = vld [vmem:[#allocation5 + $0x1168] sm:$0xff]
    %v906 = vld [vmem:[#allocation5 + $0x1170] sm:$0xff]
    %v907 = vld [vmem:[#allocation5 + $0x1178] sm:$0xff]
    %v908 = vld [vmem:[#allocation5 + $0x1180] sm:$0xff]
    %v909 = vld [vmem:[#allocation5 + $0x1188] sm:$0xff]
    %v910 = vld [vmem:[#allocation5 + $0x1190] sm:$0xff]
    %v911 = vld [vmem:[#allocation5 + $0x1198] sm:$0xff]
    %v912 = vld [vmem:[#allocation5 + $0x11a0] sm:$0xff]
    %v913 = vld [vmem:[#allocation5 + $0x11a8] sm:$0xff]
    %v914 = vld [vmem:[#allocation5 + $0x11b0] sm:$0xff]
    %v915 = vld [vmem:[#allocation5 + $0x11b8] sm:$0xff]
    %v916 = vld [vmem:[#allocation5 + $0x11c0] sm:$0xff]
    %v917 = vld [vmem:[#allocation5 + $0x11c8] sm:$0xff]
    %v918 = vld [vmem:[#allocation5 + $0x11d0] sm:$0xff]
    %v919 = vld [vmem:[#allocation5 + $0x11d8] sm:$0xff]
    %v920 = vld [vmem:[#allocation5 + $0x11e0] sm:$0xff]
    %v921 = vld [vmem:[#allocation5 + $0x11e8] sm:$0xff]
    %v922 = vld [vmem:[#allocation5 + $0x11f0] sm:$0xff]
    %v923 = vld [vmem:[#allocation5 + $0x11f8] sm:$0xff]
    %v924 = vld [vmem:[#allocation7] sm:$0x3f]
    %v926 = vperm.slane %v924, 0
    %v927 = vperm.slane %v924, 1
    %v928 = vperm.slane %v924, 2
    %v929 = vperm.slane %v924, 3
    %v930 = vperm.slane %v924, 4
    %v931 = vperm.slane %v924, 5
    %938 = vmatpush.msra.mxu0 %v438
    %939 = vmatpush.msra.mxu0 %v432
    %940 = vmatpush.msra.mxu0 %v426
    %941 = vmatpush.msra.mxu0 %v420
    %942 = vmatpush.msra.mxu0 %v414
    %943 = vmatpush.msra.mxu0 %v408
    %944 = vmatpush.msra.mxu0 %v402
    %945 = vmatpush.msra.mxu0 %v396
    %946 = vmatpush.msra.mxu0 %v390
    %947 = vmatpush.msra.mxu0 %v384
    %948 = vmatpush.msra.mxu0 %v378
    %949 = vmatpush.msra.mxu0 %v372
    %950 = vmatpush.msra.mxu0 %v366
    %951 = vmatpush.msra.mxu0 %v360
    %952 = vmatpush.msra.mxu0 %v354
    %953 = vmatpush.msra.mxu0 %v348
    %954 = vmatmul.f32.gmra.mxu0 %v60
    %v955 = vpop.f32.mrf.mxu0
    %v956 = vadd.f32 %v926, %v955
    %957 = vmatmul.f32.gmra.mxu0 %v66
    %v958 = vpop.f32.mrf.mxu0
    %v959 = vadd.f32 %v926, %v958
    %960 = vmatmul.f32.gmra.mxu0 %v72
    %v961 = vpop.f32.mrf.mxu0
    %v962 = vadd.f32 %v926, %v961
    %963 = vmatmul.f32.gmra.mxu0 %v78
    %v964 = vpop.f32.mrf.mxu0
    %v965 = vadd.f32 %v926, %v964
    %966 = vmatmul.f32.gmra.mxu0 %v84
    %v967 = vpop.f32.mrf.mxu0
    %v968 = vadd.f32 %v926, %v967
    %969 = vmatmul.f32.gmra.mxu0 %v90
    %v970 = vpop.f32.mrf.mxu0
    %v971 = vadd.f32 %v926, %v970
    %972 = vmatmul.f32.gmra.mxu0 %v96
    %v973 = vpop.f32.mrf.mxu0
    %v974 = vadd.f32 %v926, %v973
    %975 = vmatmul.f32.gmra.mxu0 %v102
    %v976 = vpop.f32.mrf.mxu0
    %v977 = vadd.f32 %v926, %v976
    %978 = vmatmul.f32.gmra.mxu0 %v108
    %v979 = vpop.f32.mrf.mxu0
    %v980 = vadd.f32 %v926, %v979
    %981 = vmatmul.f32.gmra.mxu0 %v114
    %v982 = vpop.f32.mrf.mxu0
    %v983 = vadd.f32 %v926, %v982
    %984 = vmatmul.f32.gmra.mxu0 %v120
    %v985 = vpop.f32.mrf.mxu0
    %v986 = vadd.f32 %v926, %v985
    %987 = vmatmul.f32.gmra.mxu0 %v126
    %v988 = vpop.f32.mrf.mxu0
    %v989 = vadd.f32 %v926, %v988
    %990 = vmatmul.f32.gmra.mxu0 %v132
    %v991 = vpop.f32.mrf.mxu0
    %v992 = vadd.f32 %v926, %v991
    %993 = vmatmul.f32.gmra.mxu0 %v138
    %v994 = vpop.f32.mrf.mxu0
    %v995 = vadd.f32 %v926, %v994
    %996 = vmatmul.f32.gmra.mxu0 %v144
    %v997 = vpop.f32.mrf.mxu0
    %v998 = vadd.f32 %v926, %v997
    %999 = vmatmul.f32.gmra.mxu0 %v150
    %v1000 = vpop.f32.mrf.mxu0
    %v1001 = vadd.f32 %v926, %v1000
    %1002 = vmatmul.f32.gmra.mxu0 %v156
    %v1003 = vpop.f32.mrf.mxu0
    %v1004 = vadd.f32 %v926, %v1003
    %1005 = vmatmul.f32.gmra.mxu0 %v162
    %v1006 = vpop.f32.mrf.mxu0
    %v1007 = vadd.f32 %v926, %v1006
    %1008 = vmatmul.f32.gmra.mxu0 %v168
    %v1009 = vpop.f32.mrf.mxu0
    %v1010 = vadd.f32 %v926, %v1009
    %1011 = vmatmul.f32.gmra.mxu0 %v174
    %v1012 = vpop.f32.mrf.mxu0
    %v1013 = vadd.f32 %v926, %v1012
    %1014 = vmatmul.f32.gmra.mxu0 %v180
    %v1015 = vpop.f32.mrf.mxu0
    %v1016 = vadd.f32 %v926, %v1015
    %1017 = vmatmul.f32.gmra.mxu0 %v186
    %v1018 = vpop.f32.mrf.mxu0
    %v1019 = vadd.f32 %v926, %v1018
    %1020 = vmatmul.f32.gmra.mxu0 %v192
    %v1021 = vpop.f32.mrf.mxu0
    %v1022 = vadd.f32 %v926, %v1021
    %1023 = vmatmul.f32.gmra.mxu0 %v198
    %v1024 = vpop.f32.mrf.mxu0
    %v1025 = vadd.f32 %v926, %v1024
    %1026 = vmatmul.f32.gmra.mxu0 %v204
    %v1027 = vpop.f32.mrf.mxu0
    %v1028 = vadd.f32 %v926, %v1027
    %1029 = vmatmul.f32.gmra.mxu0 %v210
    %v1030 = vpop.f32.mrf.mxu0
    %v1031 = vadd.f32 %v926, %v1030
    %1032 = vmatmul.f32.gmra.mxu0 %v216
    %v1033 = vpop.f32.mrf.mxu0
    %v1034 = vadd.f32 %v926, %v1033
    %1035 = vmatmul.f32.gmra.mxu0 %v222
    %v1036 = vpop.f32.mrf.mxu0
    %v1037 = vadd.f32 %v926, %v1036
    %1038 = vmatmul.f32.gmra.mxu0 %v228
    %v1039 = vpop.f32.mrf.mxu0
    %v1040 = vadd.f32 %v926, %v1039
    %1041 = vmatmul.f32.gmra.mxu0 %v234
    %v1042 = vpop.f32.mrf.mxu0
    %v1043 = vadd.f32 %v926, %v1042
    %1044 = vmatmul.f32.gmra.mxu0 %v240
    %v1045 = vpop.f32.mrf.mxu0
    %v1046 = vadd.f32 %v926, %v1045
    %1047 = vmatmul.f32.gmra.mxu0 %v246
    %v1048 = vpop.f32.mrf.mxu0
    %v1049 = vadd.f32 %v926, %v1048
    %1050 = vmatmul.f32.gmra.mxu0 %v252
    %v1051 = vpop.f32.mrf.mxu0
    %v1052 = vadd.f32 %v926, %v1051
    %1053 = vmatmul.f32.gmra.mxu0 %v258
    %v1054 = vpop.f32.mrf.mxu0
    %v1055 = vadd.f32 %v926, %v1054
    %1056 = vmatmul.f32.gmra.mxu0 %v264
    %v1057 = vpop.f32.mrf.mxu0
    %v1058 = vadd.f32 %v926, %v1057
    %1059 = vmatmul.f32.gmra.mxu0 %v270
    %v1060 = vpop.f32.mrf.mxu0
    %v1061 = vadd.f32 %v926, %v1060
    %1062 = vmatmul.f32.gmra.mxu0 %v276
    %v1063 = vpop.f32.mrf.mxu0
    %v1064 = vadd.f32 %v926, %v1063
    %1065 = vmatmul.f32.gmra.mxu0 %v282
    %v1066 = vpop.f32.mrf.mxu0
    %v1067 = vadd.f32 %v926, %v1066
    %1068 = vmatmul.f32.gmra.mxu0 %v288
    %v1069 = vpop.f32.mrf.mxu0
    %v1070 = vadd.f32 %v926, %v1069
    %1071 = vmatmul.f32.gmra.mxu0 %v294
    %v1072 = vpop.f32.mrf.mxu0
    %v1073 = vadd.f32 %v926, %v1072
    %1074 = vmatmul.f32.gmra.mxu0 %v300
    %v1075 = vpop.f32.mrf.mxu0
    %v1076 = vadd.f32 %v926, %v1075
    %1077 = vmatmul.f32.gmra.mxu0 %v306
    %v1078 = vpop.f32.mrf.mxu0
    %v1079 = vadd.f32 %v926, %v1078
    %1080 = vmatmul.f32.gmra.mxu0 %v312
    %v1081 = vpop.f32.mrf.mxu0
    %v1082 = vadd.f32 %v926, %v1081
    %1083 = vmatmul.f32.gmra.mxu0 %v318
    %v1084 = vpop.f32.mrf.mxu0
    %v1085 = vadd.f32 %v926, %v1084
    %1086 = vmatmul.f32.gmra.mxu0 %v324
    %v1087 = vpop.f32.mrf.mxu0
    %v1088 = vadd.f32 %v926, %v1087
    %1089 = vmatmul.f32.gmra.mxu0 %v330
    %v1090 = vpop.f32.mrf.mxu0
    %v1091 = vadd.f32 %v926, %v1090
    %1092 = vmatmul.f32.gmra.mxu0 %v336
    %v1093 = vpop.f32.mrf.mxu0
    %v1094 = vadd.f32 %v926, %v1093
    %1095 = vmatmul.f32.gmra.mxu0 %v342
    %v1096 = vpop.f32.mrf.mxu0
    %v1097 = vadd.f32 %v926, %v1096
    %1098 = vdwg.mxu0
    %1099 = vmatpush.msra.mxu0 %v534
    %1100 = vmatpush.msra.mxu0 %v528
    %1101 = vmatpush.msra.mxu0 %v522
    %1102 = vmatpush.msra.mxu0 %v516
    %1103 = vmatpush.msra.mxu0 %v510
    %1104 = vmatpush.msra.mxu0 %v504
    %1105 = vmatpush.msra.mxu0 %v498
    %1106 = vmatpush.msra.mxu0 %v492
    %1107 = vmatpush.msra.mxu0 %v486
    %1108 = vmatpush.msra.mxu0 %v480
    %1109 = vmatpush.msra.mxu0 %v474
    %1110 = vmatpush.msra.mxu0 %v468
    %1111 = vmatpush.msra.mxu0 %v462
    %1112 = vmatpush.msra.mxu0 %v456
    %1113 = vmatpush.msra.mxu0 %v450
    %1114 = vmatpush.msra.mxu0 %v444
    %1115 = vmatmul.f32.gmra.mxu0 %v61
    %v1116 = vpop.f32.mrf.mxu0
    %v1117 = vadd.f32 %v956, %v1116
    %1118 = vmatmul.f32.gmra.mxu0 %v67
    %v1119 = vpop.f32.mrf.mxu0
    %v1120 = vadd.f32 %v959, %v1119
    %1121 = vmatmul.f32.gmra.mxu0 %v73
    %v1122 = vpop.f32.mrf.mxu0
    %v1123 = vadd.f32 %v962, %v1122
    %1124 = vmatmul.f32.gmra.mxu0 %v79
    %v1125 = vpop.f32.mrf.mxu0
    %v1126 = vadd.f32 %v965, %v1125
    %1127 = vmatmul.f32.gmra.mxu0 %v85
    %v1128 = vpop.f32.mrf.mxu0
    %v1129 = vadd.f32 %v968, %v1128
    %1130 = vmatmul.f32.gmra.mxu0 %v91
    %v1131 = vpop.f32.mrf.mxu0
    %v1132 = vadd.f32 %v971, %v1131
    %1133 = vmatmul.f32.gmra.mxu0 %v97
    %v1134 = vpop.f32.mrf.mxu0
    %v1135 = vadd.f32 %v974, %v1134
    %1136 = vmatmul.f32.gmra.mxu0 %v103
    %v1137 = vpop.f32.mrf.mxu0
    %v1138 = vadd.f32 %v977, %v1137
    %1139 = vmatmul.f32.gmra.mxu0 %v109
    %v1140 = vpop.f32.mrf.mxu0
    %v1141 = vadd.f32 %v980, %v1140
    %1142 = vmatmul.f32.gmra.mxu0 %v115
    %v1143 = vpop.f32.mrf.mxu0
    %v1144 = vadd.f32 %v983, %v1143
    %1145 = vmatmul.f32.gmra.mxu0 %v121
    %v1146 = vpop.f32.mrf.mxu0
    %v1147 = vadd.f32 %v986, %v1146
    %1148 = vmatmul.f32.gmra.mxu0 %v127
    %v1149 = vpop.f32.mrf.mxu0
    %v1150 = vadd.f32 %v989, %v1149
    %1151 = vmatmul.f32.gmra.mxu0 %v133
    %v1152 = vpop.f32.mrf.mxu0
    %v1153 = vadd.f32 %v992, %v1152
    %1154 = vmatmul.f32.gmra.mxu0 %v139
    %v1155 = vpop.f32.mrf.mxu0
    %v1156 = vadd.f32 %v995, %v1155
    %1157 = vmatmul.f32.gmra.mxu0 %v145
    %v1158 = vpop.f32.mrf.mxu0
    %v1159 = vadd.f32 %v998, %v1158
    %1160 = vmatmul.f32.gmra.mxu0 %v151
    %v1161 = vpop.f32.mrf.mxu0
    %v1162 = vadd.f32 %v1001, %v1161
    %1163 = vmatmul.f32.gmra.mxu0 %v157
    %v1164 = vpop.f32.mrf.mxu0
    %v1165 = vadd.f32 %v1004, %v1164
    %1166 = vmatmul.f32.gmra.mxu0 %v163
    %v1167 = vpop.f32.mrf.mxu0
    %v1168 = vadd.f32 %v1007, %v1167
    %1169 = vmatmul.f32.gmra.mxu0 %v169
    %v1170 = vpop.f32.mrf.mxu0
    %v1171 = vadd.f32 %v1010, %v1170
    %1172 = vmatmul.f32.gmra.mxu0 %v175
    %v1173 = vpop.f32.mrf.mxu0
    %v1174 = vadd.f32 %v1013, %v1173
    %1175 = vmatmul.f32.gmra.mxu0 %v181
    %v1176 = vpop.f32.mrf.mxu0
    %v1177 = vadd.f32 %v1016, %v1176
    %1178 = vmatmul.f32.gmra.mxu0 %v187
    %v1179 = vpop.f32.mrf.mxu0
    %v1180 = vadd.f32 %v1019, %v1179
    %1181 = vmatmul.f32.gmra.mxu0 %v193
    %v1182 = vpop.f32.mrf.mxu0
    %v1183 = vadd.f32 %v1022, %v1182
    %1184 = vmatmul.f32.gmra.mxu0 %v199
    %v1185 = vpop.f32.mrf.mxu0
    %v1186 = vadd.f32 %v1025, %v1185
    %1187 = vmatmul.f32.gmra.mxu0 %v205
    %v1188 = vpop.f32.mrf.mxu0
    %v1189 = vadd.f32 %v1028, %v1188
    %1190 = vmatmul.f32.gmra.mxu0 %v211
    %v1191 = vpop.f32.mrf.mxu0
    %v1192 = vadd.f32 %v1031, %v1191
    %1193 = vmatmul.f32.gmra.mxu0 %v217
    %v1194 = vpop.f32.mrf.mxu0
    %v1195 = vadd.f32 %v1034, %v1194
    %1196 = vmatmul.f32.gmra.mxu0 %v223
    %v1197 = vpop.f32.mrf.mxu0
    %v1198 = vadd.f32 %v1037, %v1197
    %1199 = vmatmul.f32.gmra.mxu0 %v229
    %v1200 = vpop.f32.mrf.mxu0
    %v1201 = vadd.f32 %v1040, %v1200
    %1202 = vmatmul.f32.gmra.mxu0 %v235
    %v1203 = vpop.f32.mrf.mxu0
    %v1204 = vadd.f32 %v1043, %v1203
    %1205 = vmatmul.f32.gmra.mxu0 %v241
    %v1206 = vpop.f32.mrf.mxu0
    %v1207 = vadd.f32 %v1046, %v1206
    %1208 = vmatmul.f32.gmra.mxu0 %v247
    %v1209 = vpop.f32.mrf.mxu0
    %v1210 = vadd.f32 %v1049, %v1209
    %1211 = vmatmul.f32.gmra.mxu0 %v253
    %v1212 = vpop.f32.mrf.mxu0
    %v1213 = vadd.f32 %v1052, %v1212
    %1214 = vmatmul.f32.gmra.mxu0 %v259
    %v1215 = vpop.f32.mrf.mxu0
    %v1216 = vadd.f32 %v1055, %v1215
    %1217 = vmatmul.f32.gmra.mxu0 %v265
    %v1218 = vpop.f32.mrf.mxu0
    %v1219 = vadd.f32 %v1058, %v1218
    %1220 = vmatmul.f32.gmra.mxu0 %v271
    %v1221 = vpop.f32.mrf.mxu0
    %v1222 = vadd.f32 %v1061, %v1221
    %1223 = vmatmul.f32.gmra.mxu0 %v277
    %v1224 = vpop.f32.mrf.mxu0
    %v1225 = vadd.f32 %v1064, %v1224
    %1226 = vmatmul.f32.gmra.mxu0 %v283
    %v1227 = vpop.f32.mrf.mxu0
    %v1228 = vadd.f32 %v1067, %v1227
    %1229 = vmatmul.f32.gmra.mxu0 %v289
    %v1230 = vpop.f32.mrf.mxu0
    %v1231 = vadd.f32 %v1070, %v1230
    %1232 = vmatmul.f32.gmra.mxu0 %v295
    %v1233 = vpop.f32.mrf.mxu0
    %v1234 = vadd.f32 %v1073, %v1233
    %1235 = vmatmul.f32.gmra.mxu0 %v301
    %v1236 = vpop.f32.mrf.mxu0
    %v1237 = vadd.f32 %v1076, %v1236
    %1238 = vmatmul.f32.gmra.mxu0 %v307
    %v1239 = vpop.f32.mrf.mxu0
    %v1240 = vadd.f32 %v1079, %v1239
    %1241 = vmatmul.f32.gmra.mxu0 %v313
    %v1242 = vpop.f32.mrf.mxu0
    %v1243 = vadd.f32 %v1082, %v1242
    %1244 = vmatmul.f32.gmra.mxu0 %v319
    %v1245 = vpop.f32.mrf.mxu0
    %v1246 = vadd.f32 %v1085, %v1245
    %1247 = vmatmul.f32.gmra.mxu0 %v325
    %v1248 = vpop.f32.mrf.mxu0
    %v1249 = vadd.f32 %v1088, %v1248
    %1250 = vmatmul.f32.gmra.mxu0 %v331
    %v1251 = vpop.f32.mrf.mxu0
    %v1252 = vadd.f32 %v1091, %v1251
    %1253 = vmatmul.f32.gmra.mxu0 %v337
    %v1254 = vpop.f32.mrf.mxu0
    %v1255 = vadd.f32 %v1094, %v1254
    %1256 = vmatmul.f32.gmra.mxu0 %v343
    %v1257 = vpop.f32.mrf.mxu0
    %v1258 = vadd.f32 %v1097, %v1257
    %1259 = vdwg.mxu0
    %1260 = vmatpush.msra.mxu0 %v630
    %1261 = vmatpush.msra.mxu0 %v624
    %1262 = vmatpush.msra.mxu0 %v618
    %1263 = vmatpush.msra.mxu0 %v612
    %1264 = vmatpush.msra.mxu0 %v606
    %1265 = vmatpush.msra.mxu0 %v600
    %1266 = vmatpush.msra.mxu0 %v594
    %1267 = vmatpush.msra.mxu0 %v588
    %1268 = vmatpush.msra.mxu0 %v582
    %1269 = vmatpush.msra.mxu0 %v576
    %1270 = vmatpush.msra.mxu0 %v570
    %1271 = vmatpush.msra.mxu0 %v564
    %1272 = vmatpush.msra.mxu0 %v558
    %1273 = vmatpush.msra.mxu0 %v552
    %1274 = vmatpush.msra.mxu0 %v546
    %1275 = vmatpush.msra.mxu0 %v540
    %1276 = vmatmul.f32.gmra.mxu0 %v62
    %v1277 = vpop.f32.mrf.mxu0
    %v1278 = vadd.f32 %v1117, %v1277
    %1279 = vmatmul.f32.gmra.mxu0 %v68
    %v1280 = vpop.f32.mrf.mxu0
    %v1281 = vadd.f32 %v1120, %v1280
    %1282 = vmatmul.f32.gmra.mxu0 %v74
    %v1283 = vpop.f32.mrf.mxu0
    %v1284 = vadd.f32 %v1123, %v1283
    %1285 = vmatmul.f32.gmra.mxu0 %v80
    %v1286 = vpop.f32.mrf.mxu0
    %v1287 = vadd.f32 %v1126, %v1286
    %1288 = vmatmul.f32.gmra.mxu0 %v86
    %v1289 = vpop.f32.mrf.mxu0
    %v1290 = vadd.f32 %v1129, %v1289
    %1291 = vmatmul.f32.gmra.mxu0 %v92
    %v1292 = vpop.f32.mrf.mxu0
    %v1293 = vadd.f32 %v1132, %v1292
    %1294 = vmatmul.f32.gmra.mxu0 %v98
    %v1295 = vpop.f32.mrf.mxu0
    %v1296 = vadd.f32 %v1135, %v1295
    %1297 = vmatmul.f32.gmra.mxu0 %v104
    %v1298 = vpop.f32.mrf.mxu0
    %v1299 = vadd.f32 %v1138, %v1298
    %1300 = vmatmul.f32.gmra.mxu0 %v110
    %v1301 = vpop.f32.mrf.mxu0
    %v1302 = vadd.f32 %v1141, %v1301
    %1303 = vmatmul.f32.gmra.mxu0 %v116
    %v1304 = vpop.f32.mrf.mxu0
    %v1305 = vadd.f32 %v1144, %v1304
    %1306 = vmatmul.f32.gmra.mxu0 %v122
    %v1307 = vpop.f32.mrf.mxu0
    %v1308 = vadd.f32 %v1147, %v1307
    %1309 = vmatmul.f32.gmra.mxu0 %v128
    %v1310 = vpop.f32.mrf.mxu0
    %v1311 = vadd.f32 %v1150, %v1310
    %1312 = vmatmul.f32.gmra.mxu0 %v134
    %v1313 = vpop.f32.mrf.mxu0
    %v1314 = vadd.f32 %v1153, %v1313
    %1315 = vmatmul.f32.gmra.mxu0 %v140
    %v1316 = vpop.f32.mrf.mxu0
    %v1317 = vadd.f32 %v1156, %v1316
    %1318 = vmatmul.f32.gmra.mxu0 %v146
    %v1319 = vpop.f32.mrf.mxu0
    %v1320 = vadd.f32 %v1159, %v1319
    %1321 = vmatmul.f32.gmra.mxu0 %v152
    %v1322 = vpop.f32.mrf.mxu0
    %v1323 = vadd.f32 %v1162, %v1322
    %1324 = vmatmul.f32.gmra.mxu0 %v158
    %v1325 = vpop.f32.mrf.mxu0
    %v1326 = vadd.f32 %v1165, %v1325
    %1327 = vmatmul.f32.gmra.mxu0 %v164
    %v1328 = vpop.f32.mrf.mxu0
    %v1329 = vadd.f32 %v1168, %v1328
    %1330 = vmatmul.f32.gmra.mxu0 %v170
    %v1331 = vpop.f32.mrf.mxu0
    %v1332 = vadd.f32 %v1171, %v1331
    %1333 = vmatmul.f32.gmra.mxu0 %v176
    %v1334 = vpop.f32.mrf.mxu0
    %v1335 = vadd.f32 %v1174, %v1334
    %1336 = vmatmul.f32.gmra.mxu0 %v182
    %v1337 = vpop.f32.mrf.mxu0
    %v1338 = vadd.f32 %v1177, %v1337
    %1339 = vmatmul.f32.gmra.mxu0 %v188
    %v1340 = vpop.f32.mrf.mxu0
    %v1341 = vadd.f32 %v1180, %v1340
    %1342 = vmatmul.f32.gmra.mxu0 %v194
    %v1343 = vpop.f32.mrf.mxu0
    %v1344 = vadd.f32 %v1183, %v1343
    %1345 = vmatmul.f32.gmra.mxu0 %v200
    %v1346 = vpop.f32.mrf.mxu0
    %v1347 = vadd.f32 %v1186, %v1346
    %1348 = vmatmul.f32.gmra.mxu0 %v206
    %v1349 = vpop.f32.mrf.mxu0
    %v1350 = vadd.f32 %v1189, %v1349
    %1351 = vmatmul.f32.gmra.mxu0 %v212
    %v1352 = vpop.f32.mrf.mxu0
    %v1353 = vadd.f32 %v1192, %v1352
    %1354 = vmatmul.f32.gmra.mxu0 %v218
    %v1355 = vpop.f32.mrf.mxu0
    %v1356 = vadd.f32 %v1195, %v1355
    %1357 = vmatmul.f32.gmra.mxu0 %v224
    %v1358 = vpop.f32.mrf.mxu0
    %v1359 = vadd.f32 %v1198, %v1358
    %1360 = vmatmul.f32.gmra.mxu0 %v230
    %v1361 = vpop.f32.mrf.mxu0
    %v1362 = vadd.f32 %v1201, %v1361
    %1363 = vmatmul.f32.gmra.mxu0 %v236
    %v1364 = vpop.f32.mrf.mxu0
    %v1365 = vadd.f32 %v1204, %v1364
    %1366 = vmatmul.f32.gmra.mxu0 %v242
    %v1367 = vpop.f32.mrf.mxu0
    %v1368 = vadd.f32 %v1207, %v1367
    %1369 = vmatmul.f32.gmra.mxu0 %v248
    %v1370 = vpop.f32.mrf.mxu0
    %v1371 = vadd.f32 %v1210, %v1370
    %1372 = vmatmul.f32.gmra.mxu0 %v254
    %v1373 = vpop.f32.mrf.mxu0
    %v1374 = vadd.f32 %v1213, %v1373
    %1375 = vmatmul.f32.gmra.mxu0 %v260
    %v1376 = vpop.f32.mrf.mxu0
    %v1377 = vadd.f32 %v1216, %v1376
    %1378 = vmatmul.f32.gmra.mxu0 %v266
    %v1379 = vpop.f32.mrf.mxu0
    %v1380 = vadd.f32 %v1219, %v1379
    %1381 = vmatmul.f32.gmra.mxu0 %v272
    %v1382 = vpop.f32.mrf.mxu0
    %v1383 = vadd.f32 %v1222, %v1382
    %1384 = vmatmul.f32.gmra.mxu0 %v278
    %v1385 = vpop.f32.mrf.mxu0
    %v1386 = vadd.f32 %v1225, %v1385
    %1387 = vmatmul.f32.gmra.mxu0 %v284
    %v1388 = vpop.f32.mrf.mxu0
    %v1389 = vadd.f32 %v1228, %v1388
    %1390 = vmatmul.f32.gmra.mxu0 %v290
    %v1391 = vpop.f32.mrf.mxu0
    %v1392 = vadd.f32 %v1231, %v1391
    %1393 = vmatmul.f32.gmra.mxu0 %v296
    %v1394 = vpop.f32.mrf.mxu0
    %v1395 = vadd.f32 %v1234, %v1394
    %1396 = vmatmul.f32.gmra.mxu0 %v302
    %v1397 = vpop.f32.mrf.mxu0
    %v1398 = vadd.f32 %v1237, %v1397
    %1399 = vmatmul.f32.gmra.mxu0 %v308
    %v1400 = vpop.f32.mrf.mxu0
    %v1401 = vadd.f32 %v1240, %v1400
    %1402 = vmatmul.f32.gmra.mxu0 %v314
    %v1403 = vpop.f32.mrf.mxu0
    %v1404 = vadd.f32 %v1243, %v1403
    %1405 = vmatmul.f32.gmra.mxu0 %v320
    %v1406 = vpop.f32.mrf.mxu0
    %v1407 = vadd.f32 %v1246, %v1406
    %1408 = vmatmul.f32.gmra.mxu0 %v326
    %v1409 = vpop.f32.mrf.mxu0
    %v1410 = vadd.f32 %v1249, %v1409
    %1411 = vmatmul.f32.gmra.mxu0 %v332
    %v1412 = vpop.f32.mrf.mxu0
    %v1413 = vadd.f32 %v1252, %v1412
    %1414 = vmatmul.f32.gmra.mxu0 %v338
    %v1415 = vpop.f32.mrf.mxu0
    %v1416 = vadd.f32 %v1255, %v1415
    %1417 = vmatmul.f32.gmra.mxu0 %v344
    %v1418 = vpop.f32.mrf.mxu0
    %v1419 = vadd.f32 %v1258, %v1418
    %1420 = vdwg.mxu0
    %1421 = vmatpush.msra.mxu0 %v726
    %1422 = vmatpush.msra.mxu0 %v720
    %1423 = vmatpush.msra.mxu0 %v714
    %1424 = vmatpush.msra.mxu0 %v708
    %1425 = vmatpush.msra.mxu0 %v702
    %1426 = vmatpush.msra.mxu0 %v696
    %1427 = vmatpush.msra.mxu0 %v690
    %1428 = vmatpush.msra.mxu0 %v684
    %1429 = vmatpush.msra.mxu0 %v678
    %1430 = vmatpush.msra.mxu0 %v672
    %1431 = vmatpush.msra.mxu0 %v666
    %1432 = vmatpush.msra.mxu0 %v660
    %1433 = vmatpush.msra.mxu0 %v654
    %1434 = vmatpush.msra.mxu0 %v648
    %1435 = vmatpush.msra.mxu0 %v642
    %1436 = vmatpush.msra.mxu0 %v636
    %1437 = vmatmul.f32.gmra.mxu0 %v63
    %v1438 = vpop.f32.mrf.mxu0
    %v1439 = vadd.f32 %v1278, %v1438
    %1440 = vmatmul.f32.gmra.mxu0 %v69
    %v1441 = vpop.f32.mrf.mxu0
    %v1442 = vadd.f32 %v1281, %v1441
    %1443 = vmatmul.f32.gmra.mxu0 %v75
    %v1444 = vpop.f32.mrf.mxu0
    %v1445 = vadd.f32 %v1284, %v1444
    %1446 = vmatmul.f32.gmra.mxu0 %v81
    %v1447 = vpop.f32.mrf.mxu0
    %v1448 = vadd.f32 %v1287, %v1447
    %1449 = vmatmul.f32.gmra.mxu0 %v87
    %v1450 = vpop.f32.mrf.mxu0
    %v1451 = vadd.f32 %v1290, %v1450
    %1452 = vmatmul.f32.gmra.mxu0 %v93
    %v1453 = vpop.f32.mrf.mxu0
    %v1454 = vadd.f32 %v1293, %v1453
    %1455 = vmatmul.f32.gmra.mxu0 %v99
    %v1456 = vpop.f32.mrf.mxu0
    %v1457 = vadd.f32 %v1296, %v1456
    %1458 = vmatmul.f32.gmra.mxu0 %v105
    %v1459 = vpop.f32.mrf.mxu0
    %v1460 = vadd.f32 %v1299, %v1459
    %1461 = vmatmul.f32.gmra.mxu0 %v111
    %v1462 = vpop.f32.mrf.mxu0
    %v1463 = vadd.f32 %v1302, %v1462
    %1464 = vmatmul.f32.gmra.mxu0 %v117
    %v1465 = vpop.f32.mrf.mxu0
    %v1466 = vadd.f32 %v1305, %v1465
    %1467 = vmatmul.f32.gmra.mxu0 %v123
    %v1468 = vpop.f32.mrf.mxu0
    %v1469 = vadd.f32 %v1308, %v1468
    %1470 = vmatmul.f32.gmra.mxu0 %v129
    %v1471 = vpop.f32.mrf.mxu0
    %v1472 = vadd.f32 %v1311, %v1471
    %1473 = vmatmul.f32.gmra.mxu0 %v135
    %v1474 = vpop.f32.mrf.mxu0
    %v1475 = vadd.f32 %v1314, %v1474
    %1476 = vmatmul.f32.gmra.mxu0 %v141
    %v1477 = vpop.f32.mrf.mxu0
    %v1478 = vadd.f32 %v1317, %v1477
    %1479 = vmatmul.f32.gmra.mxu0 %v147
    %v1480 = vpop.f32.mrf.mxu0
    %v1481 = vadd.f32 %v1320, %v1480
    %1482 = vmatmul.f32.gmra.mxu0 %v153
    %v1483 = vpop.f32.mrf.mxu0
    %v1484 = vadd.f32 %v1323, %v1483
    %1485 = vmatmul.f32.gmra.mxu0 %v159
    %v1486 = vpop.f32.mrf.mxu0
    %v1487 = vadd.f32 %v1326, %v1486
    %1488 = vmatmul.f32.gmra.mxu0 %v165
    %v1489 = vpop.f32.mrf.mxu0
    %v1490 = vadd.f32 %v1329, %v1489
    %1491 = vmatmul.f32.gmra.mxu0 %v171
    %v1492 = vpop.f32.mrf.mxu0
    %v1493 = vadd.f32 %v1332, %v1492
    %1494 = vmatmul.f32.gmra.mxu0 %v177
    %v1495 = vpop.f32.mrf.mxu0
    %v1496 = vadd.f32 %v1335, %v1495
    %1497 = vmatmul.f32.gmra.mxu0 %v183
    %v1498 = vpop.f32.mrf.mxu0
    %v1499 = vadd.f32 %v1338, %v1498
    %1500 = vmatmul.f32.gmra.mxu0 %v189
    %v1501 = vpop.f32.mrf.mxu0
    %v1502 = vadd.f32 %v1341, %v1501
    %1503 = vmatmul.f32.gmra.mxu0 %v195
    %v1504 = vpop.f32.mrf.mxu0
    %v1505 = vadd.f32 %v1344, %v1504
    %1506 = vmatmul.f32.gmra.mxu0 %v201
    %v1507 = vpop.f32.mrf.mxu0
    %v1508 = vadd.f32 %v1347, %v1507
    %1509 = vmatmul.f32.gmra.mxu0 %v207
    %v1510 = vpop.f32.mrf.mxu0
    %v1511 = vadd.f32 %v1350, %v1510
    %1512 = vmatmul.f32.gmra.mxu0 %v213
    %v1513 = vpop.f32.mrf.mxu0
    %v1514 = vadd.f32 %v1353, %v1513
    %1515 = vmatmul.f32.gmra.mxu0 %v219
    %v1516 = vpop.f32.mrf.mxu0
    %v1517 = vadd.f32 %v1356, %v1516
    %1518 = vmatmul.f32.gmra.mxu0 %v225
    %v1519 = vpop.f32.mrf.mxu0
    %v1520 = vadd.f32 %v1359, %v1519
    %1521 = vmatmul.f32.gmra.mxu0 %v231
    %v1522 = vpop.f32.mrf.mxu0
    %v1523 = vadd.f32 %v1362, %v1522
    %1524 = vmatmul.f32.gmra.mxu0 %v237
    %v1525 = vpop.f32.mrf.mxu0
    %v1526 = vadd.f32 %v1365, %v1525
    %1527 = vmatmul.f32.gmra.mxu0 %v243
    %v1528 = vpop.f32.mrf.mxu0
    %v1529 = vadd.f32 %v1368, %v1528
    %1530 = vmatmul.f32.gmra.mxu0 %v249
    %v1531 = vpop.f32.mrf.mxu0
    %v1532 = vadd.f32 %v1371, %v1531
    %1533 = vmatmul.f32.gmra.mxu0 %v255
    %v1534 = vpop.f32.mrf.mxu0
    %v1535 = vadd.f32 %v1374, %v1534
    %1536 = vmatmul.f32.gmra.mxu0 %v261
    %v1537 = vpop.f32.mrf.mxu0
    %v1538 = vadd.f32 %v1377, %v1537
    %1539 = vmatmul.f32.gmra.mxu0 %v267
    %v1540 = vpop.f32.mrf.mxu0
    %v1541 = vadd.f32 %v1380, %v1540
    %1542 = vmatmul.f32.gmra.mxu0 %v273
    %v1543 = vpop.f32.mrf.mxu0
    %v1544 = vadd.f32 %v1383, %v1543
    %1545 = vmatmul.f32.gmra.mxu0 %v279
    %v1546 = vpop.f32.mrf.mxu0
    %v1547 = vadd.f32 %v1386, %v1546
    %1548 = vmatmul.f32.gmra.mxu0 %v285
    %v1549 = vpop.f32.mrf.mxu0
    %v1550 = vadd.f32 %v1389, %v1549
    %1551 = vmatmul.f32.gmra.mxu0 %v291
    %v1552 = vpop.f32.mrf.mxu0
    %v1553 = vadd.f32 %v1392, %v1552
    %1554 = vmatmul.f32.gmra.mxu0 %v297
    %v1555 = vpop.f32.mrf.mxu0
    %v1556 = vadd.f32 %v1395, %v1555
    %1557 = vmatmul.f32.gmra.mxu0 %v303
    %v1558 = vpop.f32.mrf.mxu0
    %v1559 = vadd.f32 %v1398, %v1558
    %1560 = vmatmul.f32.gmra.mxu0 %v309
    %v1561 = vpop.f32.mrf.mxu0
    %v1562 = vadd.f32 %v1401, %v1561
    %1563 = vmatmul.f32.gmra.mxu0 %v315
    %v1564 = vpop.f32.mrf.mxu0
    %v1565 = vadd.f32 %v1404, %v1564
    %1566 = vmatmul.f32.gmra.mxu0 %v321
    %v1567 = vpop.f32.mrf.mxu0
    %v1568 = vadd.f32 %v1407, %v1567
    %1569 = vmatmul.f32.gmra.mxu0 %v327
    %v1570 = vpop.f32.mrf.mxu0
    %v1571 = vadd.f32 %v1410, %v1570
    %1572 = vmatmul.f32.gmra.mxu0 %v333
    %v1573 = vpop.f32.mrf.mxu0
    %v1574 = vadd.f32 %v1413, %v1573
    %1575 = vmatmul.f32.gmra.mxu0 %v339
    %v1576 = vpop.f32.mrf.mxu0
    %v1577 = vadd.f32 %v1416, %v1576
    %1578 = vmatmul.f32.gmra.mxu0 %v345
    %v1579 = vpop.f32.mrf.mxu0
    %v1580 = vadd.f32 %v1419, %v1579
    %1581 = vdwg.mxu0
    %1582 = vmatpush.msra.mxu0 %v822
    %1583 = vmatpush.msra.mxu0 %v816
    %1584 = vmatpush.msra.mxu0 %v810
    %1585 = vmatpush.msra.mxu0 %v804
    %1586 = vmatpush.msra.mxu0 %v798
    %1587 = vmatpush.msra.mxu0 %v792
    %1588 = vmatpush.msra.mxu0 %v786
    %1589 = vmatpush.msra.mxu0 %v780
    %1590 = vmatpush.msra.mxu0 %v774
    %1591 = vmatpush.msra.mxu0 %v768
    %1592 = vmatpush.msra.mxu0 %v762
    %1593 = vmatpush.msra.mxu0 %v756
    %1594 = vmatpush.msra.mxu0 %v750
    %1595 = vmatpush.msra.mxu0 %v744
    %1596 = vmatpush.msra.mxu0 %v738
    %1597 = vmatpush.msra.mxu0 %v732
    %1598 = vmatmul.f32.gmra.mxu0 %v64
    %v1599 = vpop.f32.mrf.mxu0
    %v1600 = vadd.f32 %v1439, %v1599
    %1601 = vmatmul.f32.gmra.mxu0 %v70
    %v1602 = vpop.f32.mrf.mxu0
    %v1603 = vadd.f32 %v1442, %v1602
    %1604 = vmatmul.f32.gmra.mxu0 %v76
    %v1605 = vpop.f32.mrf.mxu0
    %v1606 = vadd.f32 %v1445, %v1605
    %1607 = vmatmul.f32.gmra.mxu0 %v82
    %v1608 = vpop.f32.mrf.mxu0
    %v1609 = vadd.f32 %v1448, %v1608
    %1610 = vmatmul.f32.gmra.mxu0 %v88
    %v1611 = vpop.f32.mrf.mxu0
    %v1612 = vadd.f32 %v1451, %v1611
    %1613 = vmatmul.f32.gmra.mxu0 %v94
    %v1614 = vpop.f32.mrf.mxu0
    %v1615 = vadd.f32 %v1454, %v1614
    %1616 = vmatmul.f32.gmra.mxu0 %v100
    %v1617 = vpop.f32.mrf.mxu0
    %v1618 = vadd.f32 %v1457, %v1617
    %1619 = vmatmul.f32.gmra.mxu0 %v106
    %v1620 = vpop.f32.mrf.mxu0
    %v1621 = vadd.f32 %v1460, %v1620
    %1622 = vmatmul.f32.gmra.mxu0 %v112
    %v1623 = vpop.f32.mrf.mxu0
    %v1624 = vadd.f32 %v1463, %v1623
    %1625 = vmatmul.f32.gmra.mxu0 %v118
    %v1626 = vpop.f32.mrf.mxu0
    %v1627 = vadd.f32 %v1466, %v1626
    %1628 = vmatmul.f32.gmra.mxu0 %v124
    %v1629 = vpop.f32.mrf.mxu0
    %v1630 = vadd.f32 %v1469, %v1629
    %1631 = vmatmul.f32.gmra.mxu0 %v130
    %v1632 = vpop.f32.mrf.mxu0
    %v1633 = vadd.f32 %v1472, %v1632
    %1634 = vmatmul.f32.gmra.mxu0 %v136
    %v1635 = vpop.f32.mrf.mxu0
    %v1636 = vadd.f32 %v1475, %v1635
    %1637 = vmatmul.f32.gmra.mxu0 %v142
    %v1638 = vpop.f32.mrf.mxu0
    %v1639 = vadd.f32 %v1478, %v1638
    %1640 = vmatmul.f32.gmra.mxu0 %v148
    %v1641 = vpop.f32.mrf.mxu0
    %v1642 = vadd.f32 %v1481, %v1641
    %1643 = vmatmul.f32.gmra.mxu0 %v154
    %v1644 = vpop.f32.mrf.mxu0
    %v1645 = vadd.f32 %v1484, %v1644
    %1646 = vmatmul.f32.gmra.mxu0 %v160
    %v1647 = vpop.f32.mrf.mxu0
    %v1648 = vadd.f32 %v1487, %v1647
    %1649 = vmatmul.f32.gmra.mxu0 %v166
    %v1650 = vpop.f32.mrf.mxu0
    %v1651 = vadd.f32 %v1490, %v1650
    %1652 = vmatmul.f32.gmra.mxu0 %v172
    %v1653 = vpop.f32.mrf.mxu0
    %v1654 = vadd.f32 %v1493, %v1653
    %1655 = vmatmul.f32.gmra.mxu0 %v178
    %v1656 = vpop.f32.mrf.mxu0
    %v1657 = vadd.f32 %v1496, %v1656
    %1658 = vmatmul.f32.gmra.mxu0 %v184
    %v1659 = vpop.f32.mrf.mxu0
    %v1660 = vadd.f32 %v1499, %v1659
    %1661 = vmatmul.f32.gmra.mxu0 %v190
    %v1662 = vpop.f32.mrf.mxu0
    %v1663 = vadd.f32 %v1502, %v1662
    %1664 = vmatmul.f32.gmra.mxu0 %v196
    %v1665 = vpop.f32.mrf.mxu0
    %v1666 = vadd.f32 %v1505, %v1665
    %1667 = vmatmul.f32.gmra.mxu0 %v202
    %v1668 = vpop.f32.mrf.mxu0
    %v1669 = vadd.f32 %v1508, %v1668
    %1670 = vmatmul.f32.gmra.mxu0 %v208
    %v1671 = vpop.f32.mrf.mxu0
    %v1672 = vadd.f32 %v1511, %v1671
    %1673 = vmatmul.f32.gmra.mxu0 %v214
    %v1674 = vpop.f32.mrf.mxu0
    %v1675 = vadd.f32 %v1514, %v1674
    %1676 = vmatmul.f32.gmra.mxu0 %v220
    %v1677 = vpop.f32.mrf.mxu0
    %v1678 = vadd.f32 %v1517, %v1677
    %1679 = vmatmul.f32.gmra.mxu0 %v226
    %v1680 = vpop.f32.mrf.mxu0
    %v1681 = vadd.f32 %v1520, %v1680
    %1682 = vmatmul.f32.gmra.mxu0 %v232
    %v1683 = vpop.f32.mrf.mxu0
    %v1684 = vadd.f32 %v1523, %v1683
    %1685 = vmatmul.f32.gmra.mxu0 %v238
    %v1686 = vpop.f32.mrf.mxu0
    %v1687 = vadd.f32 %v1526, %v1686
    %1688 = vmatmul.f32.gmra.mxu0 %v244
    %v1689 = vpop.f32.mrf.mxu0
    %v1690 = vadd.f32 %v1529, %v1689
    %1691 = vmatmul.f32.gmra.mxu0 %v250
    %v1692 = vpop.f32.mrf.mxu0
    %v1693 = vadd.f32 %v1532, %v1692
    %1694 = vmatmul.f32.gmra.mxu0 %v256
    %v1695 = vpop.f32.mrf.mxu0
    %v1696 = vadd.f32 %v1535, %v1695
    %1697 = vmatmul.f32.gmra.mxu0 %v262
    %v1698 = vpop.f32.mrf.mxu0
    %v1699 = vadd.f32 %v1538, %v1698
    %1700 = vmatmul.f32.gmra.mxu0 %v268
    %v1701 = vpop.f32.mrf.mxu0
    %v1702 = vadd.f32 %v1541, %v1701
    %1703 = vmatmul.f32.gmra.mxu0 %v274
    %v1704 = vpop.f32.mrf.mxu0
    %v1705 = vadd.f32 %v1544, %v1704
    %1706 = vmatmul.f32.gmra.mxu0 %v280
    %v1707 = vpop.f32.mrf.mxu0
    %v1708 = vadd.f32 %v1547, %v1707
    %1709 = vmatmul.f32.gmra.mxu0 %v286
    %v1710 = vpop.f32.mrf.mxu0
    %v1711 = vadd.f32 %v1550, %v1710
    %1712 = vmatmul.f32.gmra.mxu0 %v292
    %v1713 = vpop.f32.mrf.mxu0
    %v1714 = vadd.f32 %v1553, %v1713
    %1715 = vmatmul.f32.gmra.mxu0 %v298
    %v1716 = vpop.f32.mrf.mxu0
    %v1717 = vadd.f32 %v1556, %v1716
    %1718 = vmatmul.f32.gmra.mxu0 %v304
    %v1719 = vpop.f32.mrf.mxu0
    %v1720 = vadd.f32 %v1559, %v1719
    %1721 = vmatmul.f32.gmra.mxu0 %v310
    %v1722 = vpop.f32.mrf.mxu0
    %v1723 = vadd.f32 %v1562, %v1722
    %1724 = vmatmul.f32.gmra.mxu0 %v316
    %v1725 = vpop.f32.mrf.mxu0
    %v1726 = vadd.f32 %v1565, %v1725
    %1727 = vmatmul.f32.gmra.mxu0 %v322
    %v1728 = vpop.f32.mrf.mxu0
    %v1729 = vadd.f32 %v1568, %v1728
    %1730 = vmatmul.f32.gmra.mxu0 %v328
    %v1731 = vpop.f32.mrf.mxu0
    %v1732 = vadd.f32 %v1571, %v1731
    %1733 = vmatmul.f32.gmra.mxu0 %v334
    %v1734 = vpop.f32.mrf.mxu0
    %v1735 = vadd.f32 %v1574, %v1734
    %1736 = vmatmul.f32.gmra.mxu0 %v340
    %v1737 = vpop.f32.mrf.mxu0
    %v1738 = vadd.f32 %v1577, %v1737
    %1739 = vmatmul.f32.gmra.mxu0 %v346
    %v1740 = vpop.f32.mrf.mxu0
    %v1741 = vadd.f32 %v1580, %v1740
    %1742 = vdwg.mxu0
    %1743 = vmatpush.msra.mxu0 %v918
    %1744 = vmatpush.msra.mxu0 %v912
    %1745 = vmatpush.msra.mxu0 %v906
    %1746 = vmatpush.msra.mxu0 %v900
    %1747 = vmatpush.msra.mxu0 %v894
    %1748 = vmatpush.msra.mxu0 %v888
    %1749 = vmatpush.msra.mxu0 %v882
    %1750 = vmatpush.msra.mxu0 %v876
    %1751 = vmatpush.msra.mxu0 %v870
    %1752 = vmatpush.msra.mxu0 %v864
    %1753 = vmatpush.msra.mxu0 %v858
    %1754 = vmatpush.msra.mxu0 %v852
    %1755 = vmatpush.msra.mxu0 %v846
    %1756 = vmatpush.msra.mxu0 %v840
    %1757 = vmatpush.msra.mxu0 %v834
    %1758 = vmatpush.msra.mxu0 %v828
    %1759 = vmatmul.f32.gmra.mxu0 %v65
    %v1760 = vpop.f32.mrf.mxu0
    %v1761 = vadd.f32 %v1600, %v1760
    %1762 = vmatmul.f32.gmra.mxu0 %v71
    %v1763 = vpop.f32.mrf.mxu0
    %v1764 = vadd.f32 %v1603, %v1763
    %1765 = vmatmul.f32.gmra.mxu0 %v77
    %v1766 = vpop.f32.mrf.mxu0
    %v1767 = vadd.f32 %v1606, %v1766
    %1768 = vmatmul.f32.gmra.mxu0 %v83
    %v1769 = vpop.f32.mrf.mxu0
    %v1770 = vadd.f32 %v1609, %v1769
    %1771 = vmatmul.f32.gmra.mxu0 %v89
    %v1772 = vpop.f32.mrf.mxu0
    %v1773 = vadd.f32 %v1612, %v1772
    %1774 = vmatmul.f32.gmra.mxu0 %v95
    %v1775 = vpop.f32.mrf.mxu0
    %v1776 = vadd.f32 %v1615, %v1775
    %1777 = vmatmul.f32.gmra.mxu0 %v101
    %v1778 = vpop.f32.mrf.mxu0
    %v1779 = vadd.f32 %v1618, %v1778
    %1780 = vmatmul.f32.gmra.mxu0 %v107
    %v1781 = vpop.f32.mrf.mxu0
    %v1782 = vadd.f32 %v1621, %v1781
    %1783 = vmatmul.f32.gmra.mxu0 %v113
    %v1784 = vpop.f32.mrf.mxu0
    %v1785 = vadd.f32 %v1624, %v1784
    %1786 = vmatmul.f32.gmra.mxu0 %v119
    %v1787 = vpop.f32.mrf.mxu0
    %v1788 = vadd.f32 %v1627, %v1787
    %1789 = vmatmul.f32.gmra.mxu0 %v125
    %v1790 = vpop.f32.mrf.mxu0
    %v1791 = vadd.f32 %v1630, %v1790
    %1792 = vmatmul.f32.gmra.mxu0 %v131
    %v1793 = vpop.f32.mrf.mxu0
    %v1794 = vadd.f32 %v1633, %v1793
    %1795 = vmatmul.f32.gmra.mxu0 %v137
    %v1796 = vpop.f32.mrf.mxu0
    %v1797 = vadd.f32 %v1636, %v1796
    %1798 = vmatmul.f32.gmra.mxu0 %v143
    %v1799 = vpop.f32.mrf.mxu0
    %v1800 = vadd.f32 %v1639, %v1799
    %1801 = vmatmul.f32.gmra.mxu0 %v149
    %v1802 = vpop.f32.mrf.mxu0
    %v1803 = vadd.f32 %v1642, %v1802
    %1804 = vmatmul.f32.gmra.mxu0 %v155
    %v1805 = vpop.f32.mrf.mxu0
    %v1806 = vadd.f32 %v1645, %v1805
    %1807 = vmatmul.f32.gmra.mxu0 %v161
    %v1808 = vpop.f32.mrf.mxu0
    %v1809 = vadd.f32 %v1648, %v1808
    %1810 = vmatmul.f32.gmra.mxu0 %v167
    %v1811 = vpop.f32.mrf.mxu0
    %v1812 = vadd.f32 %v1651, %v1811
    %1813 = vmatmul.f32.gmra.mxu0 %v173
    %v1814 = vpop.f32.mrf.mxu0
    %v1815 = vadd.f32 %v1654, %v1814
    %1816 = vmatmul.f32.gmra.mxu0 %v179
    %v1817 = vpop.f32.mrf.mxu0
    %v1818 = vadd.f32 %v1657, %v1817
    %1819 = vmatmul.f32.gmra.mxu0 %v185
    %v1820 = vpop.f32.mrf.mxu0
    %v1821 = vadd.f32 %v1660, %v1820
    %1822 = vmatmul.f32.gmra.mxu0 %v191
    %v1823 = vpop.f32.mrf.mxu0
    %v1824 = vadd.f32 %v1663, %v1823
    %1825 = vmatmul.f32.gmra.mxu0 %v197
    %v1826 = vpop.f32.mrf.mxu0
    %v1827 = vadd.f32 %v1666, %v1826
    %1828 = vmatmul.f32.gmra.mxu0 %v203
    %v1829 = vpop.f32.mrf.mxu0
    %v1830 = vadd.f32 %v1669, %v1829
    %1831 = vmatmul.f32.gmra.mxu0 %v209
    %v1832 = vpop.f32.mrf.mxu0
    %v1833 = vadd.f32 %v1672, %v1832
    %1834 = vmatmul.f32.gmra.mxu0 %v215
    %v1835 = vpop.f32.mrf.mxu0
    %v1836 = vadd.f32 %v1675, %v1835
    %1837 = vmatmul.f32.gmra.mxu0 %v221
    %v1838 = vpop.f32.mrf.mxu0
    %v1839 = vadd.f32 %v1678, %v1838
    %1840 = vmatmul.f32.gmra.mxu0 %v227
    %v1841 = vpop.f32.mrf.mxu0
    %v1842 = vadd.f32 %v1681, %v1841
    %1843 = vmatmul.f32.gmra.mxu0 %v233
    %v1844 = vpop.f32.mrf.mxu0
    %v1845 = vadd.f32 %v1684, %v1844
    %1846 = vmatmul.f32.gmra.mxu0 %v239
    %v1847 = vpop.f32.mrf.mxu0
    %v1848 = vadd.f32 %v1687, %v1847
    %1849 = vmatmul.f32.gmra.mxu0 %v245
    %v1850 = vpop.f32.mrf.mxu0
    %v1851 = vadd.f32 %v1690, %v1850
    %1852 = vmatmul.f32.gmra.mxu0 %v251
    %v1853 = vpop.f32.mrf.mxu0
    %v1854 = vadd.f32 %v1693, %v1853
    %1855 = vmatmul.f32.gmra.mxu0 %v257
    %v1856 = vpop.f32.mrf.mxu0
    %v1857 = vadd.f32 %v1696, %v1856
    %1858 = vmatmul.f32.gmra.mxu0 %v263
    %v1859 = vpop.f32.mrf.mxu0
    %v1860 = vadd.f32 %v1699, %v1859
    %1861 = vmatmul.f32.gmra.mxu0 %v269
    %v1862 = vpop.f32.mrf.mxu0
    %v1863 = vadd.f32 %v1702, %v1862
    %1864 = vmatmul.f32.gmra.mxu0 %v275
    %v1865 = vpop.f32.mrf.mxu0
    %v1866 = vadd.f32 %v1705, %v1865
    %1867 = vmatmul.f32.gmra.mxu0 %v281
    %v1868 = vpop.f32.mrf.mxu0
    %v1869 = vadd.f32 %v1708, %v1868
    %1870 = vmatmul.f32.gmra.mxu0 %v287
    %v1871 = vpop.f32.mrf.mxu0
    %v1872 = vadd.f32 %v1711, %v1871
    %1873 = vmatmul.f32.gmra.mxu0 %v293
    %v1874 = vpop.f32.mrf.mxu0
    %v1875 = vadd.f32 %v1714, %v1874
    %1876 = vmatmul.f32.gmra.mxu0 %v299
    %v1877 = vpop.f32.mrf.mxu0
    %v1878 = vadd.f32 %v1717, %v1877
    %1879 = vmatmul.f32.gmra.mxu0 %v305
    %v1880 = vpop.f32.mrf.mxu0
    %v1881 = vadd.f32 %v1720, %v1880
    %1882 = vmatmul.f32.gmra.mxu0 %v311
    %v1883 = vpop.f32.mrf.mxu0
    %v1884 = vadd.f32 %v1723, %v1883
    %1885 = vmatmul.f32.gmra.mxu0 %v317
    %v1886 = vpop.f32.mrf.mxu0
    %v1887 = vadd.f32 %v1726, %v1886
    %1888 = vmatmul.f32.gmra.mxu0 %v323
    %v1889 = vpop.f32.mrf.mxu0
    %v1890 = vadd.f32 %v1729, %v1889
    %1891 = vmatmul.f32.gmra.mxu0 %v329
    %v1892 = vpop.f32.mrf.mxu0
    %v1893 = vadd.f32 %v1732, %v1892
    %1894 = vmatmul.f32.gmra.mxu0 %v335
    %v1895 = vpop.f32.mrf.mxu0
    %v1896 = vadd.f32 %v1735, %v1895
    %1897 = vmatmul.f32.gmra.mxu0 %v341
    %v1898 = vpop.f32.mrf.mxu0
    %v1899 = vadd.f32 %v1738, %v1898
    %1900 = vmatmul.f32.gmra.mxu0 %v347
    %v1901 = vpop.f32.mrf.mxu0
    %v1902 = vadd.f32 %v1741, %v1901
    %1903 = vdwg.mxu0
    %1904 = vmatpush.msra.mxu0 %v439
    %1905 = vmatpush.msra.mxu0 %v433
    %1906 = vmatpush.msra.mxu0 %v427
    %1907 = vmatpush.msra.mxu0 %v421
    %1908 = vmatpush.msra.mxu0 %v415
    %1909 = vmatpush.msra.mxu0 %v409
    %1910 = vmatpush.msra.mxu0 %v403
    %1911 = vmatpush.msra.mxu0 %v397
    %1912 = vmatpush.msra.mxu0 %v391
    %1913 = vmatpush.msra.mxu0 %v385
    %1914 = vmatpush.msra.mxu0 %v379
    %1915 = vmatpush.msra.mxu0 %v373
    %1916 = vmatpush.msra.mxu0 %v367
    %1917 = vmatpush.msra.mxu0 %v361
    %1918 = vmatpush.msra.mxu0 %v355
    %1919 = vmatpush.msra.mxu0 %v349
    %1920 = vmatmul.f32.gmra.mxu0 %v60
    %v1921 = vpop.f32.mrf.mxu0
    %v1922 = vadd.f32 %v927, %v1921
    %1923 = vmatmul.f32.gmra.mxu0 %v66
    %v1924 = vpop.f32.mrf.mxu0
    %v1925 = vadd.f32 %v927, %v1924
    %1926 = vmatmul.f32.gmra.mxu0 %v72
    %v1927 = vpop.f32.mrf.mxu0
    %v1928 = vadd.f32 %v927, %v1927
    %1929 = vmatmul.f32.gmra.mxu0 %v78
    %v1930 = vpop.f32.mrf.mxu0
    %v1931 = vadd.f32 %v927, %v1930
    %1932 = vmatmul.f32.gmra.mxu0 %v84
    %v1933 = vpop.f32.mrf.mxu0
    %v1934 = vadd.f32 %v927, %v1933
    %1935 = vmatmul.f32.gmra.mxu0 %v90
    %v1936 = vpop.f32.mrf.mxu0
    %v1937 = vadd.f32 %v927, %v1936
    %1938 = vmatmul.f32.gmra.mxu0 %v96
    %v1939 = vpop.f32.mrf.mxu0
    %v1940 = vadd.f32 %v927, %v1939
    %1941 = vmatmul.f32.gmra.mxu0 %v102
    %v1942 = vpop.f32.mrf.mxu0
    %v1943 = vadd.f32 %v927, %v1942
    %1944 = vmatmul.f32.gmra.mxu0 %v108
    %v1945 = vpop.f32.mrf.mxu0
    %v1946 = vadd.f32 %v927, %v1945
    %1947 = vmatmul.f32.gmra.mxu0 %v114
    %v1948 = vpop.f32.mrf.mxu0
    %v1949 = vadd.f32 %v927, %v1948
    %1950 = vmatmul.f32.gmra.mxu0 %v120
    %v1951 = vpop.f32.mrf.mxu0
    %v1952 = vadd.f32 %v927, %v1951
    %1953 = vmatmul.f32.gmra.mxu0 %v126
    %v1954 = vpop.f32.mrf.mxu0
    %v1955 = vadd.f32 %v927, %v1954
    %1956 = vmatmul.f32.gmra.mxu0 %v132
    %v1957 = vpop.f32.mrf.mxu0
    %v1958 = vadd.f32 %v927, %v1957
    %1959 = vmatmul.f32.gmra.mxu0 %v138
    %v1960 = vpop.f32.mrf.mxu0
    %v1961 = vadd.f32 %v927, %v1960
    %1962 = vmatmul.f32.gmra.mxu0 %v144
    %v1963 = vpop.f32.mrf.mxu0
    %v1964 = vadd.f32 %v927, %v1963
    %1965 = vmatmul.f32.gmra.mxu0 %v150
    %v1966 = vpop.f32.mrf.mxu0
    %v1967 = vadd.f32 %v927, %v1966
    %1968 = vmatmul.f32.gmra.mxu0 %v156
    %v1969 = vpop.f32.mrf.mxu0
    %v1970 = vadd.f32 %v927, %v1969
    %1971 = vmatmul.f32.gmra.mxu0 %v162
    %v1972 = vpop.f32.mrf.mxu0
    %v1973 = vadd.f32 %v927, %v1972
    %1974 = vmatmul.f32.gmra.mxu0 %v168
    %v1975 = vpop.f32.mrf.mxu0
    %v1976 = vadd.f32 %v927, %v1975
    %1977 = vmatmul.f32.gmra.mxu0 %v174
    %v1978 = vpop.f32.mrf.mxu0
    %v1979 = vadd.f32 %v927, %v1978
    %1980 = vmatmul.f32.gmra.mxu0 %v180
    %v1981 = vpop.f32.mrf.mxu0
    %v1982 = vadd.f32 %v927, %v1981
    %1983 = vmatmul.f32.gmra.mxu0 %v186
    %v1984 = vpop.f32.mrf.mxu0
    %v1985 = vadd.f32 %v927, %v1984
    %1986 = vmatmul.f32.gmra.mxu0 %v192
    %v1987 = vpop.f32.mrf.mxu0
    %v1988 = vadd.f32 %v927, %v1987
    %1989 = vmatmul.f32.gmra.mxu0 %v198
    %v1990 = vpop.f32.mrf.mxu0
    %v1991 = vadd.f32 %v927, %v1990
    %1992 = vmatmul.f32.gmra.mxu0 %v204
    %v1993 = vpop.f32.mrf.mxu0
    %v1994 = vadd.f32 %v927, %v1993
    %1995 = vmatmul.f32.gmra.mxu0 %v210
    %v1996 = vpop.f32.mrf.mxu0
    %v1997 = vadd.f32 %v927, %v1996
    %1998 = vmatmul.f32.gmra.mxu0 %v216
    %v1999 = vpop.f32.mrf.mxu0
    %v2000 = vadd.f32 %v927, %v1999
    %2001 = vmatmul.f32.gmra.mxu0 %v222
    %v2002 = vpop.f32.mrf.mxu0
    %v2003 = vadd.f32 %v927, %v2002
    %2004 = vmatmul.f32.gmra.mxu0 %v228
    %v2005 = vpop.f32.mrf.mxu0
    %v2006 = vadd.f32 %v927, %v2005
    %2007 = vmatmul.f32.gmra.mxu0 %v234
    %v2008 = vpop.f32.mrf.mxu0
    %v2009 = vadd.f32 %v927, %v2008
    %2010 = vmatmul.f32.gmra.mxu0 %v240
    %v2011 = vpop.f32.mrf.mxu0
    %v2012 = vadd.f32 %v927, %v2011
    %2013 = vmatmul.f32.gmra.mxu0 %v246
    %v2014 = vpop.f32.mrf.mxu0
    %v2015 = vadd.f32 %v927, %v2014
    %2016 = vmatmul.f32.gmra.mxu0 %v252
    %v2017 = vpop.f32.mrf.mxu0
    %v2018 = vadd.f32 %v927, %v2017
    %2019 = vmatmul.f32.gmra.mxu0 %v258
    %v2020 = vpop.f32.mrf.mxu0
    %v2021 = vadd.f32 %v927, %v2020
    %2022 = vmatmul.f32.gmra.mxu0 %v264
    %v2023 = vpop.f32.mrf.mxu0
    %v2024 = vadd.f32 %v927, %v2023
    %2025 = vmatmul.f32.gmra.mxu0 %v270
    %v2026 = vpop.f32.mrf.mxu0
    %v2027 = vadd.f32 %v927, %v2026
    %2028 = vmatmul.f32.gmra.mxu0 %v276
    %v2029 = vpop.f32.mrf.mxu0
    %v2030 = vadd.f32 %v927, %v2029
    %2031 = vmatmul.f32.gmra.mxu0 %v282
    %v2032 = vpop.f32.mrf.mxu0
    %v2033 = vadd.f32 %v927, %v2032
    %2034 = vmatmul.f32.gmra.mxu0 %v288
    %v2035 = vpop.f32.mrf.mxu0
    %v2036 = vadd.f32 %v927, %v2035
    %2037 = vmatmul.f32.gmra.mxu0 %v294
    %v2038 = vpop.f32.mrf.mxu0
    %v2039 = vadd.f32 %v927, %v2038
    %2040 = vmatmul.f32.gmra.mxu0 %v300
    %v2041 = vpop.f32.mrf.mxu0
    %v2042 = vadd.f32 %v927, %v2041
    %2043 = vmatmul.f32.gmra.mxu0 %v306
    %v2044 = vpop.f32.mrf.mxu0
    %v2045 = vadd.f32 %v927, %v2044
    %2046 = vmatmul.f32.gmra.mxu0 %v312
    %v2047 = vpop.f32.mrf.mxu0
    %v2048 = vadd.f32 %v927, %v2047
    %2049 = vmatmul.f32.gmra.mxu0 %v318
    %v2050 = vpop.f32.mrf.mxu0
    %v2051 = vadd.f32 %v927, %v2050
    %2052 = vmatmul.f32.gmra.mxu0 %v324
    %v2053 = vpop.f32.mrf.mxu0
    %v2054 = vadd.f32 %v927, %v2053
    %2055 = vmatmul.f32.gmra.mxu0 %v330
    %v2056 = vpop.f32.mrf.mxu0
    %v2057 = vadd.f32 %v927, %v2056
    %2058 = vmatmul.f32.gmra.mxu0 %v336
    %v2059 = vpop.f32.mrf.mxu0
    %v2060 = vadd.f32 %v927, %v2059
    %2061 = vmatmul.f32.gmra.mxu0 %v342
    %v2062 = vpop.f32.mrf.mxu0
    %v2063 = vadd.f32 %v927, %v2062
    %2064 = vdwg.mxu0
    %2065 = vmatpush.msra.mxu0 %v535
    %2066 = vmatpush.msra.mxu0 %v529
    %2067 = vmatpush.msra.mxu0 %v523
    %2068 = vmatpush.msra.mxu0 %v517
    %2069 = vmatpush.msra.mxu0 %v511
    %2070 = vmatpush.msra.mxu0 %v505
    %2071 = vmatpush.msra.mxu0 %v499
    %2072 = vmatpush.msra.mxu0 %v493
    %2073 = vmatpush.msra.mxu0 %v487
    %2074 = vmatpush.msra.mxu0 %v481
    %2075 = vmatpush.msra.mxu0 %v475
    %2076 = vmatpush.msra.mxu0 %v469
    %2077 = vmatpush.msra.mxu0 %v463
    %2078 = vmatpush.msra.mxu0 %v457
    %2079 = vmatpush.msra.mxu0 %v451
    %2080 = vmatpush.msra.mxu0 %v445
    %2081 = vmatmul.f32.gmra.mxu0 %v61
    %v2082 = vpop.f32.mrf.mxu0
    %v2083 = vadd.f32 %v1922, %v2082
    %2084 = vmatmul.f32.gmra.mxu0 %v67
    %v2085 = vpop.f32.mrf.mxu0
    %v2086 = vadd.f32 %v1925, %v2085
    %2087 = vmatmul.f32.gmra.mxu0 %v73
    %v2088 = vpop.f32.mrf.mxu0
    %v2089 = vadd.f32 %v1928, %v2088
    %2090 = vmatmul.f32.gmra.mxu0 %v79
    %v2091 = vpop.f32.mrf.mxu0
    %v2092 = vadd.f32 %v1931, %v2091
    %2093 = vmatmul.f32.gmra.mxu0 %v85
    %v2094 = vpop.f32.mrf.mxu0
    %v2095 = vadd.f32 %v1934, %v2094
    %2096 = vmatmul.f32.gmra.mxu0 %v91
    %v2097 = vpop.f32.mrf.mxu0
    %v2098 = vadd.f32 %v1937, %v2097
    %2099 = vmatmul.f32.gmra.mxu0 %v97
    %v2100 = vpop.f32.mrf.mxu0
    %v2101 = vadd.f32 %v1940, %v2100
    %2102 = vmatmul.f32.gmra.mxu0 %v103
    %v2103 = vpop.f32.mrf.mxu0
    %v2104 = vadd.f32 %v1943, %v2103
    %2105 = vmatmul.f32.gmra.mxu0 %v109
    %v2106 = vpop.f32.mrf.mxu0
    %v2107 = vadd.f32 %v1946, %v2106
    %2108 = vmatmul.f32.gmra.mxu0 %v115
    %v2109 = vpop.f32.mrf.mxu0
    %v2110 = vadd.f32 %v1949, %v2109
    %2111 = vmatmul.f32.gmra.mxu0 %v121
    %v2112 = vpop.f32.mrf.mxu0
    %v2113 = vadd.f32 %v1952, %v2112
    %2114 = vmatmul.f32.gmra.mxu0 %v127
    %v2115 = vpop.f32.mrf.mxu0
    %v2116 = vadd.f32 %v1955, %v2115
    %2117 = vmatmul.f32.gmra.mxu0 %v133
    %v2118 = vpop.f32.mrf.mxu0
    %v2119 = vadd.f32 %v1958, %v2118
    %2120 = vmatmul.f32.gmra.mxu0 %v139
    %v2121 = vpop.f32.mrf.mxu0
    %v2122 = vadd.f32 %v1961, %v2121
    %2123 = vmatmul.f32.gmra.mxu0 %v145
    %v2124 = vpop.f32.mrf.mxu0
    %v2125 = vadd.f32 %v1964, %v2124
    %2126 = vmatmul.f32.gmra.mxu0 %v151
    %v2127 = vpop.f32.mrf.mxu0
    %v2128 = vadd.f32 %v1967, %v2127
    %2129 = vmatmul.f32.gmra.mxu0 %v157
    %v2130 = vpop.f32.mrf.mxu0
    %v2131 = vadd.f32 %v1970, %v2130
    %2132 = vmatmul.f32.gmra.mxu0 %v163
    %v2133 = vpop.f32.mrf.mxu0
    %v2134 = vadd.f32 %v1973, %v2133
    %2135 = vmatmul.f32.gmra.mxu0 %v169
    %v2136 = vpop.f32.mrf.mxu0
    %v2137 = vadd.f32 %v1976, %v2136
    %2138 = vmatmul.f32.gmra.mxu0 %v175
    %v2139 = vpop.f32.mrf.mxu0
    %v2140 = vadd.f32 %v1979, %v2139
    %2141 = vmatmul.f32.gmra.mxu0 %v181
    %v2142 = vpop.f32.mrf.mxu0
    %v2143 = vadd.f32 %v1982, %v2142
    %2144 = vmatmul.f32.gmra.mxu0 %v187
    %v2145 = vpop.f32.mrf.mxu0
    %v2146 = vadd.f32 %v1985, %v2145
    %2147 = vmatmul.f32.gmra.mxu0 %v193
    %v2148 = vpop.f32.mrf.mxu0
    %v2149 = vadd.f32 %v1988, %v2148
    %2150 = vmatmul.f32.gmra.mxu0 %v199
    %v2151 = vpop.f32.mrf.mxu0
    %v2152 = vadd.f32 %v1991, %v2151
    %2153 = vmatmul.f32.gmra.mxu0 %v205
    %v2154 = vpop.f32.mrf.mxu0
    %v2155 = vadd.f32 %v1994, %v2154
    %2156 = vmatmul.f32.gmra.mxu0 %v211
    %v2157 = vpop.f32.mrf.mxu0
    %v2158 = vadd.f32 %v1997, %v2157
    %2159 = vmatmul.f32.gmra.mxu0 %v217
    %v2160 = vpop.f32.mrf.mxu0
    %v2161 = vadd.f32 %v2000, %v2160
    %2162 = vmatmul.f32.gmra.mxu0 %v223
    %v2163 = vpop.f32.mrf.mxu0
    %v2164 = vadd.f32 %v2003, %v2163
    %2165 = vmatmul.f32.gmra.mxu0 %v229
    %v2166 = vpop.f32.mrf.mxu0
    %v2167 = vadd.f32 %v2006, %v2166
    %2168 = vmatmul.f32.gmra.mxu0 %v235
    %v2169 = vpop.f32.mrf.mxu0
    %v2170 = vadd.f32 %v2009, %v2169
    %2171 = vmatmul.f32.gmra.mxu0 %v241
    %v2172 = vpop.f32.mrf.mxu0
    %v2173 = vadd.f32 %v2012, %v2172
    %2174 = vmatmul.f32.gmra.mxu0 %v247
    %v2175 = vpop.f32.mrf.mxu0
    %v2176 = vadd.f32 %v2015, %v2175
    %2177 = vmatmul.f32.gmra.mxu0 %v253
    %v2178 = vpop.f32.mrf.mxu0
    %v2179 = vadd.f32 %v2018, %v2178
    %2180 = vmatmul.f32.gmra.mxu0 %v259
    %v2181 = vpop.f32.mrf.mxu0
    %v2182 = vadd.f32 %v2021, %v2181
    %2183 = vmatmul.f32.gmra.mxu0 %v265
    %v2184 = vpop.f32.mrf.mxu0
    %v2185 = vadd.f32 %v2024, %v2184
    %2186 = vmatmul.f32.gmra.mxu0 %v271
    %v2187 = vpop.f32.mrf.mxu0
    %v2188 = vadd.f32 %v2027, %v2187
    %2189 = vmatmul.f32.gmra.mxu0 %v277
    %v2190 = vpop.f32.mrf.mxu0
    %v2191 = vadd.f32 %v2030, %v2190
    %2192 = vmatmul.f32.gmra.mxu0 %v283
    %v2193 = vpop.f32.mrf.mxu0
    %v2194 = vadd.f32 %v2033, %v2193
    %2195 = vmatmul.f32.gmra.mxu0 %v289
    %v2196 = vpop.f32.mrf.mxu0
    %v2197 = vadd.f32 %v2036, %v2196
    %2198 = vmatmul.f32.gmra.mxu0 %v295
    %v2199 = vpop.f32.mrf.mxu0
    %v2200 = vadd.f32 %v2039, %v2199
    %2201 = vmatmul.f32.gmra.mxu0 %v301
    %v2202 = vpop.f32.mrf.mxu0
    %v2203 = vadd.f32 %v2042, %v2202
    %2204 = vmatmul.f32.gmra.mxu0 %v307
    %v2205 = vpop.f32.mrf.mxu0
    %v2206 = vadd.f32 %v2045, %v2205
    %2207 = vmatmul.f32.gmra.mxu0 %v313
    %v2208 = vpop.f32.mrf.mxu0
    %v2209 = vadd.f32 %v2048, %v2208
    %2210 = vmatmul.f32.gmra.mxu0 %v319
    %v2211 = vpop.f32.mrf.mxu0
    %v2212 = vadd.f32 %v2051, %v2211
    %2213 = vmatmul.f32.gmra.mxu0 %v325
    %v2214 = vpop.f32.mrf.mxu0
    %v2215 = vadd.f32 %v2054, %v2214
    %2216 = vmatmul.f32.gmra.mxu0 %v331
    %v2217 = vpop.f32.mrf.mxu0
    %v2218 = vadd.f32 %v2057, %v2217
    %2219 = vmatmul.f32.gmra.mxu0 %v337
    %v2220 = vpop.f32.mrf.mxu0
    %v2221 = vadd.f32 %v2060, %v2220
    %2222 = vmatmul.f32.gmra.mxu0 %v343
    %v2223 = vpop.f32.mrf.mxu0
    %v2224 = vadd.f32 %v2063, %v2223
    %2225 = vdwg.mxu0
    %2226 = vmatpush.msra.mxu0 %v631
    %2227 = vmatpush.msra.mxu0 %v625
    %2228 = vmatpush.msra.mxu0 %v619
    %2229 = vmatpush.msra.mxu0 %v613
    %2230 = vmatpush.msra.mxu0 %v607
    %2231 = vmatpush.msra.mxu0 %v601
    %2232 = vmatpush.msra.mxu0 %v595
    %2233 = vmatpush.msra.mxu0 %v589
    %2234 = vmatpush.msra.mxu0 %v583
    %2235 = vmatpush.msra.mxu0 %v577
    %2236 = vmatpush.msra.mxu0 %v571
    %2237 = vmatpush.msra.mxu0 %v565
    %2238 = vmatpush.msra.mxu0 %v559
    %2239 = vmatpush.msra.mxu0 %v553
    %2240 = vmatpush.msra.mxu0 %v547
    %2241 = vmatpush.msra.mxu0 %v541
    %2242 = vmatmul.f32.gmra.mxu0 %v62
    %v2243 = vpop.f32.mrf.mxu0
    %v2244 = vadd.f32 %v2083, %v2243
    %2245 = vmatmul.f32.gmra.mxu0 %v68
    %v2246 = vpop.f32.mrf.mxu0
    %v2247 = vadd.f32 %v2086, %v2246
    %2248 = vmatmul.f32.gmra.mxu0 %v74
    %v2249 = vpop.f32.mrf.mxu0
    %v2250 = vadd.f32 %v2089, %v2249
    %2251 = vmatmul.f32.gmra.mxu0 %v80
    %v2252 = vpop.f32.mrf.mxu0
    %v2253 = vadd.f32 %v2092, %v2252
    %2254 = vmatmul.f32.gmra.mxu0 %v86
    %v2255 = vpop.f32.mrf.mxu0
    %v2256 = vadd.f32 %v2095, %v2255
    %2257 = vmatmul.f32.gmra.mxu0 %v92
    %v2258 = vpop.f32.mrf.mxu0
    %v2259 = vadd.f32 %v2098, %v2258
    %2260 = vmatmul.f32.gmra.mxu0 %v98
    %v2261 = vpop.f32.mrf.mxu0
    %v2262 = vadd.f32 %v2101, %v2261
    %2263 = vmatmul.f32.gmra.mxu0 %v104
    %v2264 = vpop.f32.mrf.mxu0
    %v2265 = vadd.f32 %v2104, %v2264
    %2266 = vmatmul.f32.gmra.mxu0 %v110
    %v2267 = vpop.f32.mrf.mxu0
    %v2268 = vadd.f32 %v2107, %v2267
    %2269 = vmatmul.f32.gmra.mxu0 %v116
    %v2270 = vpop.f32.mrf.mxu0
    %v2271 = vadd.f32 %v2110, %v2270
    %2272 = vmatmul.f32.gmra.mxu0 %v122
    %v2273 = vpop.f32.mrf.mxu0
    %v2274 = vadd.f32 %v2113, %v2273
    %2275 = vmatmul.f32.gmra.mxu0 %v128
    %v2276 = vpop.f32.mrf.mxu0
    %v2277 = vadd.f32 %v2116, %v2276
    %2278 = vmatmul.f32.gmra.mxu0 %v134
    %v2279 = vpop.f32.mrf.mxu0
    %v2280 = vadd.f32 %v2119, %v2279
    %2281 = vmatmul.f32.gmra.mxu0 %v140
    %v2282 = vpop.f32.mrf.mxu0
    %v2283 = vadd.f32 %v2122, %v2282
    %2284 = vmatmul.f32.gmra.mxu0 %v146
    %v2285 = vpop.f32.mrf.mxu0
    %v2286 = vadd.f32 %v2125, %v2285
    %2287 = vmatmul.f32.gmra.mxu0 %v152
    %v2288 = vpop.f32.mrf.mxu0
    %v2289 = vadd.f32 %v2128, %v2288
    %2290 = vmatmul.f32.gmra.mxu0 %v158
    %v2291 = vpop.f32.mrf.mxu0
    %v2292 = vadd.f32 %v2131, %v2291
    %2293 = vmatmul.f32.gmra.mxu0 %v164
    %v2294 = vpop.f32.mrf.mxu0
    %v2295 = vadd.f32 %v2134, %v2294
    %2296 = vmatmul.f32.gmra.mxu0 %v170
    %v2297 = vpop.f32.mrf.mxu0
    %v2298 = vadd.f32 %v2137, %v2297
    %2299 = vmatmul.f32.gmra.mxu0 %v176
    %v2300 = vpop.f32.mrf.mxu0
    %v2301 = vadd.f32 %v2140, %v2300
    %2302 = vmatmul.f32.gmra.mxu0 %v182
    %v2303 = vpop.f32.mrf.mxu0
    %v2304 = vadd.f32 %v2143, %v2303
    %2305 = vmatmul.f32.gmra.mxu0 %v188
    %v2306 = vpop.f32.mrf.mxu0
    %v2307 = vadd.f32 %v2146, %v2306
    %2308 = vmatmul.f32.gmra.mxu0 %v194
    %v2309 = vpop.f32.mrf.mxu0
    %v2310 = vadd.f32 %v2149, %v2309
    %2311 = vmatmul.f32.gmra.mxu0 %v200
    %v2312 = vpop.f32.mrf.mxu0
    %v2313 = vadd.f32 %v2152, %v2312
    %2314 = vmatmul.f32.gmra.mxu0 %v206
    %v2315 = vpop.f32.mrf.mxu0
    %v2316 = vadd.f32 %v2155, %v2315
    %2317 = vmatmul.f32.gmra.mxu0 %v212
    %v2318 = vpop.f32.mrf.mxu0
    %v2319 = vadd.f32 %v2158, %v2318
    %2320 = vmatmul.f32.gmra.mxu0 %v218
    %v2321 = vpop.f32.mrf.mxu0
    %v2322 = vadd.f32 %v2161, %v2321
    %2323 = vmatmul.f32.gmra.mxu0 %v224
    %v2324 = vpop.f32.mrf.mxu0
    %v2325 = vadd.f32 %v2164, %v2324
    %2326 = vmatmul.f32.gmra.mxu0 %v230
    %v2327 = vpop.f32.mrf.mxu0
    %v2328 = vadd.f32 %v2167, %v2327
    %2329 = vmatmul.f32.gmra.mxu0 %v236
    %v2330 = vpop.f32.mrf.mxu0
    %v2331 = vadd.f32 %v2170, %v2330
    %2332 = vmatmul.f32.gmra.mxu0 %v242
    %v2333 = vpop.f32.mrf.mxu0
    %v2334 = vadd.f32 %v2173, %v2333
    %2335 = vmatmul.f32.gmra.mxu0 %v248
    %v2336 = vpop.f32.mrf.mxu0
    %v2337 = vadd.f32 %v2176, %v2336
    %2338 = vmatmul.f32.gmra.mxu0 %v254
    %v2339 = vpop.f32.mrf.mxu0
    %v2340 = vadd.f32 %v2179, %v2339
    %2341 = vmatmul.f32.gmra.mxu0 %v260
    %v2342 = vpop.f32.mrf.mxu0
    %v2343 = vadd.f32 %v2182, %v2342
    %2344 = vmatmul.f32.gmra.mxu0 %v266
    %v2345 = vpop.f32.mrf.mxu0
    %v2346 = vadd.f32 %v2185, %v2345
    %2347 = vmatmul.f32.gmra.mxu0 %v272
    %v2348 = vpop.f32.mrf.mxu0
    %v2349 = vadd.f32 %v2188, %v2348
    %2350 = vmatmul.f32.gmra.mxu0 %v278
    %v2351 = vpop.f32.mrf.mxu0
    %v2352 = vadd.f32 %v2191, %v2351
    %2353 = vmatmul.f32.gmra.mxu0 %v284
    %v2354 = vpop.f32.mrf.mxu0
    %v2355 = vadd.f32 %v2194, %v2354
    %2356 = vmatmul.f32.gmra.mxu0 %v290
    %v2357 = vpop.f32.mrf.mxu0
    %v2358 = vadd.f32 %v2197, %v2357
    %2359 = vmatmul.f32.gmra.mxu0 %v296
    %v2360 = vpop.f32.mrf.mxu0
    %v2361 = vadd.f32 %v2200, %v2360
    %2362 = vmatmul.f32.gmra.mxu0 %v302
    %v2363 = vpop.f32.mrf.mxu0
    %v2364 = vadd.f32 %v2203, %v2363
    %2365 = vmatmul.f32.gmra.mxu0 %v308
    %v2366 = vpop.f32.mrf.mxu0
    %v2367 = vadd.f32 %v2206, %v2366
    %2368 = vmatmul.f32.gmra.mxu0 %v314
    %v2369 = vpop.f32.mrf.mxu0
    %v2370 = vadd.f32 %v2209, %v2369
    %2371 = vmatmul.f32.gmra.mxu0 %v320
    %v2372 = vpop.f32.mrf.mxu0
    %v2373 = vadd.f32 %v2212, %v2372
    %2374 = vmatmul.f32.gmra.mxu0 %v326
    %v2375 = vpop.f32.mrf.mxu0
    %v2376 = vadd.f32 %v2215, %v2375
    %2377 = vmatmul.f32.gmra.mxu0 %v332
    %v2378 = vpop.f32.mrf.mxu0
    %v2379 = vadd.f32 %v2218, %v2378
    %2380 = vmatmul.f32.gmra.mxu0 %v338
    %v2381 = vpop.f32.mrf.mxu0
    %v2382 = vadd.f32 %v2221, %v2381
    %2383 = vmatmul.f32.gmra.mxu0 %v344
    %v2384 = vpop.f32.mrf.mxu0
    %v2385 = vadd.f32 %v2224, %v2384
    %2386 = vdwg.mxu0
    %2387 = vmatpush.msra.mxu0 %v727
    %2388 = vmatpush.msra.mxu0 %v721
    %2389 = vmatpush.msra.mxu0 %v715
    %2390 = vmatpush.msra.mxu0 %v709
    %2391 = vmatpush.msra.mxu0 %v703
    %2392 = vmatpush.msra.mxu0 %v697
    %2393 = vmatpush.msra.mxu0 %v691
    %2394 = vmatpush.msra.mxu0 %v685
    %2395 = vmatpush.msra.mxu0 %v679
    %2396 = vmatpush.msra.mxu0 %v673
    %2397 = vmatpush.msra.mxu0 %v667
    %2398 = vmatpush.msra.mxu0 %v661
    %2399 = vmatpush.msra.mxu0 %v655
    %2400 = vmatpush.msra.mxu0 %v649
    %2401 = vmatpush.msra.mxu0 %v643
    %2402 = vmatpush.msra.mxu0 %v637
    %2403 = vmatmul.f32.gmra.mxu0 %v63
    %v2404 = vpop.f32.mrf.mxu0
    %v2405 = vadd.f32 %v2244, %v2404
    %2406 = vmatmul.f32.gmra.mxu0 %v69
    %v2407 = vpop.f32.mrf.mxu0
    %v2408 = vadd.f32 %v2247, %v2407
    %2409 = vmatmul.f32.gmra.mxu0 %v75
    %v2410 = vpop.f32.mrf.mxu0
    %v2411 = vadd.f32 %v2250, %v2410
    %2412 = vmatmul.f32.gmra.mxu0 %v81
    %v2413 = vpop.f32.mrf.mxu0
    %v2414 = vadd.f32 %v2253, %v2413
    %2415 = vmatmul.f32.gmra.mxu0 %v87
    %v2416 = vpop.f32.mrf.mxu0
    %v2417 = vadd.f32 %v2256, %v2416
    %2418 = vmatmul.f32.gmra.mxu0 %v93
    %v2419 = vpop.f32.mrf.mxu0
    %v2420 = vadd.f32 %v2259, %v2419
    %2421 = vmatmul.f32.gmra.mxu0 %v99
    %v2422 = vpop.f32.mrf.mxu0
    %v2423 = vadd.f32 %v2262, %v2422
    %2424 = vmatmul.f32.gmra.mxu0 %v105
    %v2425 = vpop.f32.mrf.mxu0
    %v2426 = vadd.f32 %v2265, %v2425
    %2427 = vmatmul.f32.gmra.mxu0 %v111
    %v2428 = vpop.f32.mrf.mxu0
    %v2429 = vadd.f32 %v2268, %v2428
    %2430 = vmatmul.f32.gmra.mxu0 %v117
    %v2431 = vpop.f32.mrf.mxu0
    %v2432 = vadd.f32 %v2271, %v2431
    %2433 = vmatmul.f32.gmra.mxu0 %v123
    %v2434 = vpop.f32.mrf.mxu0
    %v2435 = vadd.f32 %v2274, %v2434
    %2436 = vmatmul.f32.gmra.mxu0 %v129
    %v2437 = vpop.f32.mrf.mxu0
    %v2438 = vadd.f32 %v2277, %v2437
    %2439 = vmatmul.f32.gmra.mxu0 %v135
    %v2440 = vpop.f32.mrf.mxu0
    %v2441 = vadd.f32 %v2280, %v2440
    %2442 = vmatmul.f32.gmra.mxu0 %v141
    %v2443 = vpop.f32.mrf.mxu0
    %v2444 = vadd.f32 %v2283, %v2443
    %2445 = vmatmul.f32.gmra.mxu0 %v147
    %v2446 = vpop.f32.mrf.mxu0
    %v2447 = vadd.f32 %v2286, %v2446
    %2448 = vmatmul.f32.gmra.mxu0 %v153
    %v2449 = vpop.f32.mrf.mxu0
    %v2450 = vadd.f32 %v2289, %v2449
    %2451 = vmatmul.f32.gmra.mxu0 %v159
    %v2452 = vpop.f32.mrf.mxu0
    %v2453 = vadd.f32 %v2292, %v2452
    %2454 = vmatmul.f32.gmra.mxu0 %v165
    %v2455 = vpop.f32.mrf.mxu0
    %v2456 = vadd.f32 %v2295, %v2455
    %2457 = vmatmul.f32.gmra.mxu0 %v171
    %v2458 = vpop.f32.mrf.mxu0
    %v2459 = vadd.f32 %v2298, %v2458
    %2460 = vmatmul.f32.gmra.mxu0 %v177
    %v2461 = vpop.f32.mrf.mxu0
    %v2462 = vadd.f32 %v2301, %v2461
    %2463 = vmatmul.f32.gmra.mxu0 %v183
    %v2464 = vpop.f32.mrf.mxu0
    %v2465 = vadd.f32 %v2304, %v2464
    %2466 = vmatmul.f32.gmra.mxu0 %v189
    %v2467 = vpop.f32.mrf.mxu0
    %v2468 = vadd.f32 %v2307, %v2467
    %2469 = vmatmul.f32.gmra.mxu0 %v195
    %v2470 = vpop.f32.mrf.mxu0
    %v2471 = vadd.f32 %v2310, %v2470
    %2472 = vmatmul.f32.gmra.mxu0 %v201
    %v2473 = vpop.f32.mrf.mxu0
    %v2474 = vadd.f32 %v2313, %v2473
    %2475 = vmatmul.f32.gmra.mxu0 %v207
    %v2476 = vpop.f32.mrf.mxu0
    %v2477 = vadd.f32 %v2316, %v2476
    %2478 = vmatmul.f32.gmra.mxu0 %v213
    %v2479 = vpop.f32.mrf.mxu0
    %v2480 = vadd.f32 %v2319, %v2479
    %2481 = vmatmul.f32.gmra.mxu0 %v219
    %v2482 = vpop.f32.mrf.mxu0
    %v2483 = vadd.f32 %v2322, %v2482
    %2484 = vmatmul.f32.gmra.mxu0 %v225
    %v2485 = vpop.f32.mrf.mxu0
    %v2486 = vadd.f32 %v2325, %v2485
    %2487 = vmatmul.f32.gmra.mxu0 %v231
    %v2488 = vpop.f32.mrf.mxu0
    %v2489 = vadd.f32 %v2328, %v2488
    %2490 = vmatmul.f32.gmra.mxu0 %v237
    %v2491 = vpop.f32.mrf.mxu0
    %v2492 = vadd.f32 %v2331, %v2491
    %2493 = vmatmul.f32.gmra.mxu0 %v243
    %v2494 = vpop.f32.mrf.mxu0
    %v2495 = vadd.f32 %v2334, %v2494
    %2496 = vmatmul.f32.gmra.mxu0 %v249
    %v2497 = vpop.f32.mrf.mxu0
    %v2498 = vadd.f32 %v2337, %v2497
    %2499 = vmatmul.f32.gmra.mxu0 %v255
    %v2500 = vpop.f32.mrf.mxu0
    %v2501 = vadd.f32 %v2340, %v2500
    %2502 = vmatmul.f32.gmra.mxu0 %v261
    %v2503 = vpop.f32.mrf.mxu0
    %v2504 = vadd.f32 %v2343, %v2503
    %2505 = vmatmul.f32.gmra.mxu0 %v267
    %v2506 = vpop.f32.mrf.mxu0
    %v2507 = vadd.f32 %v2346, %v2506
    %2508 = vmatmul.f32.gmra.mxu0 %v273
    %v2509 = vpop.f32.mrf.mxu0
    %v2510 = vadd.f32 %v2349, %v2509
    %2511 = vmatmul.f32.gmra.mxu0 %v279
    %v2512 = vpop.f32.mrf.mxu0
    %v2513 = vadd.f32 %v2352, %v2512
    %2514 = vmatmul.f32.gmra.mxu0 %v285
    %v2515 = vpop.f32.mrf.mxu0
    %v2516 = vadd.f32 %v2355, %v2515
    %2517 = vmatmul.f32.gmra.mxu0 %v291
    %v2518 = vpop.f32.mrf.mxu0
    %v2519 = vadd.f32 %v2358, %v2518
    %2520 = vmatmul.f32.gmra.mxu0 %v297
    %v2521 = vpop.f32.mrf.mxu0
    %v2522 = vadd.f32 %v2361, %v2521
    %2523 = vmatmul.f32.gmra.mxu0 %v303
    %v2524 = vpop.f32.mrf.mxu0
    %v2525 = vadd.f32 %v2364, %v2524
    %2526 = vmatmul.f32.gmra.mxu0 %v309
    %v2527 = vpop.f32.mrf.mxu0
    %v2528 = vadd.f32 %v2367, %v2527
    %2529 = vmatmul.f32.gmra.mxu0 %v315
    %v2530 = vpop.f32.mrf.mxu0
    %v2531 = vadd.f32 %v2370, %v2530
    %2532 = vmatmul.f32.gmra.mxu0 %v321
    %v2533 = vpop.f32.mrf.mxu0
    %v2534 = vadd.f32 %v2373, %v2533
    %2535 = vmatmul.f32.gmra.mxu0 %v327
    %v2536 = vpop.f32.mrf.mxu0
    %v2537 = vadd.f32 %v2376, %v2536
    %2538 = vmatmul.f32.gmra.mxu0 %v333
    %v2539 = vpop.f32.mrf.mxu0
    %v2540 = vadd.f32 %v2379, %v2539
    %2541 = vmatmul.f32.gmra.mxu0 %v339
    %v2542 = vpop.f32.mrf.mxu0
    %v2543 = vadd.f32 %v2382, %v2542
    %2544 = vmatmul.f32.gmra.mxu0 %v345
    %v2545 = vpop.f32.mrf.mxu0
    %v2546 = vadd.f32 %v2385, %v2545
    %2547 = vdwg.mxu0
    %2548 = vmatpush.msra.mxu0 %v823
    %2549 = vmatpush.msra.mxu0 %v817
    %2550 = vmatpush.msra.mxu0 %v811
    %2551 = vmatpush.msra.mxu0 %v805
    %2552 = vmatpush.msra.mxu0 %v799
    %2553 = vmatpush.msra.mxu0 %v793
    %2554 = vmatpush.msra.mxu0 %v787
    %2555 = vmatpush.msra.mxu0 %v781
    %2556 = vmatpush.msra.mxu0 %v775
    %2557 = vmatpush.msra.mxu0 %v769
    %2558 = vmatpush.msra.mxu0 %v763
    %2559 = vmatpush.msra.mxu0 %v757
    %2560 = vmatpush.msra.mxu0 %v751
    %2561 = vmatpush.msra.mxu0 %v745
    %2562 = vmatpush.msra.mxu0 %v739
    %2563 = vmatpush.msra.mxu0 %v733
    %2564 = vmatmul.f32.gmra.mxu0 %v64
    %v2565 = vpop.f32.mrf.mxu0
    %v2566 = vadd.f32 %v2405, %v2565
    %2567 = vmatmul.f32.gmra.mxu0 %v70
    %v2568 = vpop.f32.mrf.mxu0
    %v2569 = vadd.f32 %v2408, %v2568
    %2570 = vmatmul.f32.gmra.mxu0 %v76
    %v2571 = vpop.f32.mrf.mxu0
    %v2572 = vadd.f32 %v2411, %v2571
    %2573 = vmatmul.f32.gmra.mxu0 %v82
    %v2574 = vpop.f32.mrf.mxu0
    %v2575 = vadd.f32 %v2414, %v2574
    %2576 = vmatmul.f32.gmra.mxu0 %v88
    %v2577 = vpop.f32.mrf.mxu0
    %v2578 = vadd.f32 %v2417, %v2577
    %2579 = vmatmul.f32.gmra.mxu0 %v94
    %v2580 = vpop.f32.mrf.mxu0
    %v2581 = vadd.f32 %v2420, %v2580
    %2582 = vmatmul.f32.gmra.mxu0 %v100
    %v2583 = vpop.f32.mrf.mxu0
    %v2584 = vadd.f32 %v2423, %v2583
    %2585 = vmatmul.f32.gmra.mxu0 %v106
    %v2586 = vpop.f32.mrf.mxu0
    %v2587 = vadd.f32 %v2426, %v2586
    %2588 = vmatmul.f32.gmra.mxu0 %v112
    %v2589 = vpop.f32.mrf.mxu0
    %v2590 = vadd.f32 %v2429, %v2589
    %2591 = vmatmul.f32.gmra.mxu0 %v118
    %v2592 = vpop.f32.mrf.mxu0
    %v2593 = vadd.f32 %v2432, %v2592
    %2594 = vmatmul.f32.gmra.mxu0 %v124
    %v2595 = vpop.f32.mrf.mxu0
    %v2596 = vadd.f32 %v2435, %v2595
    %2597 = vmatmul.f32.gmra.mxu0 %v130
    %v2598 = vpop.f32.mrf.mxu0
    %v2599 = vadd.f32 %v2438, %v2598
    %2600 = vmatmul.f32.gmra.mxu0 %v136
    %v2601 = vpop.f32.mrf.mxu0
    %v2602 = vadd.f32 %v2441, %v2601
    %2603 = vmatmul.f32.gmra.mxu0 %v142
    %v2604 = vpop.f32.mrf.mxu0
    %v2605 = vadd.f32 %v2444, %v2604
    %2606 = vmatmul.f32.gmra.mxu0 %v148
    %v2607 = vpop.f32.mrf.mxu0
    %v2608 = vadd.f32 %v2447, %v2607
    %2609 = vmatmul.f32.gmra.mxu0 %v154
    %v2610 = vpop.f32.mrf.mxu0
    %v2611 = vadd.f32 %v2450, %v2610
    %2612 = vmatmul.f32.gmra.mxu0 %v160
    %v2613 = vpop.f32.mrf.mxu0
    %v2614 = vadd.f32 %v2453, %v2613
    %2615 = vmatmul.f32.gmra.mxu0 %v166
    %v2616 = vpop.f32.mrf.mxu0
    %v2617 = vadd.f32 %v2456, %v2616
    %2618 = vmatmul.f32.gmra.mxu0 %v172
    %v2619 = vpop.f32.mrf.mxu0
    %v2620 = vadd.f32 %v2459, %v2619
    %2621 = vmatmul.f32.gmra.mxu0 %v178
    %v2622 = vpop.f32.mrf.mxu0
    %v2623 = vadd.f32 %v2462, %v2622
    %2624 = vmatmul.f32.gmra.mxu0 %v184
    %v2625 = vpop.f32.mrf.mxu0
    %v2626 = vadd.f32 %v2465, %v2625
    %2627 = vmatmul.f32.gmra.mxu0 %v190
    %v2628 = vpop.f32.mrf.mxu0
    %v2629 = vadd.f32 %v2468, %v2628
    %2630 = vmatmul.f32.gmra.mxu0 %v196
    %v2631 = vpop.f32.mrf.mxu0
    %v2632 = vadd.f32 %v2471, %v2631
    %2633 = vmatmul.f32.gmra.mxu0 %v202
    %v2634 = vpop.f32.mrf.mxu0
    %v2635 = vadd.f32 %v2474, %v2634
    %2636 = vmatmul.f32.gmra.mxu0 %v208
    %v2637 = vpop.f32.mrf.mxu0
    %v2638 = vadd.f32 %v2477, %v2637
    %2639 = vmatmul.f32.gmra.mxu0 %v214
    %v2640 = vpop.f32.mrf.mxu0
    %v2641 = vadd.f32 %v2480, %v2640
    %2642 = vmatmul.f32.gmra.mxu0 %v220
    %v2643 = vpop.f32.mrf.mxu0
    %v2644 = vadd.f32 %v2483, %v2643
    %2645 = vmatmul.f32.gmra.mxu0 %v226
    %v2646 = vpop.f32.mrf.mxu0
    %v2647 = vadd.f32 %v2486, %v2646
    %2648 = vmatmul.f32.gmra.mxu0 %v232
    %v2649 = vpop.f32.mrf.mxu0
    %v2650 = vadd.f32 %v2489, %v2649
    %2651 = vmatmul.f32.gmra.mxu0 %v238
    %v2652 = vpop.f32.mrf.mxu0
    %v2653 = vadd.f32 %v2492, %v2652
    %2654 = vmatmul.f32.gmra.mxu0 %v244
    %v2655 = vpop.f32.mrf.mxu0
    %v2656 = vadd.f32 %v2495, %v2655
    %2657 = vmatmul.f32.gmra.mxu0 %v250
    %v2658 = vpop.f32.mrf.mxu0
    %v2659 = vadd.f32 %v2498, %v2658
    %2660 = vmatmul.f32.gmra.mxu0 %v256
    %v2661 = vpop.f32.mrf.mxu0
    %v2662 = vadd.f32 %v2501, %v2661
    %2663 = vmatmul.f32.gmra.mxu0 %v262
    %v2664 = vpop.f32.mrf.mxu0
    %v2665 = vadd.f32 %v2504, %v2664
    %2666 = vmatmul.f32.gmra.mxu0 %v268
    %v2667 = vpop.f32.mrf.mxu0
    %v2668 = vadd.f32 %v2507, %v2667
    %2669 = vmatmul.f32.gmra.mxu0 %v274
    %v2670 = vpop.f32.mrf.mxu0
    %v2671 = vadd.f32 %v2510, %v2670
    %2672 = vmatmul.f32.gmra.mxu0 %v280
    %v2673 = vpop.f32.mrf.mxu0
    %v2674 = vadd.f32 %v2513, %v2673
    %2675 = vmatmul.f32.gmra.mxu0 %v286
    %v2676 = vpop.f32.mrf.mxu0
    %v2677 = vadd.f32 %v2516, %v2676
    %2678 = vmatmul.f32.gmra.mxu0 %v292
    %v2679 = vpop.f32.mrf.mxu0
    %v2680 = vadd.f32 %v2519, %v2679
    %2681 = vmatmul.f32.gmra.mxu0 %v298
    %v2682 = vpop.f32.mrf.mxu0
    %v2683 = vadd.f32 %v2522, %v2682
    %2684 = vmatmul.f32.gmra.mxu0 %v304
    %v2685 = vpop.f32.mrf.mxu0
    %v2686 = vadd.f32 %v2525, %v2685
    %2687 = vmatmul.f32.gmra.mxu0 %v310
    %v2688 = vpop.f32.mrf.mxu0
    %v2689 = vadd.f32 %v2528, %v2688
    %2690 = vmatmul.f32.gmra.mxu0 %v316
    %v2691 = vpop.f32.mrf.mxu0
    %v2692 = vadd.f32 %v2531, %v2691
    %2693 = vmatmul.f32.gmra.mxu0 %v322
    %v2694 = vpop.f32.mrf.mxu0
    %v2695 = vadd.f32 %v2534, %v2694
    %2696 = vmatmul.f32.gmra.mxu0 %v328
    %v2697 = vpop.f32.mrf.mxu0
    %v2698 = vadd.f32 %v2537, %v2697
    %2699 = vmatmul.f32.gmra.mxu0 %v334
    %v2700 = vpop.f32.mrf.mxu0
    %v2701 = vadd.f32 %v2540, %v2700
    %2702 = vmatmul.f32.gmra.mxu0 %v340
    %v2703 = vpop.f32.mrf.mxu0
    %v2704 = vadd.f32 %v2543, %v2703
    %2705 = vmatmul.f32.gmra.mxu0 %v346
    %v2706 = vpop.f32.mrf.mxu0
    %v2707 = vadd.f32 %v2546, %v2706
    %2708 = vdwg.mxu0
    %2709 = vmatpush.msra.mxu0 %v919
    %2710 = vmatpush.msra.mxu0 %v913
    %2711 = vmatpush.msra.mxu0 %v907
    %2712 = vmatpush.msra.mxu0 %v901
    %2713 = vmatpush.msra.mxu0 %v895
    %2714 = vmatpush.msra.mxu0 %v889
    %2715 = vmatpush.msra.mxu0 %v883
    %2716 = vmatpush.msra.mxu0 %v877
    %2717 = vmatpush.msra.mxu0 %v871
    %2718 = vmatpush.msra.mxu0 %v865
    %2719 = vmatpush.msra.mxu0 %v859
    %2720 = vmatpush.msra.mxu0 %v853
    %2721 = vmatpush.msra.mxu0 %v847
    %2722 = vmatpush.msra.mxu0 %v841
    %2723 = vmatpush.msra.mxu0 %v835
    %2724 = vmatpush.msra.mxu0 %v829
    %2725 = vmatmul.f32.gmra.mxu0 %v65
    %v2726 = vpop.f32.mrf.mxu0
    %v2727 = vadd.f32 %v2566, %v2726
    %2728 = vmatmul.f32.gmra.mxu0 %v71
    %v2729 = vpop.f32.mrf.mxu0
    %v2730 = vadd.f32 %v2569, %v2729
    %2731 = vmatmul.f32.gmra.mxu0 %v77
    %v2732 = vpop.f32.mrf.mxu0
    %v2733 = vadd.f32 %v2572, %v2732
    %2734 = vmatmul.f32.gmra.mxu0 %v83
    %v2735 = vpop.f32.mrf.mxu0
    %v2736 = vadd.f32 %v2575, %v2735
    %2737 = vmatmul.f32.gmra.mxu0 %v89
    %v2738 = vpop.f32.mrf.mxu0
    %v2739 = vadd.f32 %v2578, %v2738
    %2740 = vmatmul.f32.gmra.mxu0 %v95
    %v2741 = vpop.f32.mrf.mxu0
    %v2742 = vadd.f32 %v2581, %v2741
    %2743 = vmatmul.f32.gmra.mxu0 %v101
    %v2744 = vpop.f32.mrf.mxu0
    %v2745 = vadd.f32 %v2584, %v2744
    %2746 = vmatmul.f32.gmra.mxu0 %v107
    %v2747 = vpop.f32.mrf.mxu0
    %v2748 = vadd.f32 %v2587, %v2747
    %2749 = vmatmul.f32.gmra.mxu0 %v113
    %v2750 = vpop.f32.mrf.mxu0
    %v2751 = vadd.f32 %v2590, %v2750
    %2752 = vmatmul.f32.gmra.mxu0 %v119
    %v2753 = vpop.f32.mrf.mxu0
    %v2754 = vadd.f32 %v2593, %v2753
    %2755 = vmatmul.f32.gmra.mxu0 %v125
    %v2756 = vpop.f32.mrf.mxu0
    %v2757 = vadd.f32 %v2596, %v2756
    %2758 = vmatmul.f32.gmra.mxu0 %v131
    %v2759 = vpop.f32.mrf.mxu0
    %v2760 = vadd.f32 %v2599, %v2759
    %2761 = vmatmul.f32.gmra.mxu0 %v137
    %v2762 = vpop.f32.mrf.mxu0
    %v2763 = vadd.f32 %v2602, %v2762
    %2764 = vmatmul.f32.gmra.mxu0 %v143
    %v2765 = vpop.f32.mrf.mxu0
    %v2766 = vadd.f32 %v2605, %v2765
    %2767 = vmatmul.f32.gmra.mxu0 %v149
    %v2768 = vpop.f32.mrf.mxu0
    %v2769 = vadd.f32 %v2608, %v2768
    %2770 = vmatmul.f32.gmra.mxu0 %v155
    %v2771 = vpop.f32.mrf.mxu0
    %v2772 = vadd.f32 %v2611, %v2771
    %2773 = vmatmul.f32.gmra.mxu0 %v161
    %v2774 = vpop.f32.mrf.mxu0
    %v2775 = vadd.f32 %v2614, %v2774
    %2776 = vmatmul.f32.gmra.mxu0 %v167
    %v2777 = vpop.f32.mrf.mxu0
    %v2778 = vadd.f32 %v2617, %v2777
    %2779 = vmatmul.f32.gmra.mxu0 %v173
    %v2780 = vpop.f32.mrf.mxu0
    %v2781 = vadd.f32 %v2620, %v2780
    %2782 = vmatmul.f32.gmra.mxu0 %v179
    %v2783 = vpop.f32.mrf.mxu0
    %v2784 = vadd.f32 %v2623, %v2783
    %2785 = vmatmul.f32.gmra.mxu0 %v185
    %v2786 = vpop.f32.mrf.mxu0
    %v2787 = vadd.f32 %v2626, %v2786
    %2788 = vmatmul.f32.gmra.mxu0 %v191
    %v2789 = vpop.f32.mrf.mxu0
    %v2790 = vadd.f32 %v2629, %v2789
    %2791 = vmatmul.f32.gmra.mxu0 %v197
    %v2792 = vpop.f32.mrf.mxu0
    %v2793 = vadd.f32 %v2632, %v2792
    %2794 = vmatmul.f32.gmra.mxu0 %v203
    %v2795 = vpop.f32.mrf.mxu0
    %v2796 = vadd.f32 %v2635, %v2795
    %2797 = vmatmul.f32.gmra.mxu0 %v209
    %v2798 = vpop.f32.mrf.mxu0
    %v2799 = vadd.f32 %v2638, %v2798
    %2800 = vmatmul.f32.gmra.mxu0 %v215
    %v2801 = vpop.f32.mrf.mxu0
    %v2802 = vadd.f32 %v2641, %v2801
    %2803 = vmatmul.f32.gmra.mxu0 %v221
    %v2804 = vpop.f32.mrf.mxu0
    %v2805 = vadd.f32 %v2644, %v2804
    %2806 = vmatmul.f32.gmra.mxu0 %v227
    %v2807 = vpop.f32.mrf.mxu0
    %v2808 = vadd.f32 %v2647, %v2807
    %2809 = vmatmul.f32.gmra.mxu0 %v233
    %v2810 = vpop.f32.mrf.mxu0
    %v2811 = vadd.f32 %v2650, %v2810
    %2812 = vmatmul.f32.gmra.mxu0 %v239
    %v2813 = vpop.f32.mrf.mxu0
    %v2814 = vadd.f32 %v2653, %v2813
    %2815 = vmatmul.f32.gmra.mxu0 %v245
    %v2816 = vpop.f32.mrf.mxu0
    %v2817 = vadd.f32 %v2656, %v2816
    %2818 = vmatmul.f32.gmra.mxu0 %v251
    %v2819 = vpop.f32.mrf.mxu0
    %v2820 = vadd.f32 %v2659, %v2819
    %2821 = vmatmul.f32.gmra.mxu0 %v257
    %v2822 = vpop.f32.mrf.mxu0
    %v2823 = vadd.f32 %v2662, %v2822
    %2824 = vmatmul.f32.gmra.mxu0 %v263
    %v2825 = vpop.f32.mrf.mxu0
    %v2826 = vadd.f32 %v2665, %v2825
    %2827 = vmatmul.f32.gmra.mxu0 %v269
    %v2828 = vpop.f32.mrf.mxu0
    %v2829 = vadd.f32 %v2668, %v2828
    %2830 = vmatmul.f32.gmra.mxu0 %v275
    %v2831 = vpop.f32.mrf.mxu0
    %v2832 = vadd.f32 %v2671, %v2831
    %2833 = vmatmul.f32.gmra.mxu0 %v281
    %v2834 = vpop.f32.mrf.mxu0
    %v2835 = vadd.f32 %v2674, %v2834
    %2836 = vmatmul.f32.gmra.mxu0 %v287
    %v2837 = vpop.f32.mrf.mxu0
    %v2838 = vadd.f32 %v2677, %v2837
    %2839 = vmatmul.f32.gmra.mxu0 %v293
    %v2840 = vpop.f32.mrf.mxu0
    %v2841 = vadd.f32 %v2680, %v2840
    %2842 = vmatmul.f32.gmra.mxu0 %v299
    %v2843 = vpop.f32.mrf.mxu0
    %v2844 = vadd.f32 %v2683, %v2843
    %2845 = vmatmul.f32.gmra.mxu0 %v305
    %v2846 = vpop.f32.mrf.mxu0
    %v2847 = vadd.f32 %v2686, %v2846
    %2848 = vmatmul.f32.gmra.mxu0 %v311
    %v2849 = vpop.f32.mrf.mxu0
    %v2850 = vadd.f32 %v2689, %v2849
    %2851 = vmatmul.f32.gmra.mxu0 %v317
    %v2852 = vpop.f32.mrf.mxu0
    %v2853 = vadd.f32 %v2692, %v2852
    %2854 = vmatmul.f32.gmra.mxu0 %v323
    %v2855 = vpop.f32.mrf.mxu0
    %v2856 = vadd.f32 %v2695, %v2855
    %2857 = vmatmul.f32.gmra.mxu0 %v329
    %v2858 = vpop.f32.mrf.mxu0
    %v2859 = vadd.f32 %v2698, %v2858
    %2860 = vmatmul.f32.gmra.mxu0 %v335
    %v2861 = vpop.f32.mrf.mxu0
    %v2862 = vadd.f32 %v2701, %v2861
    %2863 = vmatmul.f32.gmra.mxu0 %v341
    %v2864 = vpop.f32.mrf.mxu0
    %v2865 = vadd.f32 %v2704, %v2864
    %2866 = vmatmul.f32.gmra.mxu0 %v347
    %v2867 = vpop.f32.mrf.mxu0
    %v2868 = vadd.f32 %v2707, %v2867
    %2869 = vdwg.mxu0
    %2870 = vmatpush.msra.mxu0 %v440
    %2871 = vmatpush.msra.mxu0 %v434
    %2872 = vmatpush.msra.mxu0 %v428
    %2873 = vmatpush.msra.mxu0 %v422
    %2874 = vmatpush.msra.mxu0 %v416
    %2875 = vmatpush.msra.mxu0 %v410
    %2876 = vmatpush.msra.mxu0 %v404
    %2877 = vmatpush.msra.mxu0 %v398
    %2878 = vmatpush.msra.mxu0 %v392
    %2879 = vmatpush.msra.mxu0 %v386
    %2880 = vmatpush.msra.mxu0 %v380
    %2881 = vmatpush.msra.mxu0 %v374
    %2882 = vmatpush.msra.mxu0 %v368
    %2883 = vmatpush.msra.mxu0 %v362
    %2884 = vmatpush.msra.mxu0 %v356
    %2885 = vmatpush.msra.mxu0 %v350
    %2886 = vmatmul.f32.gmra.mxu0 %v60
    %v2887 = vpop.f32.mrf.mxu0
    %v2888 = vadd.f32 %v928, %v2887
    %2889 = vmatmul.f32.gmra.mxu0 %v66
    %v2890 = vpop.f32.mrf.mxu0
    %v2891 = vadd.f32 %v928, %v2890
    %2892 = vmatmul.f32.gmra.mxu0 %v72
    %v2893 = vpop.f32.mrf.mxu0
    %v2894 = vadd.f32 %v928, %v2893
    %2895 = vmatmul.f32.gmra.mxu0 %v78
    %v2896 = vpop.f32.mrf.mxu0
    %v2897 = vadd.f32 %v928, %v2896
    %2898 = vmatmul.f32.gmra.mxu0 %v84
    %v2899 = vpop.f32.mrf.mxu0
    %v2900 = vadd.f32 %v928, %v2899
    %2901 = vmatmul.f32.gmra.mxu0 %v90
    %v2902 = vpop.f32.mrf.mxu0
    %v2903 = vadd.f32 %v928, %v2902
    %2904 = vmatmul.f32.gmra.mxu0 %v96
    %v2905 = vpop.f32.mrf.mxu0
    %v2906 = vadd.f32 %v928, %v2905
    %2907 = vmatmul.f32.gmra.mxu0 %v102
    %v2908 = vpop.f32.mrf.mxu0
    %v2909 = vadd.f32 %v928, %v2908
    %2910 = vmatmul.f32.gmra.mxu0 %v108
    %v2911 = vpop.f32.mrf.mxu0
    %v2912 = vadd.f32 %v928, %v2911
    %2913 = vmatmul.f32.gmra.mxu0 %v114
    %v2914 = vpop.f32.mrf.mxu0
    %v2915 = vadd.f32 %v928, %v2914
    %2916 = vmatmul.f32.gmra.mxu0 %v120
    %v2917 = vpop.f32.mrf.mxu0
    %v2918 = vadd.f32 %v928, %v2917
    %2919 = vmatmul.f32.gmra.mxu0 %v126
    %v2920 = vpop.f32.mrf.mxu0
    %v2921 = vadd.f32 %v928, %v2920
    %2922 = vmatmul.f32.gmra.mxu0 %v132
    %v2923 = vpop.f32.mrf.mxu0
    %v2924 = vadd.f32 %v928, %v2923
    %2925 = vmatmul.f32.gmra.mxu0 %v138
    %v2926 = vpop.f32.mrf.mxu0
    %v2927 = vadd.f32 %v928, %v2926
    %2928 = vmatmul.f32.gmra.mxu0 %v144
    %v2929 = vpop.f32.mrf.mxu0
    %v2930 = vadd.f32 %v928, %v2929
    %2931 = vmatmul.f32.gmra.mxu0 %v150
    %v2932 = vpop.f32.mrf.mxu0
    %v2933 = vadd.f32 %v928, %v2932
    %2934 = vmatmul.f32.gmra.mxu0 %v156
    %v2935 = vpop.f32.mrf.mxu0
    %v2936 = vadd.f32 %v928, %v2935
    %2937 = vmatmul.f32.gmra.mxu0 %v162
    %v2938 = vpop.f32.mrf.mxu0
    %v2939 = vadd.f32 %v928, %v2938
    %2940 = vmatmul.f32.gmra.mxu0 %v168
    %v2941 = vpop.f32.mrf.mxu0
    %v2942 = vadd.f32 %v928, %v2941
    %2943 = vmatmul.f32.gmra.mxu0 %v174
    %v2944 = vpop.f32.mrf.mxu0
    %v2945 = vadd.f32 %v928, %v2944
    %2946 = vmatmul.f32.gmra.mxu0 %v180
    %v2947 = vpop.f32.mrf.mxu0
    %v2948 = vadd.f32 %v928, %v2947
    %2949 = vmatmul.f32.gmra.mxu0 %v186
    %v2950 = vpop.f32.mrf.mxu0
    %v2951 = vadd.f32 %v928, %v2950
    %2952 = vmatmul.f32.gmra.mxu0 %v192
    %v2953 = vpop.f32.mrf.mxu0
    %v2954 = vadd.f32 %v928, %v2953
    %2955 = vmatmul.f32.gmra.mxu0 %v198
    %v2956 = vpop.f32.mrf.mxu0
    %v2957 = vadd.f32 %v928, %v2956
    %2958 = vmatmul.f32.gmra.mxu0 %v204
    %v2959 = vpop.f32.mrf.mxu0
    %v2960 = vadd.f32 %v928, %v2959
    %2961 = vmatmul.f32.gmra.mxu0 %v210
    %v2962 = vpop.f32.mrf.mxu0
    %v2963 = vadd.f32 %v928, %v2962
    %2964 = vmatmul.f32.gmra.mxu0 %v216
    %v2965 = vpop.f32.mrf.mxu0
    %v2966 = vadd.f32 %v928, %v2965
    %2967 = vmatmul.f32.gmra.mxu0 %v222
    %v2968 = vpop.f32.mrf.mxu0
    %v2969 = vadd.f32 %v928, %v2968
    %2970 = vmatmul.f32.gmra.mxu0 %v228
    %v2971 = vpop.f32.mrf.mxu0
    %v2972 = vadd.f32 %v928, %v2971
    %2973 = vmatmul.f32.gmra.mxu0 %v234
    %v2974 = vpop.f32.mrf.mxu0
    %v2975 = vadd.f32 %v928, %v2974
    %2976 = vmatmul.f32.gmra.mxu0 %v240
    %v2977 = vpop.f32.mrf.mxu0
    %v2978 = vadd.f32 %v928, %v2977
    %2979 = vmatmul.f32.gmra.mxu0 %v246
    %v2980 = vpop.f32.mrf.mxu0
    %v2981 = vadd.f32 %v928, %v2980
    %2982 = vmatmul.f32.gmra.mxu0 %v252
    %v2983 = vpop.f32.mrf.mxu0
    %v2984 = vadd.f32 %v928, %v2983
    %2985 = vmatmul.f32.gmra.mxu0 %v258
    %v2986 = vpop.f32.mrf.mxu0
    %v2987 = vadd.f32 %v928, %v2986
    %2988 = vmatmul.f32.gmra.mxu0 %v264
    %v2989 = vpop.f32.mrf.mxu0
    %v2990 = vadd.f32 %v928, %v2989
    %2991 = vmatmul.f32.gmra.mxu0 %v270
    %v2992 = vpop.f32.mrf.mxu0
    %v2993 = vadd.f32 %v928, %v2992
    %2994 = vmatmul.f32.gmra.mxu0 %v276
    %v2995 = vpop.f32.mrf.mxu0
    %v2996 = vadd.f32 %v928, %v2995
    %2997 = vmatmul.f32.gmra.mxu0 %v282
    %v2998 = vpop.f32.mrf.mxu0
    %v2999 = vadd.f32 %v928, %v2998
    %3000 = vmatmul.f32.gmra.mxu0 %v288
    %v3001 = vpop.f32.mrf.mxu0
    %v3002 = vadd.f32 %v928, %v3001
    %3003 = vmatmul.f32.gmra.mxu0 %v294
    %v3004 = vpop.f32.mrf.mxu0
    %v3005 = vadd.f32 %v928, %v3004
    %3006 = vmatmul.f32.gmra.mxu0 %v300
    %v3007 = vpop.f32.mrf.mxu0
    %v3008 = vadd.f32 %v928, %v3007
    %3009 = vmatmul.f32.gmra.mxu0 %v306
    %v3010 = vpop.f32.mrf.mxu0
    %v3011 = vadd.f32 %v928, %v3010
    %3012 = vmatmul.f32.gmra.mxu0 %v312
    %v3013 = vpop.f32.mrf.mxu0
    %v3014 = vadd.f32 %v928, %v3013
    %3015 = vmatmul.f32.gmra.mxu0 %v318
    %v3016 = vpop.f32.mrf.mxu0
    %v3017 = vadd.f32 %v928, %v3016
    %3018 = vmatmul.f32.gmra.mxu0 %v324
    %v3019 = vpop.f32.mrf.mxu0
    %v3020 = vadd.f32 %v928, %v3019
    %3021 = vmatmul.f32.gmra.mxu0 %v330
    %v3022 = vpop.f32.mrf.mxu0
    %v3023 = vadd.f32 %v928, %v3022
    %3024 = vmatmul.f32.gmra.mxu0 %v336
    %v3025 = vpop.f32.mrf.mxu0
    %v3026 = vadd.f32 %v928, %v3025
    %3027 = vmatmul.f32.gmra.mxu0 %v342
    %v3028 = vpop.f32.mrf.mxu0
    %v3029 = vadd.f32 %v928, %v3028
    %3030 = vdwg.mxu0
    %3031 = vmatpush.msra.mxu0 %v536
    %3032 = vmatpush.msra.mxu0 %v530
    %3033 = vmatpush.msra.mxu0 %v524
    %3034 = vmatpush.msra.mxu0 %v518
    %3035 = vmatpush.msra.mxu0 %v512
    %3036 = vmatpush.msra.mxu0 %v506
    %3037 = vmatpush.msra.mxu0 %v500
    %3038 = vmatpush.msra.mxu0 %v494
    %3039 = vmatpush.msra.mxu0 %v488
    %3040 = vmatpush.msra.mxu0 %v482
    %3041 = vmatpush.msra.mxu0 %v476
    %3042 = vmatpush.msra.mxu0 %v470
    %3043 = vmatpush.msra.mxu0 %v464
    %3044 = vmatpush.msra.mxu0 %v458
    %3045 = vmatpush.msra.mxu0 %v452
    %3046 = vmatpush.msra.mxu0 %v446
    %3047 = vmatmul.f32.gmra.mxu0 %v61
    %v3048 = vpop.f32.mrf.mxu0
    %v3049 = vadd.f32 %v2888, %v3048
    %3050 = vmatmul.f32.gmra.mxu0 %v67
    %v3051 = vpop.f32.mrf.mxu0
    %v3052 = vadd.f32 %v2891, %v3051
    %3053 = vmatmul.f32.gmra.mxu0 %v73
    %v3054 = vpop.f32.mrf.mxu0
    %v3055 = vadd.f32 %v2894, %v3054
    %3056 = vmatmul.f32.gmra.mxu0 %v79
    %v3057 = vpop.f32.mrf.mxu0
    %v3058 = vadd.f32 %v2897, %v3057
    %3059 = vmatmul.f32.gmra.mxu0 %v85
    %v3060 = vpop.f32.mrf.mxu0
    %v3061 = vadd.f32 %v2900, %v3060
    %3062 = vmatmul.f32.gmra.mxu0 %v91
    %v3063 = vpop.f32.mrf.mxu0
    %v3064 = vadd.f32 %v2903, %v3063
    %3065 = vmatmul.f32.gmra.mxu0 %v97
    %v3066 = vpop.f32.mrf.mxu0
    %v3067 = vadd.f32 %v2906, %v3066
    %3068 = vmatmul.f32.gmra.mxu0 %v103
    %v3069 = vpop.f32.mrf.mxu0
    %v3070 = vadd.f32 %v2909, %v3069
    %3071 = vmatmul.f32.gmra.mxu0 %v109
    %v3072 = vpop.f32.mrf.mxu0
    %v3073 = vadd.f32 %v2912, %v3072
    %3074 = vmatmul.f32.gmra.mxu0 %v115
    %v3075 = vpop.f32.mrf.mxu0
    %v3076 = vadd.f32 %v2915, %v3075
    %3077 = vmatmul.f32.gmra.mxu0 %v121
    %v3078 = vpop.f32.mrf.mxu0
    %v3079 = vadd.f32 %v2918, %v3078
    %3080 = vmatmul.f32.gmra.mxu0 %v127
    %v3081 = vpop.f32.mrf.mxu0
    %v3082 = vadd.f32 %v2921, %v3081
    %3083 = vmatmul.f32.gmra.mxu0 %v133
    %v3084 = vpop.f32.mrf.mxu0
    %v3085 = vadd.f32 %v2924, %v3084
    %3086 = vmatmul.f32.gmra.mxu0 %v139
    %v3087 = vpop.f32.mrf.mxu0
    %v3088 = vadd.f32 %v2927, %v3087
    %3089 = vmatmul.f32.gmra.mxu0 %v145
    %v3090 = vpop.f32.mrf.mxu0
    %v3091 = vadd.f32 %v2930, %v3090
    %3092 = vmatmul.f32.gmra.mxu0 %v151
    %v3093 = vpop.f32.mrf.mxu0
    %v3094 = vadd.f32 %v2933, %v3093
    %3095 = vmatmul.f32.gmra.mxu0 %v157
    %v3096 = vpop.f32.mrf.mxu0
    %v3097 = vadd.f32 %v2936, %v3096
    %3098 = vmatmul.f32.gmra.mxu0 %v163
    %v3099 = vpop.f32.mrf.mxu0
    %v3100 = vadd.f32 %v2939, %v3099
    %3101 = vmatmul.f32.gmra.mxu0 %v169
    %v3102 = vpop.f32.mrf.mxu0
    %v3103 = vadd.f32 %v2942, %v3102
    %3104 = vmatmul.f32.gmra.mxu0 %v175
    %v3105 = vpop.f32.mrf.mxu0
    %v3106 = vadd.f32 %v2945, %v3105
    %3107 = vmatmul.f32.gmra.mxu0 %v181
    %v3108 = vpop.f32.mrf.mxu0
    %v3109 = vadd.f32 %v2948, %v3108
    %3110 = vmatmul.f32.gmra.mxu0 %v187
    %v3111 = vpop.f32.mrf.mxu0
    %v3112 = vadd.f32 %v2951, %v3111
    %3113 = vmatmul.f32.gmra.mxu0 %v193
    %v3114 = vpop.f32.mrf.mxu0
    %v3115 = vadd.f32 %v2954, %v3114
    %3116 = vmatmul.f32.gmra.mxu0 %v199
    %v3117 = vpop.f32.mrf.mxu0
    %v3118 = vadd.f32 %v2957, %v3117
    %3119 = vmatmul.f32.gmra.mxu0 %v205
    %v3120 = vpop.f32.mrf.mxu0
    %v3121 = vadd.f32 %v2960, %v3120
    %3122 = vmatmul.f32.gmra.mxu0 %v211
    %v3123 = vpop.f32.mrf.mxu0
    %v3124 = vadd.f32 %v2963, %v3123
    %3125 = vmatmul.f32.gmra.mxu0 %v217
    %v3126 = vpop.f32.mrf.mxu0
    %v3127 = vadd.f32 %v2966, %v3126
    %3128 = vmatmul.f32.gmra.mxu0 %v223
    %v3129 = vpop.f32.mrf.mxu0
    %v3130 = vadd.f32 %v2969, %v3129
    %3131 = vmatmul.f32.gmra.mxu0 %v229
    %v3132 = vpop.f32.mrf.mxu0
    %v3133 = vadd.f32 %v2972, %v3132
    %3134 = vmatmul.f32.gmra.mxu0 %v235
    %v3135 = vpop.f32.mrf.mxu0
    %v3136 = vadd.f32 %v2975, %v3135
    %3137 = vmatmul.f32.gmra.mxu0 %v241
    %v3138 = vpop.f32.mrf.mxu0
    %v3139 = vadd.f32 %v2978, %v3138
    %3140 = vmatmul.f32.gmra.mxu0 %v247
    %v3141 = vpop.f32.mrf.mxu0
    %v3142 = vadd.f32 %v2981, %v3141
    %3143 = vmatmul.f32.gmra.mxu0 %v253
    %v3144 = vpop.f32.mrf.mxu0
    %v3145 = vadd.f32 %v2984, %v3144
    %3146 = vmatmul.f32.gmra.mxu0 %v259
    %v3147 = vpop.f32.mrf.mxu0
    %v3148 = vadd.f32 %v2987, %v3147
    %3149 = vmatmul.f32.gmra.mxu0 %v265
    %v3150 = vpop.f32.mrf.mxu0
    %v3151 = vadd.f32 %v2990, %v3150
    %3152 = vmatmul.f32.gmra.mxu0 %v271
    %v3153 = vpop.f32.mrf.mxu0
    %v3154 = vadd.f32 %v2993, %v3153
    %3155 = vmatmul.f32.gmra.mxu0 %v277
    %v3156 = vpop.f32.mrf.mxu0
    %v3157 = vadd.f32 %v2996, %v3156
    %3158 = vmatmul.f32.gmra.mxu0 %v283
    %v3159 = vpop.f32.mrf.mxu0
    %v3160 = vadd.f32 %v2999, %v3159
    %3161 = vmatmul.f32.gmra.mxu0 %v289
    %v3162 = vpop.f32.mrf.mxu0
    %v3163 = vadd.f32 %v3002, %v3162
    %3164 = vmatmul.f32.gmra.mxu0 %v295
    %v3165 = vpop.f32.mrf.mxu0
    %v3166 = vadd.f32 %v3005, %v3165
    %3167 = vmatmul.f32.gmra.mxu0 %v301
    %v3168 = vpop.f32.mrf.mxu0
    %v3169 = vadd.f32 %v3008, %v3168
    %3170 = vmatmul.f32.gmra.mxu0 %v307
    %v3171 = vpop.f32.mrf.mxu0
    %v3172 = vadd.f32 %v3011, %v3171
    %3173 = vmatmul.f32.gmra.mxu0 %v313
    %v3174 = vpop.f32.mrf.mxu0
    %v3175 = vadd.f32 %v3014, %v3174
    %3176 = vmatmul.f32.gmra.mxu0 %v319
    %v3177 = vpop.f32.mrf.mxu0
    %v3178 = vadd.f32 %v3017, %v3177
    %3179 = vmatmul.f32.gmra.mxu0 %v325
    %v3180 = vpop.f32.mrf.mxu0
    %v3181 = vadd.f32 %v3020, %v3180
    %3182 = vmatmul.f32.gmra.mxu0 %v331
    %v3183 = vpop.f32.mrf.mxu0
    %v3184 = vadd.f32 %v3023, %v3183
    %3185 = vmatmul.f32.gmra.mxu0 %v337
    %v3186 = vpop.f32.mrf.mxu0
    %v3187 = vadd.f32 %v3026, %v3186
    %3188 = vmatmul.f32.gmra.mxu0 %v343
    %v3189 = vpop.f32.mrf.mxu0
    %v3190 = vadd.f32 %v3029, %v3189
    %3191 = vdwg.mxu0
    %3192 = vmatpush.msra.mxu0 %v632
    %3193 = vmatpush.msra.mxu0 %v626
    %3194 = vmatpush.msra.mxu0 %v620
    %3195 = vmatpush.msra.mxu0 %v614
    %3196 = vmatpush.msra.mxu0 %v608
    %3197 = vmatpush.msra.mxu0 %v602
    %3198 = vmatpush.msra.mxu0 %v596
    %3199 = vmatpush.msra.mxu0 %v590
    %3200 = vmatpush.msra.mxu0 %v584
    %3201 = vmatpush.msra.mxu0 %v578
    %3202 = vmatpush.msra.mxu0 %v572
    %3203 = vmatpush.msra.mxu0 %v566
    %3204 = vmatpush.msra.mxu0 %v560
    %3205 = vmatpush.msra.mxu0 %v554
    %3206 = vmatpush.msra.mxu0 %v548
    %3207 = vmatpush.msra.mxu0 %v542
    %3208 = vmatmul.f32.gmra.mxu0 %v62
    %v3209 = vpop.f32.mrf.mxu0
    %v3210 = vadd.f32 %v3049, %v3209
    %3211 = vmatmul.f32.gmra.mxu0 %v68
    %v3212 = vpop.f32.mrf.mxu0
    %v3213 = vadd.f32 %v3052, %v3212
    %3214 = vmatmul.f32.gmra.mxu0 %v74
    %v3215 = vpop.f32.mrf.mxu0
    %v3216 = vadd.f32 %v3055, %v3215
    %3217 = vmatmul.f32.gmra.mxu0 %v80
    %v3218 = vpop.f32.mrf.mxu0
    %v3219 = vadd.f32 %v3058, %v3218
    %3220 = vmatmul.f32.gmra.mxu0 %v86
    %v3221 = vpop.f32.mrf.mxu0
    %v3222 = vadd.f32 %v3061, %v3221
    %3223 = vmatmul.f32.gmra.mxu0 %v92
    %v3224 = vpop.f32.mrf.mxu0
    %v3225 = vadd.f32 %v3064, %v3224
    %3226 = vmatmul.f32.gmra.mxu0 %v98
    %v3227 = vpop.f32.mrf.mxu0
    %v3228 = vadd.f32 %v3067, %v3227
    %3229 = vmatmul.f32.gmra.mxu0 %v104
    %v3230 = vpop.f32.mrf.mxu0
    %v3231 = vadd.f32 %v3070, %v3230
    %3232 = vmatmul.f32.gmra.mxu0 %v110
    %v3233 = vpop.f32.mrf.mxu0
    %v3234 = vadd.f32 %v3073, %v3233
    %3235 = vmatmul.f32.gmra.mxu0 %v116
    %v3236 = vpop.f32.mrf.mxu0
    %v3237 = vadd.f32 %v3076, %v3236
    %3238 = vmatmul.f32.gmra.mxu0 %v122
    %v3239 = vpop.f32.mrf.mxu0
    %v3240 = vadd.f32 %v3079, %v3239
    %3241 = vmatmul.f32.gmra.mxu0 %v128
    %v3242 = vpop.f32.mrf.mxu0
    %v3243 = vadd.f32 %v3082, %v3242
    %3244 = vmatmul.f32.gmra.mxu0 %v134
    %v3245 = vpop.f32.mrf.mxu0
    %v3246 = vadd.f32 %v3085, %v3245
    %3247 = vmatmul.f32.gmra.mxu0 %v140
    %v3248 = vpop.f32.mrf.mxu0
    %v3249 = vadd.f32 %v3088, %v3248
    %3250 = vmatmul.f32.gmra.mxu0 %v146
    %v3251 = vpop.f32.mrf.mxu0
    %v3252 = vadd.f32 %v3091, %v3251
    %3253 = vmatmul.f32.gmra.mxu0 %v152
    %v3254 = vpop.f32.mrf.mxu0
    %v3255 = vadd.f32 %v3094, %v3254
    %3256 = vmatmul.f32.gmra.mxu0 %v158
    %v3257 = vpop.f32.mrf.mxu0
    %v3258 = vadd.f32 %v3097, %v3257
    %3259 = vmatmul.f32.gmra.mxu0 %v164
    %v3260 = vpop.f32.mrf.mxu0
    %v3261 = vadd.f32 %v3100, %v3260
    %3262 = vmatmul.f32.gmra.mxu0 %v170
    %v3263 = vpop.f32.mrf.mxu0
    %v3264 = vadd.f32 %v3103, %v3263
    %3265 = vmatmul.f32.gmra.mxu0 %v176
    %v3266 = vpop.f32.mrf.mxu0
    %v3267 = vadd.f32 %v3106, %v3266
    %3268 = vmatmul.f32.gmra.mxu0 %v182
    %v3269 = vpop.f32.mrf.mxu0
    %v3270 = vadd.f32 %v3109, %v3269
    %3271 = vmatmul.f32.gmra.mxu0 %v188
    %v3272 = vpop.f32.mrf.mxu0
    %v3273 = vadd.f32 %v3112, %v3272
    %3274 = vmatmul.f32.gmra.mxu0 %v194
    %v3275 = vpop.f32.mrf.mxu0
    %v3276 = vadd.f32 %v3115, %v3275
    %3277 = vmatmul.f32.gmra.mxu0 %v200
    %v3278 = vpop.f32.mrf.mxu0
    %v3279 = vadd.f32 %v3118, %v3278
    %3280 = vmatmul.f32.gmra.mxu0 %v206
    %v3281 = vpop.f32.mrf.mxu0
    %v3282 = vadd.f32 %v3121, %v3281
    %3283 = vmatmul.f32.gmra.mxu0 %v212
    %v3284 = vpop.f32.mrf.mxu0
    %v3285 = vadd.f32 %v3124, %v3284
    %3286 = vmatmul.f32.gmra.mxu0 %v218
    %v3287 = vpop.f32.mrf.mxu0
    %v3288 = vadd.f32 %v3127, %v3287
    %3289 = vmatmul.f32.gmra.mxu0 %v224
    %v3290 = vpop.f32.mrf.mxu0
    %v3291 = vadd.f32 %v3130, %v3290
    %3292 = vmatmul.f32.gmra.mxu0 %v230
    %v3293 = vpop.f32.mrf.mxu0
    %v3294 = vadd.f32 %v3133, %v3293
    %3295 = vmatmul.f32.gmra.mxu0 %v236
    %v3296 = vpop.f32.mrf.mxu0
    %v3297 = vadd.f32 %v3136, %v3296
    %3298 = vmatmul.f32.gmra.mxu0 %v242
    %v3299 = vpop.f32.mrf.mxu0
    %v3300 = vadd.f32 %v3139, %v3299
    %3301 = vmatmul.f32.gmra.mxu0 %v248
    %v3302 = vpop.f32.mrf.mxu0
    %v3303 = vadd.f32 %v3142, %v3302
    %3304 = vmatmul.f32.gmra.mxu0 %v254
    %v3305 = vpop.f32.mrf.mxu0
    %v3306 = vadd.f32 %v3145, %v3305
    %3307 = vmatmul.f32.gmra.mxu0 %v260
    %v3308 = vpop.f32.mrf.mxu0
    %v3309 = vadd.f32 %v3148, %v3308
    %3310 = vmatmul.f32.gmra.mxu0 %v266
    %v3311 = vpop.f32.mrf.mxu0
    %v3312 = vadd.f32 %v3151, %v3311
    %3313 = vmatmul.f32.gmra.mxu0 %v272
    %v3314 = vpop.f32.mrf.mxu0
    %v3315 = vadd.f32 %v3154, %v3314
    %3316 = vmatmul.f32.gmra.mxu0 %v278
    %v3317 = vpop.f32.mrf.mxu0
    %v3318 = vadd.f32 %v3157, %v3317
    %3319 = vmatmul.f32.gmra.mxu0 %v284
    %v3320 = vpop.f32.mrf.mxu0
    %v3321 = vadd.f32 %v3160, %v3320
    %3322 = vmatmul.f32.gmra.mxu0 %v290
    %v3323 = vpop.f32.mrf.mxu0
    %v3324 = vadd.f32 %v3163, %v3323
    %3325 = vmatmul.f32.gmra.mxu0 %v296
    %v3326 = vpop.f32.mrf.mxu0
    %v3327 = vadd.f32 %v3166, %v3326
    %3328 = vmatmul.f32.gmra.mxu0 %v302
    %v3329 = vpop.f32.mrf.mxu0
    %v3330 = vadd.f32 %v3169, %v3329
    %3331 = vmatmul.f32.gmra.mxu0 %v308
    %v3332 = vpop.f32.mrf.mxu0
    %v3333 = vadd.f32 %v3172, %v3332
    %3334 = vmatmul.f32.gmra.mxu0 %v314
    %v3335 = vpop.f32.mrf.mxu0
    %v3336 = vadd.f32 %v3175, %v3335
    %3337 = vmatmul.f32.gmra.mxu0 %v320
    %v3338 = vpop.f32.mrf.mxu0
    %v3339 = vadd.f32 %v3178, %v3338
    %3340 = vmatmul.f32.gmra.mxu0 %v326
    %v3341 = vpop.f32.mrf.mxu0
    %v3342 = vadd.f32 %v3181, %v3341
    %3343 = vmatmul.f32.gmra.mxu0 %v332
    %v3344 = vpop.f32.mrf.mxu0
    %v3345 = vadd.f32 %v3184, %v3344
    %3346 = vmatmul.f32.gmra.mxu0 %v338
    %v3347 = vpop.f32.mrf.mxu0
    %v3348 = vadd.f32 %v3187, %v3347
    %3349 = vmatmul.f32.gmra.mxu0 %v344
    %v3350 = vpop.f32.mrf.mxu0
    %v3351 = vadd.f32 %v3190, %v3350
    %3352 = vdwg.mxu0
    %3353 = vmatpush.msra.mxu0 %v728
    %3354 = vmatpush.msra.mxu0 %v722
    %3355 = vmatpush.msra.mxu0 %v716
    %3356 = vmatpush.msra.mxu0 %v710
    %3357 = vmatpush.msra.mxu0 %v704
    %3358 = vmatpush.msra.mxu0 %v698
    %3359 = vmatpush.msra.mxu0 %v692
    %3360 = vmatpush.msra.mxu0 %v686
    %3361 = vmatpush.msra.mxu0 %v680
    %3362 = vmatpush.msra.mxu0 %v674
    %3363 = vmatpush.msra.mxu0 %v668
    %3364 = vmatpush.msra.mxu0 %v662
    %3365 = vmatpush.msra.mxu0 %v656
    %3366 = vmatpush.msra.mxu0 %v650
    %3367 = vmatpush.msra.mxu0 %v644
    %3368 = vmatpush.msra.mxu0 %v638
    %3369 = vmatmul.f32.gmra.mxu0 %v63
    %v3370 = vpop.f32.mrf.mxu0
    %v3371 = vadd.f32 %v3210, %v3370
    %3372 = vmatmul.f32.gmra.mxu0 %v69
    %v3373 = vpop.f32.mrf.mxu0
    %v3374 = vadd.f32 %v3213, %v3373
    %3375 = vmatmul.f32.gmra.mxu0 %v75
    %v3376 = vpop.f32.mrf.mxu0
    %v3377 = vadd.f32 %v3216, %v3376
    %3378 = vmatmul.f32.gmra.mxu0 %v81
    %v3379 = vpop.f32.mrf.mxu0
    %v3380 = vadd.f32 %v3219, %v3379
    %3381 = vmatmul.f32.gmra.mxu0 %v87
    %v3382 = vpop.f32.mrf.mxu0
    %v3383 = vadd.f32 %v3222, %v3382
    %3384 = vmatmul.f32.gmra.mxu0 %v93
    %v3385 = vpop.f32.mrf.mxu0
    %v3386 = vadd.f32 %v3225, %v3385
    %3387 = vmatmul.f32.gmra.mxu0 %v99
    %v3388 = vpop.f32.mrf.mxu0
    %v3389 = vadd.f32 %v3228, %v3388
    %3390 = vmatmul.f32.gmra.mxu0 %v105
    %v3391 = vpop.f32.mrf.mxu0
    %v3392 = vadd.f32 %v3231, %v3391
    %3393 = vmatmul.f32.gmra.mxu0 %v111
    %v3394 = vpop.f32.mrf.mxu0
    %v3395 = vadd.f32 %v3234, %v3394
    %3396 = vmatmul.f32.gmra.mxu0 %v117
    %v3397 = vpop.f32.mrf.mxu0
    %v3398 = vadd.f32 %v3237, %v3397
    %3399 = vmatmul.f32.gmra.mxu0 %v123
    %v3400 = vpop.f32.mrf.mxu0
    %v3401 = vadd.f32 %v3240, %v3400
    %3402 = vmatmul.f32.gmra.mxu0 %v129
    %v3403 = vpop.f32.mrf.mxu0
    %v3404 = vadd.f32 %v3243, %v3403
    %3405 = vmatmul.f32.gmra.mxu0 %v135
    %v3406 = vpop.f32.mrf.mxu0
    %v3407 = vadd.f32 %v3246, %v3406
    %3408 = vmatmul.f32.gmra.mxu0 %v141
    %v3409 = vpop.f32.mrf.mxu0
    %v3410 = vadd.f32 %v3249, %v3409
    %3411 = vmatmul.f32.gmra.mxu0 %v147
    %v3412 = vpop.f32.mrf.mxu0
    %v3413 = vadd.f32 %v3252, %v3412
    %3414 = vmatmul.f32.gmra.mxu0 %v153
    %v3415 = vpop.f32.mrf.mxu0
    %v3416 = vadd.f32 %v3255, %v3415
    %3417 = vmatmul.f32.gmra.mxu0 %v159
    %v3418 = vpop.f32.mrf.mxu0
    %v3419 = vadd.f32 %v3258, %v3418
    %3420 = vmatmul.f32.gmra.mxu0 %v165
    %v3421 = vpop.f32.mrf.mxu0
    %v3422 = vadd.f32 %v3261, %v3421
    %3423 = vmatmul.f32.gmra.mxu0 %v171
    %v3424 = vpop.f32.mrf.mxu0
    %v3425 = vadd.f32 %v3264, %v3424
    %3426 = vmatmul.f32.gmra.mxu0 %v177
    %v3427 = vpop.f32.mrf.mxu0
    %v3428 = vadd.f32 %v3267, %v3427
    %3429 = vmatmul.f32.gmra.mxu0 %v183
    %v3430 = vpop.f32.mrf.mxu0
    %v3431 = vadd.f32 %v3270, %v3430
    %3432 = vmatmul.f32.gmra.mxu0 %v189
    %v3433 = vpop.f32.mrf.mxu0
    %v3434 = vadd.f32 %v3273, %v3433
    %3435 = vmatmul.f32.gmra.mxu0 %v195
    %v3436 = vpop.f32.mrf.mxu0
    %v3437 = vadd.f32 %v3276, %v3436
    %3438 = vmatmul.f32.gmra.mxu0 %v201
    %v3439 = vpop.f32.mrf.mxu0
    %v3440 = vadd.f32 %v3279, %v3439
    %3441 = vmatmul.f32.gmra.mxu0 %v207
    %v3442 = vpop.f32.mrf.mxu0
    %v3443 = vadd.f32 %v3282, %v3442
    %3444 = vmatmul.f32.gmra.mxu0 %v213
    %v3445 = vpop.f32.mrf.mxu0
    %v3446 = vadd.f32 %v3285, %v3445
    %3447 = vmatmul.f32.gmra.mxu0 %v219
    %v3448 = vpop.f32.mrf.mxu0
    %v3449 = vadd.f32 %v3288, %v3448
    %3450 = vmatmul.f32.gmra.mxu0 %v225
    %v3451 = vpop.f32.mrf.mxu0
    %v3452 = vadd.f32 %v3291, %v3451
    %3453 = vmatmul.f32.gmra.mxu0 %v231
    %v3454 = vpop.f32.mrf.mxu0
    %v3455 = vadd.f32 %v3294, %v3454
    %3456 = vmatmul.f32.gmra.mxu0 %v237
    %v3457 = vpop.f32.mrf.mxu0
    %v3458 = vadd.f32 %v3297, %v3457
    %3459 = vmatmul.f32.gmra.mxu0 %v243
    %v3460 = vpop.f32.mrf.mxu0
    %v3461 = vadd.f32 %v3300, %v3460
    %3462 = vmatmul.f32.gmra.mxu0 %v249
    %v3463 = vpop.f32.mrf.mxu0
    %v3464 = vadd.f32 %v3303, %v3463
    %3465 = vmatmul.f32.gmra.mxu0 %v255
    %v3466 = vpop.f32.mrf.mxu0
    %v3467 = vadd.f32 %v3306, %v3466
    %3468 = vmatmul.f32.gmra.mxu0 %v261
    %v3469 = vpop.f32.mrf.mxu0
    %v3470 = vadd.f32 %v3309, %v3469
    %3471 = vmatmul.f32.gmra.mxu0 %v267
    %v3472 = vpop.f32.mrf.mxu0
    %v3473 = vadd.f32 %v3312, %v3472
    %3474 = vmatmul.f32.gmra.mxu0 %v273
    %v3475 = vpop.f32.mrf.mxu0
    %v3476 = vadd.f32 %v3315, %v3475
    %3477 = vmatmul.f32.gmra.mxu0 %v279
    %v3478 = vpop.f32.mrf.mxu0
    %v3479 = vadd.f32 %v3318, %v3478
    %3480 = vmatmul.f32.gmra.mxu0 %v285
    %v3481 = vpop.f32.mrf.mxu0
    %v3482 = vadd.f32 %v3321, %v3481
    %3483 = vmatmul.f32.gmra.mxu0 %v291
    %v3484 = vpop.f32.mrf.mxu0
    %v3485 = vadd.f32 %v3324, %v3484
    %3486 = vmatmul.f32.gmra.mxu0 %v297
    %v3487 = vpop.f32.mrf.mxu0
    %v3488 = vadd.f32 %v3327, %v3487
    %3489 = vmatmul.f32.gmra.mxu0 %v303
    %v3490 = vpop.f32.mrf.mxu0
    %v3491 = vadd.f32 %v3330, %v3490
    %3492 = vmatmul.f32.gmra.mxu0 %v309
    %v3493 = vpop.f32.mrf.mxu0
    %v3494 = vadd.f32 %v3333, %v3493
    %3495 = vmatmul.f32.gmra.mxu0 %v315
    %v3496 = vpop.f32.mrf.mxu0
    %v3497 = vadd.f32 %v3336, %v3496
    %3498 = vmatmul.f32.gmra.mxu0 %v321
    %v3499 = vpop.f32.mrf.mxu0
    %v3500 = vadd.f32 %v3339, %v3499
    %3501 = vmatmul.f32.gmra.mxu0 %v327
    %v3502 = vpop.f32.mrf.mxu0
    %v3503 = vadd.f32 %v3342, %v3502
    %3504 = vmatmul.f32.gmra.mxu0 %v333
    %v3505 = vpop.f32.mrf.mxu0
    %v3506 = vadd.f32 %v3345, %v3505
    %3507 = vmatmul.f32.gmra.mxu0 %v339
    %v3508 = vpop.f32.mrf.mxu0
    %v3509 = vadd.f32 %v3348, %v3508
    %3510 = vmatmul.f32.gmra.mxu0 %v345
    %v3511 = vpop.f32.mrf.mxu0
    %v3512 = vadd.f32 %v3351, %v3511
    %3513 = vdwg.mxu0
    %3514 = vmatpush.msra.mxu0 %v824
    %3515 = vmatpush.msra.mxu0 %v818
    %3516 = vmatpush.msra.mxu0 %v812
    %3517 = vmatpush.msra.mxu0 %v806
    %3518 = vmatpush.msra.mxu0 %v800
    %3519 = vmatpush.msra.mxu0 %v794
    %3520 = vmatpush.msra.mxu0 %v788
    %3521 = vmatpush.msra.mxu0 %v782
    %3522 = vmatpush.msra.mxu0 %v776
    %3523 = vmatpush.msra.mxu0 %v770
    %3524 = vmatpush.msra.mxu0 %v764
    %3525 = vmatpush.msra.mxu0 %v758
    %3526 = vmatpush.msra.mxu0 %v752
    %3527 = vmatpush.msra.mxu0 %v746
    %3528 = vmatpush.msra.mxu0 %v740
    %3529 = vmatpush.msra.mxu0 %v734
    %3530 = vmatmul.f32.gmra.mxu0 %v64
    %v3531 = vpop.f32.mrf.mxu0
    %v3532 = vadd.f32 %v3371, %v3531
    %3533 = vmatmul.f32.gmra.mxu0 %v70
    %v3534 = vpop.f32.mrf.mxu0
    %v3535 = vadd.f32 %v3374, %v3534
    %3536 = vmatmul.f32.gmra.mxu0 %v76
    %v3537 = vpop.f32.mrf.mxu0
    %v3538 = vadd.f32 %v3377, %v3537
    %3539 = vmatmul.f32.gmra.mxu0 %v82
    %v3540 = vpop.f32.mrf.mxu0
    %v3541 = vadd.f32 %v3380, %v3540
    %3542 = vmatmul.f32.gmra.mxu0 %v88
    %v3543 = vpop.f32.mrf.mxu0
    %v3544 = vadd.f32 %v3383, %v3543
    %3545 = vmatmul.f32.gmra.mxu0 %v94
    %v3546 = vpop.f32.mrf.mxu0
    %v3547 = vadd.f32 %v3386, %v3546
    %3548 = vmatmul.f32.gmra.mxu0 %v100
    %v3549 = vpop.f32.mrf.mxu0
    %v3550 = vadd.f32 %v3389, %v3549
    %3551 = vmatmul.f32.gmra.mxu0 %v106
    %v3552 = vpop.f32.mrf.mxu0
    %v3553 = vadd.f32 %v3392, %v3552
    %3554 = vmatmul.f32.gmra.mxu0 %v112
    %v3555 = vpop.f32.mrf.mxu0
    %v3556 = vadd.f32 %v3395, %v3555
    %3557 = vmatmul.f32.gmra.mxu0 %v118
    %v3558 = vpop.f32.mrf.mxu0
    %v3559 = vadd.f32 %v3398, %v3558
    %3560 = vmatmul.f32.gmra.mxu0 %v124
    %v3561 = vpop.f32.mrf.mxu0
    %v3562 = vadd.f32 %v3401, %v3561
    %3563 = vmatmul.f32.gmra.mxu0 %v130
    %v3564 = vpop.f32.mrf.mxu0
    %v3565 = vadd.f32 %v3404, %v3564
    %3566 = vmatmul.f32.gmra.mxu0 %v136
    %v3567 = vpop.f32.mrf.mxu0
    %v3568 = vadd.f32 %v3407, %v3567
    %3569 = vmatmul.f32.gmra.mxu0 %v142
    %v3570 = vpop.f32.mrf.mxu0
    %v3571 = vadd.f32 %v3410, %v3570
    %3572 = vmatmul.f32.gmra.mxu0 %v148
    %v3573 = vpop.f32.mrf.mxu0
    %v3574 = vadd.f32 %v3413, %v3573
    %3575 = vmatmul.f32.gmra.mxu0 %v154
    %v3576 = vpop.f32.mrf.mxu0
    %v3577 = vadd.f32 %v3416, %v3576
    %3578 = vmatmul.f32.gmra.mxu0 %v160
    %v3579 = vpop.f32.mrf.mxu0
    %v3580 = vadd.f32 %v3419, %v3579
    %3581 = vmatmul.f32.gmra.mxu0 %v166
    %v3582 = vpop.f32.mrf.mxu0
    %v3583 = vadd.f32 %v3422, %v3582
    %3584 = vmatmul.f32.gmra.mxu0 %v172
    %v3585 = vpop.f32.mrf.mxu0
    %v3586 = vadd.f32 %v3425, %v3585
    %3587 = vmatmul.f32.gmra.mxu0 %v178
    %v3588 = vpop.f32.mrf.mxu0
    %v3589 = vadd.f32 %v3428, %v3588
    %3590 = vmatmul.f32.gmra.mxu0 %v184
    %v3591 = vpop.f32.mrf.mxu0
    %v3592 = vadd.f32 %v3431, %v3591
    %3593 = vmatmul.f32.gmra.mxu0 %v190
    %v3594 = vpop.f32.mrf.mxu0
    %v3595 = vadd.f32 %v3434, %v3594
    %3596 = vmatmul.f32.gmra.mxu0 %v196
    %v3597 = vpop.f32.mrf.mxu0
    %v3598 = vadd.f32 %v3437, %v3597
    %3599 = vmatmul.f32.gmra.mxu0 %v202
    %v3600 = vpop.f32.mrf.mxu0
    %v3601 = vadd.f32 %v3440, %v3600
    %3602 = vmatmul.f32.gmra.mxu0 %v208
    %v3603 = vpop.f32.mrf.mxu0
    %v3604 = vadd.f32 %v3443, %v3603
    %3605 = vmatmul.f32.gmra.mxu0 %v214
    %v3606 = vpop.f32.mrf.mxu0
    %v3607 = vadd.f32 %v3446, %v3606
    %3608 = vmatmul.f32.gmra.mxu0 %v220
    %v3609 = vpop.f32.mrf.mxu0
    %v3610 = vadd.f32 %v3449, %v3609
    %3611 = vmatmul.f32.gmra.mxu0 %v226
    %v3612 = vpop.f32.mrf.mxu0
    %v3613 = vadd.f32 %v3452, %v3612
    %3614 = vmatmul.f32.gmra.mxu0 %v232
    %v3615 = vpop.f32.mrf.mxu0
    %v3616 = vadd.f32 %v3455, %v3615
    %3617 = vmatmul.f32.gmra.mxu0 %v238
    %v3618 = vpop.f32.mrf.mxu0
    %v3619 = vadd.f32 %v3458, %v3618
    %3620 = vmatmul.f32.gmra.mxu0 %v244
    %v3621 = vpop.f32.mrf.mxu0
    %v3622 = vadd.f32 %v3461, %v3621
    %3623 = vmatmul.f32.gmra.mxu0 %v250
    %v3624 = vpop.f32.mrf.mxu0
    %v3625 = vadd.f32 %v3464, %v3624
    %3626 = vmatmul.f32.gmra.mxu0 %v256
    %v3627 = vpop.f32.mrf.mxu0
    %v3628 = vadd.f32 %v3467, %v3627
    %3629 = vmatmul.f32.gmra.mxu0 %v262
    %v3630 = vpop.f32.mrf.mxu0
    %v3631 = vadd.f32 %v3470, %v3630
    %3632 = vmatmul.f32.gmra.mxu0 %v268
    %v3633 = vpop.f32.mrf.mxu0
    %v3634 = vadd.f32 %v3473, %v3633
    %3635 = vmatmul.f32.gmra.mxu0 %v274
    %v3636 = vpop.f32.mrf.mxu0
    %v3637 = vadd.f32 %v3476, %v3636
    %3638 = vmatmul.f32.gmra.mxu0 %v280
    %v3639 = vpop.f32.mrf.mxu0
    %v3640 = vadd.f32 %v3479, %v3639
    %3641 = vmatmul.f32.gmra.mxu0 %v286
    %v3642 = vpop.f32.mrf.mxu0
    %v3643 = vadd.f32 %v3482, %v3642
    %3644 = vmatmul.f32.gmra.mxu0 %v292
    %v3645 = vpop.f32.mrf.mxu0
    %v3646 = vadd.f32 %v3485, %v3645
    %3647 = vmatmul.f32.gmra.mxu0 %v298
    %v3648 = vpop.f32.mrf.mxu0
    %v3649 = vadd.f32 %v3488, %v3648
    %3650 = vmatmul.f32.gmra.mxu0 %v304
    %v3651 = vpop.f32.mrf.mxu0
    %v3652 = vadd.f32 %v3491, %v3651
    %3653 = vmatmul.f32.gmra.mxu0 %v310
    %v3654 = vpop.f32.mrf.mxu0
    %v3655 = vadd.f32 %v3494, %v3654
    %3656 = vmatmul.f32.gmra.mxu0 %v316
    %v3657 = vpop.f32.mrf.mxu0
    %v3658 = vadd.f32 %v3497, %v3657
    %3659 = vmatmul.f32.gmra.mxu0 %v322
    %v3660 = vpop.f32.mrf.mxu0
    %v3661 = vadd.f32 %v3500, %v3660
    %3662 = vmatmul.f32.gmra.mxu0 %v328
    %v3663 = vpop.f32.mrf.mxu0
    %v3664 = vadd.f32 %v3503, %v3663
    %3665 = vmatmul.f32.gmra.mxu0 %v334
    %v3666 = vpop.f32.mrf.mxu0
    %v3667 = vadd.f32 %v3506, %v3666
    %3668 = vmatmul.f32.gmra.mxu0 %v340
    %v3669 = vpop.f32.mrf.mxu0
    %v3670 = vadd.f32 %v3509, %v3669
    %3671 = vmatmul.f32.gmra.mxu0 %v346
    %v3672 = vpop.f32.mrf.mxu0
    %v3673 = vadd.f32 %v3512, %v3672
    %3674 = vdwg.mxu0
    %3675 = vmatpush.msra.mxu0 %v920
    %3676 = vmatpush.msra.mxu0 %v914
    %3677 = vmatpush.msra.mxu0 %v908
    %3678 = vmatpush.msra.mxu0 %v902
    %3679 = vmatpush.msra.mxu0 %v896
    %3680 = vmatpush.msra.mxu0 %v890
    %3681 = vmatpush.msra.mxu0 %v884
    %3682 = vmatpush.msra.mxu0 %v878
    %3683 = vmatpush.msra.mxu0 %v872
    %3684 = vmatpush.msra.mxu0 %v866
    %3685 = vmatpush.msra.mxu0 %v860
    %3686 = vmatpush.msra.mxu0 %v854
    %3687 = vmatpush.msra.mxu0 %v848
    %3688 = vmatpush.msra.mxu0 %v842
    %3689 = vmatpush.msra.mxu0 %v836
    %3690 = vmatpush.msra.mxu0 %v830
    %3691 = vmatmul.f32.gmra.mxu0 %v65
    %v3692 = vpop.f32.mrf.mxu0
    %v3693 = vadd.f32 %v3532, %v3692
    %3694 = vmatmul.f32.gmra.mxu0 %v71
    %v3695 = vpop.f32.mrf.mxu0
    %v3696 = vadd.f32 %v3535, %v3695
    %3697 = vmatmul.f32.gmra.mxu0 %v77
    %v3698 = vpop.f32.mrf.mxu0
    %v3699 = vadd.f32 %v3538, %v3698
    %3700 = vmatmul.f32.gmra.mxu0 %v83
    %v3701 = vpop.f32.mrf.mxu0
    %v3702 = vadd.f32 %v3541, %v3701
    %3703 = vmatmul.f32.gmra.mxu0 %v89
    %v3704 = vpop.f32.mrf.mxu0
    %v3705 = vadd.f32 %v3544, %v3704
    %3706 = vmatmul.f32.gmra.mxu0 %v95
    %v3707 = vpop.f32.mrf.mxu0
    %v3708 = vadd.f32 %v3547, %v3707
    %3709 = vmatmul.f32.gmra.mxu0 %v101
    %v3710 = vpop.f32.mrf.mxu0
    %v3711 = vadd.f32 %v3550, %v3710
    %3712 = vmatmul.f32.gmra.mxu0 %v107
    %v3713 = vpop.f32.mrf.mxu0
    %v3714 = vadd.f32 %v3553, %v3713
    %3715 = vmatmul.f32.gmra.mxu0 %v113
    %v3716 = vpop.f32.mrf.mxu0
    %v3717 = vadd.f32 %v3556, %v3716
    %3718 = vmatmul.f32.gmra.mxu0 %v119
    %v3719 = vpop.f32.mrf.mxu0
    %v3720 = vadd.f32 %v3559, %v3719
    %3721 = vmatmul.f32.gmra.mxu0 %v125
    %v3722 = vpop.f32.mrf.mxu0
    %v3723 = vadd.f32 %v3562, %v3722
    %3724 = vmatmul.f32.gmra.mxu0 %v131
    %v3725 = vpop.f32.mrf.mxu0
    %v3726 = vadd.f32 %v3565, %v3725
    %3727 = vmatmul.f32.gmra.mxu0 %v137
    %v3728 = vpop.f32.mrf.mxu0
    %v3729 = vadd.f32 %v3568, %v3728
    %3730 = vmatmul.f32.gmra.mxu0 %v143
    %v3731 = vpop.f32.mrf.mxu0
    %v3732 = vadd.f32 %v3571, %v3731
    %3733 = vmatmul.f32.gmra.mxu0 %v149
    %v3734 = vpop.f32.mrf.mxu0
    %v3735 = vadd.f32 %v3574, %v3734
    %3736 = vmatmul.f32.gmra.mxu0 %v155
    %v3737 = vpop.f32.mrf.mxu0
    %v3738 = vadd.f32 %v3577, %v3737
    %3739 = vmatmul.f32.gmra.mxu0 %v161
    %v3740 = vpop.f32.mrf.mxu0
    %v3741 = vadd.f32 %v3580, %v3740
    %3742 = vmatmul.f32.gmra.mxu0 %v167
    %v3743 = vpop.f32.mrf.mxu0
    %v3744 = vadd.f32 %v3583, %v3743
    %3745 = vmatmul.f32.gmra.mxu0 %v173
    %v3746 = vpop.f32.mrf.mxu0
    %v3747 = vadd.f32 %v3586, %v3746
    %3748 = vmatmul.f32.gmra.mxu0 %v179
    %v3749 = vpop.f32.mrf.mxu0
    %v3750 = vadd.f32 %v3589, %v3749
    %3751 = vmatmul.f32.gmra.mxu0 %v185
    %v3752 = vpop.f32.mrf.mxu0
    %v3753 = vadd.f32 %v3592, %v3752
    %3754 = vmatmul.f32.gmra.mxu0 %v191
    %v3755 = vpop.f32.mrf.mxu0
    %v3756 = vadd.f32 %v3595, %v3755
    %3757 = vmatmul.f32.gmra.mxu0 %v197
    %v3758 = vpop.f32.mrf.mxu0
    %v3759 = vadd.f32 %v3598, %v3758
    %3760 = vmatmul.f32.gmra.mxu0 %v203
    %v3761 = vpop.f32.mrf.mxu0
    %v3762 = vadd.f32 %v3601, %v3761
    %3763 = vmatmul.f32.gmra.mxu0 %v209
    %v3764 = vpop.f32.mrf.mxu0
    %v3765 = vadd.f32 %v3604, %v3764
    %3766 = vmatmul.f32.gmra.mxu0 %v215
    %v3767 = vpop.f32.mrf.mxu0
    %v3768 = vadd.f32 %v3607, %v3767
    %3769 = vmatmul.f32.gmra.mxu0 %v221
    %v3770 = vpop.f32.mrf.mxu0
    %v3771 = vadd.f32 %v3610, %v3770
    %3772 = vmatmul.f32.gmra.mxu0 %v227
    %v3773 = vpop.f32.mrf.mxu0
    %v3774 = vadd.f32 %v3613, %v3773
    %3775 = vmatmul.f32.gmra.mxu0 %v233
    %v3776 = vpop.f32.mrf.mxu0
    %v3777 = vadd.f32 %v3616, %v3776
    %3778 = vmatmul.f32.gmra.mxu0 %v239
    %v3779 = vpop.f32.mrf.mxu0
    %v3780 = vadd.f32 %v3619, %v3779
    %3781 = vmatmul.f32.gmra.mxu0 %v245
    %v3782 = vpop.f32.mrf.mxu0
    %v3783 = vadd.f32 %v3622, %v3782
    %3784 = vmatmul.f32.gmra.mxu0 %v251
    %v3785 = vpop.f32.mrf.mxu0
    %v3786 = vadd.f32 %v3625, %v3785
    %3787 = vmatmul.f32.gmra.mxu0 %v257
    %v3788 = vpop.f32.mrf.mxu0
    %v3789 = vadd.f32 %v3628, %v3788
    %3790 = vmatmul.f32.gmra.mxu0 %v263
    %v3791 = vpop.f32.mrf.mxu0
    %v3792 = vadd.f32 %v3631, %v3791
    %3793 = vmatmul.f32.gmra.mxu0 %v269
    %v3794 = vpop.f32.mrf.mxu0
    %v3795 = vadd.f32 %v3634, %v3794
    %3796 = vmatmul.f32.gmra.mxu0 %v275
    %v3797 = vpop.f32.mrf.mxu0
    %v3798 = vadd.f32 %v3637, %v3797
    %3799 = vmatmul.f32.gmra.mxu0 %v281
    %v3800 = vpop.f32.mrf.mxu0
    %v3801 = vadd.f32 %v3640, %v3800
    %3802 = vmatmul.f32.gmra.mxu0 %v287
    %v3803 = vpop.f32.mrf.mxu0
    %v3804 = vadd.f32 %v3643, %v3803
    %3805 = vmatmul.f32.gmra.mxu0 %v293
    %v3806 = vpop.f32.mrf.mxu0
    %v3807 = vadd.f32 %v3646, %v3806
    %3808 = vmatmul.f32.gmra.mxu0 %v299
    %v3809 = vpop.f32.mrf.mxu0
    %v3810 = vadd.f32 %v3649, %v3809
    %3811 = vmatmul.f32.gmra.mxu0 %v305
    %v3812 = vpop.f32.mrf.mxu0
    %v3813 = vadd.f32 %v3652, %v3812
    %3814 = vmatmul.f32.gmra.mxu0 %v311
    %v3815 = vpop.f32.mrf.mxu0
    %v3816 = vadd.f32 %v3655, %v3815
    %3817 = vmatmul.f32.gmra.mxu0 %v317
    %v3818 = vpop.f32.mrf.mxu0
    %v3819 = vadd.f32 %v3658, %v3818
    %3820 = vmatmul.f32.gmra.mxu0 %v323
    %v3821 = vpop.f32.mrf.mxu0
    %v3822 = vadd.f32 %v3661, %v3821
    %3823 = vmatmul.f32.gmra.mxu0 %v329
    %v3824 = vpop.f32.mrf.mxu0
    %v3825 = vadd.f32 %v3664, %v3824
    %3826 = vmatmul.f32.gmra.mxu0 %v335
    %v3827 = vpop.f32.mrf.mxu0
    %v3828 = vadd.f32 %v3667, %v3827
    %3829 = vmatmul.f32.gmra.mxu0 %v341
    %v3830 = vpop.f32.mrf.mxu0
    %v3831 = vadd.f32 %v3670, %v3830
    %3832 = vmatmul.f32.gmra.mxu0 %v347
    %v3833 = vpop.f32.mrf.mxu0
    %v3834 = vadd.f32 %v3673, %v3833
    %3835 = vdwg.mxu0
    %3836 = vmatpush.msra.mxu0 %v441
    %3837 = vmatpush.msra.mxu0 %v435
    %3838 = vmatpush.msra.mxu0 %v429
    %3839 = vmatpush.msra.mxu0 %v423
    %3840 = vmatpush.msra.mxu0 %v417
    %3841 = vmatpush.msra.mxu0 %v411
    %3842 = vmatpush.msra.mxu0 %v405
    %3843 = vmatpush.msra.mxu0 %v399
    %3844 = vmatpush.msra.mxu0 %v393
    %3845 = vmatpush.msra.mxu0 %v387
    %3846 = vmatpush.msra.mxu0 %v381
    %3847 = vmatpush.msra.mxu0 %v375
    %3848 = vmatpush.msra.mxu0 %v369
    %3849 = vmatpush.msra.mxu0 %v363
    %3850 = vmatpush.msra.mxu0 %v357
    %3851 = vmatpush.msra.mxu0 %v351
    %3852 = vmatmul.f32.gmra.mxu0 %v60
    %v3853 = vpop.f32.mrf.mxu0
    %v3854 = vadd.f32 %v929, %v3853
    %3855 = vmatmul.f32.gmra.mxu0 %v66
    %v3856 = vpop.f32.mrf.mxu0
    %v3857 = vadd.f32 %v929, %v3856
    %3858 = vmatmul.f32.gmra.mxu0 %v72
    %v3859 = vpop.f32.mrf.mxu0
    %v3860 = vadd.f32 %v929, %v3859
    %3861 = vmatmul.f32.gmra.mxu0 %v78
    %v3862 = vpop.f32.mrf.mxu0
    %v3863 = vadd.f32 %v929, %v3862
    %3864 = vmatmul.f32.gmra.mxu0 %v84
    %v3865 = vpop.f32.mrf.mxu0
    %v3866 = vadd.f32 %v929, %v3865
    %3867 = vmatmul.f32.gmra.mxu0 %v90
    %v3868 = vpop.f32.mrf.mxu0
    %v3869 = vadd.f32 %v929, %v3868
    %3870 = vmatmul.f32.gmra.mxu0 %v96
    %v3871 = vpop.f32.mrf.mxu0
    %v3872 = vadd.f32 %v929, %v3871
    %3873 = vmatmul.f32.gmra.mxu0 %v102
    %v3874 = vpop.f32.mrf.mxu0
    %v3875 = vadd.f32 %v929, %v3874
    %3876 = vmatmul.f32.gmra.mxu0 %v108
    %v3877 = vpop.f32.mrf.mxu0
    %v3878 = vadd.f32 %v929, %v3877
    %3879 = vmatmul.f32.gmra.mxu0 %v114
    %v3880 = vpop.f32.mrf.mxu0
    %v3881 = vadd.f32 %v929, %v3880
    %3882 = vmatmul.f32.gmra.mxu0 %v120
    %v3883 = vpop.f32.mrf.mxu0
    %v3884 = vadd.f32 %v929, %v3883
    %3885 = vmatmul.f32.gmra.mxu0 %v126
    %v3886 = vpop.f32.mrf.mxu0
    %v3887 = vadd.f32 %v929, %v3886
    %3888 = vmatmul.f32.gmra.mxu0 %v132
    %v3889 = vpop.f32.mrf.mxu0
    %v3890 = vadd.f32 %v929, %v3889
    %3891 = vmatmul.f32.gmra.mxu0 %v138
    %v3892 = vpop.f32.mrf.mxu0
    %v3893 = vadd.f32 %v929, %v3892
    %3894 = vmatmul.f32.gmra.mxu0 %v144
    %v3895 = vpop.f32.mrf.mxu0
    %v3896 = vadd.f32 %v929, %v3895
    %3897 = vmatmul.f32.gmra.mxu0 %v150
    %v3898 = vpop.f32.mrf.mxu0
    %v3899 = vadd.f32 %v929, %v3898
    %3900 = vmatmul.f32.gmra.mxu0 %v156
    %v3901 = vpop.f32.mrf.mxu0
    %v3902 = vadd.f32 %v929, %v3901
    %3903 = vmatmul.f32.gmra.mxu0 %v162
    %v3904 = vpop.f32.mrf.mxu0
    %v3905 = vadd.f32 %v929, %v3904
    %3906 = vmatmul.f32.gmra.mxu0 %v168
    %v3907 = vpop.f32.mrf.mxu0
    %v3908 = vadd.f32 %v929, %v3907
    %3909 = vmatmul.f32.gmra.mxu0 %v174
    %v3910 = vpop.f32.mrf.mxu0
    %v3911 = vadd.f32 %v929, %v3910
    %3912 = vmatmul.f32.gmra.mxu0 %v180
    %v3913 = vpop.f32.mrf.mxu0
    %v3914 = vadd.f32 %v929, %v3913
    %3915 = vmatmul.f32.gmra.mxu0 %v186
    %v3916 = vpop.f32.mrf.mxu0
    %v3917 = vadd.f32 %v929, %v3916
    %3918 = vmatmul.f32.gmra.mxu0 %v192
    %v3919 = vpop.f32.mrf.mxu0
    %v3920 = vadd.f32 %v929, %v3919
    %3921 = vmatmul.f32.gmra.mxu0 %v198
    %v3922 = vpop.f32.mrf.mxu0
    %v3923 = vadd.f32 %v929, %v3922
    %3924 = vmatmul.f32.gmra.mxu0 %v204
    %v3925 = vpop.f32.mrf.mxu0
    %v3926 = vadd.f32 %v929, %v3925
    %3927 = vmatmul.f32.gmra.mxu0 %v210
    %v3928 = vpop.f32.mrf.mxu0
    %v3929 = vadd.f32 %v929, %v3928
    %3930 = vmatmul.f32.gmra.mxu0 %v216
    %v3931 = vpop.f32.mrf.mxu0
    %v3932 = vadd.f32 %v929, %v3931
    %3933 = vmatmul.f32.gmra.mxu0 %v222
    %v3934 = vpop.f32.mrf.mxu0
    %v3935 = vadd.f32 %v929, %v3934
    %3936 = vmatmul.f32.gmra.mxu0 %v228
    %v3937 = vpop.f32.mrf.mxu0
    %v3938 = vadd.f32 %v929, %v3937
    %3939 = vmatmul.f32.gmra.mxu0 %v234
    %v3940 = vpop.f32.mrf.mxu0
    %v3941 = vadd.f32 %v929, %v3940
    %3942 = vmatmul.f32.gmra.mxu0 %v240
    %v3943 = vpop.f32.mrf.mxu0
    %v3944 = vadd.f32 %v929, %v3943
    %3945 = vmatmul.f32.gmra.mxu0 %v246
    %v3946 = vpop.f32.mrf.mxu0
    %v3947 = vadd.f32 %v929, %v3946
    %3948 = vmatmul.f32.gmra.mxu0 %v252
    %v3949 = vpop.f32.mrf.mxu0
    %v3950 = vadd.f32 %v929, %v3949
    %3951 = vmatmul.f32.gmra.mxu0 %v258
    %v3952 = vpop.f32.mrf.mxu0
    %v3953 = vadd.f32 %v929, %v3952
    %3954 = vmatmul.f32.gmra.mxu0 %v264
    %v3955 = vpop.f32.mrf.mxu0
    %v3956 = vadd.f32 %v929, %v3955
    %3957 = vmatmul.f32.gmra.mxu0 %v270
    %v3958 = vpop.f32.mrf.mxu0
    %v3959 = vadd.f32 %v929, %v3958
    %3960 = vmatmul.f32.gmra.mxu0 %v276
    %v3961 = vpop.f32.mrf.mxu0
    %v3962 = vadd.f32 %v929, %v3961
    %3963 = vmatmul.f32.gmra.mxu0 %v282
    %v3964 = vpop.f32.mrf.mxu0
    %v3965 = vadd.f32 %v929, %v3964
    %3966 = vmatmul.f32.gmra.mxu0 %v288
    %v3967 = vpop.f32.mrf.mxu0
    %v3968 = vadd.f32 %v929, %v3967
    %3969 = vmatmul.f32.gmra.mxu0 %v294
    %v3970 = vpop.f32.mrf.mxu0
    %v3971 = vadd.f32 %v929, %v3970
    %3972 = vmatmul.f32.gmra.mxu0 %v300
    %v3973 = vpop.f32.mrf.mxu0
    %v3974 = vadd.f32 %v929, %v3973
    %3975 = vmatmul.f32.gmra.mxu0 %v306
    %v3976 = vpop.f32.mrf.mxu0
    %v3977 = vadd.f32 %v929, %v3976
    %3978 = vmatmul.f32.gmra.mxu0 %v312
    %v3979 = vpop.f32.mrf.mxu0
    %v3980 = vadd.f32 %v929, %v3979
    %3981 = vmatmul.f32.gmra.mxu0 %v318
    %v3982 = vpop.f32.mrf.mxu0
    %v3983 = vadd.f32 %v929, %v3982
    %3984 = vmatmul.f32.gmra.mxu0 %v324
    %v3985 = vpop.f32.mrf.mxu0
    %v3986 = vadd.f32 %v929, %v3985
    %3987 = vmatmul.f32.gmra.mxu0 %v330
    %v3988 = vpop.f32.mrf.mxu0
    %v3989 = vadd.f32 %v929, %v3988
    %3990 = vmatmul.f32.gmra.mxu0 %v336
    %v3991 = vpop.f32.mrf.mxu0
    %v3992 = vadd.f32 %v929, %v3991
    %3993 = vmatmul.f32.gmra.mxu0 %v342
    %v3994 = vpop.f32.mrf.mxu0
    %v3995 = vadd.f32 %v929, %v3994
    %3996 = vdwg.mxu0
    %3997 = vmatpush.msra.mxu0 %v537
    %3998 = vmatpush.msra.mxu0 %v531
    %3999 = vmatpush.msra.mxu0 %v525
    %4000 = vmatpush.msra.mxu0 %v519
    %4001 = vmatpush.msra.mxu0 %v513
    %4002 = vmatpush.msra.mxu0 %v507
    %4003 = vmatpush.msra.mxu0 %v501
    %4004 = vmatpush.msra.mxu0 %v495
    %4005 = vmatpush.msra.mxu0 %v489
    %4006 = vmatpush.msra.mxu0 %v483
    %4007 = vmatpush.msra.mxu0 %v477
    %4008 = vmatpush.msra.mxu0 %v471
    %4009 = vmatpush.msra.mxu0 %v465
    %4010 = vmatpush.msra.mxu0 %v459
    %4011 = vmatpush.msra.mxu0 %v453
    %4012 = vmatpush.msra.mxu0 %v447
    %4013 = vmatmul.f32.gmra.mxu0 %v61
    %v4014 = vpop.f32.mrf.mxu0
    %v4015 = vadd.f32 %v3854, %v4014
    %4016 = vmatmul.f32.gmra.mxu0 %v67
    %v4017 = vpop.f32.mrf.mxu0
    %v4018 = vadd.f32 %v3857, %v4017
    %4019 = vmatmul.f32.gmra.mxu0 %v73
    %v4020 = vpop.f32.mrf.mxu0
    %v4021 = vadd.f32 %v3860, %v4020
    %4022 = vmatmul.f32.gmra.mxu0 %v79
    %v4023 = vpop.f32.mrf.mxu0
    %v4024 = vadd.f32 %v3863, %v4023
    %4025 = vmatmul.f32.gmra.mxu0 %v85
    %v4026 = vpop.f32.mrf.mxu0
    %v4027 = vadd.f32 %v3866, %v4026
    %4028 = vmatmul.f32.gmra.mxu0 %v91
    %v4029 = vpop.f32.mrf.mxu0
    %v4030 = vadd.f32 %v3869, %v4029
    %4031 = vmatmul.f32.gmra.mxu0 %v97
    %v4032 = vpop.f32.mrf.mxu0
    %v4033 = vadd.f32 %v3872, %v4032
    %4034 = vmatmul.f32.gmra.mxu0 %v103
    %v4035 = vpop.f32.mrf.mxu0
    %v4036 = vadd.f32 %v3875, %v4035
    %4037 = vmatmul.f32.gmra.mxu0 %v109
    %v4038 = vpop.f32.mrf.mxu0
    %v4039 = vadd.f32 %v3878, %v4038
    %4040 = vmatmul.f32.gmra.mxu0 %v115
    %v4041 = vpop.f32.mrf.mxu0
    %v4042 = vadd.f32 %v3881, %v4041
    %4043 = vmatmul.f32.gmra.mxu0 %v121
    %v4044 = vpop.f32.mrf.mxu0
    %v4045 = vadd.f32 %v3884, %v4044
    %4046 = vmatmul.f32.gmra.mxu0 %v127
    %v4047 = vpop.f32.mrf.mxu0
    %v4048 = vadd.f32 %v3887, %v4047
    %4049 = vmatmul.f32.gmra.mxu0 %v133
    %v4050 = vpop.f32.mrf.mxu0
    %v4051 = vadd.f32 %v3890, %v4050
    %4052 = vmatmul.f32.gmra.mxu0 %v139
    %v4053 = vpop.f32.mrf.mxu0
    %v4054 = vadd.f32 %v3893, %v4053
    %4055 = vmatmul.f32.gmra.mxu0 %v145
    %v4056 = vpop.f32.mrf.mxu0
    %v4057 = vadd.f32 %v3896, %v4056
    %4058 = vmatmul.f32.gmra.mxu0 %v151
    %v4059 = vpop.f32.mrf.mxu0
    %v4060 = vadd.f32 %v3899, %v4059
    %4061 = vmatmul.f32.gmra.mxu0 %v157
    %v4062 = vpop.f32.mrf.mxu0
    %v4063 = vadd.f32 %v3902, %v4062
    %4064 = vmatmul.f32.gmra.mxu0 %v163
    %v4065 = vpop.f32.mrf.mxu0
    %v4066 = vadd.f32 %v3905, %v4065
    %4067 = vmatmul.f32.gmra.mxu0 %v169
    %v4068 = vpop.f32.mrf.mxu0
    %v4069 = vadd.f32 %v3908, %v4068
    %4070 = vmatmul.f32.gmra.mxu0 %v175
    %v4071 = vpop.f32.mrf.mxu0
    %v4072 = vadd.f32 %v3911, %v4071
    %4073 = vmatmul.f32.gmra.mxu0 %v181
    %v4074 = vpop.f32.mrf.mxu0
    %v4075 = vadd.f32 %v3914, %v4074
    %4076 = vmatmul.f32.gmra.mxu0 %v187
    %v4077 = vpop.f32.mrf.mxu0
    %v4078 = vadd.f32 %v3917, %v4077
    %4079 = vmatmul.f32.gmra.mxu0 %v193
    %v4080 = vpop.f32.mrf.mxu0
    %v4081 = vadd.f32 %v3920, %v4080
    %4082 = vmatmul.f32.gmra.mxu0 %v199
    %v4083 = vpop.f32.mrf.mxu0
    %v4084 = vadd.f32 %v3923, %v4083
    %4085 = vmatmul.f32.gmra.mxu0 %v205
    %v4086 = vpop.f32.mrf.mxu0
    %v4087 = vadd.f32 %v3926, %v4086
    %4088 = vmatmul.f32.gmra.mxu0 %v211
    %v4089 = vpop.f32.mrf.mxu0
    %v4090 = vadd.f32 %v3929, %v4089
    %4091 = vmatmul.f32.gmra.mxu0 %v217
    %v4092 = vpop.f32.mrf.mxu0
    %v4093 = vadd.f32 %v3932, %v4092
    %4094 = vmatmul.f32.gmra.mxu0 %v223
    %v4095 = vpop.f32.mrf.mxu0
    %v4096 = vadd.f32 %v3935, %v4095
    %4097 = vmatmul.f32.gmra.mxu0 %v229
    %v4098 = vpop.f32.mrf.mxu0
    %v4099 = vadd.f32 %v3938, %v4098
    %4100 = vmatmul.f32.gmra.mxu0 %v235
    %v4101 = vpop.f32.mrf.mxu0
    %v4102 = vadd.f32 %v3941, %v4101
    %4103 = vmatmul.f32.gmra.mxu0 %v241
    %v4104 = vpop.f32.mrf.mxu0
    %v4105 = vadd.f32 %v3944, %v4104
    %4106 = vmatmul.f32.gmra.mxu0 %v247
    %v4107 = vpop.f32.mrf.mxu0
    %v4108 = vadd.f32 %v3947, %v4107
    %4109 = vmatmul.f32.gmra.mxu0 %v253
    %v4110 = vpop.f32.mrf.mxu0
    %v4111 = vadd.f32 %v3950, %v4110
    %4112 = vmatmul.f32.gmra.mxu0 %v259
    %v4113 = vpop.f32.mrf.mxu0
    %v4114 = vadd.f32 %v3953, %v4113
    %4115 = vmatmul.f32.gmra.mxu0 %v265
    %v4116 = vpop.f32.mrf.mxu0
    %v4117 = vadd.f32 %v3956, %v4116
    %4118 = vmatmul.f32.gmra.mxu0 %v271
    %v4119 = vpop.f32.mrf.mxu0
    %v4120 = vadd.f32 %v3959, %v4119
    %4121 = vmatmul.f32.gmra.mxu0 %v277
    %v4122 = vpop.f32.mrf.mxu0
    %v4123 = vadd.f32 %v3962, %v4122
    %4124 = vmatmul.f32.gmra.mxu0 %v283
    %v4125 = vpop.f32.mrf.mxu0
    %v4126 = vadd.f32 %v3965, %v4125
    %4127 = vmatmul.f32.gmra.mxu0 %v289
    %v4128 = vpop.f32.mrf.mxu0
    %v4129 = vadd.f32 %v3968, %v4128
    %4130 = vmatmul.f32.gmra.mxu0 %v295
    %v4131 = vpop.f32.mrf.mxu0
    %v4132 = vadd.f32 %v3971, %v4131
    %4133 = vmatmul.f32.gmra.mxu0 %v301
    %v4134 = vpop.f32.mrf.mxu0
    %v4135 = vadd.f32 %v3974, %v4134
    %4136 = vmatmul.f32.gmra.mxu0 %v307
    %v4137 = vpop.f32.mrf.mxu0
    %v4138 = vadd.f32 %v3977, %v4137
    %4139 = vmatmul.f32.gmra.mxu0 %v313
    %v4140 = vpop.f32.mrf.mxu0
    %v4141 = vadd.f32 %v3980, %v4140
    %4142 = vmatmul.f32.gmra.mxu0 %v319
    %v4143 = vpop.f32.mrf.mxu0
    %v4144 = vadd.f32 %v3983, %v4143
    %4145 = vmatmul.f32.gmra.mxu0 %v325
    %v4146 = vpop.f32.mrf.mxu0
    %v4147 = vadd.f32 %v3986, %v4146
    %4148 = vmatmul.f32.gmra.mxu0 %v331
    %v4149 = vpop.f32.mrf.mxu0
    %v4150 = vadd.f32 %v3989, %v4149
    %4151 = vmatmul.f32.gmra.mxu0 %v337
    %v4152 = vpop.f32.mrf.mxu0
    %v4153 = vadd.f32 %v3992, %v4152
    %4154 = vmatmul.f32.gmra.mxu0 %v343
    %v4155 = vpop.f32.mrf.mxu0
    %v4156 = vadd.f32 %v3995, %v4155
    %4157 = vdwg.mxu0
    %4158 = vmatpush.msra.mxu0 %v633
    %4159 = vmatpush.msra.mxu0 %v627
    %4160 = vmatpush.msra.mxu0 %v621
    %4161 = vmatpush.msra.mxu0 %v615
    %4162 = vmatpush.msra.mxu0 %v609
    %4163 = vmatpush.msra.mxu0 %v603
    %4164 = vmatpush.msra.mxu0 %v597
    %4165 = vmatpush.msra.mxu0 %v591
    %4166 = vmatpush.msra.mxu0 %v585
    %4167 = vmatpush.msra.mxu0 %v579
    %4168 = vmatpush.msra.mxu0 %v573
    %4169 = vmatpush.msra.mxu0 %v567
    %4170 = vmatpush.msra.mxu0 %v561
    %4171 = vmatpush.msra.mxu0 %v555
    %4172 = vmatpush.msra.mxu0 %v549
    %4173 = vmatpush.msra.mxu0 %v543
    %4174 = vmatmul.f32.gmra.mxu0 %v62
    %v4175 = vpop.f32.mrf.mxu0
    %v4176 = vadd.f32 %v4015, %v4175
    %4177 = vmatmul.f32.gmra.mxu0 %v68
    %v4178 = vpop.f32.mrf.mxu0
    %v4179 = vadd.f32 %v4018, %v4178
    %4180 = vmatmul.f32.gmra.mxu0 %v74
    %v4181 = vpop.f32.mrf.mxu0
    %v4182 = vadd.f32 %v4021, %v4181
    %4183 = vmatmul.f32.gmra.mxu0 %v80
    %v4184 = vpop.f32.mrf.mxu0
    %v4185 = vadd.f32 %v4024, %v4184
    %4186 = vmatmul.f32.gmra.mxu0 %v86
    %v4187 = vpop.f32.mrf.mxu0
    %v4188 = vadd.f32 %v4027, %v4187
    %4189 = vmatmul.f32.gmra.mxu0 %v92
    %v4190 = vpop.f32.mrf.mxu0
    %v4191 = vadd.f32 %v4030, %v4190
    %4192 = vmatmul.f32.gmra.mxu0 %v98
    %v4193 = vpop.f32.mrf.mxu0
    %v4194 = vadd.f32 %v4033, %v4193
    %4195 = vmatmul.f32.gmra.mxu0 %v104
    %v4196 = vpop.f32.mrf.mxu0
    %v4197 = vadd.f32 %v4036, %v4196
    %4198 = vmatmul.f32.gmra.mxu0 %v110
    %v4199 = vpop.f32.mrf.mxu0
    %v4200 = vadd.f32 %v4039, %v4199
    %4201 = vmatmul.f32.gmra.mxu0 %v116
    %v4202 = vpop.f32.mrf.mxu0
    %v4203 = vadd.f32 %v4042, %v4202
    %4204 = vmatmul.f32.gmra.mxu0 %v122
    %v4205 = vpop.f32.mrf.mxu0
    %v4206 = vadd.f32 %v4045, %v4205
    %4207 = vmatmul.f32.gmra.mxu0 %v128
    %v4208 = vpop.f32.mrf.mxu0
    %v4209 = vadd.f32 %v4048, %v4208
    %4210 = vmatmul.f32.gmra.mxu0 %v134
    %v4211 = vpop.f32.mrf.mxu0
    %v4212 = vadd.f32 %v4051, %v4211
    %4213 = vmatmul.f32.gmra.mxu0 %v140
    %v4214 = vpop.f32.mrf.mxu0
    %v4215 = vadd.f32 %v4054, %v4214
    %4216 = vmatmul.f32.gmra.mxu0 %v146
    %v4217 = vpop.f32.mrf.mxu0
    %v4218 = vadd.f32 %v4057, %v4217
    %4219 = vmatmul.f32.gmra.mxu0 %v152
    %v4220 = vpop.f32.mrf.mxu0
    %v4221 = vadd.f32 %v4060, %v4220
    %4222 = vmatmul.f32.gmra.mxu0 %v158
    %v4223 = vpop.f32.mrf.mxu0
    %v4224 = vadd.f32 %v4063, %v4223
    %4225 = vmatmul.f32.gmra.mxu0 %v164
    %v4226 = vpop.f32.mrf.mxu0
    %v4227 = vadd.f32 %v4066, %v4226
    %4228 = vmatmul.f32.gmra.mxu0 %v170
    %v4229 = vpop.f32.mrf.mxu0
    %v4230 = vadd.f32 %v4069, %v4229
    %4231 = vmatmul.f32.gmra.mxu0 %v176
    %v4232 = vpop.f32.mrf.mxu0
    %v4233 = vadd.f32 %v4072, %v4232
    %4234 = vmatmul.f32.gmra.mxu0 %v182
    %v4235 = vpop.f32.mrf.mxu0
    %v4236 = vadd.f32 %v4075, %v4235
    %4237 = vmatmul.f32.gmra.mxu0 %v188
    %v4238 = vpop.f32.mrf.mxu0
    %v4239 = vadd.f32 %v4078, %v4238
    %4240 = vmatmul.f32.gmra.mxu0 %v194
    %v4241 = vpop.f32.mrf.mxu0
    %v4242 = vadd.f32 %v4081, %v4241
    %4243 = vmatmul.f32.gmra.mxu0 %v200
    %v4244 = vpop.f32.mrf.mxu0
    %v4245 = vadd.f32 %v4084, %v4244
    %4246 = vmatmul.f32.gmra.mxu0 %v206
    %v4247 = vpop.f32.mrf.mxu0
    %v4248 = vadd.f32 %v4087, %v4247
    %4249 = vmatmul.f32.gmra.mxu0 %v212
    %v4250 = vpop.f32.mrf.mxu0
    %v4251 = vadd.f32 %v4090, %v4250
    %4252 = vmatmul.f32.gmra.mxu0 %v218
    %v4253 = vpop.f32.mrf.mxu0
    %v4254 = vadd.f32 %v4093, %v4253
    %4255 = vmatmul.f32.gmra.mxu0 %v224
    %v4256 = vpop.f32.mrf.mxu0
    %v4257 = vadd.f32 %v4096, %v4256
    %4258 = vmatmul.f32.gmra.mxu0 %v230
    %v4259 = vpop.f32.mrf.mxu0
    %v4260 = vadd.f32 %v4099, %v4259
    %4261 = vmatmul.f32.gmra.mxu0 %v236
    %v4262 = vpop.f32.mrf.mxu0
    %v4263 = vadd.f32 %v4102, %v4262
    %4264 = vmatmul.f32.gmra.mxu0 %v242
    %v4265 = vpop.f32.mrf.mxu0
    %v4266 = vadd.f32 %v4105, %v4265
    %4267 = vmatmul.f32.gmra.mxu0 %v248
    %v4268 = vpop.f32.mrf.mxu0
    %v4269 = vadd.f32 %v4108, %v4268
    %4270 = vmatmul.f32.gmra.mxu0 %v254
    %v4271 = vpop.f32.mrf.mxu0
    %v4272 = vadd.f32 %v4111, %v4271
    %4273 = vmatmul.f32.gmra.mxu0 %v260
    %v4274 = vpop.f32.mrf.mxu0
    %v4275 = vadd.f32 %v4114, %v4274
    %4276 = vmatmul.f32.gmra.mxu0 %v266
    %v4277 = vpop.f32.mrf.mxu0
    %v4278 = vadd.f32 %v4117, %v4277
    %4279 = vmatmul.f32.gmra.mxu0 %v272
    %v4280 = vpop.f32.mrf.mxu0
    %v4281 = vadd.f32 %v4120, %v4280
    %4282 = vmatmul.f32.gmra.mxu0 %v278
    %v4283 = vpop.f32.mrf.mxu0
    %v4284 = vadd.f32 %v4123, %v4283
    %4285 = vmatmul.f32.gmra.mxu0 %v284
    %v4286 = vpop.f32.mrf.mxu0
    %v4287 = vadd.f32 %v4126, %v4286
    %4288 = vmatmul.f32.gmra.mxu0 %v290
    %v4289 = vpop.f32.mrf.mxu0
    %v4290 = vadd.f32 %v4129, %v4289
    %4291 = vmatmul.f32.gmra.mxu0 %v296
    %v4292 = vpop.f32.mrf.mxu0
    %v4293 = vadd.f32 %v4132, %v4292
    %4294 = vmatmul.f32.gmra.mxu0 %v302
    %v4295 = vpop.f32.mrf.mxu0
    %v4296 = vadd.f32 %v4135, %v4295
    %4297 = vmatmul.f32.gmra.mxu0 %v308
    %v4298 = vpop.f32.mrf.mxu0
    %v4299 = vadd.f32 %v4138, %v4298
    %4300 = vmatmul.f32.gmra.mxu0 %v314
    %v4301 = vpop.f32.mrf.mxu0
    %v4302 = vadd.f32 %v4141, %v4301
    %4303 = vmatmul.f32.gmra.mxu0 %v320
    %v4304 = vpop.f32.mrf.mxu0
    %v4305 = vadd.f32 %v4144, %v4304
    %4306 = vmatmul.f32.gmra.mxu0 %v326
    %v4307 = vpop.f32.mrf.mxu0
    %v4308 = vadd.f32 %v4147, %v4307
    %4309 = vmatmul.f32.gmra.mxu0 %v332
    %v4310 = vpop.f32.mrf.mxu0
    %v4311 = vadd.f32 %v4150, %v4310
    %4312 = vmatmul.f32.gmra.mxu0 %v338
    %v4313 = vpop.f32.mrf.mxu0
    %v4314 = vadd.f32 %v4153, %v4313
    %4315 = vmatmul.f32.gmra.mxu0 %v344
    %v4316 = vpop.f32.mrf.mxu0
    %v4317 = vadd.f32 %v4156, %v4316
    %4318 = vdwg.mxu0
    %4319 = vmatpush.msra.mxu0 %v729
    %4320 = vmatpush.msra.mxu0 %v723
    %4321 = vmatpush.msra.mxu0 %v717
    %4322 = vmatpush.msra.mxu0 %v711
    %4323 = vmatpush.msra.mxu0 %v705
    %4324 = vmatpush.msra.mxu0 %v699
    %4325 = vmatpush.msra.mxu0 %v693
    %4326 = vmatpush.msra.mxu0 %v687
    %4327 = vmatpush.msra.mxu0 %v681
    %4328 = vmatpush.msra.mxu0 %v675
    %4329 = vmatpush.msra.mxu0 %v669
    %4330 = vmatpush.msra.mxu0 %v663
    %4331 = vmatpush.msra.mxu0 %v657
    %4332 = vmatpush.msra.mxu0 %v651
    %4333 = vmatpush.msra.mxu0 %v645
    %4334 = vmatpush.msra.mxu0 %v639
    %4335 = vmatmul.f32.gmra.mxu0 %v63
    %v4336 = vpop.f32.mrf.mxu0
    %v4337 = vadd.f32 %v4176, %v4336
    %4338 = vmatmul.f32.gmra.mxu0 %v69
    %v4339 = vpop.f32.mrf.mxu0
    %v4340 = vadd.f32 %v4179, %v4339
    %4341 = vmatmul.f32.gmra.mxu0 %v75
    %v4342 = vpop.f32.mrf.mxu0
    %v4343 = vadd.f32 %v4182, %v4342
    %4344 = vmatmul.f32.gmra.mxu0 %v81
    %v4345 = vpop.f32.mrf.mxu0
    %v4346 = vadd.f32 %v4185, %v4345
    %4347 = vmatmul.f32.gmra.mxu0 %v87
    %v4348 = vpop.f32.mrf.mxu0
    %v4349 = vadd.f32 %v4188, %v4348
    %4350 = vmatmul.f32.gmra.mxu0 %v93
    %v4351 = vpop.f32.mrf.mxu0
    %v4352 = vadd.f32 %v4191, %v4351
    %4353 = vmatmul.f32.gmra.mxu0 %v99
    %v4354 = vpop.f32.mrf.mxu0
    %v4355 = vadd.f32 %v4194, %v4354
    %4356 = vmatmul.f32.gmra.mxu0 %v105
    %v4357 = vpop.f32.mrf.mxu0
    %v4358 = vadd.f32 %v4197, %v4357
    %4359 = vmatmul.f32.gmra.mxu0 %v111
    %v4360 = vpop.f32.mrf.mxu0
    %v4361 = vadd.f32 %v4200, %v4360
    %4362 = vmatmul.f32.gmra.mxu0 %v117
    %v4363 = vpop.f32.mrf.mxu0
    %v4364 = vadd.f32 %v4203, %v4363
    %4365 = vmatmul.f32.gmra.mxu0 %v123
    %v4366 = vpop.f32.mrf.mxu0
    %v4367 = vadd.f32 %v4206, %v4366
    %4368 = vmatmul.f32.gmra.mxu0 %v129
    %v4369 = vpop.f32.mrf.mxu0
    %v4370 = vadd.f32 %v4209, %v4369
    %4371 = vmatmul.f32.gmra.mxu0 %v135
    %v4372 = vpop.f32.mrf.mxu0
    %v4373 = vadd.f32 %v4212, %v4372
    %4374 = vmatmul.f32.gmra.mxu0 %v141
    %v4375 = vpop.f32.mrf.mxu0
    %v4376 = vadd.f32 %v4215, %v4375
    %4377 = vmatmul.f32.gmra.mxu0 %v147
    %v4378 = vpop.f32.mrf.mxu0
    %v4379 = vadd.f32 %v4218, %v4378
    %4380 = vmatmul.f32.gmra.mxu0 %v153
    %v4381 = vpop.f32.mrf.mxu0
    %v4382 = vadd.f32 %v4221, %v4381
    %4383 = vmatmul.f32.gmra.mxu0 %v159
    %v4384 = vpop.f32.mrf.mxu0
    %v4385 = vadd.f32 %v4224, %v4384
    %4386 = vmatmul.f32.gmra.mxu0 %v165
    %v4387 = vpop.f32.mrf.mxu0
    %v4388 = vadd.f32 %v4227, %v4387
    %4389 = vmatmul.f32.gmra.mxu0 %v171
    %v4390 = vpop.f32.mrf.mxu0
    %v4391 = vadd.f32 %v4230, %v4390
    %4392 = vmatmul.f32.gmra.mxu0 %v177
    %v4393 = vpop.f32.mrf.mxu0
    %v4394 = vadd.f32 %v4233, %v4393
    %4395 = vmatmul.f32.gmra.mxu0 %v183
    %v4396 = vpop.f32.mrf.mxu0
    %v4397 = vadd.f32 %v4236, %v4396
    %4398 = vmatmul.f32.gmra.mxu0 %v189
    %v4399 = vpop.f32.mrf.mxu0
    %v4400 = vadd.f32 %v4239, %v4399
    %4401 = vmatmul.f32.gmra.mxu0 %v195
    %v4402 = vpop.f32.mrf.mxu0
    %v4403 = vadd.f32 %v4242, %v4402
    %4404 = vmatmul.f32.gmra.mxu0 %v201
    %v4405 = vpop.f32.mrf.mxu0
    %v4406 = vadd.f32 %v4245, %v4405
    %4407 = vmatmul.f32.gmra.mxu0 %v207
    %v4408 = vpop.f32.mrf.mxu0
    %v4409 = vadd.f32 %v4248, %v4408
    %4410 = vmatmul.f32.gmra.mxu0 %v213
    %v4411 = vpop.f32.mrf.mxu0
    %v4412 = vadd.f32 %v4251, %v4411
    %4413 = vmatmul.f32.gmra.mxu0 %v219
    %v4414 = vpop.f32.mrf.mxu0
    %v4415 = vadd.f32 %v4254, %v4414
    %4416 = vmatmul.f32.gmra.mxu0 %v225
    %v4417 = vpop.f32.mrf.mxu0
    %v4418 = vadd.f32 %v4257, %v4417
    %4419 = vmatmul.f32.gmra.mxu0 %v231
    %v4420 = vpop.f32.mrf.mxu0
    %v4421 = vadd.f32 %v4260, %v4420
    %4422 = vmatmul.f32.gmra.mxu0 %v237
    %v4423 = vpop.f32.mrf.mxu0
    %v4424 = vadd.f32 %v4263, %v4423
    %4425 = vmatmul.f32.gmra.mxu0 %v243
    %v4426 = vpop.f32.mrf.mxu0
    %v4427 = vadd.f32 %v4266, %v4426
    %4428 = vmatmul.f32.gmra.mxu0 %v249
    %v4429 = vpop.f32.mrf.mxu0
    %v4430 = vadd.f32 %v4269, %v4429
    %4431 = vmatmul.f32.gmra.mxu0 %v255
    %v4432 = vpop.f32.mrf.mxu0
    %v4433 = vadd.f32 %v4272, %v4432
    %4434 = vmatmul.f32.gmra.mxu0 %v261
    %v4435 = vpop.f32.mrf.mxu0
    %v4436 = vadd.f32 %v4275, %v4435
    %4437 = vmatmul.f32.gmra.mxu0 %v267
    %v4438 = vpop.f32.mrf.mxu0
    %v4439 = vadd.f32 %v4278, %v4438
    %4440 = vmatmul.f32.gmra.mxu0 %v273
    %v4441 = vpop.f32.mrf.mxu0
    %v4442 = vadd.f32 %v4281, %v4441
    %4443 = vmatmul.f32.gmra.mxu0 %v279
    %v4444 = vpop.f32.mrf.mxu0
    %v4445 = vadd.f32 %v4284, %v4444
    %4446 = vmatmul.f32.gmra.mxu0 %v285
    %v4447 = vpop.f32.mrf.mxu0
    %v4448 = vadd.f32 %v4287, %v4447
    %4449 = vmatmul.f32.gmra.mxu0 %v291
    %v4450 = vpop.f32.mrf.mxu0
    %v4451 = vadd.f32 %v4290, %v4450
    %4452 = vmatmul.f32.gmra.mxu0 %v297
    %v4453 = vpop.f32.mrf.mxu0
    %v4454 = vadd.f32 %v4293, %v4453
    %4455 = vmatmul.f32.gmra.mxu0 %v303
    %v4456 = vpop.f32.mrf.mxu0
    %v4457 = vadd.f32 %v4296, %v4456
    %4458 = vmatmul.f32.gmra.mxu0 %v309
    %v4459 = vpop.f32.mrf.mxu0
    %v4460 = vadd.f32 %v4299, %v4459
    %4461 = vmatmul.f32.gmra.mxu0 %v315
    %v4462 = vpop.f32.mrf.mxu0
    %v4463 = vadd.f32 %v4302, %v4462
    %4464 = vmatmul.f32.gmra.mxu0 %v321
    %v4465 = vpop.f32.mrf.mxu0
    %v4466 = vadd.f32 %v4305, %v4465
    %4467 = vmatmul.f32.gmra.mxu0 %v327
    %v4468 = vpop.f32.mrf.mxu0
    %v4469 = vadd.f32 %v4308, %v4468
    %4470 = vmatmul.f32.gmra.mxu0 %v333
    %v4471 = vpop.f32.mrf.mxu0
    %v4472 = vadd.f32 %v4311, %v4471
    %4473 = vmatmul.f32.gmra.mxu0 %v339
    %v4474 = vpop.f32.mrf.mxu0
    %v4475 = vadd.f32 %v4314, %v4474
    %4476 = vmatmul.f32.gmra.mxu0 %v345
    %v4477 = vpop.f32.mrf.mxu0
    %v4478 = vadd.f32 %v4317, %v4477
    %4479 = vdwg.mxu0
    %4480 = vmatpush.msra.mxu0 %v825
    %4481 = vmatpush.msra.mxu0 %v819
    %4482 = vmatpush.msra.mxu0 %v813
    %4483 = vmatpush.msra.mxu0 %v807
    %4484 = vmatpush.msra.mxu0 %v801
    %4485 = vmatpush.msra.mxu0 %v795
    %4486 = vmatpush.msra.mxu0 %v789
    %4487 = vmatpush.msra.mxu0 %v783
    %4488 = vmatpush.msra.mxu0 %v777
    %4489 = vmatpush.msra.mxu0 %v771
    %4490 = vmatpush.msra.mxu0 %v765
    %4491 = vmatpush.msra.mxu0 %v759
    %4492 = vmatpush.msra.mxu0 %v753
    %4493 = vmatpush.msra.mxu0 %v747
    %4494 = vmatpush.msra.mxu0 %v741
    %4495 = vmatpush.msra.mxu0 %v735
    %4496 = vmatmul.f32.gmra.mxu0 %v64
    %v4497 = vpop.f32.mrf.mxu0
    %v4498 = vadd.f32 %v4337, %v4497
    %4499 = vmatmul.f32.gmra.mxu0 %v70
    %v4500 = vpop.f32.mrf.mxu0
    %v4501 = vadd.f32 %v4340, %v4500
    %4502 = vmatmul.f32.gmra.mxu0 %v76
    %v4503 = vpop.f32.mrf.mxu0
    %v4504 = vadd.f32 %v4343, %v4503
    %4505 = vmatmul.f32.gmra.mxu0 %v82
    %v4506 = vpop.f32.mrf.mxu0
    %v4507 = vadd.f32 %v4346, %v4506
    %4508 = vmatmul.f32.gmra.mxu0 %v88
    %v4509 = vpop.f32.mrf.mxu0
    %v4510 = vadd.f32 %v4349, %v4509
    %4511 = vmatmul.f32.gmra.mxu0 %v94
    %v4512 = vpop.f32.mrf.mxu0
    %v4513 = vadd.f32 %v4352, %v4512
    %4514 = vmatmul.f32.gmra.mxu0 %v100
    %v4515 = vpop.f32.mrf.mxu0
    %v4516 = vadd.f32 %v4355, %v4515
    %4517 = vmatmul.f32.gmra.mxu0 %v106
    %v4518 = vpop.f32.mrf.mxu0
    %v4519 = vadd.f32 %v4358, %v4518
    %4520 = vmatmul.f32.gmra.mxu0 %v112
    %v4521 = vpop.f32.mrf.mxu0
    %v4522 = vadd.f32 %v4361, %v4521
    %4523 = vmatmul.f32.gmra.mxu0 %v118
    %v4524 = vpop.f32.mrf.mxu0
    %v4525 = vadd.f32 %v4364, %v4524
    %4526 = vmatmul.f32.gmra.mxu0 %v124
    %v4527 = vpop.f32.mrf.mxu0
    %v4528 = vadd.f32 %v4367, %v4527
    %4529 = vmatmul.f32.gmra.mxu0 %v130
    %v4530 = vpop.f32.mrf.mxu0
    %v4531 = vadd.f32 %v4370, %v4530
    %4532 = vmatmul.f32.gmra.mxu0 %v136
    %v4533 = vpop.f32.mrf.mxu0
    %v4534 = vadd.f32 %v4373, %v4533
    %4535 = vmatmul.f32.gmra.mxu0 %v142
    %v4536 = vpop.f32.mrf.mxu0
    %v4537 = vadd.f32 %v4376, %v4536
    %4538 = vmatmul.f32.gmra.mxu0 %v148
    %v4539 = vpop.f32.mrf.mxu0
    %v4540 = vadd.f32 %v4379, %v4539
    %4541 = vmatmul.f32.gmra.mxu0 %v154
    %v4542 = vpop.f32.mrf.mxu0
    %v4543 = vadd.f32 %v4382, %v4542
    %4544 = vmatmul.f32.gmra.mxu0 %v160
    %v4545 = vpop.f32.mrf.mxu0
    %v4546 = vadd.f32 %v4385, %v4545
    %4547 = vmatmul.f32.gmra.mxu0 %v166
    %v4548 = vpop.f32.mrf.mxu0
    %v4549 = vadd.f32 %v4388, %v4548
    %4550 = vmatmul.f32.gmra.mxu0 %v172
    %v4551 = vpop.f32.mrf.mxu0
    %v4552 = vadd.f32 %v4391, %v4551
    %4553 = vmatmul.f32.gmra.mxu0 %v178
    %v4554 = vpop.f32.mrf.mxu0
    %v4555 = vadd.f32 %v4394, %v4554
    %4556 = vmatmul.f32.gmra.mxu0 %v184
    %v4557 = vpop.f32.mrf.mxu0
    %v4558 = vadd.f32 %v4397, %v4557
    %4559 = vmatmul.f32.gmra.mxu0 %v190
    %v4560 = vpop.f32.mrf.mxu0
    %v4561 = vadd.f32 %v4400, %v4560
    %4562 = vmatmul.f32.gmra.mxu0 %v196
    %v4563 = vpop.f32.mrf.mxu0
    %v4564 = vadd.f32 %v4403, %v4563
    %4565 = vmatmul.f32.gmra.mxu0 %v202
    %v4566 = vpop.f32.mrf.mxu0
    %v4567 = vadd.f32 %v4406, %v4566
    %4568 = vmatmul.f32.gmra.mxu0 %v208
    %v4569 = vpop.f32.mrf.mxu0
    %v4570 = vadd.f32 %v4409, %v4569
    %4571 = vmatmul.f32.gmra.mxu0 %v214
    %v4572 = vpop.f32.mrf.mxu0
    %v4573 = vadd.f32 %v4412, %v4572
    %4574 = vmatmul.f32.gmra.mxu0 %v220
    %v4575 = vpop.f32.mrf.mxu0
    %v4576 = vadd.f32 %v4415, %v4575
    %4577 = vmatmul.f32.gmra.mxu0 %v226
    %v4578 = vpop.f32.mrf.mxu0
    %v4579 = vadd.f32 %v4418, %v4578
    %4580 = vmatmul.f32.gmra.mxu0 %v232
    %v4581 = vpop.f32.mrf.mxu0
    %v4582 = vadd.f32 %v4421, %v4581
    %4583 = vmatmul.f32.gmra.mxu0 %v238
    %v4584 = vpop.f32.mrf.mxu0
    %v4585 = vadd.f32 %v4424, %v4584
    %4586 = vmatmul.f32.gmra.mxu0 %v244
    %v4587 = vpop.f32.mrf.mxu0
    %v4588 = vadd.f32 %v4427, %v4587
    %4589 = vmatmul.f32.gmra.mxu0 %v250
    %v4590 = vpop.f32.mrf.mxu0
    %v4591 = vadd.f32 %v4430, %v4590
    %4592 = vmatmul.f32.gmra.mxu0 %v256
    %v4593 = vpop.f32.mrf.mxu0
    %v4594 = vadd.f32 %v4433, %v4593
    %4595 = vmatmul.f32.gmra.mxu0 %v262
    %v4596 = vpop.f32.mrf.mxu0
    %v4597 = vadd.f32 %v4436, %v4596
    %4598 = vmatmul.f32.gmra.mxu0 %v268
    %v4599 = vpop.f32.mrf.mxu0
    %v4600 = vadd.f32 %v4439, %v4599
    %4601 = vmatmul.f32.gmra.mxu0 %v274
    %v4602 = vpop.f32.mrf.mxu0
    %v4603 = vadd.f32 %v4442, %v4602
    %4604 = vmatmul.f32.gmra.mxu0 %v280
    %v4605 = vpop.f32.mrf.mxu0
    %v4606 = vadd.f32 %v4445, %v4605
    %4607 = vmatmul.f32.gmra.mxu0 %v286
    %v4608 = vpop.f32.mrf.mxu0
    %v4609 = vadd.f32 %v4448, %v4608
    %4610 = vmatmul.f32.gmra.mxu0 %v292
    %v4611 = vpop.f32.mrf.mxu0
    %v4612 = vadd.f32 %v4451, %v4611
    %4613 = vmatmul.f32.gmra.mxu0 %v298
    %v4614 = vpop.f32.mrf.mxu0
    %v4615 = vadd.f32 %v4454, %v4614
    %4616 = vmatmul.f32.gmra.mxu0 %v304
    %v4617 = vpop.f32.mrf.mxu0
    %v4618 = vadd.f32 %v4457, %v4617
    %4619 = vmatmul.f32.gmra.mxu0 %v310
    %v4620 = vpop.f32.mrf.mxu0
    %v4621 = vadd.f32 %v4460, %v4620
    %4622 = vmatmul.f32.gmra.mxu0 %v316
    %v4623 = vpop.f32.mrf.mxu0
    %v4624 = vadd.f32 %v4463, %v4623
    %4625 = vmatmul.f32.gmra.mxu0 %v322
    %v4626 = vpop.f32.mrf.mxu0
    %v4627 = vadd.f32 %v4466, %v4626
    %4628 = vmatmul.f32.gmra.mxu0 %v328
    %v4629 = vpop.f32.mrf.mxu0
    %v4630 = vadd.f32 %v4469, %v4629
    %4631 = vmatmul.f32.gmra.mxu0 %v334
    %v4632 = vpop.f32.mrf.mxu0
    %v4633 = vadd.f32 %v4472, %v4632
    %4634 = vmatmul.f32.gmra.mxu0 %v340
    %v4635 = vpop.f32.mrf.mxu0
    %v4636 = vadd.f32 %v4475, %v4635
    %4637 = vmatmul.f32.gmra.mxu0 %v346
    %v4638 = vpop.f32.mrf.mxu0
    %v4639 = vadd.f32 %v4478, %v4638
    %4640 = vdwg.mxu0
    %4641 = vmatpush.msra.mxu0 %v921
    %4642 = vmatpush.msra.mxu0 %v915
    %4643 = vmatpush.msra.mxu0 %v909
    %4644 = vmatpush.msra.mxu0 %v903
    %4645 = vmatpush.msra.mxu0 %v897
    %4646 = vmatpush.msra.mxu0 %v891
    %4647 = vmatpush.msra.mxu0 %v885
    %4648 = vmatpush.msra.mxu0 %v879
    %4649 = vmatpush.msra.mxu0 %v873
    %4650 = vmatpush.msra.mxu0 %v867
    %4651 = vmatpush.msra.mxu0 %v861
    %4652 = vmatpush.msra.mxu0 %v855
    %4653 = vmatpush.msra.mxu0 %v849
    %4654 = vmatpush.msra.mxu0 %v843
    %4655 = vmatpush.msra.mxu0 %v837
    %4656 = vmatpush.msra.mxu0 %v831
    %4657 = vmatmul.f32.gmra.mxu0 %v65
    %v4658 = vpop.f32.mrf.mxu0
    %v4659 = vadd.f32 %v4498, %v4658
    %4660 = vmatmul.f32.gmra.mxu0 %v71
    %v4661 = vpop.f32.mrf.mxu0
    %v4662 = vadd.f32 %v4501, %v4661
    %4663 = vmatmul.f32.gmra.mxu0 %v77
    %v4664 = vpop.f32.mrf.mxu0
    %v4665 = vadd.f32 %v4504, %v4664
    %4666 = vmatmul.f32.gmra.mxu0 %v83
    %v4667 = vpop.f32.mrf.mxu0
    %v4668 = vadd.f32 %v4507, %v4667
    %4669 = vmatmul.f32.gmra.mxu0 %v89
    %v4670 = vpop.f32.mrf.mxu0
    %v4671 = vadd.f32 %v4510, %v4670
    %4672 = vmatmul.f32.gmra.mxu0 %v95
    %v4673 = vpop.f32.mrf.mxu0
    %v4674 = vadd.f32 %v4513, %v4673
    %4675 = vmatmul.f32.gmra.mxu0 %v101
    %v4676 = vpop.f32.mrf.mxu0
    %v4677 = vadd.f32 %v4516, %v4676
    %4678 = vmatmul.f32.gmra.mxu0 %v107
    %v4679 = vpop.f32.mrf.mxu0
    %v4680 = vadd.f32 %v4519, %v4679
    %4681 = vmatmul.f32.gmra.mxu0 %v113
    %v4682 = vpop.f32.mrf.mxu0
    %v4683 = vadd.f32 %v4522, %v4682
    %4684 = vmatmul.f32.gmra.mxu0 %v119
    %v4685 = vpop.f32.mrf.mxu0
    %v4686 = vadd.f32 %v4525, %v4685
    %4687 = vmatmul.f32.gmra.mxu0 %v125
    %v4688 = vpop.f32.mrf.mxu0
    %v4689 = vadd.f32 %v4528, %v4688
    %4690 = vmatmul.f32.gmra.mxu0 %v131
    %v4691 = vpop.f32.mrf.mxu0
    %v4692 = vadd.f32 %v4531, %v4691
    %4693 = vmatmul.f32.gmra.mxu0 %v137
    %v4694 = vpop.f32.mrf.mxu0
    %v4695 = vadd.f32 %v4534, %v4694
    %4696 = vmatmul.f32.gmra.mxu0 %v143
    %v4697 = vpop.f32.mrf.mxu0
    %v4698 = vadd.f32 %v4537, %v4697
    %4699 = vmatmul.f32.gmra.mxu0 %v149
    %v4700 = vpop.f32.mrf.mxu0
    %v4701 = vadd.f32 %v4540, %v4700
    %4702 = vmatmul.f32.gmra.mxu0 %v155
    %v4703 = vpop.f32.mrf.mxu0
    %v4704 = vadd.f32 %v4543, %v4703
    %4705 = vmatmul.f32.gmra.mxu0 %v161
    %v4706 = vpop.f32.mrf.mxu0
    %v4707 = vadd.f32 %v4546, %v4706
    %4708 = vmatmul.f32.gmra.mxu0 %v167
    %v4709 = vpop.f32.mrf.mxu0
    %v4710 = vadd.f32 %v4549, %v4709
    %4711 = vmatmul.f32.gmra.mxu0 %v173
    %v4712 = vpop.f32.mrf.mxu0
    %v4713 = vadd.f32 %v4552, %v4712
    %4714 = vmatmul.f32.gmra.mxu0 %v179
    %v4715 = vpop.f32.mrf.mxu0
    %v4716 = vadd.f32 %v4555, %v4715
    %4717 = vmatmul.f32.gmra.mxu0 %v185
    %v4718 = vpop.f32.mrf.mxu0
    %v4719 = vadd.f32 %v4558, %v4718
    %4720 = vmatmul.f32.gmra.mxu0 %v191
    %v4721 = vpop.f32.mrf.mxu0
    %v4722 = vadd.f32 %v4561, %v4721
    %4723 = vmatmul.f32.gmra.mxu0 %v197
    %v4724 = vpop.f32.mrf.mxu0
    %v4725 = vadd.f32 %v4564, %v4724
    %4726 = vmatmul.f32.gmra.mxu0 %v203
    %v4727 = vpop.f32.mrf.mxu0
    %v4728 = vadd.f32 %v4567, %v4727
    %4729 = vmatmul.f32.gmra.mxu0 %v209
    %v4730 = vpop.f32.mrf.mxu0
    %v4731 = vadd.f32 %v4570, %v4730
    %4732 = vmatmul.f32.gmra.mxu0 %v215
    %v4733 = vpop.f32.mrf.mxu0
    %v4734 = vadd.f32 %v4573, %v4733
    %4735 = vmatmul.f32.gmra.mxu0 %v221
    %v4736 = vpop.f32.mrf.mxu0
    %v4737 = vadd.f32 %v4576, %v4736
    %4738 = vmatmul.f32.gmra.mxu0 %v227
    %v4739 = vpop.f32.mrf.mxu0
    %v4740 = vadd.f32 %v4579, %v4739
    %4741 = vmatmul.f32.gmra.mxu0 %v233
    %v4742 = vpop.f32.mrf.mxu0
    %v4743 = vadd.f32 %v4582, %v4742
    %4744 = vmatmul.f32.gmra.mxu0 %v239
    %v4745 = vpop.f32.mrf.mxu0
    %v4746 = vadd.f32 %v4585, %v4745
    %4747 = vmatmul.f32.gmra.mxu0 %v245
    %v4748 = vpop.f32.mrf.mxu0
    %v4749 = vadd.f32 %v4588, %v4748
    %4750 = vmatmul.f32.gmra.mxu0 %v251
    %v4751 = vpop.f32.mrf.mxu0
    %v4752 = vadd.f32 %v4591, %v4751
    %4753 = vmatmul.f32.gmra.mxu0 %v257
    %v4754 = vpop.f32.mrf.mxu0
    %v4755 = vadd.f32 %v4594, %v4754
    %4756 = vmatmul.f32.gmra.mxu0 %v263
    %v4757 = vpop.f32.mrf.mxu0
    %v4758 = vadd.f32 %v4597, %v4757
    %4759 = vmatmul.f32.gmra.mxu0 %v269
    %v4760 = vpop.f32.mrf.mxu0
    %v4761 = vadd.f32 %v4600, %v4760
    %4762 = vmatmul.f32.gmra.mxu0 %v275
    %v4763 = vpop.f32.mrf.mxu0
    %v4764 = vadd.f32 %v4603, %v4763
    %4765 = vmatmul.f32.gmra.mxu0 %v281
    %v4766 = vpop.f32.mrf.mxu0
    %v4767 = vadd.f32 %v4606, %v4766
    %4768 = vmatmul.f32.gmra.mxu0 %v287
    %v4769 = vpop.f32.mrf.mxu0
    %v4770 = vadd.f32 %v4609, %v4769
    %4771 = vmatmul.f32.gmra.mxu0 %v293
    %v4772 = vpop.f32.mrf.mxu0
    %v4773 = vadd.f32 %v4612, %v4772
    %4774 = vmatmul.f32.gmra.mxu0 %v299
    %v4775 = vpop.f32.mrf.mxu0
    %v4776 = vadd.f32 %v4615, %v4775
    %4777 = vmatmul.f32.gmra.mxu0 %v305
    %v4778 = vpop.f32.mrf.mxu0
    %v4779 = vadd.f32 %v4618, %v4778
    %4780 = vmatmul.f32.gmra.mxu0 %v311
    %v4781 = vpop.f32.mrf.mxu0
    %v4782 = vadd.f32 %v4621, %v4781
    %4783 = vmatmul.f32.gmra.mxu0 %v317
    %v4784 = vpop.f32.mrf.mxu0
    %v4785 = vadd.f32 %v4624, %v4784
    %4786 = vmatmul.f32.gmra.mxu0 %v323
    %v4787 = vpop.f32.mrf.mxu0
    %v4788 = vadd.f32 %v4627, %v4787
    %4789 = vmatmul.f32.gmra.mxu0 %v329
    %v4790 = vpop.f32.mrf.mxu0
    %v4791 = vadd.f32 %v4630, %v4790
    %4792 = vmatmul.f32.gmra.mxu0 %v335
    %v4793 = vpop.f32.mrf.mxu0
    %v4794 = vadd.f32 %v4633, %v4793
    %4795 = vmatmul.f32.gmra.mxu0 %v341
    %v4796 = vpop.f32.mrf.mxu0
    %v4797 = vadd.f32 %v4636, %v4796
    %4798 = vmatmul.f32.gmra.mxu0 %v347
    %v4799 = vpop.f32.mrf.mxu0
    %v4800 = vadd.f32 %v4639, %v4799
    %4801 = vdwg.mxu0
    %4802 = vmatpush.msra.mxu0 %v442
    %4803 = vmatpush.msra.mxu0 %v436
    %4804 = vmatpush.msra.mxu0 %v430
    %4805 = vmatpush.msra.mxu0 %v424
    %4806 = vmatpush.msra.mxu0 %v418
    %4807 = vmatpush.msra.mxu0 %v412
    %4808 = vmatpush.msra.mxu0 %v406
    %4809 = vmatpush.msra.mxu0 %v400
    %4810 = vmatpush.msra.mxu0 %v394
    %4811 = vmatpush.msra.mxu0 %v388
    %4812 = vmatpush.msra.mxu0 %v382
    %4813 = vmatpush.msra.mxu0 %v376
    %4814 = vmatpush.msra.mxu0 %v370
    %4815 = vmatpush.msra.mxu0 %v364
    %4816 = vmatpush.msra.mxu0 %v358
    %4817 = vmatpush.msra.mxu0 %v352
    %4818 = vmatmul.f32.gmra.mxu0 %v60
    %v4819 = vpop.f32.mrf.mxu0
    %v4820 = vadd.f32 %v930, %v4819
    %4821 = vmatmul.f32.gmra.mxu0 %v66
    %v4822 = vpop.f32.mrf.mxu0
    %v4823 = vadd.f32 %v930, %v4822
    %4824 = vmatmul.f32.gmra.mxu0 %v72
    %v4825 = vpop.f32.mrf.mxu0
    %v4826 = vadd.f32 %v930, %v4825
    %4827 = vmatmul.f32.gmra.mxu0 %v78
    %v4828 = vpop.f32.mrf.mxu0
    %v4829 = vadd.f32 %v930, %v4828
    %4830 = vmatmul.f32.gmra.mxu0 %v84
    %v4831 = vpop.f32.mrf.mxu0
    %v4832 = vadd.f32 %v930, %v4831
    %4833 = vmatmul.f32.gmra.mxu0 %v90
    %v4834 = vpop.f32.mrf.mxu0
    %v4835 = vadd.f32 %v930, %v4834
    %4836 = vmatmul.f32.gmra.mxu0 %v96
    %v4837 = vpop.f32.mrf.mxu0
    %v4838 = vadd.f32 %v930, %v4837
    %4839 = vmatmul.f32.gmra.mxu0 %v102
    %v4840 = vpop.f32.mrf.mxu0
    %v4841 = vadd.f32 %v930, %v4840
    %4842 = vmatmul.f32.gmra.mxu0 %v108
    %v4843 = vpop.f32.mrf.mxu0
    %v4844 = vadd.f32 %v930, %v4843
    %4845 = vmatmul.f32.gmra.mxu0 %v114
    %v4846 = vpop.f32.mrf.mxu0
    %v4847 = vadd.f32 %v930, %v4846
    %4848 = vmatmul.f32.gmra.mxu0 %v120
    %v4849 = vpop.f32.mrf.mxu0
    %v4850 = vadd.f32 %v930, %v4849
    %4851 = vmatmul.f32.gmra.mxu0 %v126
    %v4852 = vpop.f32.mrf.mxu0
    %v4853 = vadd.f32 %v930, %v4852
    %4854 = vmatmul.f32.gmra.mxu0 %v132
    %v4855 = vpop.f32.mrf.mxu0
    %v4856 = vadd.f32 %v930, %v4855
    %4857 = vmatmul.f32.gmra.mxu0 %v138
    %v4858 = vpop.f32.mrf.mxu0
    %v4859 = vadd.f32 %v930, %v4858
    %4860 = vmatmul.f32.gmra.mxu0 %v144
    %v4861 = vpop.f32.mrf.mxu0
    %v4862 = vadd.f32 %v930, %v4861
    %4863 = vmatmul.f32.gmra.mxu0 %v150
    %v4864 = vpop.f32.mrf.mxu0
    %v4865 = vadd.f32 %v930, %v4864
    %4866 = vmatmul.f32.gmra.mxu0 %v156
    %v4867 = vpop.f32.mrf.mxu0
    %v4868 = vadd.f32 %v930, %v4867
    %4869 = vmatmul.f32.gmra.mxu0 %v162
    %v4870 = vpop.f32.mrf.mxu0
    %v4871 = vadd.f32 %v930, %v4870
    %4872 = vmatmul.f32.gmra.mxu0 %v168
    %v4873 = vpop.f32.mrf.mxu0
    %v4874 = vadd.f32 %v930, %v4873
    %4875 = vmatmul.f32.gmra.mxu0 %v174
    %v4876 = vpop.f32.mrf.mxu0
    %v4877 = vadd.f32 %v930, %v4876
    %4878 = vmatmul.f32.gmra.mxu0 %v180
    %v4879 = vpop.f32.mrf.mxu0
    %v4880 = vadd.f32 %v930, %v4879
    %4881 = vmatmul.f32.gmra.mxu0 %v186
    %v4882 = vpop.f32.mrf.mxu0
    %v4883 = vadd.f32 %v930, %v4882
    %4884 = vmatmul.f32.gmra.mxu0 %v192
    %v4885 = vpop.f32.mrf.mxu0
    %v4886 = vadd.f32 %v930, %v4885
    %4887 = vmatmul.f32.gmra.mxu0 %v198
    %v4888 = vpop.f32.mrf.mxu0
    %v4889 = vadd.f32 %v930, %v4888
    %4890 = vmatmul.f32.gmra.mxu0 %v204
    %v4891 = vpop.f32.mrf.mxu0
    %v4892 = vadd.f32 %v930, %v4891
    %4893 = vmatmul.f32.gmra.mxu0 %v210
    %v4894 = vpop.f32.mrf.mxu0
    %v4895 = vadd.f32 %v930, %v4894
    %4896 = vmatmul.f32.gmra.mxu0 %v216
    %v4897 = vpop.f32.mrf.mxu0
    %v4898 = vadd.f32 %v930, %v4897
    %4899 = vmatmul.f32.gmra.mxu0 %v222
    %v4900 = vpop.f32.mrf.mxu0
    %v4901 = vadd.f32 %v930, %v4900
    %4902 = vmatmul.f32.gmra.mxu0 %v228
    %v4903 = vpop.f32.mrf.mxu0
    %v4904 = vadd.f32 %v930, %v4903
    %4905 = vmatmul.f32.gmra.mxu0 %v234
    %v4906 = vpop.f32.mrf.mxu0
    %v4907 = vadd.f32 %v930, %v4906
    %4908 = vmatmul.f32.gmra.mxu0 %v240
    %v4909 = vpop.f32.mrf.mxu0
    %v4910 = vadd.f32 %v930, %v4909
    %4911 = vmatmul.f32.gmra.mxu0 %v246
    %v4912 = vpop.f32.mrf.mxu0
    %v4913 = vadd.f32 %v930, %v4912
    %4914 = vmatmul.f32.gmra.mxu0 %v252
    %v4915 = vpop.f32.mrf.mxu0
    %v4916 = vadd.f32 %v930, %v4915
    %4917 = vmatmul.f32.gmra.mxu0 %v258
    %v4918 = vpop.f32.mrf.mxu0
    %v4919 = vadd.f32 %v930, %v4918
    %4920 = vmatmul.f32.gmra.mxu0 %v264
    %v4921 = vpop.f32.mrf.mxu0
    %v4922 = vadd.f32 %v930, %v4921
    %4923 = vmatmul.f32.gmra.mxu0 %v270
    %v4924 = vpop.f32.mrf.mxu0
    %v4925 = vadd.f32 %v930, %v4924
    %4926 = vmatmul.f32.gmra.mxu0 %v276
    %v4927 = vpop.f32.mrf.mxu0
    %v4928 = vadd.f32 %v930, %v4927
    %4929 = vmatmul.f32.gmra.mxu0 %v282
    %v4930 = vpop.f32.mrf.mxu0
    %v4931 = vadd.f32 %v930, %v4930
    %4932 = vmatmul.f32.gmra.mxu0 %v288
    %v4933 = vpop.f32.mrf.mxu0
    %v4934 = vadd.f32 %v930, %v4933
    %4935 = vmatmul.f32.gmra.mxu0 %v294
    %v4936 = vpop.f32.mrf.mxu0
    %v4937 = vadd.f32 %v930, %v4936
    %4938 = vmatmul.f32.gmra.mxu0 %v300
    %v4939 = vpop.f32.mrf.mxu0
    %v4940 = vadd.f32 %v930, %v4939
    %4941 = vmatmul.f32.gmra.mxu0 %v306
    %v4942 = vpop.f32.mrf.mxu0
    %v4943 = vadd.f32 %v930, %v4942
    %4944 = vmatmul.f32.gmra.mxu0 %v312
    %v4945 = vpop.f32.mrf.mxu0
    %v4946 = vadd.f32 %v930, %v4945
    %4947 = vmatmul.f32.gmra.mxu0 %v318
    %v4948 = vpop.f32.mrf.mxu0
    %v4949 = vadd.f32 %v930, %v4948
    %4950 = vmatmul.f32.gmra.mxu0 %v324
    %v4951 = vpop.f32.mrf.mxu0
    %v4952 = vadd.f32 %v930, %v4951
    %4953 = vmatmul.f32.gmra.mxu0 %v330
    %v4954 = vpop.f32.mrf.mxu0
    %v4955 = vadd.f32 %v930, %v4954
    %4956 = vmatmul.f32.gmra.mxu0 %v336
    %v4957 = vpop.f32.mrf.mxu0
    %v4958 = vadd.f32 %v930, %v4957
    %4959 = vmatmul.f32.gmra.mxu0 %v342
    %v4960 = vpop.f32.mrf.mxu0
    %v4961 = vadd.f32 %v930, %v4960
    %4962 = vdwg.mxu0
    %4963 = vmatpush.msra.mxu0 %v538
    %4964 = vmatpush.msra.mxu0 %v532
    %4965 = vmatpush.msra.mxu0 %v526
    %4966 = vmatpush.msra.mxu0 %v520
    %4967 = vmatpush.msra.mxu0 %v514
    %4968 = vmatpush.msra.mxu0 %v508
    %4969 = vmatpush.msra.mxu0 %v502
    %4970 = vmatpush.msra.mxu0 %v496
    %4971 = vmatpush.msra.mxu0 %v490
    %4972 = vmatpush.msra.mxu0 %v484
    %4973 = vmatpush.msra.mxu0 %v478
    %4974 = vmatpush.msra.mxu0 %v472
    %4975 = vmatpush.msra.mxu0 %v466
    %4976 = vmatpush.msra.mxu0 %v460
    %4977 = vmatpush.msra.mxu0 %v454
    %4978 = vmatpush.msra.mxu0 %v448
    %4979 = vmatmul.f32.gmra.mxu0 %v61
    %v4980 = vpop.f32.mrf.mxu0
    %v4981 = vadd.f32 %v4820, %v4980
    %4982 = vmatmul.f32.gmra.mxu0 %v67
    %v4983 = vpop.f32.mrf.mxu0
    %v4984 = vadd.f32 %v4823, %v4983
    %4985 = vmatmul.f32.gmra.mxu0 %v73
    %v4986 = vpop.f32.mrf.mxu0
    %v4987 = vadd.f32 %v4826, %v4986
    %4988 = vmatmul.f32.gmra.mxu0 %v79
    %v4989 = vpop.f32.mrf.mxu0
    %v4990 = vadd.f32 %v4829, %v4989
    %4991 = vmatmul.f32.gmra.mxu0 %v85
    %v4992 = vpop.f32.mrf.mxu0
    %v4993 = vadd.f32 %v4832, %v4992
    %4994 = vmatmul.f32.gmra.mxu0 %v91
    %v4995 = vpop.f32.mrf.mxu0
    %v4996 = vadd.f32 %v4835, %v4995
    %4997 = vmatmul.f32.gmra.mxu0 %v97
    %v4998 = vpop.f32.mrf.mxu0
    %v4999 = vadd.f32 %v4838, %v4998
    %5000 = vmatmul.f32.gmra.mxu0 %v103
    %v5001 = vpop.f32.mrf.mxu0
    %v5002 = vadd.f32 %v4841, %v5001
    %5003 = vmatmul.f32.gmra.mxu0 %v109
    %v5004 = vpop.f32.mrf.mxu0
    %v5005 = vadd.f32 %v4844, %v5004
    %5006 = vmatmul.f32.gmra.mxu0 %v115
    %v5007 = vpop.f32.mrf.mxu0
    %v5008 = vadd.f32 %v4847, %v5007
    %5009 = vmatmul.f32.gmra.mxu0 %v121
    %v5010 = vpop.f32.mrf.mxu0
    %v5011 = vadd.f32 %v4850, %v5010
    %5012 = vmatmul.f32.gmra.mxu0 %v127
    %v5013 = vpop.f32.mrf.mxu0
    %v5014 = vadd.f32 %v4853, %v5013
    %5015 = vmatmul.f32.gmra.mxu0 %v133
    %v5016 = vpop.f32.mrf.mxu0
    %v5017 = vadd.f32 %v4856, %v5016
    %5018 = vmatmul.f32.gmra.mxu0 %v139
    %v5019 = vpop.f32.mrf.mxu0
    %v5020 = vadd.f32 %v4859, %v5019
    %5021 = vmatmul.f32.gmra.mxu0 %v145
    %v5022 = vpop.f32.mrf.mxu0
    %v5023 = vadd.f32 %v4862, %v5022
    %5024 = vmatmul.f32.gmra.mxu0 %v151
    %v5025 = vpop.f32.mrf.mxu0
    %v5026 = vadd.f32 %v4865, %v5025
    %5027 = vmatmul.f32.gmra.mxu0 %v157
    %v5028 = vpop.f32.mrf.mxu0
    %v5029 = vadd.f32 %v4868, %v5028
    %5030 = vmatmul.f32.gmra.mxu0 %v163
    %v5031 = vpop.f32.mrf.mxu0
    %v5032 = vadd.f32 %v4871, %v5031
    %5033 = vmatmul.f32.gmra.mxu0 %v169
    %v5034 = vpop.f32.mrf.mxu0
    %v5035 = vadd.f32 %v4874, %v5034
    %5036 = vmatmul.f32.gmra.mxu0 %v175
    %v5037 = vpop.f32.mrf.mxu0
    %v5038 = vadd.f32 %v4877, %v5037
    %5039 = vmatmul.f32.gmra.mxu0 %v181
    %v5040 = vpop.f32.mrf.mxu0
    %v5041 = vadd.f32 %v4880, %v5040
    %5042 = vmatmul.f32.gmra.mxu0 %v187
    %v5043 = vpop.f32.mrf.mxu0
    %v5044 = vadd.f32 %v4883, %v5043
    %5045 = vmatmul.f32.gmra.mxu0 %v193
    %v5046 = vpop.f32.mrf.mxu0
    %v5047 = vadd.f32 %v4886, %v5046
    %5048 = vmatmul.f32.gmra.mxu0 %v199
    %v5049 = vpop.f32.mrf.mxu0
    %v5050 = vadd.f32 %v4889, %v5049
    %5051 = vmatmul.f32.gmra.mxu0 %v205
    %v5052 = vpop.f32.mrf.mxu0
    %v5053 = vadd.f32 %v4892, %v5052
    %5054 = vmatmul.f32.gmra.mxu0 %v211
    %v5055 = vpop.f32.mrf.mxu0
    %v5056 = vadd.f32 %v4895, %v5055
    %5057 = vmatmul.f32.gmra.mxu0 %v217
    %v5058 = vpop.f32.mrf.mxu0
    %v5059 = vadd.f32 %v4898, %v5058
    %5060 = vmatmul.f32.gmra.mxu0 %v223
    %v5061 = vpop.f32.mrf.mxu0
    %v5062 = vadd.f32 %v4901, %v5061
    %5063 = vmatmul.f32.gmra.mxu0 %v229
    %v5064 = vpop.f32.mrf.mxu0
    %v5065 = vadd.f32 %v4904, %v5064
    %5066 = vmatmul.f32.gmra.mxu0 %v235
    %v5067 = vpop.f32.mrf.mxu0
    %v5068 = vadd.f32 %v4907, %v5067
    %5069 = vmatmul.f32.gmra.mxu0 %v241
    %v5070 = vpop.f32.mrf.mxu0
    %v5071 = vadd.f32 %v4910, %v5070
    %5072 = vmatmul.f32.gmra.mxu0 %v247
    %v5073 = vpop.f32.mrf.mxu0
    %v5074 = vadd.f32 %v4913, %v5073
    %5075 = vmatmul.f32.gmra.mxu0 %v253
    %v5076 = vpop.f32.mrf.mxu0
    %v5077 = vadd.f32 %v4916, %v5076
    %5078 = vmatmul.f32.gmra.mxu0 %v259
    %v5079 = vpop.f32.mrf.mxu0
    %v5080 = vadd.f32 %v4919, %v5079
    %5081 = vmatmul.f32.gmra.mxu0 %v265
    %v5082 = vpop.f32.mrf.mxu0
    %v5083 = vadd.f32 %v4922, %v5082
    %5084 = vmatmul.f32.gmra.mxu0 %v271
    %v5085 = vpop.f32.mrf.mxu0
    %v5086 = vadd.f32 %v4925, %v5085
    %5087 = vmatmul.f32.gmra.mxu0 %v277
    %v5088 = vpop.f32.mrf.mxu0
    %v5089 = vadd.f32 %v4928, %v5088
    %5090 = vmatmul.f32.gmra.mxu0 %v283
    %v5091 = vpop.f32.mrf.mxu0
    %v5092 = vadd.f32 %v4931, %v5091
    %5093 = vmatmul.f32.gmra.mxu0 %v289
    %v5094 = vpop.f32.mrf.mxu0
    %v5095 = vadd.f32 %v4934, %v5094
    %5096 = vmatmul.f32.gmra.mxu0 %v295
    %v5097 = vpop.f32.mrf.mxu0
    %v5098 = vadd.f32 %v4937, %v5097
    %5099 = vmatmul.f32.gmra.mxu0 %v301
    %v5100 = vpop.f32.mrf.mxu0
    %v5101 = vadd.f32 %v4940, %v5100
    %5102 = vmatmul.f32.gmra.mxu0 %v307
    %v5103 = vpop.f32.mrf.mxu0
    %v5104 = vadd.f32 %v4943, %v5103
    %5105 = vmatmul.f32.gmra.mxu0 %v313
    %v5106 = vpop.f32.mrf.mxu0
    %v5107 = vadd.f32 %v4946, %v5106
    %5108 = vmatmul.f32.gmra.mxu0 %v319
    %v5109 = vpop.f32.mrf.mxu0
    %v5110 = vadd.f32 %v4949, %v5109
    %5111 = vmatmul.f32.gmra.mxu0 %v325
    %v5112 = vpop.f32.mrf.mxu0
    %v5113 = vadd.f32 %v4952, %v5112
    %5114 = vmatmul.f32.gmra.mxu0 %v331
    %v5115 = vpop.f32.mrf.mxu0
    %v5116 = vadd.f32 %v4955, %v5115
    %5117 = vmatmul.f32.gmra.mxu0 %v337
    %v5118 = vpop.f32.mrf.mxu0
    %v5119 = vadd.f32 %v4958, %v5118
    %5120 = vmatmul.f32.gmra.mxu0 %v343
    %v5121 = vpop.f32.mrf.mxu0
    %v5122 = vadd.f32 %v4961, %v5121
    %5123 = vdwg.mxu0
    %5124 = vmatpush.msra.mxu0 %v634
    %5125 = vmatpush.msra.mxu0 %v628
    %5126 = vmatpush.msra.mxu0 %v622
    %5127 = vmatpush.msra.mxu0 %v616
    %5128 = vmatpush.msra.mxu0 %v610
    %5129 = vmatpush.msra.mxu0 %v604
    %5130 = vmatpush.msra.mxu0 %v598
    %5131 = vmatpush.msra.mxu0 %v592
    %5132 = vmatpush.msra.mxu0 %v586
    %5133 = vmatpush.msra.mxu0 %v580
    %5134 = vmatpush.msra.mxu0 %v574
    %5135 = vmatpush.msra.mxu0 %v568
    %5136 = vmatpush.msra.mxu0 %v562
    %5137 = vmatpush.msra.mxu0 %v556
    %5138 = vmatpush.msra.mxu0 %v550
    %5139 = vmatpush.msra.mxu0 %v544
    %5140 = vmatmul.f32.gmra.mxu0 %v62
    %v5141 = vpop.f32.mrf.mxu0
    %v5142 = vadd.f32 %v4981, %v5141
    %5143 = vmatmul.f32.gmra.mxu0 %v68
    %v5144 = vpop.f32.mrf.mxu0
    %v5145 = vadd.f32 %v4984, %v5144
    %5146 = vmatmul.f32.gmra.mxu0 %v74
    %v5147 = vpop.f32.mrf.mxu0
    %v5148 = vadd.f32 %v4987, %v5147
    %5149 = vmatmul.f32.gmra.mxu0 %v80
    %v5150 = vpop.f32.mrf.mxu0
    %v5151 = vadd.f32 %v4990, %v5150
    %5152 = vmatmul.f32.gmra.mxu0 %v86
    %v5153 = vpop.f32.mrf.mxu0
    %v5154 = vadd.f32 %v4993, %v5153
    %5155 = vmatmul.f32.gmra.mxu0 %v92
    %v5156 = vpop.f32.mrf.mxu0
    %v5157 = vadd.f32 %v4996, %v5156
    %5158 = vmatmul.f32.gmra.mxu0 %v98
    %v5159 = vpop.f32.mrf.mxu0
    %v5160 = vadd.f32 %v4999, %v5159
    %5161 = vmatmul.f32.gmra.mxu0 %v104
    %v5162 = vpop.f32.mrf.mxu0
    %v5163 = vadd.f32 %v5002, %v5162
    %5164 = vmatmul.f32.gmra.mxu0 %v110
    %v5165 = vpop.f32.mrf.mxu0
    %v5166 = vadd.f32 %v5005, %v5165
    %5167 = vmatmul.f32.gmra.mxu0 %v116
    %v5168 = vpop.f32.mrf.mxu0
    %v5169 = vadd.f32 %v5008, %v5168
    %5170 = vmatmul.f32.gmra.mxu0 %v122
    %v5171 = vpop.f32.mrf.mxu0
    %v5172 = vadd.f32 %v5011, %v5171
    %5173 = vmatmul.f32.gmra.mxu0 %v128
    %v5174 = vpop.f32.mrf.mxu0
    %v5175 = vadd.f32 %v5014, %v5174
    %5176 = vmatmul.f32.gmra.mxu0 %v134
    %v5177 = vpop.f32.mrf.mxu0
    %v5178 = vadd.f32 %v5017, %v5177
    %5179 = vmatmul.f32.gmra.mxu0 %v140
    %v5180 = vpop.f32.mrf.mxu0
    %v5181 = vadd.f32 %v5020, %v5180
    %5182 = vmatmul.f32.gmra.mxu0 %v146
    %v5183 = vpop.f32.mrf.mxu0
    %v5184 = vadd.f32 %v5023, %v5183
    %5185 = vmatmul.f32.gmra.mxu0 %v152
    %v5186 = vpop.f32.mrf.mxu0
    %v5187 = vadd.f32 %v5026, %v5186
    %5188 = vmatmul.f32.gmra.mxu0 %v158
    %v5189 = vpop.f32.mrf.mxu0
    %v5190 = vadd.f32 %v5029, %v5189
    %5191 = vmatmul.f32.gmra.mxu0 %v164
    %v5192 = vpop.f32.mrf.mxu0
    %v5193 = vadd.f32 %v5032, %v5192
    %5194 = vmatmul.f32.gmra.mxu0 %v170
    %v5195 = vpop.f32.mrf.mxu0
    %v5196 = vadd.f32 %v5035, %v5195
    %5197 = vmatmul.f32.gmra.mxu0 %v176
    %v5198 = vpop.f32.mrf.mxu0
    %v5199 = vadd.f32 %v5038, %v5198
    %5200 = vmatmul.f32.gmra.mxu0 %v182
    %v5201 = vpop.f32.mrf.mxu0
    %v5202 = vadd.f32 %v5041, %v5201
    %5203 = vmatmul.f32.gmra.mxu0 %v188
    %v5204 = vpop.f32.mrf.mxu0
    %v5205 = vadd.f32 %v5044, %v5204
    %5206 = vmatmul.f32.gmra.mxu0 %v194
    %v5207 = vpop.f32.mrf.mxu0
    %v5208 = vadd.f32 %v5047, %v5207
    %5209 = vmatmul.f32.gmra.mxu0 %v200
    %v5210 = vpop.f32.mrf.mxu0
    %v5211 = vadd.f32 %v5050, %v5210
    %5212 = vmatmul.f32.gmra.mxu0 %v206
    %v5213 = vpop.f32.mrf.mxu0
    %v5214 = vadd.f32 %v5053, %v5213
    %5215 = vmatmul.f32.gmra.mxu0 %v212
    %v5216 = vpop.f32.mrf.mxu0
    %v5217 = vadd.f32 %v5056, %v5216
    %5218 = vmatmul.f32.gmra.mxu0 %v218
    %v5219 = vpop.f32.mrf.mxu0
    %v5220 = vadd.f32 %v5059, %v5219
    %5221 = vmatmul.f32.gmra.mxu0 %v224
    %v5222 = vpop.f32.mrf.mxu0
    %v5223 = vadd.f32 %v5062, %v5222
    %5224 = vmatmul.f32.gmra.mxu0 %v230
    %v5225 = vpop.f32.mrf.mxu0
    %v5226 = vadd.f32 %v5065, %v5225
    %5227 = vmatmul.f32.gmra.mxu0 %v236
    %v5228 = vpop.f32.mrf.mxu0
    %v5229 = vadd.f32 %v5068, %v5228
    %5230 = vmatmul.f32.gmra.mxu0 %v242
    %v5231 = vpop.f32.mrf.mxu0
    %v5232 = vadd.f32 %v5071, %v5231
    %5233 = vmatmul.f32.gmra.mxu0 %v248
    %v5234 = vpop.f32.mrf.mxu0
    %v5235 = vadd.f32 %v5074, %v5234
    %5236 = vmatmul.f32.gmra.mxu0 %v254
    %v5237 = vpop.f32.mrf.mxu0
    %v5238 = vadd.f32 %v5077, %v5237
    %5239 = vmatmul.f32.gmra.mxu0 %v260
    %v5240 = vpop.f32.mrf.mxu0
    %v5241 = vadd.f32 %v5080, %v5240
    %5242 = vmatmul.f32.gmra.mxu0 %v266
    %v5243 = vpop.f32.mrf.mxu0
    %v5244 = vadd.f32 %v5083, %v5243
    %5245 = vmatmul.f32.gmra.mxu0 %v272
    %v5246 = vpop.f32.mrf.mxu0
    %v5247 = vadd.f32 %v5086, %v5246
    %5248 = vmatmul.f32.gmra.mxu0 %v278
    %v5249 = vpop.f32.mrf.mxu0
    %v5250 = vadd.f32 %v5089, %v5249
    %5251 = vmatmul.f32.gmra.mxu0 %v284
    %v5252 = vpop.f32.mrf.mxu0
    %v5253 = vadd.f32 %v5092, %v5252
    %5254 = vmatmul.f32.gmra.mxu0 %v290
    %v5255 = vpop.f32.mrf.mxu0
    %v5256 = vadd.f32 %v5095, %v5255
    %5257 = vmatmul.f32.gmra.mxu0 %v296
    %v5258 = vpop.f32.mrf.mxu0
    %v5259 = vadd.f32 %v5098, %v5258
    %5260 = vmatmul.f32.gmra.mxu0 %v302
    %v5261 = vpop.f32.mrf.mxu0
    %v5262 = vadd.f32 %v5101, %v5261
    %5263 = vmatmul.f32.gmra.mxu0 %v308
    %v5264 = vpop.f32.mrf.mxu0
    %v5265 = vadd.f32 %v5104, %v5264
    %5266 = vmatmul.f32.gmra.mxu0 %v314
    %v5267 = vpop.f32.mrf.mxu0
    %v5268 = vadd.f32 %v5107, %v5267
    %5269 = vmatmul.f32.gmra.mxu0 %v320
    %v5270 = vpop.f32.mrf.mxu0
    %v5271 = vadd.f32 %v5110, %v5270
    %5272 = vmatmul.f32.gmra.mxu0 %v326
    %v5273 = vpop.f32.mrf.mxu0
    %v5274 = vadd.f32 %v5113, %v5273
    %5275 = vmatmul.f32.gmra.mxu0 %v332
    %v5276 = vpop.f32.mrf.mxu0
    %v5277 = vadd.f32 %v5116, %v5276
    %5278 = vmatmul.f32.gmra.mxu0 %v338
    %v5279 = vpop.f32.mrf.mxu0
    %v5280 = vadd.f32 %v5119, %v5279
    %5281 = vmatmul.f32.gmra.mxu0 %v344
    %v5282 = vpop.f32.mrf.mxu0
    %v5283 = vadd.f32 %v5122, %v5282
    %5284 = vdwg.mxu0
    %5285 = vmatpush.msra.mxu0 %v730
    %5286 = vmatpush.msra.mxu0 %v724
    %5287 = vmatpush.msra.mxu0 %v718
    %5288 = vmatpush.msra.mxu0 %v712
    %5289 = vmatpush.msra.mxu0 %v706
    %5290 = vmatpush.msra.mxu0 %v700
    %5291 = vmatpush.msra.mxu0 %v694
    %5292 = vmatpush.msra.mxu0 %v688
    %5293 = vmatpush.msra.mxu0 %v682
    %5294 = vmatpush.msra.mxu0 %v676
    %5295 = vmatpush.msra.mxu0 %v670
    %5296 = vmatpush.msra.mxu0 %v664
    %5297 = vmatpush.msra.mxu0 %v658
    %5298 = vmatpush.msra.mxu0 %v652
    %5299 = vmatpush.msra.mxu0 %v646
    %5300 = vmatpush.msra.mxu0 %v640
    %5301 = vmatmul.f32.gmra.mxu0 %v63
    %v5302 = vpop.f32.mrf.mxu0
    %v5303 = vadd.f32 %v5142, %v5302
    %5304 = vmatmul.f32.gmra.mxu0 %v69
    %v5305 = vpop.f32.mrf.mxu0
    %v5306 = vadd.f32 %v5145, %v5305
    %5307 = vmatmul.f32.gmra.mxu0 %v75
    %v5308 = vpop.f32.mrf.mxu0
    %v5309 = vadd.f32 %v5148, %v5308
    %5310 = vmatmul.f32.gmra.mxu0 %v81
    %v5311 = vpop.f32.mrf.mxu0
    %v5312 = vadd.f32 %v5151, %v5311
    %5313 = vmatmul.f32.gmra.mxu0 %v87
    %v5314 = vpop.f32.mrf.mxu0
    %v5315 = vadd.f32 %v5154, %v5314
    %5316 = vmatmul.f32.gmra.mxu0 %v93
    %v5317 = vpop.f32.mrf.mxu0
    %v5318 = vadd.f32 %v5157, %v5317
    %5319 = vmatmul.f32.gmra.mxu0 %v99
    %v5320 = vpop.f32.mrf.mxu0
    %v5321 = vadd.f32 %v5160, %v5320
    %5322 = vmatmul.f32.gmra.mxu0 %v105
    %v5323 = vpop.f32.mrf.mxu0
    %v5324 = vadd.f32 %v5163, %v5323
    %5325 = vmatmul.f32.gmra.mxu0 %v111
    %v5326 = vpop.f32.mrf.mxu0
    %v5327 = vadd.f32 %v5166, %v5326
    %5328 = vmatmul.f32.gmra.mxu0 %v117
    %v5329 = vpop.f32.mrf.mxu0
    %v5330 = vadd.f32 %v5169, %v5329
    %5331 = vmatmul.f32.gmra.mxu0 %v123
    %v5332 = vpop.f32.mrf.mxu0
    %v5333 = vadd.f32 %v5172, %v5332
    %5334 = vmatmul.f32.gmra.mxu0 %v129
    %v5335 = vpop.f32.mrf.mxu0
    %v5336 = vadd.f32 %v5175, %v5335
    %5337 = vmatmul.f32.gmra.mxu0 %v135
    %v5338 = vpop.f32.mrf.mxu0
    %v5339 = vadd.f32 %v5178, %v5338
    %5340 = vmatmul.f32.gmra.mxu0 %v141
    %v5341 = vpop.f32.mrf.mxu0
    %v5342 = vadd.f32 %v5181, %v5341
    %5343 = vmatmul.f32.gmra.mxu0 %v147
    %v5344 = vpop.f32.mrf.mxu0
    %v5345 = vadd.f32 %v5184, %v5344
    %5346 = vmatmul.f32.gmra.mxu0 %v153
    %v5347 = vpop.f32.mrf.mxu0
    %v5348 = vadd.f32 %v5187, %v5347
    %5349 = vmatmul.f32.gmra.mxu0 %v159
    %v5350 = vpop.f32.mrf.mxu0
    %v5351 = vadd.f32 %v5190, %v5350
    %5352 = vmatmul.f32.gmra.mxu0 %v165
    %v5353 = vpop.f32.mrf.mxu0
    %v5354 = vadd.f32 %v5193, %v5353
    %5355 = vmatmul.f32.gmra.mxu0 %v171
    %v5356 = vpop.f32.mrf.mxu0
    %v5357 = vadd.f32 %v5196, %v5356
    %5358 = vmatmul.f32.gmra.mxu0 %v177
    %v5359 = vpop.f32.mrf.mxu0
    %v5360 = vadd.f32 %v5199, %v5359
    %5361 = vmatmul.f32.gmra.mxu0 %v183
    %v5362 = vpop.f32.mrf.mxu0
    %v5363 = vadd.f32 %v5202, %v5362
    %5364 = vmatmul.f32.gmra.mxu0 %v189
    %v5365 = vpop.f32.mrf.mxu0
    %v5366 = vadd.f32 %v5205, %v5365
    %5367 = vmatmul.f32.gmra.mxu0 %v195
    %v5368 = vpop.f32.mrf.mxu0
    %v5369 = vadd.f32 %v5208, %v5368
    %5370 = vmatmul.f32.gmra.mxu0 %v201
    %v5371 = vpop.f32.mrf.mxu0
    %v5372 = vadd.f32 %v5211, %v5371
    %5373 = vmatmul.f32.gmra.mxu0 %v207
    %v5374 = vpop.f32.mrf.mxu0
    %v5375 = vadd.f32 %v5214, %v5374
    %5376 = vmatmul.f32.gmra.mxu0 %v213
    %v5377 = vpop.f32.mrf.mxu0
    %v5378 = vadd.f32 %v5217, %v5377
    %5379 = vmatmul.f32.gmra.mxu0 %v219
    %v5380 = vpop.f32.mrf.mxu0
    %v5381 = vadd.f32 %v5220, %v5380
    %5382 = vmatmul.f32.gmra.mxu0 %v225
    %v5383 = vpop.f32.mrf.mxu0
    %v5384 = vadd.f32 %v5223, %v5383
    %5385 = vmatmul.f32.gmra.mxu0 %v231
    %v5386 = vpop.f32.mrf.mxu0
    %v5387 = vadd.f32 %v5226, %v5386
    %5388 = vmatmul.f32.gmra.mxu0 %v237
    %v5389 = vpop.f32.mrf.mxu0
    %v5390 = vadd.f32 %v5229, %v5389
    %5391 = vmatmul.f32.gmra.mxu0 %v243
    %v5392 = vpop.f32.mrf.mxu0
    %v5393 = vadd.f32 %v5232, %v5392
    %5394 = vmatmul.f32.gmra.mxu0 %v249
    %v5395 = vpop.f32.mrf.mxu0
    %v5396 = vadd.f32 %v5235, %v5395
    %5397 = vmatmul.f32.gmra.mxu0 %v255
    %v5398 = vpop.f32.mrf.mxu0
    %v5399 = vadd.f32 %v5238, %v5398
    %5400 = vmatmul.f32.gmra.mxu0 %v261
    %v5401 = vpop.f32.mrf.mxu0
    %v5402 = vadd.f32 %v5241, %v5401
    %5403 = vmatmul.f32.gmra.mxu0 %v267
    %v5404 = vpop.f32.mrf.mxu0
    %v5405 = vadd.f32 %v5244, %v5404
    %5406 = vmatmul.f32.gmra.mxu0 %v273
    %v5407 = vpop.f32.mrf.mxu0
    %v5408 = vadd.f32 %v5247, %v5407
    %5409 = vmatmul.f32.gmra.mxu0 %v279
    %v5410 = vpop.f32.mrf.mxu0
    %v5411 = vadd.f32 %v5250, %v5410
    %5412 = vmatmul.f32.gmra.mxu0 %v285
    %v5413 = vpop.f32.mrf.mxu0
    %v5414 = vadd.f32 %v5253, %v5413
    %5415 = vmatmul.f32.gmra.mxu0 %v291
    %v5416 = vpop.f32.mrf.mxu0
    %v5417 = vadd.f32 %v5256, %v5416
    %5418 = vmatmul.f32.gmra.mxu0 %v297
    %v5419 = vpop.f32.mrf.mxu0
    %v5420 = vadd.f32 %v5259, %v5419
    %5421 = vmatmul.f32.gmra.mxu0 %v303
    %v5422 = vpop.f32.mrf.mxu0
    %v5423 = vadd.f32 %v5262, %v5422
    %5424 = vmatmul.f32.gmra.mxu0 %v309
    %v5425 = vpop.f32.mrf.mxu0
    %v5426 = vadd.f32 %v5265, %v5425
    %5427 = vmatmul.f32.gmra.mxu0 %v315
    %v5428 = vpop.f32.mrf.mxu0
    %v5429 = vadd.f32 %v5268, %v5428
    %5430 = vmatmul.f32.gmra.mxu0 %v321
    %v5431 = vpop.f32.mrf.mxu0
    %v5432 = vadd.f32 %v5271, %v5431
    %5433 = vmatmul.f32.gmra.mxu0 %v327
    %v5434 = vpop.f32.mrf.mxu0
    %v5435 = vadd.f32 %v5274, %v5434
    %5436 = vmatmul.f32.gmra.mxu0 %v333
    %v5437 = vpop.f32.mrf.mxu0
    %v5438 = vadd.f32 %v5277, %v5437
    %5439 = vmatmul.f32.gmra.mxu0 %v339
    %v5440 = vpop.f32.mrf.mxu0
    %v5441 = vadd.f32 %v5280, %v5440
    %5442 = vmatmul.f32.gmra.mxu0 %v345
    %v5443 = vpop.f32.mrf.mxu0
    %v5444 = vadd.f32 %v5283, %v5443
    %5445 = vdwg.mxu0
    %5446 = vmatpush.msra.mxu0 %v826
    %5447 = vmatpush.msra.mxu0 %v820
    %5448 = vmatpush.msra.mxu0 %v814
    %5449 = vmatpush.msra.mxu0 %v808
    %5450 = vmatpush.msra.mxu0 %v802
    %5451 = vmatpush.msra.mxu0 %v796
    %5452 = vmatpush.msra.mxu0 %v790
    %5453 = vmatpush.msra.mxu0 %v784
    %5454 = vmatpush.msra.mxu0 %v778
    %5455 = vmatpush.msra.mxu0 %v772
    %5456 = vmatpush.msra.mxu0 %v766
    %5457 = vmatpush.msra.mxu0 %v760
    %5458 = vmatpush.msra.mxu0 %v754
    %5459 = vmatpush.msra.mxu0 %v748
    %5460 = vmatpush.msra.mxu0 %v742
    %5461 = vmatpush.msra.mxu0 %v736
    %5462 = vmatmul.f32.gmra.mxu0 %v64
    %v5463 = vpop.f32.mrf.mxu0
    %v5464 = vadd.f32 %v5303, %v5463
    %5465 = vmatmul.f32.gmra.mxu0 %v70
    %v5466 = vpop.f32.mrf.mxu0
    %v5467 = vadd.f32 %v5306, %v5466
    %5468 = vmatmul.f32.gmra.mxu0 %v76
    %v5469 = vpop.f32.mrf.mxu0
    %v5470 = vadd.f32 %v5309, %v5469
    %5471 = vmatmul.f32.gmra.mxu0 %v82
    %v5472 = vpop.f32.mrf.mxu0
    %v5473 = vadd.f32 %v5312, %v5472
    %5474 = vmatmul.f32.gmra.mxu0 %v88
    %v5475 = vpop.f32.mrf.mxu0
    %v5476 = vadd.f32 %v5315, %v5475
    %5477 = vmatmul.f32.gmra.mxu0 %v94
    %v5478 = vpop.f32.mrf.mxu0
    %v5479 = vadd.f32 %v5318, %v5478
    %5480 = vmatmul.f32.gmra.mxu0 %v100
    %v5481 = vpop.f32.mrf.mxu0
    %v5482 = vadd.f32 %v5321, %v5481
    %5483 = vmatmul.f32.gmra.mxu0 %v106
    %v5484 = vpop.f32.mrf.mxu0
    %v5485 = vadd.f32 %v5324, %v5484
    %5486 = vmatmul.f32.gmra.mxu0 %v112
    %v5487 = vpop.f32.mrf.mxu0
    %v5488 = vadd.f32 %v5327, %v5487
    %5489 = vmatmul.f32.gmra.mxu0 %v118
    %v5490 = vpop.f32.mrf.mxu0
    %v5491 = vadd.f32 %v5330, %v5490
    %5492 = vmatmul.f32.gmra.mxu0 %v124
    %v5493 = vpop.f32.mrf.mxu0
    %v5494 = vadd.f32 %v5333, %v5493
    %5495 = vmatmul.f32.gmra.mxu0 %v130
    %v5496 = vpop.f32.mrf.mxu0
    %v5497 = vadd.f32 %v5336, %v5496
    %5498 = vmatmul.f32.gmra.mxu0 %v136
    %v5499 = vpop.f32.mrf.mxu0
    %v5500 = vadd.f32 %v5339, %v5499
    %5501 = vmatmul.f32.gmra.mxu0 %v142
    %v5502 = vpop.f32.mrf.mxu0
    %v5503 = vadd.f32 %v5342, %v5502
    %5504 = vmatmul.f32.gmra.mxu0 %v148
    %v5505 = vpop.f32.mrf.mxu0
    %v5506 = vadd.f32 %v5345, %v5505
    %5507 = vmatmul.f32.gmra.mxu0 %v154
    %v5508 = vpop.f32.mrf.mxu0
    %v5509 = vadd.f32 %v5348, %v5508
    %5510 = vmatmul.f32.gmra.mxu0 %v160
    %v5511 = vpop.f32.mrf.mxu0
    %v5512 = vadd.f32 %v5351, %v5511
    %5513 = vmatmul.f32.gmra.mxu0 %v166
    %v5514 = vpop.f32.mrf.mxu0
    %v5515 = vadd.f32 %v5354, %v5514
    %5516 = vmatmul.f32.gmra.mxu0 %v172
    %v5517 = vpop.f32.mrf.mxu0
    %v5518 = vadd.f32 %v5357, %v5517
    %5519 = vmatmul.f32.gmra.mxu0 %v178
    %v5520 = vpop.f32.mrf.mxu0
    %v5521 = vadd.f32 %v5360, %v5520
    %5522 = vmatmul.f32.gmra.mxu0 %v184
    %v5523 = vpop.f32.mrf.mxu0
    %v5524 = vadd.f32 %v5363, %v5523
    %5525 = vmatmul.f32.gmra.mxu0 %v190
    %v5526 = vpop.f32.mrf.mxu0
    %v5527 = vadd.f32 %v5366, %v5526
    %5528 = vmatmul.f32.gmra.mxu0 %v196
    %v5529 = vpop.f32.mrf.mxu0
    %v5530 = vadd.f32 %v5369, %v5529
    %5531 = vmatmul.f32.gmra.mxu0 %v202
    %v5532 = vpop.f32.mrf.mxu0
    %v5533 = vadd.f32 %v5372, %v5532
    %5534 = vmatmul.f32.gmra.mxu0 %v208
    %v5535 = vpop.f32.mrf.mxu0
    %v5536 = vadd.f32 %v5375, %v5535
    %5537 = vmatmul.f32.gmra.mxu0 %v214
    %v5538 = vpop.f32.mrf.mxu0
    %v5539 = vadd.f32 %v5378, %v5538
    %5540 = vmatmul.f32.gmra.mxu0 %v220
    %v5541 = vpop.f32.mrf.mxu0
    %v5542 = vadd.f32 %v5381, %v5541
    %5543 = vmatmul.f32.gmra.mxu0 %v226
    %v5544 = vpop.f32.mrf.mxu0
    %v5545 = vadd.f32 %v5384, %v5544
    %5546 = vmatmul.f32.gmra.mxu0 %v232
    %v5547 = vpop.f32.mrf.mxu0
    %v5548 = vadd.f32 %v5387, %v5547
    %5549 = vmatmul.f32.gmra.mxu0 %v238
    %v5550 = vpop.f32.mrf.mxu0
    %v5551 = vadd.f32 %v5390, %v5550
    %5552 = vmatmul.f32.gmra.mxu0 %v244
    %v5553 = vpop.f32.mrf.mxu0
    %v5554 = vadd.f32 %v5393, %v5553
    %5555 = vmatmul.f32.gmra.mxu0 %v250
    %v5556 = vpop.f32.mrf.mxu0
    %v5557 = vadd.f32 %v5396, %v5556
    %5558 = vmatmul.f32.gmra.mxu0 %v256
    %v5559 = vpop.f32.mrf.mxu0
    %v5560 = vadd.f32 %v5399, %v5559
    %5561 = vmatmul.f32.gmra.mxu0 %v262
    %v5562 = vpop.f32.mrf.mxu0
    %v5563 = vadd.f32 %v5402, %v5562
    %5564 = vmatmul.f32.gmra.mxu0 %v268
    %v5565 = vpop.f32.mrf.mxu0
    %v5566 = vadd.f32 %v5405, %v5565
    %5567 = vmatmul.f32.gmra.mxu0 %v274
    %v5568 = vpop.f32.mrf.mxu0
    %v5569 = vadd.f32 %v5408, %v5568
    %5570 = vmatmul.f32.gmra.mxu0 %v280
    %v5571 = vpop.f32.mrf.mxu0
    %v5572 = vadd.f32 %v5411, %v5571
    %5573 = vmatmul.f32.gmra.mxu0 %v286
    %v5574 = vpop.f32.mrf.mxu0
    %v5575 = vadd.f32 %v5414, %v5574
    %5576 = vmatmul.f32.gmra.mxu0 %v292
    %v5577 = vpop.f32.mrf.mxu0
    %v5578 = vadd.f32 %v5417, %v5577
    %5579 = vmatmul.f32.gmra.mxu0 %v298
    %v5580 = vpop.f32.mrf.mxu0
    %v5581 = vadd.f32 %v5420, %v5580
    %5582 = vmatmul.f32.gmra.mxu0 %v304
    %v5583 = vpop.f32.mrf.mxu0
    %v5584 = vadd.f32 %v5423, %v5583
    %5585 = vmatmul.f32.gmra.mxu0 %v310
    %v5586 = vpop.f32.mrf.mxu0
    %v5587 = vadd.f32 %v5426, %v5586
    %5588 = vmatmul.f32.gmra.mxu0 %v316
    %v5589 = vpop.f32.mrf.mxu0
    %v5590 = vadd.f32 %v5429, %v5589
    %5591 = vmatmul.f32.gmra.mxu0 %v322
    %v5592 = vpop.f32.mrf.mxu0
    %v5593 = vadd.f32 %v5432, %v5592
    %5594 = vmatmul.f32.gmra.mxu0 %v328
    %v5595 = vpop.f32.mrf.mxu0
    %v5596 = vadd.f32 %v5435, %v5595
    %5597 = vmatmul.f32.gmra.mxu0 %v334
    %v5598 = vpop.f32.mrf.mxu0
    %v5599 = vadd.f32 %v5438, %v5598
    %5600 = vmatmul.f32.gmra.mxu0 %v340
    %v5601 = vpop.f32.mrf.mxu0
    %v5602 = vadd.f32 %v5441, %v5601
    %5603 = vmatmul.f32.gmra.mxu0 %v346
    %v5604 = vpop.f32.mrf.mxu0
    %v5605 = vadd.f32 %v5444, %v5604
    %5606 = vdwg.mxu0
    %5607 = vmatpush.msra.mxu0 %v922
    %5608 = vmatpush.msra.mxu0 %v916
    %5609 = vmatpush.msra.mxu0 %v910
    %5610 = vmatpush.msra.mxu0 %v904
    %5611 = vmatpush.msra.mxu0 %v898
    %5612 = vmatpush.msra.mxu0 %v892
    %5613 = vmatpush.msra.mxu0 %v886
    %5614 = vmatpush.msra.mxu0 %v880
    %5615 = vmatpush.msra.mxu0 %v874
    %5616 = vmatpush.msra.mxu0 %v868
    %5617 = vmatpush.msra.mxu0 %v862
    %5618 = vmatpush.msra.mxu0 %v856
    %5619 = vmatpush.msra.mxu0 %v850
    %5620 = vmatpush.msra.mxu0 %v844
    %5621 = vmatpush.msra.mxu0 %v838
    %5622 = vmatpush.msra.mxu0 %v832
    %5623 = vmatmul.f32.gmra.mxu0 %v65
    %v5624 = vpop.f32.mrf.mxu0
    %v5625 = vadd.f32 %v5464, %v5624
    %5626 = vmatmul.f32.gmra.mxu0 %v71
    %v5627 = vpop.f32.mrf.mxu0
    %v5628 = vadd.f32 %v5467, %v5627
    %5629 = vmatmul.f32.gmra.mxu0 %v77
    %v5630 = vpop.f32.mrf.mxu0
    %v5631 = vadd.f32 %v5470, %v5630
    %5632 = vmatmul.f32.gmra.mxu0 %v83
    %v5633 = vpop.f32.mrf.mxu0
    %v5634 = vadd.f32 %v5473, %v5633
    %5635 = vmatmul.f32.gmra.mxu0 %v89
    %v5636 = vpop.f32.mrf.mxu0
    %v5637 = vadd.f32 %v5476, %v5636
    %5638 = vmatmul.f32.gmra.mxu0 %v95
    %v5639 = vpop.f32.mrf.mxu0
    %v5640 = vadd.f32 %v5479, %v5639
    %5641 = vmatmul.f32.gmra.mxu0 %v101
    %v5642 = vpop.f32.mrf.mxu0
    %v5643 = vadd.f32 %v5482, %v5642
    %5644 = vmatmul.f32.gmra.mxu0 %v107
    %v5645 = vpop.f32.mrf.mxu0
    %v5646 = vadd.f32 %v5485, %v5645
    %5647 = vmatmul.f32.gmra.mxu0 %v113
    %v5648 = vpop.f32.mrf.mxu0
    %v5649 = vadd.f32 %v5488, %v5648
    %5650 = vmatmul.f32.gmra.mxu0 %v119
    %v5651 = vpop.f32.mrf.mxu0
    %v5652 = vadd.f32 %v5491, %v5651
    %5653 = vmatmul.f32.gmra.mxu0 %v125
    %v5654 = vpop.f32.mrf.mxu0
    %v5655 = vadd.f32 %v5494, %v5654
    %5656 = vmatmul.f32.gmra.mxu0 %v131
    %v5657 = vpop.f32.mrf.mxu0
    %v5658 = vadd.f32 %v5497, %v5657
    %5659 = vmatmul.f32.gmra.mxu0 %v137
    %v5660 = vpop.f32.mrf.mxu0
    %v5661 = vadd.f32 %v5500, %v5660
    %5662 = vmatmul.f32.gmra.mxu0 %v143
    %v5663 = vpop.f32.mrf.mxu0
    %v5664 = vadd.f32 %v5503, %v5663
    %5665 = vmatmul.f32.gmra.mxu0 %v149
    %v5666 = vpop.f32.mrf.mxu0
    %v5667 = vadd.f32 %v5506, %v5666
    %5668 = vmatmul.f32.gmra.mxu0 %v155
    %v5669 = vpop.f32.mrf.mxu0
    %v5670 = vadd.f32 %v5509, %v5669
    %5671 = vmatmul.f32.gmra.mxu0 %v161
    %v5672 = vpop.f32.mrf.mxu0
    %v5673 = vadd.f32 %v5512, %v5672
    %5674 = vmatmul.f32.gmra.mxu0 %v167
    %v5675 = vpop.f32.mrf.mxu0
    %v5676 = vadd.f32 %v5515, %v5675
    %5677 = vmatmul.f32.gmra.mxu0 %v173
    %v5678 = vpop.f32.mrf.mxu0
    %v5679 = vadd.f32 %v5518, %v5678
    %5680 = vmatmul.f32.gmra.mxu0 %v179
    %v5681 = vpop.f32.mrf.mxu0
    %v5682 = vadd.f32 %v5521, %v5681
    %5683 = vmatmul.f32.gmra.mxu0 %v185
    %v5684 = vpop.f32.mrf.mxu0
    %v5685 = vadd.f32 %v5524, %v5684
    %5686 = vmatmul.f32.gmra.mxu0 %v191
    %v5687 = vpop.f32.mrf.mxu0
    %v5688 = vadd.f32 %v5527, %v5687
    %5689 = vmatmul.f32.gmra.mxu0 %v197
    %v5690 = vpop.f32.mrf.mxu0
    %v5691 = vadd.f32 %v5530, %v5690
    %5692 = vmatmul.f32.gmra.mxu0 %v203
    %v5693 = vpop.f32.mrf.mxu0
    %v5694 = vadd.f32 %v5533, %v5693
    %5695 = vmatmul.f32.gmra.mxu0 %v209
    %v5696 = vpop.f32.mrf.mxu0
    %v5697 = vadd.f32 %v5536, %v5696
    %5698 = vmatmul.f32.gmra.mxu0 %v215
    %v5699 = vpop.f32.mrf.mxu0
    %v5700 = vadd.f32 %v5539, %v5699
    %5701 = vmatmul.f32.gmra.mxu0 %v221
    %v5702 = vpop.f32.mrf.mxu0
    %v5703 = vadd.f32 %v5542, %v5702
    %5704 = vmatmul.f32.gmra.mxu0 %v227
    %v5705 = vpop.f32.mrf.mxu0
    %v5706 = vadd.f32 %v5545, %v5705
    %5707 = vmatmul.f32.gmra.mxu0 %v233
    %v5708 = vpop.f32.mrf.mxu0
    %v5709 = vadd.f32 %v5548, %v5708
    %5710 = vmatmul.f32.gmra.mxu0 %v239
    %v5711 = vpop.f32.mrf.mxu0
    %v5712 = vadd.f32 %v5551, %v5711
    %5713 = vmatmul.f32.gmra.mxu0 %v245
    %v5714 = vpop.f32.mrf.mxu0
    %v5715 = vadd.f32 %v5554, %v5714
    %5716 = vmatmul.f32.gmra.mxu0 %v251
    %v5717 = vpop.f32.mrf.mxu0
    %v5718 = vadd.f32 %v5557, %v5717
    %5719 = vmatmul.f32.gmra.mxu0 %v257
    %v5720 = vpop.f32.mrf.mxu0
    %v5721 = vadd.f32 %v5560, %v5720
    %5722 = vmatmul.f32.gmra.mxu0 %v263
    %v5723 = vpop.f32.mrf.mxu0
    %v5724 = vadd.f32 %v5563, %v5723
    %5725 = vmatmul.f32.gmra.mxu0 %v269
    %v5726 = vpop.f32.mrf.mxu0
    %v5727 = vadd.f32 %v5566, %v5726
    %5728 = vmatmul.f32.gmra.mxu0 %v275
    %v5729 = vpop.f32.mrf.mxu0
    %v5730 = vadd.f32 %v5569, %v5729
    %5731 = vmatmul.f32.gmra.mxu0 %v281
    %v5732 = vpop.f32.mrf.mxu0
    %v5733 = vadd.f32 %v5572, %v5732
    %5734 = vmatmul.f32.gmra.mxu0 %v287
    %v5735 = vpop.f32.mrf.mxu0
    %v5736 = vadd.f32 %v5575, %v5735
    %5737 = vmatmul.f32.gmra.mxu0 %v293
    %v5738 = vpop.f32.mrf.mxu0
    %v5739 = vadd.f32 %v5578, %v5738
    %5740 = vmatmul.f32.gmra.mxu0 %v299
    %v5741 = vpop.f32.mrf.mxu0
    %v5742 = vadd.f32 %v5581, %v5741
    %5743 = vmatmul.f32.gmra.mxu0 %v305
    %v5744 = vpop.f32.mrf.mxu0
    %v5745 = vadd.f32 %v5584, %v5744
    %5746 = vmatmul.f32.gmra.mxu0 %v311
    %v5747 = vpop.f32.mrf.mxu0
    %v5748 = vadd.f32 %v5587, %v5747
    %5749 = vmatmul.f32.gmra.mxu0 %v317
    %v5750 = vpop.f32.mrf.mxu0
    %v5751 = vadd.f32 %v5590, %v5750
    %5752 = vmatmul.f32.gmra.mxu0 %v323
    %v5753 = vpop.f32.mrf.mxu0
    %v5754 = vadd.f32 %v5593, %v5753
    %5755 = vmatmul.f32.gmra.mxu0 %v329
    %v5756 = vpop.f32.mrf.mxu0
    %v5757 = vadd.f32 %v5596, %v5756
    %5758 = vmatmul.f32.gmra.mxu0 %v335
    %v5759 = vpop.f32.mrf.mxu0
    %v5760 = vadd.f32 %v5599, %v5759
    %5761 = vmatmul.f32.gmra.mxu0 %v341
    %v5762 = vpop.f32.mrf.mxu0
    %v5763 = vadd.f32 %v5602, %v5762
    %5764 = vmatmul.f32.gmra.mxu0 %v347
    %v5765 = vpop.f32.mrf.mxu0
    %v5766 = vadd.f32 %v5605, %v5765
    %5767 = vdwg.mxu0
    %5768 = vmatpush.msra.mxu0 %v443
    %5769 = vmatpush.msra.mxu0 %v437
    %5770 = vmatpush.msra.mxu0 %v431
    %5771 = vmatpush.msra.mxu0 %v425
    %5772 = vmatpush.msra.mxu0 %v419
    %5773 = vmatpush.msra.mxu0 %v413
    %5774 = vmatpush.msra.mxu0 %v407
    %5775 = vmatpush.msra.mxu0 %v401
    %5776 = vmatpush.msra.mxu0 %v395
    %5777 = vmatpush.msra.mxu0 %v389
    %5778 = vmatpush.msra.mxu0 %v383
    %5779 = vmatpush.msra.mxu0 %v377
    %5780 = vmatpush.msra.mxu0 %v371
    %5781 = vmatpush.msra.mxu0 %v365
    %5782 = vmatpush.msra.mxu0 %v359
    %5783 = vmatpush.msra.mxu0 %v353
    %5784 = vmatmul.f32.gmra.mxu0 %v60
    %v5785 = vpop.f32.mrf.mxu0
    %v5786 = vadd.f32 %v931, %v5785
    %5787 = vmatmul.f32.gmra.mxu0 %v66
    %v5788 = vpop.f32.mrf.mxu0
    %v5789 = vadd.f32 %v931, %v5788
    %5790 = vmatmul.f32.gmra.mxu0 %v72
    %v5791 = vpop.f32.mrf.mxu0
    %v5792 = vadd.f32 %v931, %v5791
    %5793 = vmatmul.f32.gmra.mxu0 %v78
    %v5794 = vpop.f32.mrf.mxu0
    %v5795 = vadd.f32 %v931, %v5794
    %5796 = vmatmul.f32.gmra.mxu0 %v84
    %v5797 = vpop.f32.mrf.mxu0
    %v5798 = vadd.f32 %v931, %v5797
    %5799 = vmatmul.f32.gmra.mxu0 %v90
    %v5800 = vpop.f32.mrf.mxu0
    %v5801 = vadd.f32 %v931, %v5800
    %5802 = vmatmul.f32.gmra.mxu0 %v96
    %v5803 = vpop.f32.mrf.mxu0
    %v5804 = vadd.f32 %v931, %v5803
    %5805 = vmatmul.f32.gmra.mxu0 %v102
    %v5806 = vpop.f32.mrf.mxu0
    %v5807 = vadd.f32 %v931, %v5806
    %5808 = vmatmul.f32.gmra.mxu0 %v108
    %v5809 = vpop.f32.mrf.mxu0
    %v5810 = vadd.f32 %v931, %v5809
    %5811 = vmatmul.f32.gmra.mxu0 %v114
    %v5812 = vpop.f32.mrf.mxu0
    %v5813 = vadd.f32 %v931, %v5812
    %5814 = vmatmul.f32.gmra.mxu0 %v120
    %v5815 = vpop.f32.mrf.mxu0
    %v5816 = vadd.f32 %v931, %v5815
    %5817 = vmatmul.f32.gmra.mxu0 %v126
    %v5818 = vpop.f32.mrf.mxu0
    %v5819 = vadd.f32 %v931, %v5818
    %5820 = vmatmul.f32.gmra.mxu0 %v132
    %v5821 = vpop.f32.mrf.mxu0
    %v5822 = vadd.f32 %v931, %v5821
    %5823 = vmatmul.f32.gmra.mxu0 %v138
    %v5824 = vpop.f32.mrf.mxu0
    %v5825 = vadd.f32 %v931, %v5824
    %5826 = vmatmul.f32.gmra.mxu0 %v144
    %v5827 = vpop.f32.mrf.mxu0
    %v5828 = vadd.f32 %v931, %v5827
    %5829 = vmatmul.f32.gmra.mxu0 %v150
    %v5830 = vpop.f32.mrf.mxu0
    %v5831 = vadd.f32 %v931, %v5830
    %5832 = vmatmul.f32.gmra.mxu0 %v156
    %v5833 = vpop.f32.mrf.mxu0
    %v5834 = vadd.f32 %v931, %v5833
    %5835 = vmatmul.f32.gmra.mxu0 %v162
    %v5836 = vpop.f32.mrf.mxu0
    %v5837 = vadd.f32 %v931, %v5836
    %5838 = vmatmul.f32.gmra.mxu0 %v168
    %v5839 = vpop.f32.mrf.mxu0
    %v5840 = vadd.f32 %v931, %v5839
    %5841 = vmatmul.f32.gmra.mxu0 %v174
    %v5842 = vpop.f32.mrf.mxu0
    %v5843 = vadd.f32 %v931, %v5842
    %5844 = vmatmul.f32.gmra.mxu0 %v180
    %v5845 = vpop.f32.mrf.mxu0
    %v5846 = vadd.f32 %v931, %v5845
    %5847 = vmatmul.f32.gmra.mxu0 %v186
    %v5848 = vpop.f32.mrf.mxu0
    %v5849 = vadd.f32 %v931, %v5848
    %5850 = vmatmul.f32.gmra.mxu0 %v192
    %v5851 = vpop.f32.mrf.mxu0
    %v5852 = vadd.f32 %v931, %v5851
    %5853 = vmatmul.f32.gmra.mxu0 %v198
    %v5854 = vpop.f32.mrf.mxu0
    %v5855 = vadd.f32 %v931, %v5854
    %5856 = vmatmul.f32.gmra.mxu0 %v204
    %v5857 = vpop.f32.mrf.mxu0
    %v5858 = vadd.f32 %v931, %v5857
    %5859 = vmatmul.f32.gmra.mxu0 %v210
    %v5860 = vpop.f32.mrf.mxu0
    %v5861 = vadd.f32 %v931, %v5860
    %5862 = vmatmul.f32.gmra.mxu0 %v216
    %v5863 = vpop.f32.mrf.mxu0
    %v5864 = vadd.f32 %v931, %v5863
    %5865 = vmatmul.f32.gmra.mxu0 %v222
    %v5866 = vpop.f32.mrf.mxu0
    %v5867 = vadd.f32 %v931, %v5866
    %5868 = vmatmul.f32.gmra.mxu0 %v228
    %v5869 = vpop.f32.mrf.mxu0
    %v5870 = vadd.f32 %v931, %v5869
    %5871 = vmatmul.f32.gmra.mxu0 %v234
    %v5872 = vpop.f32.mrf.mxu0
    %v5873 = vadd.f32 %v931, %v5872
    %5874 = vmatmul.f32.gmra.mxu0 %v240
    %v5875 = vpop.f32.mrf.mxu0
    %v5876 = vadd.f32 %v931, %v5875
    %5877 = vmatmul.f32.gmra.mxu0 %v246
    %v5878 = vpop.f32.mrf.mxu0
    %v5879 = vadd.f32 %v931, %v5878
    %5880 = vmatmul.f32.gmra.mxu0 %v252
    %v5881 = vpop.f32.mrf.mxu0
    %v5882 = vadd.f32 %v931, %v5881
    %5883 = vmatmul.f32.gmra.mxu0 %v258
    %v5884 = vpop.f32.mrf.mxu0
    %v5885 = vadd.f32 %v931, %v5884
    %5886 = vmatmul.f32.gmra.mxu0 %v264
    %v5887 = vpop.f32.mrf.mxu0
    %v5888 = vadd.f32 %v931, %v5887
    %5889 = vmatmul.f32.gmra.mxu0 %v270
    %v5890 = vpop.f32.mrf.mxu0
    %v5891 = vadd.f32 %v931, %v5890
    %5892 = vmatmul.f32.gmra.mxu0 %v276
    %v5893 = vpop.f32.mrf.mxu0
    %v5894 = vadd.f32 %v931, %v5893
    %5895 = vmatmul.f32.gmra.mxu0 %v282
    %v5896 = vpop.f32.mrf.mxu0
    %v5897 = vadd.f32 %v931, %v5896
    %5898 = vmatmul.f32.gmra.mxu0 %v288
    %v5899 = vpop.f32.mrf.mxu0
    %v5900 = vadd.f32 %v931, %v5899
    %5901 = vmatmul.f32.gmra.mxu0 %v294
    %v5902 = vpop.f32.mrf.mxu0
    %v5903 = vadd.f32 %v931, %v5902
    %5904 = vmatmul.f32.gmra.mxu0 %v300
    %v5905 = vpop.f32.mrf.mxu0
    %v5906 = vadd.f32 %v931, %v5905
    %5907 = vmatmul.f32.gmra.mxu0 %v306
    %v5908 = vpop.f32.mrf.mxu0
    %v5909 = vadd.f32 %v931, %v5908
    %5910 = vmatmul.f32.gmra.mxu0 %v312
    %v5911 = vpop.f32.mrf.mxu0
    %v5912 = vadd.f32 %v931, %v5911
    %5913 = vmatmul.f32.gmra.mxu0 %v318
    %v5914 = vpop.f32.mrf.mxu0
    %v5915 = vadd.f32 %v931, %v5914
    %5916 = vmatmul.f32.gmra.mxu0 %v324
    %v5917 = vpop.f32.mrf.mxu0
    %v5918 = vadd.f32 %v931, %v5917
    %5919 = vmatmul.f32.gmra.mxu0 %v330
    %v5920 = vpop.f32.mrf.mxu0
    %v5921 = vadd.f32 %v931, %v5920
    %5922 = vmatmul.f32.gmra.mxu0 %v336
    %v5923 = vpop.f32.mrf.mxu0
    %v5924 = vadd.f32 %v931, %v5923
    %5925 = vmatmul.f32.gmra.mxu0 %v342
    %v5926 = vpop.f32.mrf.mxu0
    %v5927 = vadd.f32 %v931, %v5926
    %5928 = vdwg.mxu0
    %5929 = vmatpush.msra.mxu0 %v539
    %5930 = vmatpush.msra.mxu0 %v533
    %5931 = vmatpush.msra.mxu0 %v527
    %5932 = vmatpush.msra.mxu0 %v521
    %5933 = vmatpush.msra.mxu0 %v515
    %5934 = vmatpush.msra.mxu0 %v509
    %5935 = vmatpush.msra.mxu0 %v503
    %5936 = vmatpush.msra.mxu0 %v497
    %5937 = vmatpush.msra.mxu0 %v491
    %5938 = vmatpush.msra.mxu0 %v485
    %5939 = vmatpush.msra.mxu0 %v479
    %5940 = vmatpush.msra.mxu0 %v473
    %5941 = vmatpush.msra.mxu0 %v467
    %5942 = vmatpush.msra.mxu0 %v461
    %5943 = vmatpush.msra.mxu0 %v455
    %5944 = vmatpush.msra.mxu0 %v449
    %5945 = vmatmul.f32.gmra.mxu0 %v61
    %v5946 = vpop.f32.mrf.mxu0
    %v5947 = vadd.f32 %v5786, %v5946
    %5948 = vmatmul.f32.gmra.mxu0 %v67
    %v5949 = vpop.f32.mrf.mxu0
    %v5950 = vadd.f32 %v5789, %v5949
    %5951 = vmatmul.f32.gmra.mxu0 %v73
    %v5952 = vpop.f32.mrf.mxu0
    %v5953 = vadd.f32 %v5792, %v5952
    %5954 = vmatmul.f32.gmra.mxu0 %v79
    %v5955 = vpop.f32.mrf.mxu0
    %v5956 = vadd.f32 %v5795, %v5955
    %5957 = vmatmul.f32.gmra.mxu0 %v85
    %v5958 = vpop.f32.mrf.mxu0
    %v5959 = vadd.f32 %v5798, %v5958
    %5960 = vmatmul.f32.gmra.mxu0 %v91
    %v5961 = vpop.f32.mrf.mxu0
    %v5962 = vadd.f32 %v5801, %v5961
    %5963 = vmatmul.f32.gmra.mxu0 %v97
    %v5964 = vpop.f32.mrf.mxu0
    %v5965 = vadd.f32 %v5804, %v5964
    %5966 = vmatmul.f32.gmra.mxu0 %v103
    %v5967 = vpop.f32.mrf.mxu0
    %v5968 = vadd.f32 %v5807, %v5967
    %5969 = vmatmul.f32.gmra.mxu0 %v109
    %v5970 = vpop.f32.mrf.mxu0
    %v5971 = vadd.f32 %v5810, %v5970
    %5972 = vmatmul.f32.gmra.mxu0 %v115
    %v5973 = vpop.f32.mrf.mxu0
    %v5974 = vadd.f32 %v5813, %v5973
    %5975 = vmatmul.f32.gmra.mxu0 %v121
    %v5976 = vpop.f32.mrf.mxu0
    %v5977 = vadd.f32 %v5816, %v5976
    %5978 = vmatmul.f32.gmra.mxu0 %v127
    %v5979 = vpop.f32.mrf.mxu0
    %v5980 = vadd.f32 %v5819, %v5979
    %5981 = vmatmul.f32.gmra.mxu0 %v133
    %v5982 = vpop.f32.mrf.mxu0
    %v5983 = vadd.f32 %v5822, %v5982
    %5984 = vmatmul.f32.gmra.mxu0 %v139
    %v5985 = vpop.f32.mrf.mxu0
    %v5986 = vadd.f32 %v5825, %v5985
    %5987 = vmatmul.f32.gmra.mxu0 %v145
    %v5988 = vpop.f32.mrf.mxu0
    %v5989 = vadd.f32 %v5828, %v5988
    %5990 = vmatmul.f32.gmra.mxu0 %v151
    %v5991 = vpop.f32.mrf.mxu0
    %v5992 = vadd.f32 %v5831, %v5991
    %5993 = vmatmul.f32.gmra.mxu0 %v157
    %v5994 = vpop.f32.mrf.mxu0
    %v5995 = vadd.f32 %v5834, %v5994
    %5996 = vmatmul.f32.gmra.mxu0 %v163
    %v5997 = vpop.f32.mrf.mxu0
    %v5998 = vadd.f32 %v5837, %v5997
    %5999 = vmatmul.f32.gmra.mxu0 %v169
    %v6000 = vpop.f32.mrf.mxu0
    %v6001 = vadd.f32 %v5840, %v6000
    %6002 = vmatmul.f32.gmra.mxu0 %v175
    %v6003 = vpop.f32.mrf.mxu0
    %v6004 = vadd.f32 %v5843, %v6003
    %6005 = vmatmul.f32.gmra.mxu0 %v181
    %v6006 = vpop.f32.mrf.mxu0
    %v6007 = vadd.f32 %v5846, %v6006
    %6008 = vmatmul.f32.gmra.mxu0 %v187
    %v6009 = vpop.f32.mrf.mxu0
    %v6010 = vadd.f32 %v5849, %v6009
    %6011 = vmatmul.f32.gmra.mxu0 %v193
    %v6012 = vpop.f32.mrf.mxu0
    %v6013 = vadd.f32 %v5852, %v6012
    %6014 = vmatmul.f32.gmra.mxu0 %v199
    %v6015 = vpop.f32.mrf.mxu0
    %v6016 = vadd.f32 %v5855, %v6015
    %6017 = vmatmul.f32.gmra.mxu0 %v205
    %v6018 = vpop.f32.mrf.mxu0
    %v6019 = vadd.f32 %v5858, %v6018
    %6020 = vmatmul.f32.gmra.mxu0 %v211
    %v6021 = vpop.f32.mrf.mxu0
    %v6022 = vadd.f32 %v5861, %v6021
    %6023 = vmatmul.f32.gmra.mxu0 %v217
    %v6024 = vpop.f32.mrf.mxu0
    %v6025 = vadd.f32 %v5864, %v6024
    %6026 = vmatmul.f32.gmra.mxu0 %v223
    %v6027 = vpop.f32.mrf.mxu0
    %v6028 = vadd.f32 %v5867, %v6027
    %6029 = vmatmul.f32.gmra.mxu0 %v229
    %v6030 = vpop.f32.mrf.mxu0
    %v6031 = vadd.f32 %v5870, %v6030
    %6032 = vmatmul.f32.gmra.mxu0 %v235
    %v6033 = vpop.f32.mrf.mxu0
    %v6034 = vadd.f32 %v5873, %v6033
    %6035 = vmatmul.f32.gmra.mxu0 %v241
    %v6036 = vpop.f32.mrf.mxu0
    %v6037 = vadd.f32 %v5876, %v6036
    %6038 = vmatmul.f32.gmra.mxu0 %v247
    %v6039 = vpop.f32.mrf.mxu0
    %v6040 = vadd.f32 %v5879, %v6039
    %6041 = vmatmul.f32.gmra.mxu0 %v253
    %v6042 = vpop.f32.mrf.mxu0
    %v6043 = vadd.f32 %v5882, %v6042
    %6044 = vmatmul.f32.gmra.mxu0 %v259
    %v6045 = vpop.f32.mrf.mxu0
    %v6046 = vadd.f32 %v5885, %v6045
    %6047 = vmatmul.f32.gmra.mxu0 %v265
    %v6048 = vpop.f32.mrf.mxu0
    %v6049 = vadd.f32 %v5888, %v6048
    %6050 = vmatmul.f32.gmra.mxu0 %v271
    %v6051 = vpop.f32.mrf.mxu0
    %v6052 = vadd.f32 %v5891, %v6051
    %6053 = vmatmul.f32.gmra.mxu0 %v277
    %v6054 = vpop.f32.mrf.mxu0
    %v6055 = vadd.f32 %v5894, %v6054
    %6056 = vmatmul.f32.gmra.mxu0 %v283
    %v6057 = vpop.f32.mrf.mxu0
    %v6058 = vadd.f32 %v5897, %v6057
    %6059 = vmatmul.f32.gmra.mxu0 %v289
    %v6060 = vpop.f32.mrf.mxu0
    %v6061 = vadd.f32 %v5900, %v6060
    %6062 = vmatmul.f32.gmra.mxu0 %v295
    %v6063 = vpop.f32.mrf.mxu0
    %v6064 = vadd.f32 %v5903, %v6063
    %6065 = vmatmul.f32.gmra.mxu0 %v301
    %v6066 = vpop.f32.mrf.mxu0
    %v6067 = vadd.f32 %v5906, %v6066
    %6068 = vmatmul.f32.gmra.mxu0 %v307
    %v6069 = vpop.f32.mrf.mxu0
    %v6070 = vadd.f32 %v5909, %v6069
    %6071 = vmatmul.f32.gmra.mxu0 %v313
    %v6072 = vpop.f32.mrf.mxu0
    %v6073 = vadd.f32 %v5912, %v6072
    %6074 = vmatmul.f32.gmra.mxu0 %v319
    %v6075 = vpop.f32.mrf.mxu0
    %v6076 = vadd.f32 %v5915, %v6075
    %6077 = vmatmul.f32.gmra.mxu0 %v325
    %v6078 = vpop.f32.mrf.mxu0
    %v6079 = vadd.f32 %v5918, %v6078
    %6080 = vmatmul.f32.gmra.mxu0 %v331
    %v6081 = vpop.f32.mrf.mxu0
    %v6082 = vadd.f32 %v5921, %v6081
    %6083 = vmatmul.f32.gmra.mxu0 %v337
    %v6084 = vpop.f32.mrf.mxu0
    %v6085 = vadd.f32 %v5924, %v6084
    %6086 = vmatmul.f32.gmra.mxu0 %v343
    %v6087 = vpop.f32.mrf.mxu0
    %v6088 = vadd.f32 %v5927, %v6087
    %6089 = vdwg.mxu0
    %6090 = vmatpush.msra.mxu0 %v635
    %6091 = vmatpush.msra.mxu0 %v629
    %6092 = vmatpush.msra.mxu0 %v623
    %6093 = vmatpush.msra.mxu0 %v617
    %6094 = vmatpush.msra.mxu0 %v611
    %6095 = vmatpush.msra.mxu0 %v605
    %6096 = vmatpush.msra.mxu0 %v599
    %6097 = vmatpush.msra.mxu0 %v593
    %6098 = vmatpush.msra.mxu0 %v587
    %6099 = vmatpush.msra.mxu0 %v581
    %6100 = vmatpush.msra.mxu0 %v575
    %6101 = vmatpush.msra.mxu0 %v569
    %6102 = vmatpush.msra.mxu0 %v563
    %6103 = vmatpush.msra.mxu0 %v557
    %6104 = vmatpush.msra.mxu0 %v551
    %6105 = vmatpush.msra.mxu0 %v545
    %6106 = vmatmul.f32.gmra.mxu0 %v62
    %v6107 = vpop.f32.mrf.mxu0
    %v6108 = vadd.f32 %v5947, %v6107
    %6109 = vmatmul.f32.gmra.mxu0 %v68
    %v6110 = vpop.f32.mrf.mxu0
    %v6111 = vadd.f32 %v5950, %v6110
    %6112 = vmatmul.f32.gmra.mxu0 %v74
    %v6113 = vpop.f32.mrf.mxu0
    %v6114 = vadd.f32 %v5953, %v6113
    %6115 = vmatmul.f32.gmra.mxu0 %v80
    %v6116 = vpop.f32.mrf.mxu0
    %v6117 = vadd.f32 %v5956, %v6116
    %6118 = vmatmul.f32.gmra.mxu0 %v86
    %v6119 = vpop.f32.mrf.mxu0
    %v6120 = vadd.f32 %v5959, %v6119
    %6121 = vmatmul.f32.gmra.mxu0 %v92
    %v6122 = vpop.f32.mrf.mxu0
    %v6123 = vadd.f32 %v5962, %v6122
    %6124 = vmatmul.f32.gmra.mxu0 %v98
    %v6125 = vpop.f32.mrf.mxu0
    %v6126 = vadd.f32 %v5965, %v6125
    %6127 = vmatmul.f32.gmra.mxu0 %v104
    %v6128 = vpop.f32.mrf.mxu0
    %v6129 = vadd.f32 %v5968, %v6128
    %6130 = vmatmul.f32.gmra.mxu0 %v110
    %v6131 = vpop.f32.mrf.mxu0
    %v6132 = vadd.f32 %v5971, %v6131
    %6133 = vmatmul.f32.gmra.mxu0 %v116
    %v6134 = vpop.f32.mrf.mxu0
    %v6135 = vadd.f32 %v5974, %v6134
    %6136 = vmatmul.f32.gmra.mxu0 %v122
    %v6137 = vpop.f32.mrf.mxu0
    %v6138 = vadd.f32 %v5977, %v6137
    %6139 = vmatmul.f32.gmra.mxu0 %v128
    %v6140 = vpop.f32.mrf.mxu0
    %v6141 = vadd.f32 %v5980, %v6140
    %6142 = vmatmul.f32.gmra.mxu0 %v134
    %v6143 = vpop.f32.mrf.mxu0
    %v6144 = vadd.f32 %v5983, %v6143
    %6145 = vmatmul.f32.gmra.mxu0 %v140
    %v6146 = vpop.f32.mrf.mxu0
    %v6147 = vadd.f32 %v5986, %v6146
    %6148 = vmatmul.f32.gmra.mxu0 %v146
    %v6149 = vpop.f32.mrf.mxu0
    %v6150 = vadd.f32 %v5989, %v6149
    %6151 = vmatmul.f32.gmra.mxu0 %v152
    %v6152 = vpop.f32.mrf.mxu0
    %v6153 = vadd.f32 %v5992, %v6152
    %6154 = vmatmul.f32.gmra.mxu0 %v158
    %v6155 = vpop.f32.mrf.mxu0
    %v6156 = vadd.f32 %v5995, %v6155
    %6157 = vmatmul.f32.gmra.mxu0 %v164
    %v6158 = vpop.f32.mrf.mxu0
    %v6159 = vadd.f32 %v5998, %v6158
    %6160 = vmatmul.f32.gmra.mxu0 %v170
    %v6161 = vpop.f32.mrf.mxu0
    %v6162 = vadd.f32 %v6001, %v6161
    %6163 = vmatmul.f32.gmra.mxu0 %v176
    %v6164 = vpop.f32.mrf.mxu0
    %v6165 = vadd.f32 %v6004, %v6164
    %6166 = vmatmul.f32.gmra.mxu0 %v182
    %v6167 = vpop.f32.mrf.mxu0
    %v6168 = vadd.f32 %v6007, %v6167
    %6169 = vmatmul.f32.gmra.mxu0 %v188
    %v6170 = vpop.f32.mrf.mxu0
    %v6171 = vadd.f32 %v6010, %v6170
    %6172 = vmatmul.f32.gmra.mxu0 %v194
    %v6173 = vpop.f32.mrf.mxu0
    %v6174 = vadd.f32 %v6013, %v6173
    %6175 = vmatmul.f32.gmra.mxu0 %v200
    %v6176 = vpop.f32.mrf.mxu0
    %v6177 = vadd.f32 %v6016, %v6176
    %6178 = vmatmul.f32.gmra.mxu0 %v206
    %v6179 = vpop.f32.mrf.mxu0
    %v6180 = vadd.f32 %v6019, %v6179
    %6181 = vmatmul.f32.gmra.mxu0 %v212
    %v6182 = vpop.f32.mrf.mxu0
    %v6183 = vadd.f32 %v6022, %v6182
    %6184 = vmatmul.f32.gmra.mxu0 %v218
    %v6185 = vpop.f32.mrf.mxu0
    %v6186 = vadd.f32 %v6025, %v6185
    %6187 = vmatmul.f32.gmra.mxu0 %v224
    %v6188 = vpop.f32.mrf.mxu0
    %v6189 = vadd.f32 %v6028, %v6188
    %6190 = vmatmul.f32.gmra.mxu0 %v230
    %v6191 = vpop.f32.mrf.mxu0
    %v6192 = vadd.f32 %v6031, %v6191
    %6193 = vmatmul.f32.gmra.mxu0 %v236
    %v6194 = vpop.f32.mrf.mxu0
    %v6195 = vadd.f32 %v6034, %v6194
    %6196 = vmatmul.f32.gmra.mxu0 %v242
    %v6197 = vpop.f32.mrf.mxu0
    %v6198 = vadd.f32 %v6037, %v6197
    %6199 = vmatmul.f32.gmra.mxu0 %v248
    %v6200 = vpop.f32.mrf.mxu0
    %v6201 = vadd.f32 %v6040, %v6200
    %6202 = vmatmul.f32.gmra.mxu0 %v254
    %v6203 = vpop.f32.mrf.mxu0
    %v6204 = vadd.f32 %v6043, %v6203
    %6205 = vmatmul.f32.gmra.mxu0 %v260
    %v6206 = vpop.f32.mrf.mxu0
    %v6207 = vadd.f32 %v6046, %v6206
    %6208 = vmatmul.f32.gmra.mxu0 %v266
    %v6209 = vpop.f32.mrf.mxu0
    %v6210 = vadd.f32 %v6049, %v6209
    %6211 = vmatmul.f32.gmra.mxu0 %v272
    %v6212 = vpop.f32.mrf.mxu0
    %v6213 = vadd.f32 %v6052, %v6212
    %6214 = vmatmul.f32.gmra.mxu0 %v278
    %v6215 = vpop.f32.mrf.mxu0
    %v6216 = vadd.f32 %v6055, %v6215
    %6217 = vmatmul.f32.gmra.mxu0 %v284
    %v6218 = vpop.f32.mrf.mxu0
    %v6219 = vadd.f32 %v6058, %v6218
    %6220 = vmatmul.f32.gmra.mxu0 %v290
    %v6221 = vpop.f32.mrf.mxu0
    %v6222 = vadd.f32 %v6061, %v6221
    %6223 = vmatmul.f32.gmra.mxu0 %v296
    %v6224 = vpop.f32.mrf.mxu0
    %v6225 = vadd.f32 %v6064, %v6224
    %6226 = vmatmul.f32.gmra.mxu0 %v302
    %v6227 = vpop.f32.mrf.mxu0
    %v6228 = vadd.f32 %v6067, %v6227
    %6229 = vmatmul.f32.gmra.mxu0 %v308
    %v6230 = vpop.f32.mrf.mxu0
    %v6231 = vadd.f32 %v6070, %v6230
    %6232 = vmatmul.f32.gmra.mxu0 %v314
    %v6233 = vpop.f32.mrf.mxu0
    %v6234 = vadd.f32 %v6073, %v6233
    %6235 = vmatmul.f32.gmra.mxu0 %v320
    %v6236 = vpop.f32.mrf.mxu0
    %v6237 = vadd.f32 %v6076, %v6236
    %6238 = vmatmul.f32.gmra.mxu0 %v326
    %v6239 = vpop.f32.mrf.mxu0
    %v6240 = vadd.f32 %v6079, %v6239
    %6241 = vmatmul.f32.gmra.mxu0 %v332
    %v6242 = vpop.f32.mrf.mxu0
    %v6243 = vadd.f32 %v6082, %v6242
    %6244 = vmatmul.f32.gmra.mxu0 %v338
    %v6245 = vpop.f32.mrf.mxu0
    %v6246 = vadd.f32 %v6085, %v6245
    %6247 = vmatmul.f32.gmra.mxu0 %v344
    %v6248 = vpop.f32.mrf.mxu0
    %v6249 = vadd.f32 %v6088, %v6248
    %6250 = vdwg.mxu0
    %6251 = vmatpush.msra.mxu0 %v731
    %6252 = vmatpush.msra.mxu0 %v725
    %6253 = vmatpush.msra.mxu0 %v719
    %6254 = vmatpush.msra.mxu0 %v713
    %6255 = vmatpush.msra.mxu0 %v707
    %6256 = vmatpush.msra.mxu0 %v701
    %6257 = vmatpush.msra.mxu0 %v695
    %6258 = vmatpush.msra.mxu0 %v689
    %6259 = vmatpush.msra.mxu0 %v683
    %6260 = vmatpush.msra.mxu0 %v677
    %6261 = vmatpush.msra.mxu0 %v671
    %6262 = vmatpush.msra.mxu0 %v665
    %6263 = vmatpush.msra.mxu0 %v659
    %6264 = vmatpush.msra.mxu0 %v653
    %6265 = vmatpush.msra.mxu0 %v647
    %6266 = vmatpush.msra.mxu0 %v641
    %6267 = vmatmul.f32.gmra.mxu0 %v63
    %v6268 = vpop.f32.mrf.mxu0
    %v6269 = vadd.f32 %v6108, %v6268
    %6270 = vmatmul.f32.gmra.mxu0 %v69
    %v6271 = vpop.f32.mrf.mxu0
    %v6272 = vadd.f32 %v6111, %v6271
    %6273 = vmatmul.f32.gmra.mxu0 %v75
    %v6274 = vpop.f32.mrf.mxu0
    %v6275 = vadd.f32 %v6114, %v6274
    %6276 = vmatmul.f32.gmra.mxu0 %v81
    %v6277 = vpop.f32.mrf.mxu0
    %v6278 = vadd.f32 %v6117, %v6277
    %6279 = vmatmul.f32.gmra.mxu0 %v87
    %v6280 = vpop.f32.mrf.mxu0
    %v6281 = vadd.f32 %v6120, %v6280
    %6282 = vmatmul.f32.gmra.mxu0 %v93
    %v6283 = vpop.f32.mrf.mxu0
    %v6284 = vadd.f32 %v6123, %v6283
    %6285 = vmatmul.f32.gmra.mxu0 %v99
    %v6286 = vpop.f32.mrf.mxu0
    %v6287 = vadd.f32 %v6126, %v6286
    %6288 = vmatmul.f32.gmra.mxu0 %v105
    %v6289 = vpop.f32.mrf.mxu0
    %v6290 = vadd.f32 %v6129, %v6289
    %6291 = vmatmul.f32.gmra.mxu0 %v111
    %v6292 = vpop.f32.mrf.mxu0
    %v6293 = vadd.f32 %v6132, %v6292
    %6294 = vmatmul.f32.gmra.mxu0 %v117
    %v6295 = vpop.f32.mrf.mxu0
    %v6296 = vadd.f32 %v6135, %v6295
    %6297 = vmatmul.f32.gmra.mxu0 %v123
    %v6298 = vpop.f32.mrf.mxu0
    %v6299 = vadd.f32 %v6138, %v6298
    %6300 = vmatmul.f32.gmra.mxu0 %v129
    %v6301 = vpop.f32.mrf.mxu0
    %v6302 = vadd.f32 %v6141, %v6301
    %6303 = vmatmul.f32.gmra.mxu0 %v135
    %v6304 = vpop.f32.mrf.mxu0
    %v6305 = vadd.f32 %v6144, %v6304
    %6306 = vmatmul.f32.gmra.mxu0 %v141
    %v6307 = vpop.f32.mrf.mxu0
    %v6308 = vadd.f32 %v6147, %v6307
    %6309 = vmatmul.f32.gmra.mxu0 %v147
    %v6310 = vpop.f32.mrf.mxu0
    %v6311 = vadd.f32 %v6150, %v6310
    %6312 = vmatmul.f32.gmra.mxu0 %v153
    %v6313 = vpop.f32.mrf.mxu0
    %v6314 = vadd.f32 %v6153, %v6313
    %6315 = vmatmul.f32.gmra.mxu0 %v159
    %v6316 = vpop.f32.mrf.mxu0
    %v6317 = vadd.f32 %v6156, %v6316
    %6318 = vmatmul.f32.gmra.mxu0 %v165
    %v6319 = vpop.f32.mrf.mxu0
    %v6320 = vadd.f32 %v6159, %v6319
    %6321 = vmatmul.f32.gmra.mxu0 %v171
    %v6322 = vpop.f32.mrf.mxu0
    %v6323 = vadd.f32 %v6162, %v6322
    %6324 = vmatmul.f32.gmra.mxu0 %v177
    %v6325 = vpop.f32.mrf.mxu0
    %v6326 = vadd.f32 %v6165, %v6325
    %6327 = vmatmul.f32.gmra.mxu0 %v183
    %v6328 = vpop.f32.mrf.mxu0
    %v6329 = vadd.f32 %v6168, %v6328
    %6330 = vmatmul.f32.gmra.mxu0 %v189
    %v6331 = vpop.f32.mrf.mxu0
    %v6332 = vadd.f32 %v6171, %v6331
    %6333 = vmatmul.f32.gmra.mxu0 %v195
    %v6334 = vpop.f32.mrf.mxu0
    %v6335 = vadd.f32 %v6174, %v6334
    %6336 = vmatmul.f32.gmra.mxu0 %v201
    %v6337 = vpop.f32.mrf.mxu0
    %v6338 = vadd.f32 %v6177, %v6337
    %6339 = vmatmul.f32.gmra.mxu0 %v207
    %v6340 = vpop.f32.mrf.mxu0
    %v6341 = vadd.f32 %v6180, %v6340
    %6342 = vmatmul.f32.gmra.mxu0 %v213
    %v6343 = vpop.f32.mrf.mxu0
    %v6344 = vadd.f32 %v6183, %v6343
    %6345 = vmatmul.f32.gmra.mxu0 %v219
    %v6346 = vpop.f32.mrf.mxu0
    %v6347 = vadd.f32 %v6186, %v6346
    %6348 = vmatmul.f32.gmra.mxu0 %v225
    %v6349 = vpop.f32.mrf.mxu0
    %v6350 = vadd.f32 %v6189, %v6349
    %6351 = vmatmul.f32.gmra.mxu0 %v231
    %v6352 = vpop.f32.mrf.mxu0
    %v6353 = vadd.f32 %v6192, %v6352
    %6354 = vmatmul.f32.gmra.mxu0 %v237
    %v6355 = vpop.f32.mrf.mxu0
    %v6356 = vadd.f32 %v6195, %v6355
    %6357 = vmatmul.f32.gmra.mxu0 %v243
    %v6358 = vpop.f32.mrf.mxu0
    %v6359 = vadd.f32 %v6198, %v6358
    %6360 = vmatmul.f32.gmra.mxu0 %v249
    %v6361 = vpop.f32.mrf.mxu0
    %v6362 = vadd.f32 %v6201, %v6361
    %6363 = vmatmul.f32.gmra.mxu0 %v255
    %v6364 = vpop.f32.mrf.mxu0
    %v6365 = vadd.f32 %v6204, %v6364
    %6366 = vmatmul.f32.gmra.mxu0 %v261
    %v6367 = vpop.f32.mrf.mxu0
    %v6368 = vadd.f32 %v6207, %v6367
    %6369 = vmatmul.f32.gmra.mxu0 %v267
    %v6370 = vpop.f32.mrf.mxu0
    %v6371 = vadd.f32 %v6210, %v6370
    %6372 = vmatmul.f32.gmra.mxu0 %v273
    %v6373 = vpop.f32.mrf.mxu0
    %v6374 = vadd.f32 %v6213, %v6373
    %6375 = vmatmul.f32.gmra.mxu0 %v279
    %v6376 = vpop.f32.mrf.mxu0
    %v6377 = vadd.f32 %v6216, %v6376
    %6378 = vmatmul.f32.gmra.mxu0 %v285
    %v6379 = vpop.f32.mrf.mxu0
    %v6380 = vadd.f32 %v6219, %v6379
    %6381 = vmatmul.f32.gmra.mxu0 %v291
    %v6382 = vpop.f32.mrf.mxu0
    %v6383 = vadd.f32 %v6222, %v6382
    %6384 = vmatmul.f32.gmra.mxu0 %v297
    %v6385 = vpop.f32.mrf.mxu0
    %v6386 = vadd.f32 %v6225, %v6385
    %6387 = vmatmul.f32.gmra.mxu0 %v303
    %v6388 = vpop.f32.mrf.mxu0
    %v6389 = vadd.f32 %v6228, %v6388
    %6390 = vmatmul.f32.gmra.mxu0 %v309
    %v6391 = vpop.f32.mrf.mxu0
    %v6392 = vadd.f32 %v6231, %v6391
    %6393 = vmatmul.f32.gmra.mxu0 %v315
    %v6394 = vpop.f32.mrf.mxu0
    %v6395 = vadd.f32 %v6234, %v6394
    %6396 = vmatmul.f32.gmra.mxu0 %v321
    %v6397 = vpop.f32.mrf.mxu0
    %v6398 = vadd.f32 %v6237, %v6397
    %6399 = vmatmul.f32.gmra.mxu0 %v327
    %v6400 = vpop.f32.mrf.mxu0
    %v6401 = vadd.f32 %v6240, %v6400
    %6402 = vmatmul.f32.gmra.mxu0 %v333
    %v6403 = vpop.f32.mrf.mxu0
    %v6404 = vadd.f32 %v6243, %v6403
    %6405 = vmatmul.f32.gmra.mxu0 %v339
    %v6406 = vpop.f32.mrf.mxu0
    %v6407 = vadd.f32 %v6246, %v6406
    %6408 = vmatmul.f32.gmra.mxu0 %v345
    %v6409 = vpop.f32.mrf.mxu0
    %v6410 = vadd.f32 %v6249, %v6409
    %6411 = vdwg.mxu0
    %6412 = vmatpush.msra.mxu0 %v827
    %6413 = vmatpush.msra.mxu0 %v821
    %6414 = vmatpush.msra.mxu0 %v815
    %6415 = vmatpush.msra.mxu0 %v809
    %6416 = vmatpush.msra.mxu0 %v803
    %6417 = vmatpush.msra.mxu0 %v797
    %6418 = vmatpush.msra.mxu0 %v791
    %6419 = vmatpush.msra.mxu0 %v785
    %6420 = vmatpush.msra.mxu0 %v779
    %6421 = vmatpush.msra.mxu0 %v773
    %6422 = vmatpush.msra.mxu0 %v767
    %6423 = vmatpush.msra.mxu0 %v761
    %6424 = vmatpush.msra.mxu0 %v755
    %6425 = vmatpush.msra.mxu0 %v749
    %6426 = vmatpush.msra.mxu0 %v743
    %6427 = vmatpush.msra.mxu0 %v737
    %6428 = vmatmul.f32.gmra.mxu0 %v64
    %v6429 = vpop.f32.mrf.mxu0
    %v6430 = vadd.f32 %v6269, %v6429
    %6431 = vmatmul.f32.gmra.mxu0 %v70
    %v6432 = vpop.f32.mrf.mxu0
    %v6433 = vadd.f32 %v6272, %v6432
    %6434 = vmatmul.f32.gmra.mxu0 %v76
    %v6435 = vpop.f32.mrf.mxu0
    %v6436 = vadd.f32 %v6275, %v6435
    %6437 = vmatmul.f32.gmra.mxu0 %v82
    %v6438 = vpop.f32.mrf.mxu0
    %v6439 = vadd.f32 %v6278, %v6438
    %6440 = vmatmul.f32.gmra.mxu0 %v88
    %v6441 = vpop.f32.mrf.mxu0
    %v6442 = vadd.f32 %v6281, %v6441
    %6443 = vmatmul.f32.gmra.mxu0 %v94
    %v6444 = vpop.f32.mrf.mxu0
    %v6445 = vadd.f32 %v6284, %v6444
    %6446 = vmatmul.f32.gmra.mxu0 %v100
    %v6447 = vpop.f32.mrf.mxu0
    %v6448 = vadd.f32 %v6287, %v6447
    %6449 = vmatmul.f32.gmra.mxu0 %v106
    %v6450 = vpop.f32.mrf.mxu0
    %v6451 = vadd.f32 %v6290, %v6450
    %6452 = vmatmul.f32.gmra.mxu0 %v112
    %v6453 = vpop.f32.mrf.mxu0
    %v6454 = vadd.f32 %v6293, %v6453
    %6455 = vmatmul.f32.gmra.mxu0 %v118
    %v6456 = vpop.f32.mrf.mxu0
    %v6457 = vadd.f32 %v6296, %v6456
    %6458 = vmatmul.f32.gmra.mxu0 %v124
    %v6459 = vpop.f32.mrf.mxu0
    %v6460 = vadd.f32 %v6299, %v6459
    %6461 = vmatmul.f32.gmra.mxu0 %v130
    %v6462 = vpop.f32.mrf.mxu0
    %v6463 = vadd.f32 %v6302, %v6462
    %6464 = vmatmul.f32.gmra.mxu0 %v136
    %v6465 = vpop.f32.mrf.mxu0
    %v6466 = vadd.f32 %v6305, %v6465
    %6467 = vmatmul.f32.gmra.mxu0 %v142
    %v6468 = vpop.f32.mrf.mxu0
    %v6469 = vadd.f32 %v6308, %v6468
    %6470 = vmatmul.f32.gmra.mxu0 %v148
    %v6471 = vpop.f32.mrf.mxu0
    %v6472 = vadd.f32 %v6311, %v6471
    %6473 = vmatmul.f32.gmra.mxu0 %v154
    %v6474 = vpop.f32.mrf.mxu0
    %v6475 = vadd.f32 %v6314, %v6474
    %6476 = vmatmul.f32.gmra.mxu0 %v160
    %v6477 = vpop.f32.mrf.mxu0
    %v6478 = vadd.f32 %v6317, %v6477
    %6479 = vmatmul.f32.gmra.mxu0 %v166
    %v6480 = vpop.f32.mrf.mxu0
    %v6481 = vadd.f32 %v6320, %v6480
    %6482 = vmatmul.f32.gmra.mxu0 %v172
    %v6483 = vpop.f32.mrf.mxu0
    %v6484 = vadd.f32 %v6323, %v6483
    %6485 = vmatmul.f32.gmra.mxu0 %v178
    %v6486 = vpop.f32.mrf.mxu0
    %v6487 = vadd.f32 %v6326, %v6486
    %6488 = vmatmul.f32.gmra.mxu0 %v184
    %v6489 = vpop.f32.mrf.mxu0
    %v6490 = vadd.f32 %v6329, %v6489
    %6491 = vmatmul.f32.gmra.mxu0 %v190
    %v6492 = vpop.f32.mrf.mxu0
    %v6493 = vadd.f32 %v6332, %v6492
    %6494 = vmatmul.f32.gmra.mxu0 %v196
    %v6495 = vpop.f32.mrf.mxu0
    %v6496 = vadd.f32 %v6335, %v6495
    %6497 = vmatmul.f32.gmra.mxu0 %v202
    %v6498 = vpop.f32.mrf.mxu0
    %v6499 = vadd.f32 %v6338, %v6498
    %6500 = vmatmul.f32.gmra.mxu0 %v208
    %v6501 = vpop.f32.mrf.mxu0
    %v6502 = vadd.f32 %v6341, %v6501
    %6503 = vmatmul.f32.gmra.mxu0 %v214
    %v6504 = vpop.f32.mrf.mxu0
    %v6505 = vadd.f32 %v6344, %v6504
    %6506 = vmatmul.f32.gmra.mxu0 %v220
    %v6507 = vpop.f32.mrf.mxu0
    %v6508 = vadd.f32 %v6347, %v6507
    %6509 = vmatmul.f32.gmra.mxu0 %v226
    %v6510 = vpop.f32.mrf.mxu0
    %v6511 = vadd.f32 %v6350, %v6510
    %6512 = vmatmul.f32.gmra.mxu0 %v232
    %v6513 = vpop.f32.mrf.mxu0
    %v6514 = vadd.f32 %v6353, %v6513
    %6515 = vmatmul.f32.gmra.mxu0 %v238
    %v6516 = vpop.f32.mrf.mxu0
    %v6517 = vadd.f32 %v6356, %v6516
    %6518 = vmatmul.f32.gmra.mxu0 %v244
    %v6519 = vpop.f32.mrf.mxu0
    %v6520 = vadd.f32 %v6359, %v6519
    %6521 = vmatmul.f32.gmra.mxu0 %v250
    %v6522 = vpop.f32.mrf.mxu0
    %v6523 = vadd.f32 %v6362, %v6522
    %6524 = vmatmul.f32.gmra.mxu0 %v256
    %v6525 = vpop.f32.mrf.mxu0
    %v6526 = vadd.f32 %v6365, %v6525
    %6527 = vmatmul.f32.gmra.mxu0 %v262
    %v6528 = vpop.f32.mrf.mxu0
    %v6529 = vadd.f32 %v6368, %v6528
    %6530 = vmatmul.f32.gmra.mxu0 %v268
    %v6531 = vpop.f32.mrf.mxu0
    %v6532 = vadd.f32 %v6371, %v6531
    %6533 = vmatmul.f32.gmra.mxu0 %v274
    %v6534 = vpop.f32.mrf.mxu0
    %v6535 = vadd.f32 %v6374, %v6534
    %6536 = vmatmul.f32.gmra.mxu0 %v280
    %v6537 = vpop.f32.mrf.mxu0
    %v6538 = vadd.f32 %v6377, %v6537
    %6539 = vmatmul.f32.gmra.mxu0 %v286
    %v6540 = vpop.f32.mrf.mxu0
    %v6541 = vadd.f32 %v6380, %v6540
    %6542 = vmatmul.f32.gmra.mxu0 %v292
    %v6543 = vpop.f32.mrf.mxu0
    %v6544 = vadd.f32 %v6383, %v6543
    %6545 = vmatmul.f32.gmra.mxu0 %v298
    %v6546 = vpop.f32.mrf.mxu0
    %v6547 = vadd.f32 %v6386, %v6546
    %6548 = vmatmul.f32.gmra.mxu0 %v304
    %v6549 = vpop.f32.mrf.mxu0
    %v6550 = vadd.f32 %v6389, %v6549
    %6551 = vmatmul.f32.gmra.mxu0 %v310
    %v6552 = vpop.f32.mrf.mxu0
    %v6553 = vadd.f32 %v6392, %v6552
    %6554 = vmatmul.f32.gmra.mxu0 %v316
    %v6555 = vpop.f32.mrf.mxu0
    %v6556 = vadd.f32 %v6395, %v6555
    %6557 = vmatmul.f32.gmra.mxu0 %v322
    %v6558 = vpop.f32.mrf.mxu0
    %v6559 = vadd.f32 %v6398, %v6558
    %6560 = vmatmul.f32.gmra.mxu0 %v328
    %v6561 = vpop.f32.mrf.mxu0
    %v6562 = vadd.f32 %v6401, %v6561
    %6563 = vmatmul.f32.gmra.mxu0 %v334
    %v6564 = vpop.f32.mrf.mxu0
    %v6565 = vadd.f32 %v6404, %v6564
    %6566 = vmatmul.f32.gmra.mxu0 %v340
    %v6567 = vpop.f32.mrf.mxu0
    %v6568 = vadd.f32 %v6407, %v6567
    %6569 = vmatmul.f32.gmra.mxu0 %v346
    %v6570 = vpop.f32.mrf.mxu0
    %v6571 = vadd.f32 %v6410, %v6570
    %6572 = vdwg.mxu0
    %6573 = vmatpush.msra.mxu0 %v923
    %6574 = vmatpush.msra.mxu0 %v917
    %6575 = vmatpush.msra.mxu0 %v911
    %6576 = vmatpush.msra.mxu0 %v905
    %6577 = vmatpush.msra.mxu0 %v899
    %6578 = vmatpush.msra.mxu0 %v893
    %6579 = vmatpush.msra.mxu0 %v887
    %6580 = vmatpush.msra.mxu0 %v881
    %6581 = vmatpush.msra.mxu0 %v875
    %6582 = vmatpush.msra.mxu0 %v869
    %6583 = vmatpush.msra.mxu0 %v863
    %6584 = vmatpush.msra.mxu0 %v857
    %6585 = vmatpush.msra.mxu0 %v851
    %6586 = vmatpush.msra.mxu0 %v845
    %6587 = vmatpush.msra.mxu0 %v839
    %6588 = vmatpush.msra.mxu0 %v833
    %6589 = vmatmul.f32.gmra.mxu0 %v65
    %v6590 = vpop.f32.mrf.mxu0
    %v6591 = vadd.f32 %v6430, %v6590
    %6592 = vmatmul.f32.gmra.mxu0 %v71
    %v6593 = vpop.f32.mrf.mxu0
    %v6594 = vadd.f32 %v6433, %v6593
    %6595 = vmatmul.f32.gmra.mxu0 %v77
    %v6596 = vpop.f32.mrf.mxu0
    %v6597 = vadd.f32 %v6436, %v6596
    %6598 = vmatmul.f32.gmra.mxu0 %v83
    %v6599 = vpop.f32.mrf.mxu0
    %v6600 = vadd.f32 %v6439, %v6599
    %6601 = vmatmul.f32.gmra.mxu0 %v89
    %v6602 = vpop.f32.mrf.mxu0
    %v6603 = vadd.f32 %v6442, %v6602
    %6604 = vmatmul.f32.gmra.mxu0 %v95
    %v6605 = vpop.f32.mrf.mxu0
    %v6606 = vadd.f32 %v6445, %v6605
    %6607 = vmatmul.f32.gmra.mxu0 %v101
    %v6608 = vpop.f32.mrf.mxu0
    %v6609 = vadd.f32 %v6448, %v6608
    %6610 = vmatmul.f32.gmra.mxu0 %v107
    %v6611 = vpop.f32.mrf.mxu0
    %v6612 = vadd.f32 %v6451, %v6611
    %6613 = vmatmul.f32.gmra.mxu0 %v113
    %v6614 = vpop.f32.mrf.mxu0
    %v6615 = vadd.f32 %v6454, %v6614
    %6616 = vmatmul.f32.gmra.mxu0 %v119
    %v6617 = vpop.f32.mrf.mxu0
    %v6618 = vadd.f32 %v6457, %v6617
    %6619 = vmatmul.f32.gmra.mxu0 %v125
    %v6620 = vpop.f32.mrf.mxu0
    %v6621 = vadd.f32 %v6460, %v6620
    %6622 = vmatmul.f32.gmra.mxu0 %v131
    %v6623 = vpop.f32.mrf.mxu0
    %v6624 = vadd.f32 %v6463, %v6623
    %6625 = vmatmul.f32.gmra.mxu0 %v137
    %v6626 = vpop.f32.mrf.mxu0
    %v6627 = vadd.f32 %v6466, %v6626
    %6628 = vmatmul.f32.gmra.mxu0 %v143
    %v6629 = vpop.f32.mrf.mxu0
    %v6630 = vadd.f32 %v6469, %v6629
    %6631 = vmatmul.f32.gmra.mxu0 %v149
    %v6632 = vpop.f32.mrf.mxu0
    %v6633 = vadd.f32 %v6472, %v6632
    %6634 = vmatmul.f32.gmra.mxu0 %v155
    %v6635 = vpop.f32.mrf.mxu0
    %v6636 = vadd.f32 %v6475, %v6635
    %6637 = vmatmul.f32.gmra.mxu0 %v161
    %v6638 = vpop.f32.mrf.mxu0
    %v6639 = vadd.f32 %v6478, %v6638
    %6640 = vmatmul.f32.gmra.mxu0 %v167
    %v6641 = vpop.f32.mrf.mxu0
    %v6642 = vadd.f32 %v6481, %v6641
    %6643 = vmatmul.f32.gmra.mxu0 %v173
    %v6644 = vpop.f32.mrf.mxu0
    %v6645 = vadd.f32 %v6484, %v6644
    %6646 = vmatmul.f32.gmra.mxu0 %v179
    %v6647 = vpop.f32.mrf.mxu0
    %v6648 = vadd.f32 %v6487, %v6647
    %6649 = vmatmul.f32.gmra.mxu0 %v185
    %v6650 = vpop.f32.mrf.mxu0
    %v6651 = vadd.f32 %v6490, %v6650
    %6652 = vmatmul.f32.gmra.mxu0 %v191
    %v6653 = vpop.f32.mrf.mxu0
    %v6654 = vadd.f32 %v6493, %v6653
    %6655 = vmatmul.f32.gmra.mxu0 %v197
    %v6656 = vpop.f32.mrf.mxu0
    %v6657 = vadd.f32 %v6496, %v6656
    %6658 = vmatmul.f32.gmra.mxu0 %v203
    %v6659 = vpop.f32.mrf.mxu0
    %v6660 = vadd.f32 %v6499, %v6659
    %6661 = vmatmul.f32.gmra.mxu0 %v209
    %v6662 = vpop.f32.mrf.mxu0
    %v6663 = vadd.f32 %v6502, %v6662
    %6664 = vmatmul.f32.gmra.mxu0 %v215
    %v6665 = vpop.f32.mrf.mxu0
    %v6666 = vadd.f32 %v6505, %v6665
    %6667 = vmatmul.f32.gmra.mxu0 %v221
    %v6668 = vpop.f32.mrf.mxu0
    %v6669 = vadd.f32 %v6508, %v6668
    %6670 = vmatmul.f32.gmra.mxu0 %v227
    %v6671 = vpop.f32.mrf.mxu0
    %v6672 = vadd.f32 %v6511, %v6671
    %6673 = vmatmul.f32.gmra.mxu0 %v233
    %v6674 = vpop.f32.mrf.mxu0
    %v6675 = vadd.f32 %v6514, %v6674
    %6676 = vmatmul.f32.gmra.mxu0 %v239
    %v6677 = vpop.f32.mrf.mxu0
    %v6678 = vadd.f32 %v6517, %v6677
    %6679 = vmatmul.f32.gmra.mxu0 %v245
    %v6680 = vpop.f32.mrf.mxu0
    %v6681 = vadd.f32 %v6520, %v6680
    %6682 = vmatmul.f32.gmra.mxu0 %v251
    %v6683 = vpop.f32.mrf.mxu0
    %v6684 = vadd.f32 %v6523, %v6683
    %6685 = vmatmul.f32.gmra.mxu0 %v257
    %v6686 = vpop.f32.mrf.mxu0
    %v6687 = vadd.f32 %v6526, %v6686
    %6688 = vmatmul.f32.gmra.mxu0 %v263
    %v6689 = vpop.f32.mrf.mxu0
    %v6690 = vadd.f32 %v6529, %v6689
    %6691 = vmatmul.f32.gmra.mxu0 %v269
    %v6692 = vpop.f32.mrf.mxu0
    %v6693 = vadd.f32 %v6532, %v6692
    %6694 = vmatmul.f32.gmra.mxu0 %v275
    %v6695 = vpop.f32.mrf.mxu0
    %v6696 = vadd.f32 %v6535, %v6695
    %6697 = vmatmul.f32.gmra.mxu0 %v281
    %v6698 = vpop.f32.mrf.mxu0
    %v6699 = vadd.f32 %v6538, %v6698
    %6700 = vmatmul.f32.gmra.mxu0 %v287
    %v6701 = vpop.f32.mrf.mxu0
    %v6702 = vadd.f32 %v6541, %v6701
    %6703 = vmatmul.f32.gmra.mxu0 %v293
    %v6704 = vpop.f32.mrf.mxu0
    %v6705 = vadd.f32 %v6544, %v6704
    %6706 = vmatmul.f32.gmra.mxu0 %v299
    %v6707 = vpop.f32.mrf.mxu0
    %v6708 = vadd.f32 %v6547, %v6707
    %6709 = vmatmul.f32.gmra.mxu0 %v305
    %v6710 = vpop.f32.mrf.mxu0
    %v6711 = vadd.f32 %v6550, %v6710
    %6712 = vmatmul.f32.gmra.mxu0 %v311
    %v6713 = vpop.f32.mrf.mxu0
    %v6714 = vadd.f32 %v6553, %v6713
    %6715 = vmatmul.f32.gmra.mxu0 %v317
    %v6716 = vpop.f32.mrf.mxu0
    %v6717 = vadd.f32 %v6556, %v6716
    %6718 = vmatmul.f32.gmra.mxu0 %v323
    %v6719 = vpop.f32.mrf.mxu0
    %v6720 = vadd.f32 %v6559, %v6719
    %6721 = vmatmul.f32.gmra.mxu0 %v329
    %v6722 = vpop.f32.mrf.mxu0
    %v6723 = vadd.f32 %v6562, %v6722
    %6724 = vmatmul.f32.gmra.mxu0 %v335
    %v6725 = vpop.f32.mrf.mxu0
    %v6726 = vadd.f32 %v6565, %v6725
    %6727 = vmatmul.f32.gmra.mxu0 %v341
    %v6728 = vpop.f32.mrf.mxu0
    %v6729 = vadd.f32 %v6568, %v6728
    %6730 = vmatmul.f32.gmra.mxu0 %v347
    %v6731 = vpop.f32.mrf.mxu0
    %v6732 = vadd.f32 %v6571, %v6731
    %6733 = vdwg.mxu0
    %6734 = vst [vmem:[#allocation8] sm:$0xff] %v1761
    %6735 = vst [vmem:[#allocation8 + $0x8] sm:$0xff] %v2727
    %6736 = vst [vmem:[#allocation8 + $0x10] sm:$0xff] %v3693
    %6737 = vst [vmem:[#allocation8 + $0x18] sm:$0xff] %v4659
    %6738 = vst [vmem:[#allocation8 + $0x20] sm:$0xff] %v5625
    %6739 = vst [vmem:[#allocation8 + $0x28] sm:$0xff] %v6591
    %6740 = vst [vmem:[#allocation8 + $0x30] sm:$0xff] %v1764
    %6741 = vst [vmem:[#allocation8 + $0x38] sm:$0xff] %v2730
    %6742 = vst [vmem:[#allocation8 + $0x40] sm:$0xff] %v3696
    %6743 = vst [vmem:[#allocation8 + $0x48] sm:$0xff] %v4662
    %6744 = vst [vmem:[#allocation8 + $0x50] sm:$0xff] %v5628
    %6745 = vst [vmem:[#allocation8 + $0x58] sm:$0xff] %v6594
    %6746 = vst [vmem:[#allocation8 + $0x60] sm:$0xff] %v1767
    %6747 = vst [vmem:[#allocation8 + $0x68] sm:$0xff] %v2733
    %6748 = vst [vmem:[#allocation8 + $0x70] sm:$0xff] %v3699
    %6749 = vst [vmem:[#allocation8 + $0x78] sm:$0xff] %v4665
    %6750 = vst [vmem:[#allocation8 + $0x80] sm:$0xff] %v5631
    %6751 = vst [vmem:[#allocation8 + $0x88] sm:$0xff] %v6597
    %6752 = vst [vmem:[#allocation8 + $0x90] sm:$0xff] %v1770
    %6753 = vst [vmem:[#allocation8 + $0x98] sm:$0xff] %v2736
    %6754 = vst [vmem:[#allocation8 + $0xa0] sm:$0xff] %v3702
    %6755 = vst [vmem:[#allocation8 + $0xa8] sm:$0xff] %v4668
    %6756 = vst [vmem:[#allocation8 + $0xb0] sm:$0xff] %v5634
    %6757 = vst [vmem:[#allocation8 + $0xb8] sm:$0xff] %v6600
    %6758 = vst [vmem:[#allocation8 + $0xc0] sm:$0xff] %v1773
    %6759 = vst [vmem:[#allocation8 + $0xc8] sm:$0xff] %v2739
    %6760 = vst [vmem:[#allocation8 + $0xd0] sm:$0xff] %v3705
    %6761 = vst [vmem:[#allocation8 + $0xd8] sm:$0xff] %v4671
    %6762 = vst [vmem:[#allocation8 + $0xe0] sm:$0xff] %v5637
    %6763 = vst [vmem:[#allocation8 + $0xe8] sm:$0xff] %v6603
    %6764 = vst [vmem:[#allocation8 + $0xf0] sm:$0xff] %v1776
    %6765 = vst [vmem:[#allocation8 + $0xf8] sm:$0xff] %v2742
    %6766 = vst [vmem:[#allocation8 + $0x100] sm:$0xff] %v3708
    %6767 = vst [vmem:[#allocation8 + $0x108] sm:$0xff] %v4674
    %6768 = vst [vmem:[#allocation8 + $0x110] sm:$0xff] %v5640
    %6769 = vst [vmem:[#allocation8 + $0x118] sm:$0xff] %v6606
    %6770 = vst [vmem:[#allocation8 + $0x120] sm:$0xff] %v1779
    %6771 = vst [vmem:[#allocation8 + $0x128] sm:$0xff] %v2745
    %6772 = vst [vmem:[#allocation8 + $0x130] sm:$0xff] %v3711
    %6773 = vst [vmem:[#allocation8 + $0x138] sm:$0xff] %v4677
    %6774 = vst [vmem:[#allocation8 + $0x140] sm:$0xff] %v5643
    %6775 = vst [vmem:[#allocation8 + $0x148] sm:$0xff] %v6609
    %6776 = vst [vmem:[#allocation8 + $0x150] sm:$0xff] %v1782
    %6777 = vst [vmem:[#allocation8 + $0x158] sm:$0xff] %v2748
    %6778 = vst [vmem:[#allocation8 + $0x160] sm:$0xff] %v3714
    %6779 = vst [vmem:[#allocation8 + $0x168] sm:$0xff] %v4680
    %6780 = vst [vmem:[#allocation8 + $0x170] sm:$0xff] %v5646
    %6781 = vst [vmem:[#allocation8 + $0x178] sm:$0xff] %v6612
    %6782 = vst [vmem:[#allocation8 + $0x180] sm:$0xff] %v1785
    %6783 = vst [vmem:[#allocation8 + $0x188] sm:$0xff] %v2751
    %6784 = vst [vmem:[#allocation8 + $0x190] sm:$0xff] %v3717
    %6785 = vst [vmem:[#allocation8 + $0x198] sm:$0xff] %v4683
    %6786 = vst [vmem:[#allocation8 + $0x1a0] sm:$0xff] %v5649
    %6787 = vst [vmem:[#allocation8 + $0x1a8] sm:$0xff] %v6615
    %6788 = vst [vmem:[#allocation8 + $0x1b0] sm:$0xff] %v1788
    %6789 = vst [vmem:[#allocation8 + $0x1b8] sm:$0xff] %v2754
    %6790 = vst [vmem:[#allocation8 + $0x1c0] sm:$0xff] %v3720
    %6791 = vst [vmem:[#allocation8 + $0x1c8] sm:$0xff] %v4686
    %6792 = vst [vmem:[#allocation8 + $0x1d0] sm:$0xff] %v5652
    %6793 = vst [vmem:[#allocation8 + $0x1d8] sm:$0xff] %v6618
    %6794 = vst [vmem:[#allocation8 + $0x1e0] sm:$0xff] %v1791
    %6795 = vst [vmem:[#allocation8 + $0x1e8] sm:$0xff] %v2757
    %6796 = vst [vmem:[#allocation8 + $0x1f0] sm:$0xff] %v3723
    %6797 = vst [vmem:[#allocation8 + $0x1f8] sm:$0xff] %v4689
    %6798 = vst [vmem:[#allocation8 + $0x200] sm:$0xff] %v5655
    %6799 = vst [vmem:[#allocation8 + $0x208] sm:$0xff] %v6621
    %6800 = vst [vmem:[#allocation8 + $0x210] sm:$0xff] %v1794
    %6801 = vst [vmem:[#allocation8 + $0x218] sm:$0xff] %v2760
    %6802 = vst [vmem:[#allocation8 + $0x220] sm:$0xff] %v3726
    %6803 = vst [vmem:[#allocation8 + $0x228] sm:$0xff] %v4692
    %6804 = vst [vmem:[#allocation8 + $0x230] sm:$0xff] %v5658
    %6805 = vst [vmem:[#allocation8 + $0x238] sm:$0xff] %v6624
    %6806 = vst [vmem:[#allocation8 + $0x240] sm:$0xff] %v1797
    %6807 = vst [vmem:[#allocation8 + $0x248] sm:$0xff] %v2763
    %6808 = vst [vmem:[#allocation8 + $0x250] sm:$0xff] %v3729
    %6809 = vst [vmem:[#allocation8 + $0x258] sm:$0xff] %v4695
    %6810 = vst [vmem:[#allocation8 + $0x260] sm:$0xff] %v5661
    %6811 = vst [vmem:[#allocation8 + $0x268] sm:$0xff] %v6627
    %6812 = vst [vmem:[#allocation8 + $0x270] sm:$0xff] %v1800
    %6813 = vst [vmem:[#allocation8 + $0x278] sm:$0xff] %v2766
    %6814 = vst [vmem:[#allocation8 + $0x280] sm:$0xff] %v3732
    %6815 = vst [vmem:[#allocation8 + $0x288] sm:$0xff] %v4698
    %6816 = vst [vmem:[#allocation8 + $0x290] sm:$0xff] %v5664
    %6817 = vst [vmem:[#allocation8 + $0x298] sm:$0xff] %v6630
    %6818 = vst [vmem:[#allocation8 + $0x2a0] sm:$0xff] %v1803
    %6819 = vst [vmem:[#allocation8 + $0x2a8] sm:$0xff] %v2769
    %6820 = vst [vmem:[#allocation8 + $0x2b0] sm:$0xff] %v3735
    %6821 = vst [vmem:[#allocation8 + $0x2b8] sm:$0xff] %v4701
    %6822 = vst [vmem:[#allocation8 + $0x2c0] sm:$0xff] %v5667
    %6823 = vst [vmem:[#allocation8 + $0x2c8] sm:$0xff] %v6633
    %6824 = vst [vmem:[#allocation8 + $0x2d0] sm:$0xff] %v1806
    %6825 = vst [vmem:[#allocation8 + $0x2d8] sm:$0xff] %v2772
    %6826 = vst [vmem:[#allocation8 + $0x2e0] sm:$0xff] %v3738
    %6827 = vst [vmem:[#allocation8 + $0x2e8] sm:$0xff] %v4704
    %6828 = vst [vmem:[#allocation8 + $0x2f0] sm:$0xff] %v5670
    %6829 = vst [vmem:[#allocation8 + $0x2f8] sm:$0xff] %v6636
    %6830 = vst [vmem:[#allocation8 + $0x300] sm:$0xff] %v1809
    %6831 = vst [vmem:[#allocation8 + $0x308] sm:$0xff] %v2775
    %6832 = vst [vmem:[#allocation8 + $0x310] sm:$0xff] %v3741
    %6833 = vst [vmem:[#allocation8 + $0x318] sm:$0xff] %v4707
    %6834 = vst [vmem:[#allocation8 + $0x320] sm:$0xff] %v5673
    %6835 = vst [vmem:[#allocation8 + $0x328] sm:$0xff] %v6639
    %6836 = vst [vmem:[#allocation8 + $0x330] sm:$0xff] %v1812
    %6837 = vst [vmem:[#allocation8 + $0x338] sm:$0xff] %v2778
    %6838 = vst [vmem:[#allocation8 + $0x340] sm:$0xff] %v3744
    %6839 = vst [vmem:[#allocation8 + $0x348] sm:$0xff] %v4710
    %6840 = vst [vmem:[#allocation8 + $0x350] sm:$0xff] %v5676
    %6841 = vst [vmem:[#allocation8 + $0x358] sm:$0xff] %v6642
    %6842 = vst [vmem:[#allocation8 + $0x360] sm:$0xff] %v1815
    %6843 = vst [vmem:[#allocation8 + $0x368] sm:$0xff] %v2781
    %6844 = vst [vmem:[#allocation8 + $0x370] sm:$0xff] %v3747
    %6845 = vst [vmem:[#allocation8 + $0x378] sm:$0xff] %v4713
    %6846 = vst [vmem:[#allocation8 + $0x380] sm:$0xff] %v5679
    %6847 = vst [vmem:[#allocation8 + $0x388] sm:$0xff] %v6645
    %6848 = vst [vmem:[#allocation8 + $0x390] sm:$0xff] %v1818
    %6849 = vst [vmem:[#allocation8 + $0x398] sm:$0xff] %v2784
    %6850 = vst [vmem:[#allocation8 + $0x3a0] sm:$0xff] %v3750
    %6851 = vst [vmem:[#allocation8 + $0x3a8] sm:$0xff] %v4716
    %6852 = vst [vmem:[#allocation8 + $0x3b0] sm:$0xff] %v5682
    %6853 = vst [vmem:[#allocation8 + $0x3b8] sm:$0xff] %v6648
    %6854 = vst [vmem:[#allocation8 + $0x3c0] sm:$0xff] %v1821
    %6855 = vst [vmem:[#allocation8 + $0x3c8] sm:$0xff] %v2787
    %6856 = vst [vmem:[#allocation8 + $0x3d0] sm:$0xff] %v3753
    %6857 = vst [vmem:[#allocation8 + $0x3d8] sm:$0xff] %v4719
    %6858 = vst [vmem:[#allocation8 + $0x3e0] sm:$0xff] %v5685
    %6859 = vst [vmem:[#allocation8 + $0x3e8] sm:$0xff] %v6651
    %6860 = vst [vmem:[#allocation8 + $0x3f0] sm:$0xff] %v1824
    %6861 = vst [vmem:[#allocation8 + $0x3f8] sm:$0xff] %v2790
    %6862 = vst [vmem:[#allocation8 + $0x400] sm:$0xff] %v3756
    %6863 = vst [vmem:[#allocation8 + $0x408] sm:$0xff] %v4722
    %6864 = vst [vmem:[#allocation8 + $0x410] sm:$0xff] %v5688
    %6865 = vst [vmem:[#allocation8 + $0x418] sm:$0xff] %v6654
    %6866 = vst [vmem:[#allocation8 + $0x420] sm:$0xff] %v1827
    %6867 = vst [vmem:[#allocation8 + $0x428] sm:$0xff] %v2793
    %6868 = vst [vmem:[#allocation8 + $0x430] sm:$0xff] %v3759
    %6869 = vst [vmem:[#allocation8 + $0x438] sm:$0xff] %v4725
    %6870 = vst [vmem:[#allocation8 + $0x440] sm:$0xff] %v5691
    %6871 = vst [vmem:[#allocation8 + $0x448] sm:$0xff] %v6657
    %6872 = vst [vmem:[#allocation8 + $0x450] sm:$0xff] %v1830
    %6873 = vst [vmem:[#allocation8 + $0x458] sm:$0xff] %v2796
    %6874 = vst [vmem:[#allocation8 + $0x460] sm:$0xff] %v3762
    %6875 = vst [vmem:[#allocation8 + $0x468] sm:$0xff] %v4728
    %6876 = vst [vmem:[#allocation8 + $0x470] sm:$0xff] %v5694
    %6877 = vst [vmem:[#allocation8 + $0x478] sm:$0xff] %v6660
    %6878 = vst [vmem:[#allocation8 + $0x480] sm:$0xff] %v1833
    %6879 = vst [vmem:[#allocation8 + $0x488] sm:$0xff] %v2799
    %6880 = vst [vmem:[#allocation8 + $0x490] sm:$0xff] %v3765
    %6881 = vst [vmem:[#allocation8 + $0x498] sm:$0xff] %v4731
    %6882 = vst [vmem:[#allocation8 + $0x4a0] sm:$0xff] %v5697
    %6883 = vst [vmem:[#allocation8 + $0x4a8] sm:$0xff] %v6663
    %6884 = vst [vmem:[#allocation8 + $0x4b0] sm:$0xff] %v1836
    %6885 = vst [vmem:[#allocation8 + $0x4b8] sm:$0xff] %v2802
    %6886 = vst [vmem:[#allocation8 + $0x4c0] sm:$0xff] %v3768
    %6887 = vst [vmem:[#allocation8 + $0x4c8] sm:$0xff] %v4734
    %6888 = vst [vmem:[#allocation8 + $0x4d0] sm:$0xff] %v5700
    %6889 = vst [vmem:[#allocation8 + $0x4d8] sm:$0xff] %v6666
    %6890 = vst [vmem:[#allocation8 + $0x4e0] sm:$0xff] %v1839
    %6891 = vst [vmem:[#allocation8 + $0x4e8] sm:$0xff] %v2805
    %6892 = vst [vmem:[#allocation8 + $0x4f0] sm:$0xff] %v3771
    %6893 = vst [vmem:[#allocation8 + $0x4f8] sm:$0xff] %v4737
    %6894 = vst [vmem:[#allocation8 + $0x500] sm:$0xff] %v5703
    %6895 = vst [vmem:[#allocation8 + $0x508] sm:$0xff] %v6669
    %6896 = vst [vmem:[#allocation8 + $0x510] sm:$0xff] %v1842
    %6897 = vst [vmem:[#allocation8 + $0x518] sm:$0xff] %v2808
    %6898 = vst [vmem:[#allocation8 + $0x520] sm:$0xff] %v3774
    %6899 = vst [vmem:[#allocation8 + $0x528] sm:$0xff] %v4740
    %6900 = vst [vmem:[#allocation8 + $0x530] sm:$0xff] %v5706
    %6901 = vst [vmem:[#allocation8 + $0x538] sm:$0xff] %v6672
    %6902 = vst [vmem:[#allocation8 + $0x540] sm:$0xff] %v1845
    %6903 = vst [vmem:[#allocation8 + $0x548] sm:$0xff] %v2811
    %6904 = vst [vmem:[#allocation8 + $0x550] sm:$0xff] %v3777
    %6905 = vst [vmem:[#allocation8 + $0x558] sm:$0xff] %v4743
    %6906 = vst [vmem:[#allocation8 + $0x560] sm:$0xff] %v5709
    %6907 = vst [vmem:[#allocation8 + $0x568] sm:$0xff] %v6675
    %6908 = vst [vmem:[#allocation8 + $0x570] sm:$0xff] %v1848
    %6909 = vst [vmem:[#allocation8 + $0x578] sm:$0xff] %v2814
    %6910 = vst [vmem:[#allocation8 + $0x580] sm:$0xff] %v3780
    %6911 = vst [vmem:[#allocation8 + $0x588] sm:$0xff] %v4746
    %6912 = vst [vmem:[#allocation8 + $0x590] sm:$0xff] %v5712
    %6913 = vst [vmem:[#allocation8 + $0x598] sm:$0xff] %v6678
    %6914 = vst [vmem:[#allocation8 + $0x5a0] sm:$0xff] %v1851
    %6915 = vst [vmem:[#allocation8 + $0x5a8] sm:$0xff] %v2817
    %6916 = vst [vmem:[#allocation8 + $0x5b0] sm:$0xff] %v3783
    %6917 = vst [vmem:[#allocation8 + $0x5b8] sm:$0xff] %v4749
    %6918 = vst [vmem:[#allocation8 + $0x5c0] sm:$0xff] %v5715
    %6919 = vst [vmem:[#allocation8 + $0x5c8] sm:$0xff] %v6681
    %6920 = vst [vmem:[#allocation8 + $0x5d0] sm:$0xff] %v1854
    %6921 = vst [vmem:[#allocation8 + $0x5d8] sm:$0xff] %v2820
    %6922 = vst [vmem:[#allocation8 + $0x5e0] sm:$0xff] %v3786
    %6923 = vst [vmem:[#allocation8 + $0x5e8] sm:$0xff] %v4752
    %6924 = vst [vmem:[#allocation8 + $0x5f0] sm:$0xff] %v5718
    %6925 = vst [vmem:[#allocation8 + $0x5f8] sm:$0xff] %v6684
    %6926 = vst [vmem:[#allocation8 + $0x600] sm:$0xff] %v1857
    %6927 = vst [vmem:[#allocation8 + $0x608] sm:$0xff] %v2823
    %6928 = vst [vmem:[#allocation8 + $0x610] sm:$0xff] %v3789
    %6929 = vst [vmem:[#allocation8 + $0x618] sm:$0xff] %v4755
    %6930 = vst [vmem:[#allocation8 + $0x620] sm:$0xff] %v5721
    %6931 = vst [vmem:[#allocation8 + $0x628] sm:$0xff] %v6687
    %6932 = vst [vmem:[#allocation8 + $0x630] sm:$0xff] %v1860
    %6933 = vst [vmem:[#allocation8 + $0x638] sm:$0xff] %v2826
    %6934 = vst [vmem:[#allocation8 + $0x640] sm:$0xff] %v3792
    %6935 = vst [vmem:[#allocation8 + $0x648] sm:$0xff] %v4758
    %6936 = vst [vmem:[#allocation8 + $0x650] sm:$0xff] %v5724
    %6937 = vst [vmem:[#allocation8 + $0x658] sm:$0xff] %v6690
    %6938 = vst [vmem:[#allocation8 + $0x660] sm:$0xff] %v1863
    %6939 = vst [vmem:[#allocation8 + $0x668] sm:$0xff] %v2829
    %6940 = vst [vmem:[#allocation8 + $0x670] sm:$0xff] %v3795
    %6941 = vst [vmem:[#allocation8 + $0x678] sm:$0xff] %v4761
    %6942 = vst [vmem:[#allocation8 + $0x680] sm:$0xff] %v5727
    %6943 = vst [vmem:[#allocation8 + $0x688] sm:$0xff] %v6693
    %6944 = vst [vmem:[#allocation8 + $0x690] sm:$0xff] %v1866
    %6945 = vst [vmem:[#allocation8 + $0x698] sm:$0xff] %v2832
    %6946 = vst [vmem:[#allocation8 + $0x6a0] sm:$0xff] %v3798
    %6947 = vst [vmem:[#allocation8 + $0x6a8] sm:$0xff] %v4764
    %6948 = vst [vmem:[#allocation8 + $0x6b0] sm:$0xff] %v5730
    %6949 = vst [vmem:[#allocation8 + $0x6b8] sm:$0xff] %v6696
    %6950 = vst [vmem:[#allocation8 + $0x6c0] sm:$0xff] %v1869
    %6951 = vst [vmem:[#allocation8 + $0x6c8] sm:$0xff] %v2835
    %6952 = vst [vmem:[#allocation8 + $0x6d0] sm:$0xff] %v3801
    %6953 = vst [vmem:[#allocation8 + $0x6d8] sm:$0xff] %v4767
    %6954 = vst [vmem:[#allocation8 + $0x6e0] sm:$0xff] %v5733
    %6955 = vst [vmem:[#allocation8 + $0x6e8] sm:$0xff] %v6699
    %6956 = vst [vmem:[#allocation8 + $0x6f0] sm:$0xff] %v1872
    %6957 = vst [vmem:[#allocation8 + $0x6f8] sm:$0xff] %v2838
    %6958 = vst [vmem:[#allocation8 + $0x700] sm:$0xff] %v3804
    %6959 = vst [vmem:[#allocation8 + $0x708] sm:$0xff] %v4770
    %6960 = vst [vmem:[#allocation8 + $0x710] sm:$0xff] %v5736
    %6961 = vst [vmem:[#allocation8 + $0x718] sm:$0xff] %v6702
    %6962 = vst [vmem:[#allocation8 + $0x720] sm:$0xff] %v1875
    %6963 = vst [vmem:[#allocation8 + $0x728] sm:$0xff] %v2841
    %6964 = vst [vmem:[#allocation8 + $0x730] sm:$0xff] %v3807
    %6965 = vst [vmem:[#allocation8 + $0x738] sm:$0xff] %v4773
    %6966 = vst [vmem:[#allocation8 + $0x740] sm:$0xff] %v5739
    %6967 = vst [vmem:[#allocation8 + $0x748] sm:$0xff] %v6705
    %6968 = vst [vmem:[#allocation8 + $0x750] sm:$0xff] %v1878
    %6969 = vst [vmem:[#allocation8 + $0x758] sm:$0xff] %v2844
    %6970 = vst [vmem:[#allocation8 + $0x760] sm:$0xff] %v3810
    %6971 = vst [vmem:[#allocation8 + $0x768] sm:$0xff] %v4776
    %6972 = vst [vmem:[#allocation8 + $0x770] sm:$0xff] %v5742
    %6973 = vst [vmem:[#allocation8 + $0x778] sm:$0xff] %v6708
    %6974 = vst [vmem:[#allocation8 + $0x780] sm:$0xff] %v1881
    %6975 = vst [vmem:[#allocation8 + $0x788] sm:$0xff] %v2847
    %6976 = vst [vmem:[#allocation8 + $0x790] sm:$0xff] %v3813
    %6977 = vst [vmem:[#allocation8 + $0x798] sm:$0xff] %v4779
    %6978 = vst [vmem:[#allocation8 + $0x7a0] sm:$0xff] %v5745
    %6979 = vst [vmem:[#allocation8 + $0x7a8] sm:$0xff] %v6711
    %6980 = vst [vmem:[#allocation8 + $0x7b0] sm:$0xff] %v1884
    %6981 = vst [vmem:[#allocation8 + $0x7b8] sm:$0xff] %v2850
    %6982 = vst [vmem:[#allocation8 + $0x7c0] sm:$0xff] %v3816
    %6983 = vst [vmem:[#allocation8 + $0x7c8] sm:$0xff] %v4782
    %6984 = vst [vmem:[#allocation8 + $0x7d0] sm:$0xff] %v5748
    %6985 = vst [vmem:[#allocation8 + $0x7d8] sm:$0xff] %v6714
    %6986 = vst [vmem:[#allocation8 + $0x7e0] sm:$0xff] %v1887
    %6987 = vst [vmem:[#allocation8 + $0x7e8] sm:$0xff] %v2853
    %6988 = vst [vmem:[#allocation8 + $0x7f0] sm:$0xff] %v3819
    %6989 = vst [vmem:[#allocation8 + $0x7f8] sm:$0xff] %v4785
    %6990 = vst [vmem:[#allocation8 + $0x800] sm:$0xff] %v5751
    %6991 = vst [vmem:[#allocation8 + $0x808] sm:$0xff] %v6717
    %6992 = vst [vmem:[#allocation8 + $0x810] sm:$0xff] %v1890
    %6993 = vst [vmem:[#allocation8 + $0x818] sm:$0xff] %v2856
    %6994 = vst [vmem:[#allocation8 + $0x820] sm:$0xff] %v3822
    %6995 = vst [vmem:[#allocation8 + $0x828] sm:$0xff] %v4788
    %6996 = vst [vmem:[#allocation8 + $0x830] sm:$0xff] %v5754
    %6997 = vst [vmem:[#allocation8 + $0x838] sm:$0xff] %v6720
    %6998 = vst [vmem:[#allocation8 + $0x840] sm:$0xff] %v1893
    %6999 = vst [vmem:[#allocation8 + $0x848] sm:$0xff] %v2859
    %7000 = vst [vmem:[#allocation8 + $0x850] sm:$0xff] %v3825
    %7001 = vst [vmem:[#allocation8 + $0x858] sm:$0xff] %v4791
    %7002 = vst [vmem:[#allocation8 + $0x860] sm:$0xff] %v5757
    %7003 = vst [vmem:[#allocation8 + $0x868] sm:$0xff] %v6723
    %7004 = vst [vmem:[#allocation8 + $0x870] sm:$0xff] %v1896
    %7005 = vst [vmem:[#allocation8 + $0x878] sm:$0xff] %v2862
    %7006 = vst [vmem:[#allocation8 + $0x880] sm:$0xff] %v3828
    %7007 = vst [vmem:[#allocation8 + $0x888] sm:$0xff] %v4794
    %7008 = vst [vmem:[#allocation8 + $0x890] sm:$0xff] %v5760
    %7009 = vst [vmem:[#allocation8 + $0x898] sm:$0xff] %v6726
    %7010 = vst [vmem:[#allocation8 + $0x8a0] sm:$0xff] %v1899
    %7011 = vst [vmem:[#allocation8 + $0x8a8] sm:$0xff] %v2865
    %7012 = vst [vmem:[#allocation8 + $0x8b0] sm:$0xff] %v3831
    %7013 = vst [vmem:[#allocation8 + $0x8b8] sm:$0xff] %v4797
    %7014 = vst [vmem:[#allocation8 + $0x8c0] sm:$0xff] %v5763
    %7015 = vst [vmem:[#allocation8 + $0x8c8] sm:$0xff] %v6729
    %7016 = vst [vmem:[#allocation8 + $0x8d0] sm:$0xff] %v1902
    %7017 = vst [vmem:[#allocation8 + $0x8d8] sm:$0xff] %v2868
    %7018 = vst [vmem:[#allocation8 + $0x8e0] sm:$0xff] %v3834
    %7019 = vst [vmem:[#allocation8 + $0x8e8] sm:$0xff] %v4800
    %7020 = vst [vmem:[#allocation8 + $0x8f0] sm:$0xff] %v5766
    %7021 = vst [vmem:[#allocation8 + $0x8f8] sm:$0xff] %v6732
    // Predicated region
    $region26: #{tpu_custom_call.1} parent=1 // pred_check
      _
    $region27: #{tpu_custom_call.1} parent=1 // pred_check_branch
      %7023 = sbr.rel (0) target = $region29
    $region28: #{tpu_custom_call.1} parent=1 // pred_region
      %7025 = vsyncadd [#allocation4], 0
      %s7026 = sshll.u32 [#allocation8], 4
      %s7027 = int_to_ptr.vmem [resolvable:$true] %s7026
      %s7028 = sshll.u32 %s3, 4
      %s7029 = int_to_ptr.hbm [resolvable:$true] %s7028
      %7034 = dma.vmem_to_hbm [thread:$0]  %s7027, 36864, %s7029, [#allocation4], 768, 768, 48
    $region29: #{tpu_custom_call.1} parent=1 // pred_fallthru
      _
    // Predicated region
    $region30: #{tpu_custom_call.1} parent=1 // pred_check
      _
    $region31: #{tpu_custom_call.1} parent=1 // pred_check_branch
      %7036 = sbr.rel (0) target = $region33
    $region32: #{tpu_custom_call.1} parent=1 // pred_region
      %7038 = dma.done [#allocation4], 36864
    $region33: #{tpu_custom_call.1} parent=1 // pred_fallthru
      _
    %7039 = vsyncpa [#allocation3], 1
    %7040 = vsyncpa [#allocation6], 1
    %7041 = vsyncpa [#allocation4], 1

</llo_original>
